<compile_context>
chip_gen: v5e
topology: v5e:2x2
jax: 0.10.0
libtpu: 0.0.40
codegen_flags: <defaults>
</compile_context>

<pallas_src>
import jax
import jax.numpy as jnp
from jax.experimental import pallas as pl
from jax.experimental.pallas import tpu as pltpu

EPS = 1e-5
# Whole-batch fused path is used when its VMEM footprint stays under this budget.
# Sized conservatively against v7x (64 MiB physical / 32 MiB default scoped VMEM);
# v5e / v6e have 128 MiB so this is safe on every generation.
_FUSED_VMEM_BUDGET = 20 * 1024 * 1024


def upsample_forward(x_nchw, conv_w, gamma, beta, *, force_two_pass=False):
    """Conv2d(3x3, pad=1, bias=False) -> BatchNorm2d(batch stats) -> PixelShuffle(2).

    x_nchw: (N, Cin, H, W); conv_w: (Cout, Cin, 3, 3); gamma/beta: (Cout,).
    Returns (N, Cout // 4, 2H, 2W) float32 (NCHW), matching the PyTorch module.
    """
    N, Cin, H, W = x_nchw.shape
    Cout = conv_w.shape[0]
    assert Cout % 4 == 0 and conv_w.shape[1] == Cin
    Cps = Cout // 4

    Hp, Wp = H + 2, W + 2
    Lv = H * Wp              # flattened conv-output plane (incl. 2 junk cols per row)
    Lf = Hp * Wp + 2         # flattened padded-input plane (+2 so all tap reads stay in-bounds)
    Lo = 4 * H * W           # flattened pixel-shuffled output plane per channel (lane-dense)
    offs = tuple(kh * Wp + kw for kh in range(3) for kw in range(3))
    count = float(N * H * W)

    # ---- PixelShuffle channel grouping folded into the weights (free, tiny) ----
    # permuted conv channel g*Cps + c  ==  original channel 4*c + g,  g = 2*di + dj,
    # so each sub-pixel group is a contiguous sublane slice inside the kernel.
    perm = jnp.arange(Cout).reshape(Cps, 4).T.reshape(-1)
    w_taps = jnp.transpose(conv_w.astype(jnp.float32)[perm], (2, 3, 0, 1)).reshape(9, Cout, Cin)
    gamma_p = gamma.astype(jnp.float32)[perm].reshape(Cout, 1)
    beta_p = beta.astype(jnp.float32)[perm].reshape(Cout, 1)
    x32 = x_nchw.astype(jnp.float32)

    # ------------------------------ in-kernel helpers ------------------------------
    def _conv_plane(x_img, w_ref, xpad_ref):
        """x_img: (Cin, H, W) value.  Returns the conv plane (Cout, Lv) in f32.

        Zero-padding happens here: rows are copied into a pre-zeroed flattened
        (Cin, Lf) VMEM scratch; each of the 9 taps is then a contiguous lane slice
        of that plane contracted with its (Cout, Cin) weight on the MXU.
        """
        xpad_ref[...] = jnp.zeros_like(xpad_ref)
        for i in range(H):
            s = (i + 1) * Wp + 1
            xpad_ref[:, s:s + W] = x_img[:, i, :]
        y = jnp.zeros((Cout, Lv), jnp.float32)
        for t in range(9):
            y = y + jnp.dot(w_ref[t], xpad_ref[:, offs[t]:offs[t] + Lv],
                            preferred_element_type=jnp.float32)
        return y

    def _interleave_mats():
        # E scatters lane j -> 2j, O scatters lane j -> 2j+1 (0/1 selection matrices).
        j = jax.lax.broadcasted_iota(jnp.int32, (W, 2 * W), 0)
        q = jax.lax.broadcasted_iota(jnp.int32, (W, 2 * W), 1)
        return (q == 2 * j).astype(jnp.float32), (q == 2 * j + 1).astype(jnp.float32)

    def _valid_mask():
        # lane p = i*Wp + j is a real output iff j < W (drops the 2 junk cols/row)
        col = jax.lax.broadcasted_iota(jnp.int32, (1, Lv), 1)
        return ((col % Wp) < W).astype(jnp.float32)

    def _store_pixel_shuffled(ybn, o_ref, n, even, odd):
        """ybn: normalized, channel-permuted conv plane (Cout, Lv).
        Writes o_ref[n] = (Cps, Lo) where lane q = (2i+di)*2W + 2j+dj (row-major
        over the final (2H, 2W) plane, so the wrapper reshape is free)."""
        for i in range(H):
            base = i * Wp
            a = [ybn[g * Cps:(g + 1) * Cps, base:base + W] for g in range(4)]
            top = (jnp.dot(a[0], even, preferred_element_type=jnp.float32)
                   + jnp.dot(a[1], odd, preferred_element_type=jnp.float32))
            bot = (jnp.dot(a[2], even, preferred_element_type=jnp.float32)
                   + jnp.dot(a[3], odd, preferred_element_type=jnp.float32))
            r0 = (2 * i) * (2 * W)
            o_ref[n, :, r0:r0 + 2 * W] = top
            o_ref[n, :, r0 + 2 * W:r0 + 4 * W] = bot

    # --------------------- fused single-pass kernel (batch fits) -------------------
    def fused_kernel(x_ref, w_ref, g_ref, b_ref, o_ref, xpad_ref, yslab_ref):
        mask = _valid_mask()
        ssum = jnp.zeros((Cout, 1), jnp.float32)
        ssq = jnp.zeros((Cout, 1), jnp.float32)
        for n in range(N):
            y = _conv_plane(x_ref[n], w_ref, xpad_ref)
            yslab_ref[n] = y
            ym = y * mask
            ssum = ssum + jnp.sum(ym, axis=1, keepdims=True)
            ssq = ssq + jnp.sum(ym * y, axis=1, keepdims=True)
        mean = ssum * (1.0 / count)
        var = jnp.maximum(ssq * (1.0 / count) - mean * mean, 0.0)
        scale = g_ref[...] * jax.lax.rsqrt(var + EPS)
        shift = b_ref[...] - mean * scale
        even, odd = _interleave_mats()
        for n in range(N):
            ybn = yslab_ref[n] * scale + shift
            _store_pixel_shuffled(ybn, o_ref, n, even, odd)

    def _run_fused():
        return pl.pallas_call(
            fused_kernel,
            out_shape=jax.ShapeDtypeStruct((N, Cps, Lo), jnp.float32),
            grid=(1,),
            in_specs=[
                pl.BlockSpec((N, Cin, H, W), lambda i: (0, 0, 0, 0)),
                pl.BlockSpec((9, Cout, Cin), lambda i: (0, 0, 0)),
                pl.BlockSpec((Cout, 1), lambda i: (0, 0)),
                pl.BlockSpec((Cout, 1), lambda i: (0, 0)),
            ],
            out_specs=pl.BlockSpec((N, Cps, Lo), lambda i: (0, 0, 0)),
            scratch_shapes=[pltpu.VMEM((Cin, Lf), jnp.float32),
                            pltpu.VMEM((N, Cout, Lv), jnp.float32)],
            compiler_params=pltpu.CompilerParams(dimension_semantics=("arbitrary",)),
        )(x32, w_taps, gamma_p, beta_p)

    # ------------------------ two-pass fallback (large shapes) ---------------------
    def stats_kernel(x_ref, w_ref, sum_ref, sq_ref, xpad_ref):
        @pl.when(pl.program_id(0) == 0)
        def _():
            sum_ref[...] = jnp.zeros_like(sum_ref)
            sq_ref[...] = jnp.zeros_like(sq_ref)
        y = _conv_plane(x_ref[0], w_ref, xpad_ref)
        ym = y * _valid_mask()
        sum_ref[...] += jnp.sum(ym, axis=1, keepdims=True)
        sq_ref[...] += jnp.sum(ym * y, axis=1, keepdims=True)

    def norm_kernel(x_ref, w_ref, scale_ref, shift_ref, o_ref, xpad_ref):
        y = _conv_plane(x_ref[0], w_ref, xpad_ref)
        ybn = y * scale_ref[...] + shift_ref[...]
        even, odd = _interleave_mats()
        _store_pixel_shuffled(ybn, o_ref, 0, even, odd)

    def _run_two_pass():
        # One image per grid step: this path only triggers for large planes /
        # batches, where per-image work already amortizes the ~0.35us per-step cost.
        s, sq = pl.pallas_call(
            stats_kernel,
            out_shape=(jax.ShapeDtypeStruct((Cout, 1), jnp.float32),
                       jax.ShapeDtypeStruct((Cout, 1), jnp.float32)),
            grid=(N,),
            in_specs=[pl.BlockSpec((1, Cin, H, W), lambda n: (n, 0, 0, 0)),
                      pl.BlockSpec((9, Cout, Cin), lambda n: (0, 0, 0))],
            out_specs=(pl.BlockSpec((Cout, 1), lambda n: (0, 0)),
                       pl.BlockSpec((Cout, 1), lambda n: (0, 0))),
            scratch_shapes=[pltpu.VMEM((Cin, Lf), jnp.float32)],
            compiler_params=pltpu.CompilerParams(dimension_semantics=("arbitrary",)),
        )(x32, w_taps)
        # tiny Cout-element fold of BatchNorm into one scale/shift
        mean = s / count
        var = jnp.maximum(sq / count - mean * mean, 0.0)
        scale = gamma_p * jax.lax.rsqrt(var + EPS)
        shift = beta_p - mean * scale
        return pl.pallas_call(
            norm_kernel,
            out_shape=jax.ShapeDtypeStruct((N, Cps, Lo), jnp.float32),
            grid=(N,),
            in_specs=[pl.BlockSpec((1, Cin, H, W), lambda n: (n, 0, 0, 0)),
                      pl.BlockSpec((9, Cout, Cin), lambda n: (0, 0, 0)),
                      pl.BlockSpec((Cout, 1), lambda n: (0, 0)),
                      pl.BlockSpec((Cout, 1), lambda n: (0, 0))],
            out_specs=pl.BlockSpec((1, Cps, Lo), lambda n: (n, 0, 0)),
            scratch_shapes=[pltpu.VMEM((Cin, Lf), jnp.float32)],
            compiler_params=pltpu.CompilerParams(dimension_semantics=("parallel",)),
        )(x32, w_taps, scale, shift)

    # VMEM needed by the fused path (x2 on in/out blocks for pipeline buffers).
    fused_bytes = 4 * (2 * N * Cin * H * W        # input block
                       + 2 * N * Cps * Lo         # output block
                       + N * Cout * Lv            # conv-plane slab scratch
                       + Cin * Lf + 9 * Cout * Cin + 4 * Cout)
    if force_two_pass or fused_bytes > _FUSED_VMEM_BUDGET:
        out = _run_two_pass()
    else:
        out = _run_fused()
    # free bitcast: lane q of the kernel output already equals (2i+di)*2W + 2j+dj
    return out.reshape(N, Cps, 2 * H, 2 * W)


def _reference(x_nchw, conv_w, gamma, beta):
    # pure-JAX reference replicating the PyTorch module's forward semantics
    y = jax.lax.conv_general_dilated(
        x_nchw.astype(jnp.float32), conv_w.astype(jnp.float32),
        window_strides=(1, 1), padding="SAME",
        dimension_numbers=("NCHW", "OIHW", "NCHW"))
    mean = jnp.mean(y, axis=(0, 2, 3), keepdims=True)
    var = jnp.mean((y - mean) ** 2, axis=(0, 2, 3), keepdims=True)
    y = (y - mean) * jax.lax.rsqrt(var + EPS)
    y = y * gamma.reshape(1, -1, 1, 1) + beta.reshape(1, -1, 1, 1)
    N, C4, H, W = y.shape
    C = C4 // 4
    y = y.reshape(N, C, 2, 2, H, W)
    y = jnp.transpose(y, (0, 1, 4, 2, 5, 3))
    return y.reshape(N, C, 2 * H, 2 * W)


if __name__ == "__main__":
    key = jax.random.PRNGKey(0)
    k_x, k_w, k_g, k_b = jax.random.split(key, 4)

    N, n_feat, H, W = 2, 4, 16, 16
    Cout = n_feat * 2

    x = jax.random.normal(k_x, (N, n_feat, H, W), dtype=jnp.float32)
    conv_w = jax.random.normal(k_w, (Cout, n_feat, 3, 3), dtype=jnp.float32) * 0.1
    gamma = 1.0 + 0.1 * jax.random.normal(k_g, (Cout,), dtype=jnp.float32)
    beta = 0.1 * jax.random.normal(k_b, (Cout,), dtype=jnp.float32)

    ref = jax.block_until_ready(_reference(x, conv_w, gamma, beta))

    # fused single-pass path (taken at this shape)
    out = jax.block_until_ready(upsample_forward(x, conv_w, gamma, beta))
    assert out.shape == (N, n_feat // 2, 2 * H, 2 * W), out.shape
    assert jnp.allclose(out, ref, atol=1e-4, rtol=1e-4), float(jnp.max(jnp.abs(out - ref)))

    # also exercise the large-shape two-pass fallback path
    out2 = jax.block_until_ready(
        upsample_forward(x, conv_w, gamma, beta, force_two_pass=True))
    assert jnp.allclose(out2, ref, atol=1e-4, rtol=1e-4), float(jnp.max(jnp.abs(out2 - ref)))

    print("KERNEL_OK")
</pallas_src>

<mosaic_0001>
module attributes {stable_mosaic.version = 11 : i64} {
  func.func @fused_kernel(%arg0: i32, %arg1: memref<2x4x16x16xf32, #tpu.memory_space<vmem>>, %arg2: memref<9x8x4xf32, #tpu.memory_space<vmem>>, %arg3: memref<8x1xf32, #tpu.memory_space<vmem>>, %arg4: memref<8x1xf32, #tpu.memory_space<vmem>>, %arg5: memref<2x2x1024xf32, #tpu.memory_space<vmem>>, %arg6: memref<4x326xf32, #tpu.memory_space<vmem>>, %arg7: memref<2x8x288xf32, #tpu.memory_space<vmem>>) attributes {dimension_semantics = [#tpu.dimension_semantics<arbitrary>], iteration_bounds = array<i64: 1>, scalar_prefetch = 0 : i64, scratch_operands = 2 : i64, tpu.core_type = #tpu.core_type<tc>, window_params = [{pipeline_mode = #tpu.pipeline_mode<synchronous>, transform_indices = @transform_0, window_bounds = array<i64: 2, 4, 16, 16>}, {pipeline_mode = #tpu.pipeline_mode<synchronous>, transform_indices = @transform_1, window_bounds = array<i64: 9, 8, 4>}, {pipeline_mode = #tpu.pipeline_mode<synchronous>, transform_indices = @transform_2, window_bounds = array<i64: 8, 1>}, {pipeline_mode = #tpu.pipeline_mode<synchronous>, transform_indices = @transform_3, window_bounds = array<i64: 8, 1>}, {pipeline_mode = #tpu.pipeline_mode<synchronous>, transform_indices = @transform_4, window_bounds = array<i64: 2, 2, 1024>}]} {
    %0 = tpu.iota {dimensions = array<i32: 1>} : vector<1x288xi32>
    %c18_i32 = arith.constant 18 : i32
    %c0_i32 = arith.constant 0 : i32
    %1 = arith.cmpi eq, %c18_i32, %c0_i32 : i32
    %c1_i32 = arith.constant 1 : i32
    %2 = arith.select %1, %c1_i32, %c18_i32 : i32
    %3 = vector.broadcast %2 : i32 to vector<1x288xi32>
    %4 = arith.remsi %0, %3 : vector<1x288xi32>
    %c0_i32_0 = arith.constant 0 : i32
    %5 = vector.broadcast %c0_i32_0 : i32 to vector<1x288xi32>
    %6 = arith.cmpi ne, %4, %5 : vector<1x288xi32>
    %c0_i32_1 = arith.constant 0 : i32
    %7 = vector.broadcast %c0_i32_1 : i32 to vector<1x288xi32>
    %8 = arith.cmpi slt, %4, %7 : vector<1x288xi32>
    %c0_i32_2 = arith.constant 0 : i32
    %9 = arith.cmpi slt, %2, %c0_i32_2 : i32
    %10 = vector.broadcast %9 : i1 to vector<1x288xi1>
    %11 = vector.broadcast %10 : vector<1x288xi1> to vector<1x288xi1>
    %12 = arith.xori %8, %11 : vector<1x288xi1>
    %13 = arith.andi %12, %6 : vector<1x288xi1>
    %14 = vector.broadcast %2 : i32 to vector<1x288xi32>
    %15 = arith.addi %4, %14 : vector<1x288xi32>
    %16 = arith.select %13, %15, %4 : vector<1x288xi1>, vector<1x288xi32>
    %c16_i32 = arith.constant 16 : i32
    %17 = vector.broadcast %c16_i32 : i32 to vector<1x288xi32>
    %18 = arith.cmpi slt, %16, %17 : vector<1x288xi32>
    %19 = arith.extui %18 : vector<1x288xi1> to vector<1x288xi32>
    %20 = arith.sitofp %19 : vector<1x288xi32> to vector<1x288xf32>
    %cst = arith.constant 0.000000e+00 : f32
    %21 = vector.broadcast %cst : f32 to vector<8x1xf32>
    %cst_3 = arith.constant 0.000000e+00 : f32
    %22 = vector.broadcast %cst_3 : f32 to vector<8x1xf32>
    %c0 = arith.constant 0 : index
    %c0_4 = arith.constant 0 : index
    %c0_5 = arith.constant 0 : index
    %c0_6 = arith.constant 0 : index
    %23 = vector.load %arg1[%c0, %c0_4, %c0_5, %c0_6] : memref<2x4x16x16xf32, #tpu.memory_space<vmem>>, vector<1x4x16x16xf32>
    %24 = vector.shape_cast %23 : vector<1x4x16x16xf32> to vector<4x16x16xf32>
    %cst_7 = arith.constant 0.000000e+00 : f32
    %25 = vector.broadcast %cst_7 : f32 to vector<4x326xf32>
    %c0_8 = arith.constant 0 : index
    %c0_9 = arith.constant 0 : index
    %26 = vector.load %arg6[%c0_8, %c0_9] : memref<4x326xf32, #tpu.memory_space<vmem>>, vector<4x326xf32>
    tpu.vector_store %arg6[%c0_8, %c0_9], %25 {strides = array<i32>} : memref<4x326xf32, #tpu.memory_space<vmem>>, vector<4x326xf32>,
    %27 = vector.extract_strided_slice %24 {offsets = [0, 0, 0], sizes = [4, 1, 16], strides = [1, 1, 1]} : vector<4x16x16xf32> to vector<4x1x16xf32>
    %28 = vector.shape_cast %27 : vector<4x1x16xf32> to vector<4x16xf32>
    %c0_10 = arith.constant 0 : index
    %c19 = arith.constant 19 : index
    %29 = vector.load %arg6[%c0_10, %c19] : memref<4x326xf32, #tpu.memory_space<vmem>>, vector<4x16xf32>
    tpu.vector_store %arg6[%c0_10, %c19], %28 {strides = array<i32>} : memref<4x326xf32, #tpu.memory_space<vmem>>, vector<4x16xf32>,
    %30 = vector.extract_strided_slice %24 {offsets = [0, 1, 0], sizes = [4, 1, 16], strides = [1, 1, 1]} : vector<4x16x16xf32> to vector<4x1x16xf32>
    %31 = vector.shape_cast %30 : vector<4x1x16xf32> to vector<4x16xf32>
    %c0_11 = arith.constant 0 : index
    %c37 = arith.constant 37 : index
    %32 = vector.load %arg6[%c0_11, %c37] : memref<4x326xf32, #tpu.memory_space<vmem>>, vector<4x16xf32>
    tpu.vector_store %arg6[%c0_11, %c37], %31 {strides = array<i32>} : memref<4x326xf32, #tpu.memory_space<vmem>>, vector<4x16xf32>,
    %33 = vector.extract_strided_slice %24 {offsets = [0, 2, 0], sizes = [4, 1, 16], strides = [1, 1, 1]} : vector<4x16x16xf32> to vector<4x1x16xf32>
    %34 = vector.shape_cast %33 : vector<4x1x16xf32> to vector<4x16xf32>
    %c0_12 = arith.constant 0 : index
    %c55 = arith.constant 55 : index
    %35 = vector.load %arg6[%c0_12, %c55] : memref<4x326xf32, #tpu.memory_space<vmem>>, vector<4x16xf32>
    tpu.vector_store %arg6[%c0_12, %c55], %34 {strides = array<i32>} : memref<4x326xf32, #tpu.memory_space<vmem>>, vector<4x16xf32>,
    %36 = vector.extract_strided_slice %24 {offsets = [0, 3, 0], sizes = [4, 1, 16], strides = [1, 1, 1]} : vector<4x16x16xf32> to vector<4x1x16xf32>
    %37 = vector.shape_cast %36 : vector<4x1x16xf32> to vector<4x16xf32>
    %c0_13 = arith.constant 0 : index
    %c73 = arith.constant 73 : index
    %38 = vector.load %arg6[%c0_13, %c73] : memref<4x326xf32, #tpu.memory_space<vmem>>, vector<4x16xf32>
    tpu.vector_store %arg6[%c0_13, %c73], %37 {strides = array<i32>} : memref<4x326xf32, #tpu.memory_space<vmem>>, vector<4x16xf32>,
    %39 = vector.extract_strided_slice %24 {offsets = [0, 4, 0], sizes = [4, 1, 16], strides = [1, 1, 1]} : vector<4x16x16xf32> to vector<4x1x16xf32>
    %40 = vector.shape_cast %39 : vector<4x1x16xf32> to vector<4x16xf32>
    %c0_14 = arith.constant 0 : index
    %c91 = arith.constant 91 : index
    %41 = vector.load %arg6[%c0_14, %c91] : memref<4x326xf32, #tpu.memory_space<vmem>>, vector<4x16xf32>
    tpu.vector_store %arg6[%c0_14, %c91], %40 {strides = array<i32>} : memref<4x326xf32, #tpu.memory_space<vmem>>, vector<4x16xf32>,
    %42 = vector.extract_strided_slice %24 {offsets = [0, 5, 0], sizes = [4, 1, 16], strides = [1, 1, 1]} : vector<4x16x16xf32> to vector<4x1x16xf32>
    %43 = vector.shape_cast %42 : vector<4x1x16xf32> to vector<4x16xf32>
    %c0_15 = arith.constant 0 : index
    %c109 = arith.constant 109 : index
    %44 = vector.load %arg6[%c0_15, %c109] : memref<4x326xf32, #tpu.memory_space<vmem>>, vector<4x16xf32>
    tpu.vector_store %arg6[%c0_15, %c109], %43 {strides = array<i32>} : memref<4x326xf32, #tpu.memory_space<vmem>>, vector<4x16xf32>,
    %45 = vector.extract_strided_slice %24 {offsets = [0, 6, 0], sizes = [4, 1, 16], strides = [1, 1, 1]} : vector<4x16x16xf32> to vector<4x1x16xf32>
    %46 = vector.shape_cast %45 : vector<4x1x16xf32> to vector<4x16xf32>
    %c0_16 = arith.constant 0 : index
    %c127 = arith.constant 127 : index
    %47 = vector.load %arg6[%c0_16, %c127] : memref<4x326xf32, #tpu.memory_space<vmem>>, vector<4x16xf32>
    tpu.vector_store %arg6[%c0_16, %c127], %46 {strides = array<i32>} : memref<4x326xf32, #tpu.memory_space<vmem>>, vector<4x16xf32>,
    %48 = vector.extract_strided_slice %24 {offsets = [0, 7, 0], sizes = [4, 1, 16], strides = [1, 1, 1]} : vector<4x16x16xf32> to vector<4x1x16xf32>
    %49 = vector.shape_cast %48 : vector<4x1x16xf32> to vector<4x16xf32>
    %c0_17 = arith.constant 0 : index
    %c145 = arith.constant 145 : index
    %50 = vector.load %arg6[%c0_17, %c145] : memref<4x326xf32, #tpu.memory_space<vmem>>, vector<4x16xf32>
    tpu.vector_store %arg6[%c0_17, %c145], %49 {strides = array<i32>} : memref<4x326xf32, #tpu.memory_space<vmem>>, vector<4x16xf32>,
    %51 = vector.extract_strided_slice %24 {offsets = [0, 8, 0], sizes = [4, 1, 16], strides = [1, 1, 1]} : vector<4x16x16xf32> to vector<4x1x16xf32>
    %52 = vector.shape_cast %51 : vector<4x1x16xf32> to vector<4x16xf32>
    %c0_18 = arith.constant 0 : index
    %c163 = arith.constant 163 : index
    %53 = vector.load %arg6[%c0_18, %c163] : memref<4x326xf32, #tpu.memory_space<vmem>>, vector<4x16xf32>
    tpu.vector_store %arg6[%c0_18, %c163], %52 {strides = array<i32>} : memref<4x326xf32, #tpu.memory_space<vmem>>, vector<4x16xf32>,
    %54 = vector.extract_strided_slice %24 {offsets = [0, 9, 0], sizes = [4, 1, 16], strides = [1, 1, 1]} : vector<4x16x16xf32> to vector<4x1x16xf32>
    %55 = vector.shape_cast %54 : vector<4x1x16xf32> to vector<4x16xf32>
    %c0_19 = arith.constant 0 : index
    %c181 = arith.constant 181 : index
    %56 = vector.load %arg6[%c0_19, %c181] : memref<4x326xf32, #tpu.memory_space<vmem>>, vector<4x16xf32>
    tpu.vector_store %arg6[%c0_19, %c181], %55 {strides = array<i32>} : memref<4x326xf32, #tpu.memory_space<vmem>>, vector<4x16xf32>,
    %57 = vector.extract_strided_slice %24 {offsets = [0, 10, 0], sizes = [4, 1, 16], strides = [1, 1, 1]} : vector<4x16x16xf32> to vector<4x1x16xf32>
    %58 = vector.shape_cast %57 : vector<4x1x16xf32> to vector<4x16xf32>
    %c0_20 = arith.constant 0 : index
    %c199 = arith.constant 199 : index
    %59 = vector.load %arg6[%c0_20, %c199] : memref<4x326xf32, #tpu.memory_space<vmem>>, vector<4x16xf32>
    tpu.vector_store %arg6[%c0_20, %c199], %58 {strides = array<i32>} : memref<4x326xf32, #tpu.memory_space<vmem>>, vector<4x16xf32>,
    %60 = vector.extract_strided_slice %24 {offsets = [0, 11, 0], sizes = [4, 1, 16], strides = [1, 1, 1]} : vector<4x16x16xf32> to vector<4x1x16xf32>
    %61 = vector.shape_cast %60 : vector<4x1x16xf32> to vector<4x16xf32>
    %c0_21 = arith.constant 0 : index
    %c217 = arith.constant 217 : index
    %62 = vector.load %arg6[%c0_21, %c217] : memref<4x326xf32, #tpu.memory_space<vmem>>, vector<4x16xf32>
    tpu.vector_store %arg6[%c0_21, %c217], %61 {strides = array<i32>} : memref<4x326xf32, #tpu.memory_space<vmem>>, vector<4x16xf32>,
    %63 = vector.extract_strided_slice %24 {offsets = [0, 12, 0], sizes = [4, 1, 16], strides = [1, 1, 1]} : vector<4x16x16xf32> to vector<4x1x16xf32>
    %64 = vector.shape_cast %63 : vector<4x1x16xf32> to vector<4x16xf32>
    %c0_22 = arith.constant 0 : index
    %c235 = arith.constant 235 : index
    %65 = vector.load %arg6[%c0_22, %c235] : memref<4x326xf32, #tpu.memory_space<vmem>>, vector<4x16xf32>
    tpu.vector_store %arg6[%c0_22, %c235], %64 {strides = array<i32>} : memref<4x326xf32, #tpu.memory_space<vmem>>, vector<4x16xf32>,
    %66 = vector.extract_strided_slice %24 {offsets = [0, 13, 0], sizes = [4, 1, 16], strides = [1, 1, 1]} : vector<4x16x16xf32> to vector<4x1x16xf32>
    %67 = vector.shape_cast %66 : vector<4x1x16xf32> to vector<4x16xf32>
    %c0_23 = arith.constant 0 : index
    %c253 = arith.constant 253 : index
    %68 = vector.load %arg6[%c0_23, %c253] : memref<4x326xf32, #tpu.memory_space<vmem>>, vector<4x16xf32>
    tpu.vector_store %arg6[%c0_23, %c253], %67 {strides = array<i32>} : memref<4x326xf32, #tpu.memory_space<vmem>>, vector<4x16xf32>,
    %69 = vector.extract_strided_slice %24 {offsets = [0, 14, 0], sizes = [4, 1, 16], strides = [1, 1, 1]} : vector<4x16x16xf32> to vector<4x1x16xf32>
    %70 = vector.shape_cast %69 : vector<4x1x16xf32> to vector<4x16xf32>
    %c0_24 = arith.constant 0 : index
    %c271 = arith.constant 271 : index
    %71 = vector.load %arg6[%c0_24, %c271] : memref<4x326xf32, #tpu.memory_space<vmem>>, vector<4x16xf32>
    tpu.vector_store %arg6[%c0_24, %c271], %70 {strides = array<i32>} : memref<4x326xf32, #tpu.memory_space<vmem>>, vector<4x16xf32>,
    %72 = vector.extract_strided_slice %24 {offsets = [0, 15, 0], sizes = [4, 1, 16], strides = [1, 1, 1]} : vector<4x16x16xf32> to vector<4x1x16xf32>
    %73 = vector.shape_cast %72 : vector<4x1x16xf32> to vector<4x16xf32>
    %c0_25 = arith.constant 0 : index
    %c289 = arith.constant 289 : index
    %74 = vector.load %arg6[%c0_25, %c289] : memref<4x326xf32, #tpu.memory_space<vmem>>, vector<4x16xf32>
    tpu.vector_store %arg6[%c0_25, %c289], %73 {strides = array<i32>} : memref<4x326xf32, #tpu.memory_space<vmem>>, vector<4x16xf32>,
    %cst_26 = arith.constant 0.000000e+00 : f32
    %75 = vector.broadcast %cst_26 : f32 to vector<8x288xf32>
    %c0_27 = arith.constant 0 : index
    %c0_28 = arith.constant 0 : index
    %c0_29 = arith.constant 0 : index
    %76 = vector.load %arg2[%c0_27, %c0_28, %c0_29] : memref<9x8x4xf32, #tpu.memory_space<vmem>>, vector<1x8x4xf32>
    %77 = vector.shape_cast %76 : vector<1x8x4xf32> to vector<8x4xf32>
    %c0_30 = arith.constant 0 : index
    %c0_31 = arith.constant 0 : index
    %78 = vector.load %arg6[%c0_30, %c0_31] : memref<4x326xf32, #tpu.memory_space<vmem>>, vector<4x288xf32>
    %cst_32 = arith.constant dense<0.000000e+00> : vector<8x288xf32>
    %79 = tpu.matmul %77, %78, %cst_32 {dimension_numbers = #tpu.dot_dimension_numbers<[1], [0], [0], [1], [0, 0, 1, 1], [], []>} : vector<8x4xf32>, vector<4x288xf32>, vector<8x288xf32> -> vector<8x288xf32>
    %80 = arith.addf %75, %79 : vector<8x288xf32>
    %c1 = arith.constant 1 : index
    %c0_33 = arith.constant 0 : index
    %c0_34 = arith.constant 0 : index
    %81 = vector.load %arg2[%c1, %c0_33, %c0_34] : memref<9x8x4xf32, #tpu.memory_space<vmem>>, vector<1x8x4xf32>
    %82 = vector.shape_cast %81 : vector<1x8x4xf32> to vector<8x4xf32>
    %c0_35 = arith.constant 0 : index
    %c1_36 = arith.constant 1 : index
    %83 = vector.load %arg6[%c0_35, %c1_36] : memref<4x326xf32, #tpu.memory_space<vmem>>, vector<4x288xf32>
    %cst_37 = arith.constant dense<0.000000e+00> : vector<8x288xf32>
    %84 = tpu.matmul %82, %83, %cst_37 {dimension_numbers = #tpu.dot_dimension_numbers<[1], [0], [0], [1], [0, 0, 1, 1], [], []>} : vector<8x4xf32>, vector<4x288xf32>, vector<8x288xf32> -> vector<8x288xf32>
    %85 = arith.addf %80, %84 : vector<8x288xf32>
    %c2 = arith.constant 2 : index
    %c0_38 = arith.constant 0 : index
    %c0_39 = arith.constant 0 : index
    %86 = vector.load %arg2[%c2, %c0_38, %c0_39] : memref<9x8x4xf32, #tpu.memory_space<vmem>>, vector<1x8x4xf32>
    %87 = vector.shape_cast %86 : vector<1x8x4xf32> to vector<8x4xf32>
    %c0_40 = arith.constant 0 : index
    %c2_41 = arith.constant 2 : index
    %88 = vector.load %arg6[%c0_40, %c2_41] : memref<4x326xf32, #tpu.memory_space<vmem>>, vector<4x288xf32>
    %cst_42 = arith.constant dense<0.000000e+00> : vector<8x288xf32>
    %89 = tpu.matmul %87, %88, %cst_42 {dimension_numbers = #tpu.dot_dimension_numbers<[1], [0], [0], [1], [0, 0, 1, 1], [], []>} : vector<8x4xf32>, vector<4x288xf32>, vector<8x288xf32> -> vector<8x288xf32>
    %90 = arith.addf %85, %89 : vector<8x288xf32>
    %c3 = arith.constant 3 : index
    %c0_43 = arith.constant 0 : index
    %c0_44 = arith.constant 0 : index
    %91 = vector.load %arg2[%c3, %c0_43, %c0_44] : memref<9x8x4xf32, #tpu.memory_space<vmem>>, vector<1x8x4xf32>
    %92 = vector.shape_cast %91 : vector<1x8x4xf32> to vector<8x4xf32>
    %c0_45 = arith.constant 0 : index
    %c18 = arith.constant 18 : index
    %93 = vector.load %arg6[%c0_45, %c18] : memref<4x326xf32, #tpu.memory_space<vmem>>, vector<4x288xf32>
    %cst_46 = arith.constant dense<0.000000e+00> : vector<8x288xf32>
    %94 = tpu.matmul %92, %93, %cst_46 {dimension_numbers = #tpu.dot_dimension_numbers<[1], [0], [0], [1], [0, 0, 1, 1], [], []>} : vector<8x4xf32>, vector<4x288xf32>, vector<8x288xf32> -> vector<8x288xf32>
    %95 = arith.addf %90, %94 : vector<8x288xf32>
    %c4 = arith.constant 4 : index
    %c0_47 = arith.constant 0 : index
    %c0_48 = arith.constant 0 : index
    %96 = vector.load %arg2[%c4, %c0_47, %c0_48] : memref<9x8x4xf32, #tpu.memory_space<vmem>>, vector<1x8x4xf32>
    %97 = vector.shape_cast %96 : vector<1x8x4xf32> to vector<8x4xf32>
    %c0_49 = arith.constant 0 : index
    %c19_50 = arith.constant 19 : index
    %98 = vector.load %arg6[%c0_49, %c19_50] : memref<4x326xf32, #tpu.memory_space<vmem>>, vector<4x288xf32>
    %cst_51 = arith.constant dense<0.000000e+00> : vector<8x288xf32>
    %99 = tpu.matmul %97, %98, %cst_51 {dimension_numbers = #tpu.dot_dimension_numbers<[1], [0], [0], [1], [0, 0, 1, 1], [], []>} : vector<8x4xf32>, vector<4x288xf32>, vector<8x288xf32> -> vector<8x288xf32>
    %100 = arith.addf %95, %99 : vector<8x288xf32>
    %c5 = arith.constant 5 : index
    %c0_52 = arith.constant 0 : index
    %c0_53 = arith.constant 0 : index
    %101 = vector.load %arg2[%c5, %c0_52, %c0_53] : memref<9x8x4xf32, #tpu.memory_space<vmem>>, vector<1x8x4xf32>
    %102 = vector.shape_cast %101 : vector<1x8x4xf32> to vector<8x4xf32>
    %c0_54 = arith.constant 0 : index
    %c20 = arith.constant 20 : index
    %103 = vector.load %arg6[%c0_54, %c20] : memref<4x326xf32, #tpu.memory_space<vmem>>, vector<4x288xf32>
    %cst_55 = arith.constant dense<0.000000e+00> : vector<8x288xf32>
    %104 = tpu.matmul %102, %103, %cst_55 {dimension_numbers = #tpu.dot_dimension_numbers<[1], [0], [0], [1], [0, 0, 1, 1], [], []>} : vector<8x4xf32>, vector<4x288xf32>, vector<8x288xf32> -> vector<8x288xf32>
    %105 = arith.addf %100, %104 : vector<8x288xf32>
    %c6 = arith.constant 6 : index
    %c0_56 = arith.constant 0 : index
    %c0_57 = arith.constant 0 : index
    %106 = vector.load %arg2[%c6, %c0_56, %c0_57] : memref<9x8x4xf32, #tpu.memory_space<vmem>>, vector<1x8x4xf32>
    %107 = vector.shape_cast %106 : vector<1x8x4xf32> to vector<8x4xf32>
    %c0_58 = arith.constant 0 : index
    %c36 = arith.constant 36 : index
    %108 = vector.load %arg6[%c0_58, %c36] : memref<4x326xf32, #tpu.memory_space<vmem>>, vector<4x288xf32>
    %cst_59 = arith.constant dense<0.000000e+00> : vector<8x288xf32>
    %109 = tpu.matmul %107, %108, %cst_59 {dimension_numbers = #tpu.dot_dimension_numbers<[1], [0], [0], [1], [0, 0, 1, 1], [], []>} : vector<8x4xf32>, vector<4x288xf32>, vector<8x288xf32> -> vector<8x288xf32>
    %110 = arith.addf %105, %109 : vector<8x288xf32>
    %c7 = arith.constant 7 : index
    %c0_60 = arith.constant 0 : index
    %c0_61 = arith.constant 0 : index
    %111 = vector.load %arg2[%c7, %c0_60, %c0_61] : memref<9x8x4xf32, #tpu.memory_space<vmem>>, vector<1x8x4xf32>
    %112 = vector.shape_cast %111 : vector<1x8x4xf32> to vector<8x4xf32>
    %c0_62 = arith.constant 0 : index
    %c37_63 = arith.constant 37 : index
    %113 = vector.load %arg6[%c0_62, %c37_63] : memref<4x326xf32, #tpu.memory_space<vmem>>, vector<4x288xf32>
    %cst_64 = arith.constant dense<0.000000e+00> : vector<8x288xf32>
    %114 = tpu.matmul %112, %113, %cst_64 {dimension_numbers = #tpu.dot_dimension_numbers<[1], [0], [0], [1], [0, 0, 1, 1], [], []>} : vector<8x4xf32>, vector<4x288xf32>, vector<8x288xf32> -> vector<8x288xf32>
    %115 = arith.addf %110, %114 : vector<8x288xf32>
    %c8 = arith.constant 8 : index
    %c0_65 = arith.constant 0 : index
    %c0_66 = arith.constant 0 : index
    %116 = vector.load %arg2[%c8, %c0_65, %c0_66] : memref<9x8x4xf32, #tpu.memory_space<vmem>>, vector<1x8x4xf32>
    %117 = vector.shape_cast %116 : vector<1x8x4xf32> to vector<8x4xf32>
    %c0_67 = arith.constant 0 : index
    %c38 = arith.constant 38 : index
    %118 = vector.load %arg6[%c0_67, %c38] : memref<4x326xf32, #tpu.memory_space<vmem>>, vector<4x288xf32>
    %cst_68 = arith.constant dense<0.000000e+00> : vector<8x288xf32>
    %119 = tpu.matmul %117, %118, %cst_68 {dimension_numbers = #tpu.dot_dimension_numbers<[1], [0], [0], [1], [0, 0, 1, 1], [], []>} : vector<8x4xf32>, vector<4x288xf32>, vector<8x288xf32> -> vector<8x288xf32>
    %120 = arith.addf %115, %119 : vector<8x288xf32>
    %c0_69 = arith.constant 0 : index
    %c0_70 = arith.constant 0 : index
    %c0_71 = arith.constant 0 : index
    %121 = vector.load %arg7[%c0_69, %c0_70, %c0_71] : memref<2x8x288xf32, #tpu.memory_space<vmem>>, vector<1x8x288xf32>
    %122 = vector.shape_cast %121 : vector<1x8x288xf32> to vector<8x288xf32>
    %123 = vector.shape_cast %120 : vector<8x288xf32> to vector<1x8x288xf32>
    tpu.vector_store %arg7[%c0_69, %c0_70, %c0_71], %123 {strides = array<i32>} : memref<2x8x288xf32, #tpu.memory_space<vmem>>, vector<1x8x288xf32>,
    %124 = vector.broadcast %20 : vector<1x288xf32> to vector<8x288xf32>
    %125 = arith.mulf %120, %124 : vector<8x288xf32>
    %cst_72 = arith.constant dense<0.000000e+00> : vector<8xf32>
    %126 = vector.multi_reduction <add>, %125, %cst_72 [1] : vector<8x288xf32> to vector<8xf32>
    %127 = vector.shape_cast %126 : vector<8xf32> to vector<8x1xf32>
    %128 = arith.addf %21, %127 : vector<8x1xf32>
    %129 = arith.mulf %125, %120 : vector<8x288xf32>
    %cst_73 = arith.constant dense<0.000000e+00> : vector<8xf32>
    %130 = vector.multi_reduction <add>, %129, %cst_73 [1] : vector<8x288xf32> to vector<8xf32>
    %131 = vector.shape_cast %130 : vector<8xf32> to vector<8x1xf32>
    %132 = arith.addf %22, %131 : vector<8x1xf32>
    %c1_74 = arith.constant 1 : index
    %c0_75 = arith.constant 0 : index
    %c0_76 = arith.constant 0 : index
    %c0_77 = arith.constant 0 : index
    %133 = vector.load %arg1[%c1_74, %c0_75, %c0_76, %c0_77] : memref<2x4x16x16xf32, #tpu.memory_space<vmem>>, vector<1x4x16x16xf32>
    %134 = vector.shape_cast %133 : vector<1x4x16x16xf32> to vector<4x16x16xf32>
    %cst_78 = arith.constant 0.000000e+00 : f32
    %135 = vector.broadcast %cst_78 : f32 to vector<4x326xf32>
    %c0_79 = arith.constant 0 : index
    %c0_80 = arith.constant 0 : index
    %136 = vector.load %arg6[%c0_79, %c0_80] : memref<4x326xf32, #tpu.memory_space<vmem>>, vector<4x326xf32>
    tpu.vector_store %arg6[%c0_79, %c0_80], %135 {strides = array<i32>} : memref<4x326xf32, #tpu.memory_space<vmem>>, vector<4x326xf32>,
    %137 = vector.extract_strided_slice %134 {offsets = [0, 0, 0], sizes = [4, 1, 16], strides = [1, 1, 1]} : vector<4x16x16xf32> to vector<4x1x16xf32>
    %138 = vector.shape_cast %137 : vector<4x1x16xf32> to vector<4x16xf32>
    %c0_81 = arith.constant 0 : index
    %c19_82 = arith.constant 19 : index
    %139 = vector.load %arg6[%c0_81, %c19_82] : memref<4x326xf32, #tpu.memory_space<vmem>>, vector<4x16xf32>
    tpu.vector_store %arg6[%c0_81, %c19_82], %138 {strides = array<i32>} : memref<4x326xf32, #tpu.memory_space<vmem>>, vector<4x16xf32>,
    %140 = vector.extract_strided_slice %134 {offsets = [0, 1, 0], sizes = [4, 1, 16], strides = [1, 1, 1]} : vector<4x16x16xf32> to vector<4x1x16xf32>
    %141 = vector.shape_cast %140 : vector<4x1x16xf32> to vector<4x16xf32>
    %c0_83 = arith.constant 0 : index
    %c37_84 = arith.constant 37 : index
    %142 = vector.load %arg6[%c0_83, %c37_84] : memref<4x326xf32, #tpu.memory_space<vmem>>, vector<4x16xf32>
    tpu.vector_store %arg6[%c0_83, %c37_84], %141 {strides = array<i32>} : memref<4x326xf32, #tpu.memory_space<vmem>>, vector<4x16xf32>,
    %143 = vector.extract_strided_slice %134 {offsets = [0, 2, 0], sizes = [4, 1, 16], strides = [1, 1, 1]} : vector<4x16x16xf32> to vector<4x1x16xf32>
    %144 = vector.shape_cast %143 : vector<4x1x16xf32> to vector<4x16xf32>
    %c0_85 = arith.constant 0 : index
    %c55_86 = arith.constant 55 : index
    %145 = vector.load %arg6[%c0_85, %c55_86] : memref<4x326xf32, #tpu.memory_space<vmem>>, vector<4x16xf32>
    tpu.vector_store %arg6[%c0_85, %c55_86], %144 {strides = array<i32>} : memref<4x326xf32, #tpu.memory_space<vmem>>, vector<4x16xf32>,
    %146 = vector.extract_strided_slice %134 {offsets = [0, 3, 0], sizes = [4, 1, 16], strides = [1, 1, 1]} : vector<4x16x16xf32> to vector<4x1x16xf32>
    %147 = vector.shape_cast %146 : vector<4x1x16xf32> to vector<4x16xf32>
    %c0_87 = arith.constant 0 : index
    %c73_88 = arith.constant 73 : index
    %148 = vector.load %arg6[%c0_87, %c73_88] : memref<4x326xf32, #tpu.memory_space<vmem>>, vector<4x16xf32>
    tpu.vector_store %arg6[%c0_87, %c73_88], %147 {strides = array<i32>} : memref<4x326xf32, #tpu.memory_space<vmem>>, vector<4x16xf32>,
    %149 = vector.extract_strided_slice %134 {offsets = [0, 4, 0], sizes = [4, 1, 16], strides = [1, 1, 1]} : vector<4x16x16xf32> to vector<4x1x16xf32>
    %150 = vector.shape_cast %149 : vector<4x1x16xf32> to vector<4x16xf32>
    %c0_89 = arith.constant 0 : index
    %c91_90 = arith.constant 91 : index
    %151 = vector.load %arg6[%c0_89, %c91_90] : memref<4x326xf32, #tpu.memory_space<vmem>>, vector<4x16xf32>
    tpu.vector_store %arg6[%c0_89, %c91_90], %150 {strides = array<i32>} : memref<4x326xf32, #tpu.memory_space<vmem>>, vector<4x16xf32>,
    %152 = vector.extract_strided_slice %134 {offsets = [0, 5, 0], sizes = [4, 1, 16], strides = [1, 1, 1]} : vector<4x16x16xf32> to vector<4x1x16xf32>
    %153 = vector.shape_cast %152 : vector<4x1x16xf32> to vector<4x16xf32>
    %c0_91 = arith.constant 0 : index
    %c109_92 = arith.constant 109 : index
    %154 = vector.load %arg6[%c0_91, %c109_92] : memref<4x326xf32, #tpu.memory_space<vmem>>, vector<4x16xf32>
    tpu.vector_store %arg6[%c0_91, %c109_92], %153 {strides = array<i32>} : memref<4x326xf32, #tpu.memory_space<vmem>>, vector<4x16xf32>,
    %155 = vector.extract_strided_slice %134 {offsets = [0, 6, 0], sizes = [4, 1, 16], strides = [1, 1, 1]} : vector<4x16x16xf32> to vector<4x1x16xf32>
    %156 = vector.shape_cast %155 : vector<4x1x16xf32> to vector<4x16xf32>
    %c0_93 = arith.constant 0 : index
    %c127_94 = arith.constant 127 : index
    %157 = vector.load %arg6[%c0_93, %c127_94] : memref<4x326xf32, #tpu.memory_space<vmem>>, vector<4x16xf32>
    tpu.vector_store %arg6[%c0_93, %c127_94], %156 {strides = array<i32>} : memref<4x326xf32, #tpu.memory_space<vmem>>, vector<4x16xf32>,
    %158 = vector.extract_strided_slice %134 {offsets = [0, 7, 0], sizes = [4, 1, 16], strides = [1, 1, 1]} : vector<4x16x16xf32> to vector<4x1x16xf32>
    %159 = vector.shape_cast %158 : vector<4x1x16xf32> to vector<4x16xf32>
    %c0_95 = arith.constant 0 : index
    %c145_96 = arith.constant 145 : index
    %160 = vector.load %arg6[%c0_95, %c145_96] : memref<4x326xf32, #tpu.memory_space<vmem>>, vector<4x16xf32>
    tpu.vector_store %arg6[%c0_95, %c145_96], %159 {strides = array<i32>} : memref<4x326xf32, #tpu.memory_space<vmem>>, vector<4x16xf32>,
    %161 = vector.extract_strided_slice %134 {offsets = [0, 8, 0], sizes = [4, 1, 16], strides = [1, 1, 1]} : vector<4x16x16xf32> to vector<4x1x16xf32>
    %162 = vector.shape_cast %161 : vector<4x1x16xf32> to vector<4x16xf32>
    %c0_97 = arith.constant 0 : index
    %c163_98 = arith.constant 163 : index
    %163 = vector.load %arg6[%c0_97, %c163_98] : memref<4x326xf32, #tpu.memory_space<vmem>>, vector<4x16xf32>
    tpu.vector_store %arg6[%c0_97, %c163_98], %162 {strides = array<i32>} : memref<4x326xf32, #tpu.memory_space<vmem>>, vector<4x16xf32>,
    %164 = vector.extract_strided_slice %134 {offsets = [0, 9, 0], sizes = [4, 1, 16], strides = [1, 1, 1]} : vector<4x16x16xf32> to vector<4x1x16xf32>
    %165 = vector.shape_cast %164 : vector<4x1x16xf32> to vector<4x16xf32>
    %c0_99 = arith.constant 0 : index
    %c181_100 = arith.constant 181 : index
    %166 = vector.load %arg6[%c0_99, %c181_100] : memref<4x326xf32, #tpu.memory_space<vmem>>, vector<4x16xf32>
    tpu.vector_store %arg6[%c0_99, %c181_100], %165 {strides = array<i32>} : memref<4x326xf32, #tpu.memory_space<vmem>>, vector<4x16xf32>,
    %167 = vector.extract_strided_slice %134 {offsets = [0, 10, 0], sizes = [4, 1, 16], strides = [1, 1, 1]} : vector<4x16x16xf32> to vector<4x1x16xf32>
    %168 = vector.shape_cast %167 : vector<4x1x16xf32> to vector<4x16xf32>
    %c0_101 = arith.constant 0 : index
    %c199_102 = arith.constant 199 : index
    %169 = vector.load %arg6[%c0_101, %c199_102] : memref<4x326xf32, #tpu.memory_space<vmem>>, vector<4x16xf32>
    tpu.vector_store %arg6[%c0_101, %c199_102], %168 {strides = array<i32>} : memref<4x326xf32, #tpu.memory_space<vmem>>, vector<4x16xf32>,
    %170 = vector.extract_strided_slice %134 {offsets = [0, 11, 0], sizes = [4, 1, 16], strides = [1, 1, 1]} : vector<4x16x16xf32> to vector<4x1x16xf32>
    %171 = vector.shape_cast %170 : vector<4x1x16xf32> to vector<4x16xf32>
    %c0_103 = arith.constant 0 : index
    %c217_104 = arith.constant 217 : index
    %172 = vector.load %arg6[%c0_103, %c217_104] : memref<4x326xf32, #tpu.memory_space<vmem>>, vector<4x16xf32>
    tpu.vector_store %arg6[%c0_103, %c217_104], %171 {strides = array<i32>} : memref<4x326xf32, #tpu.memory_space<vmem>>, vector<4x16xf32>,
    %173 = vector.extract_strided_slice %134 {offsets = [0, 12, 0], sizes = [4, 1, 16], strides = [1, 1, 1]} : vector<4x16x16xf32> to vector<4x1x16xf32>
    %174 = vector.shape_cast %173 : vector<4x1x16xf32> to vector<4x16xf32>
    %c0_105 = arith.constant 0 : index
    %c235_106 = arith.constant 235 : index
    %175 = vector.load %arg6[%c0_105, %c235_106] : memref<4x326xf32, #tpu.memory_space<vmem>>, vector<4x16xf32>
    tpu.vector_store %arg6[%c0_105, %c235_106], %174 {strides = array<i32>} : memref<4x326xf32, #tpu.memory_space<vmem>>, vector<4x16xf32>,
    %176 = vector.extract_strided_slice %134 {offsets = [0, 13, 0], sizes = [4, 1, 16], strides = [1, 1, 1]} : vector<4x16x16xf32> to vector<4x1x16xf32>
    %177 = vector.shape_cast %176 : vector<4x1x16xf32> to vector<4x16xf32>
    %c0_107 = arith.constant 0 : index
    %c253_108 = arith.constant 253 : index
    %178 = vector.load %arg6[%c0_107, %c253_108] : memref<4x326xf32, #tpu.memory_space<vmem>>, vector<4x16xf32>
    tpu.vector_store %arg6[%c0_107, %c253_108], %177 {strides = array<i32>} : memref<4x326xf32, #tpu.memory_space<vmem>>, vector<4x16xf32>,
    %179 = vector.extract_strided_slice %134 {offsets = [0, 14, 0], sizes = [4, 1, 16], strides = [1, 1, 1]} : vector<4x16x16xf32> to vector<4x1x16xf32>
    %180 = vector.shape_cast %179 : vector<4x1x16xf32> to vector<4x16xf32>
    %c0_109 = arith.constant 0 : index
    %c271_110 = arith.constant 271 : index
    %181 = vector.load %arg6[%c0_109, %c271_110] : memref<4x326xf32, #tpu.memory_space<vmem>>, vector<4x16xf32>
    tpu.vector_store %arg6[%c0_109, %c271_110], %180 {strides = array<i32>} : memref<4x326xf32, #tpu.memory_space<vmem>>, vector<4x16xf32>,
    %182 = vector.extract_strided_slice %134 {offsets = [0, 15, 0], sizes = [4, 1, 16], strides = [1, 1, 1]} : vector<4x16x16xf32> to vector<4x1x16xf32>
    %183 = vector.shape_cast %182 : vector<4x1x16xf32> to vector<4x16xf32>
    %c0_111 = arith.constant 0 : index
    %c289_112 = arith.constant 289 : index
    %184 = vector.load %arg6[%c0_111, %c289_112] : memref<4x326xf32, #tpu.memory_space<vmem>>, vector<4x16xf32>
    tpu.vector_store %arg6[%c0_111, %c289_112], %183 {strides = array<i32>} : memref<4x326xf32, #tpu.memory_space<vmem>>, vector<4x16xf32>,
    %cst_113 = arith.constant 0.000000e+00 : f32
    %185 = vector.broadcast %cst_113 : f32 to vector<8x288xf32>
    %c0_114 = arith.constant 0 : index
    %c0_115 = arith.constant 0 : index
    %c0_116 = arith.constant 0 : index
    %186 = vector.load %arg2[%c0_114, %c0_115, %c0_116] : memref<9x8x4xf32, #tpu.memory_space<vmem>>, vector<1x8x4xf32>
    %187 = vector.shape_cast %186 : vector<1x8x4xf32> to vector<8x4xf32>
    %c0_117 = arith.constant 0 : index
    %c0_118 = arith.constant 0 : index
    %188 = vector.load %arg6[%c0_117, %c0_118] : memref<4x326xf32, #tpu.memory_space<vmem>>, vector<4x288xf32>
    %cst_119 = arith.constant dense<0.000000e+00> : vector<8x288xf32>
    %189 = tpu.matmul %187, %188, %cst_119 {dimension_numbers = #tpu.dot_dimension_numbers<[1], [0], [0], [1], [0, 0, 1, 1], [], []>} : vector<8x4xf32>, vector<4x288xf32>, vector<8x288xf32> -> vector<8x288xf32>
    %190 = arith.addf %185, %189 : vector<8x288xf32>
    %c1_120 = arith.constant 1 : index
    %c0_121 = arith.constant 0 : index
    %c0_122 = arith.constant 0 : index
    %191 = vector.load %arg2[%c1_120, %c0_121, %c0_122] : memref<9x8x4xf32, #tpu.memory_space<vmem>>, vector<1x8x4xf32>
    %192 = vector.shape_cast %191 : vector<1x8x4xf32> to vector<8x4xf32>
    %c0_123 = arith.constant 0 : index
    %c1_124 = arith.constant 1 : index
    %193 = vector.load %arg6[%c0_123, %c1_124] : memref<4x326xf32, #tpu.memory_space<vmem>>, vector<4x288xf32>
    %cst_125 = arith.constant dense<0.000000e+00> : vector<8x288xf32>
    %194 = tpu.matmul %192, %193, %cst_125 {dimension_numbers = #tpu.dot_dimension_numbers<[1], [0], [0], [1], [0, 0, 1, 1], [], []>} : vector<8x4xf32>, vector<4x288xf32>, vector<8x288xf32> -> vector<8x288xf32>
    %195 = arith.addf %190, %194 : vector<8x288xf32>
    %c2_126 = arith.constant 2 : index
    %c0_127 = arith.constant 0 : index
    %c0_128 = arith.constant 0 : index
    %196 = vector.load %arg2[%c2_126, %c0_127, %c0_128] : memref<9x8x4xf32, #tpu.memory_space<vmem>>, vector<1x8x4xf32>
    %197 = vector.shape_cast %196 : vector<1x8x4xf32> to vector<8x4xf32>
    %c0_129 = arith.constant 0 : index
    %c2_130 = arith.constant 2 : index
    %198 = vector.load %arg6[%c0_129, %c2_130] : memref<4x326xf32, #tpu.memory_space<vmem>>, vector<4x288xf32>
    %cst_131 = arith.constant dense<0.000000e+00> : vector<8x288xf32>
    %199 = tpu.matmul %197, %198, %cst_131 {dimension_numbers = #tpu.dot_dimension_numbers<[1], [0], [0], [1], [0, 0, 1, 1], [], []>} : vector<8x4xf32>, vector<4x288xf32>, vector<8x288xf32> -> vector<8x288xf32>
    %200 = arith.addf %195, %199 : vector<8x288xf32>
    %c3_132 = arith.constant 3 : index
    %c0_133 = arith.constant 0 : index
    %c0_134 = arith.constant 0 : index
    %201 = vector.load %arg2[%c3_132, %c0_133, %c0_134] : memref<9x8x4xf32, #tpu.memory_space<vmem>>, vector<1x8x4xf32>
    %202 = vector.shape_cast %201 : vector<1x8x4xf32> to vector<8x4xf32>
    %c0_135 = arith.constant 0 : index
    %c18_136 = arith.constant 18 : index
    %203 = vector.load %arg6[%c0_135, %c18_136] : memref<4x326xf32, #tpu.memory_space<vmem>>, vector<4x288xf32>
    %cst_137 = arith.constant dense<0.000000e+00> : vector<8x288xf32>
    %204 = tpu.matmul %202, %203, %cst_137 {dimension_numbers = #tpu.dot_dimension_numbers<[1], [0], [0], [1], [0, 0, 1, 1], [], []>} : vector<8x4xf32>, vector<4x288xf32>, vector<8x288xf32> -> vector<8x288xf32>
    %205 = arith.addf %200, %204 : vector<8x288xf32>
    %c4_138 = arith.constant 4 : index
    %c0_139 = arith.constant 0 : index
    %c0_140 = arith.constant 0 : index
    %206 = vector.load %arg2[%c4_138, %c0_139, %c0_140] : memref<9x8x4xf32, #tpu.memory_space<vmem>>, vector<1x8x4xf32>
    %207 = vector.shape_cast %206 : vector<1x8x4xf32> to vector<8x4xf32>
    %c0_141 = arith.constant 0 : index
    %c19_142 = arith.constant 19 : index
    %208 = vector.load %arg6[%c0_141, %c19_142] : memref<4x326xf32, #tpu.memory_space<vmem>>, vector<4x288xf32>
    %cst_143 = arith.constant dense<0.000000e+00> : vector<8x288xf32>
    %209 = tpu.matmul %207, %208, %cst_143 {dimension_numbers = #tpu.dot_dimension_numbers<[1], [0], [0], [1], [0, 0, 1, 1], [], []>} : vector<8x4xf32>, vector<4x288xf32>, vector<8x288xf32> -> vector<8x288xf32>
    %210 = arith.addf %205, %209 : vector<8x288xf32>
    %c5_144 = arith.constant 5 : index
    %c0_145 = arith.constant 0 : index
    %c0_146 = arith.constant 0 : index
    %211 = vector.load %arg2[%c5_144, %c0_145, %c0_146] : memref<9x8x4xf32, #tpu.memory_space<vmem>>, vector<1x8x4xf32>
    %212 = vector.shape_cast %211 : vector<1x8x4xf32> to vector<8x4xf32>
    %c0_147 = arith.constant 0 : index
    %c20_148 = arith.constant 20 : index
    %213 = vector.load %arg6[%c0_147, %c20_148] : memref<4x326xf32, #tpu.memory_space<vmem>>, vector<4x288xf32>
    %cst_149 = arith.constant dense<0.000000e+00> : vector<8x288xf32>
    %214 = tpu.matmul %212, %213, %cst_149 {dimension_numbers = #tpu.dot_dimension_numbers<[1], [0], [0], [1], [0, 0, 1, 1], [], []>} : vector<8x4xf32>, vector<4x288xf32>, vector<8x288xf32> -> vector<8x288xf32>
    %215 = arith.addf %210, %214 : vector<8x288xf32>
    %c6_150 = arith.constant 6 : index
    %c0_151 = arith.constant 0 : index
    %c0_152 = arith.constant 0 : index
    %216 = vector.load %arg2[%c6_150, %c0_151, %c0_152] : memref<9x8x4xf32, #tpu.memory_space<vmem>>, vector<1x8x4xf32>
    %217 = vector.shape_cast %216 : vector<1x8x4xf32> to vector<8x4xf32>
    %c0_153 = arith.constant 0 : index
    %c36_154 = arith.constant 36 : index
    %218 = vector.load %arg6[%c0_153, %c36_154] : memref<4x326xf32, #tpu.memory_space<vmem>>, vector<4x288xf32>
    %cst_155 = arith.constant dense<0.000000e+00> : vector<8x288xf32>
    %219 = tpu.matmul %217, %218, %cst_155 {dimension_numbers = #tpu.dot_dimension_numbers<[1], [0], [0], [1], [0, 0, 1, 1], [], []>} : vector<8x4xf32>, vector<4x288xf32>, vector<8x288xf32> -> vector<8x288xf32>
    %220 = arith.addf %215, %219 : vector<8x288xf32>
    %c7_156 = arith.constant 7 : index
    %c0_157 = arith.constant 0 : index
    %c0_158 = arith.constant 0 : index
    %221 = vector.load %arg2[%c7_156, %c0_157, %c0_158] : memref<9x8x4xf32, #tpu.memory_space<vmem>>, vector<1x8x4xf32>
    %222 = vector.shape_cast %221 : vector<1x8x4xf32> to vector<8x4xf32>
    %c0_159 = arith.constant 0 : index
    %c37_160 = arith.constant 37 : index
    %223 = vector.load %arg6[%c0_159, %c37_160] : memref<4x326xf32, #tpu.memory_space<vmem>>, vector<4x288xf32>
    %cst_161 = arith.constant dense<0.000000e+00> : vector<8x288xf32>
    %224 = tpu.matmul %222, %223, %cst_161 {dimension_numbers = #tpu.dot_dimension_numbers<[1], [0], [0], [1], [0, 0, 1, 1], [], []>} : vector<8x4xf32>, vector<4x288xf32>, vector<8x288xf32> -> vector<8x288xf32>
    %225 = arith.addf %220, %224 : vector<8x288xf32>
    %c8_162 = arith.constant 8 : index
    %c0_163 = arith.constant 0 : index
    %c0_164 = arith.constant 0 : index
    %226 = vector.load %arg2[%c8_162, %c0_163, %c0_164] : memref<9x8x4xf32, #tpu.memory_space<vmem>>, vector<1x8x4xf32>
    %227 = vector.shape_cast %226 : vector<1x8x4xf32> to vector<8x4xf32>
    %c0_165 = arith.constant 0 : index
    %c38_166 = arith.constant 38 : index
    %228 = vector.load %arg6[%c0_165, %c38_166] : memref<4x326xf32, #tpu.memory_space<vmem>>, vector<4x288xf32>
    %cst_167 = arith.constant dense<0.000000e+00> : vector<8x288xf32>
    %229 = tpu.matmul %227, %228, %cst_167 {dimension_numbers = #tpu.dot_dimension_numbers<[1], [0], [0], [1], [0, 0, 1, 1], [], []>} : vector<8x4xf32>, vector<4x288xf32>, vector<8x288xf32> -> vector<8x288xf32>
    %230 = arith.addf %225, %229 : vector<8x288xf32>
    %c1_168 = arith.constant 1 : index
    %c0_169 = arith.constant 0 : index
    %c0_170 = arith.constant 0 : index
    %231 = vector.load %arg7[%c1_168, %c0_169, %c0_170] : memref<2x8x288xf32, #tpu.memory_space<vmem>>, vector<1x8x288xf32>
    %232 = vector.shape_cast %231 : vector<1x8x288xf32> to vector<8x288xf32>
    %233 = vector.shape_cast %230 : vector<8x288xf32> to vector<1x8x288xf32>
    tpu.vector_store %arg7[%c1_168, %c0_169, %c0_170], %233 {strides = array<i32>} : memref<2x8x288xf32, #tpu.memory_space<vmem>>, vector<1x8x288xf32>,
    %234 = vector.broadcast %20 : vector<1x288xf32> to vector<8x288xf32>
    %235 = arith.mulf %230, %234 : vector<8x288xf32>
    %cst_171 = arith.constant dense<0.000000e+00> : vector<8xf32>
    %236 = vector.multi_reduction <add>, %235, %cst_171 [1] : vector<8x288xf32> to vector<8xf32>
    %237 = vector.shape_cast %236 : vector<8xf32> to vector<8x1xf32>
    %238 = arith.addf %128, %237 : vector<8x1xf32>
    %239 = arith.mulf %235, %230 : vector<8x288xf32>
    %cst_172 = arith.constant dense<0.000000e+00> : vector<8xf32>
    %240 = vector.multi_reduction <add>, %239, %cst_172 [1] : vector<8x288xf32> to vector<8xf32>
    %241 = vector.shape_cast %240 : vector<8xf32> to vector<8x1xf32>
    %242 = arith.addf %132, %241 : vector<8x1xf32>
    %cst_173 = arith.constant 0.001953125 : f32
    %243 = vector.broadcast %cst_173 : f32 to vector<8x1xf32>
    %244 = arith.mulf %238, %243 : vector<8x1xf32>
    %cst_174 = arith.constant 0.001953125 : f32
    %245 = vector.broadcast %cst_174 : f32 to vector<8x1xf32>
    %246 = arith.mulf %242, %245 : vector<8x1xf32>
    %247 = arith.mulf %244, %244 : vector<8x1xf32>
    %248 = arith.subf %246, %247 : vector<8x1xf32>
    %cst_175 = arith.constant 0.000000e+00 : f32
    %249 = vector.broadcast %cst_175 : f32 to vector<8x1xf32>
    %250 = arith.maximumf %248, %249 : vector<8x1xf32>
    %c0_176 = arith.constant 0 : index
    %c0_177 = arith.constant 0 : index
    %251 = vector.load %arg3[%c0_176, %c0_177] : memref<8x1xf32, #tpu.memory_space<vmem>>, vector<8x1xf32>
    %cst_178 = arith.constant 9.99999974E-6 : f32
    %252 = vector.broadcast %cst_178 : f32 to vector<8x1xf32>
    %253 = arith.addf %250, %252 : vector<8x1xf32>
    %254 = math.rsqrt %253 : vector<8x1xf32>
    %255 = arith.mulf %251, %254 : vector<8x1xf32>
    %c0_179 = arith.constant 0 : index
    %c0_180 = arith.constant 0 : index
    %256 = vector.load %arg4[%c0_179, %c0_180] : memref<8x1xf32, #tpu.memory_space<vmem>>, vector<8x1xf32>
    %257 = arith.mulf %244, %255 : vector<8x1xf32>
    %258 = arith.subf %256, %257 : vector<8x1xf32>
    %259 = tpu.iota {dimensions = array<i32: 0>} : vector<16x32xi32>
    %260 = tpu.iota {dimensions = array<i32: 1>} : vector<16x32xi32>
    %c2_i32 = arith.constant 2 : i32
    %261 = vector.broadcast %c2_i32 : i32 to vector<16x32xi32>
    %262 = arith.muli %261, %259 : vector<16x32xi32>
    %263 = arith.cmpi eq, %260, %262 : vector<16x32xi32>
    %264 = arith.extui %263 : vector<16x32xi1> to vector<16x32xi32>
    %265 = arith.sitofp %264 : vector<16x32xi32> to vector<16x32xf32>
    %c2_i32_181 = arith.constant 2 : i32
    %266 = vector.broadcast %c2_i32_181 : i32 to vector<16x32xi32>
    %267 = arith.muli %266, %259 : vector<16x32xi32>
    %c1_i32_182 = arith.constant 1 : i32
    %268 = vector.broadcast %c1_i32_182 : i32 to vector<16x32xi32>
    %269 = arith.addi %267, %268 : vector<16x32xi32>
    %270 = arith.cmpi eq, %260, %269 : vector<16x32xi32>
    %271 = arith.extui %270 : vector<16x32xi1> to vector<16x32xi32>
    %272 = arith.sitofp %271 : vector<16x32xi32> to vector<16x32xf32>
    %c0_183 = arith.constant 0 : index
    %c0_184 = arith.constant 0 : index
    %c0_185 = arith.constant 0 : index
    %273 = vector.load %arg7[%c0_183, %c0_184, %c0_185] : memref<2x8x288xf32, #tpu.memory_space<vmem>>, vector<1x8x288xf32>
    %274 = vector.shape_cast %273 : vector<1x8x288xf32> to vector<8x288xf32>
    %275 = vector.broadcast %255 : vector<8x1xf32> to vector<8x288xf32>
    %276 = arith.mulf %274, %275 : vector<8x288xf32>
    %277 = vector.broadcast %258 : vector<8x1xf32> to vector<8x288xf32>
    %278 = arith.addf %276, %277 : vector<8x288xf32>
    %279 = vector.extract_strided_slice %278 {offsets = [0, 0], sizes = [2, 16], strides = [1, 1]} : vector<8x288xf32> to vector<2x16xf32>
    %280 = vector.extract_strided_slice %278 {offsets = [2, 0], sizes = [2, 16], strides = [1, 1]} : vector<8x288xf32> to vector<2x16xf32>
    %281 = vector.extract_strided_slice %278 {offsets = [4, 0], sizes = [2, 16], strides = [1, 1]} : vector<8x288xf32> to vector<2x16xf32>
    %282 = vector.extract_strided_slice %278 {offsets = [6, 0], sizes = [2, 16], strides = [1, 1]} : vector<8x288xf32> to vector<2x16xf32>
    %cst_186 = arith.constant dense<0.000000e+00> : vector<2x32xf32>
    %283 = tpu.matmul %279, %265, %cst_186 {dimension_numbers = #tpu.dot_dimension_numbers<[1], [0], [0], [1], [0, 0, 1, 1], [], []>} : vector<2x16xf32>, vector<16x32xf32>, vector<2x32xf32> -> vector<2x32xf32>
    %cst_187 = arith.constant dense<0.000000e+00> : vector<2x32xf32>
    %284 = tpu.matmul %280, %272, %cst_187 {dimension_numbers = #tpu.dot_dimension_numbers<[1], [0], [0], [1], [0, 0, 1, 1], [], []>} : vector<2x16xf32>, vector<16x32xf32>, vector<2x32xf32> -> vector<2x32xf32>
    %285 = arith.addf %283, %284 : vector<2x32xf32>
    %cst_188 = arith.constant dense<0.000000e+00> : vector<2x32xf32>
    %286 = tpu.matmul %281, %265, %cst_188 {dimension_numbers = #tpu.dot_dimension_numbers<[1], [0], [0], [1], [0, 0, 1, 1], [], []>} : vector<2x16xf32>, vector<16x32xf32>, vector<2x32xf32> -> vector<2x32xf32>
    %cst_189 = arith.constant dense<0.000000e+00> : vector<2x32xf32>
    %287 = tpu.matmul %282, %272, %cst_189 {dimension_numbers = #tpu.dot_dimension_numbers<[1], [0], [0], [1], [0, 0, 1, 1], [], []>} : vector<2x16xf32>, vector<16x32xf32>, vector<2x32xf32> -> vector<2x32xf32>
    %288 = arith.addf %286, %287 : vector<2x32xf32>
    %c0_190 = arith.constant 0 : index
    %c0_191 = arith.constant 0 : index
    %c0_192 = arith.constant 0 : index
    %289 = vector.load %arg5[%c0_190, %c0_191, %c0_192] : memref<2x2x1024xf32, #tpu.memory_space<vmem>>, vector<1x2x32xf32>
    %290 = vector.shape_cast %289 : vector<1x2x32xf32> to vector<2x32xf32>
    %291 = vector.shape_cast %285 : vector<2x32xf32> to vector<1x2x32xf32>
    tpu.vector_store %arg5[%c0_190, %c0_191, %c0_192], %291 {strides = array<i32>} : memref<2x2x1024xf32, #tpu.memory_space<vmem>>, vector<1x2x32xf32>,
    %c0_193 = arith.constant 0 : index
    %c0_194 = arith.constant 0 : index
    %c32 = arith.constant 32 : index
    %292 = vector.load %arg5[%c0_193, %c0_194, %c32] : memref<2x2x1024xf32, #tpu.memory_space<vmem>>, vector<1x2x32xf32>
    %293 = vector.shape_cast %292 : vector<1x2x32xf32> to vector<2x32xf32>
    %294 = vector.shape_cast %288 : vector<2x32xf32> to vector<1x2x32xf32>
    tpu.vector_store %arg5[%c0_193, %c0_194, %c32], %294 {strides = array<i32>} : memref<2x2x1024xf32, #tpu.memory_space<vmem>>, vector<1x2x32xf32>,
    %295 = vector.extract_strided_slice %278 {offsets = [0, 18], sizes = [2, 16], strides = [1, 1]} : vector<8x288xf32> to vector<2x16xf32>
    %296 = vector.extract_strided_slice %278 {offsets = [2, 18], sizes = [2, 16], strides = [1, 1]} : vector<8x288xf32> to vector<2x16xf32>
    %297 = vector.extract_strided_slice %278 {offsets = [4, 18], sizes = [2, 16], strides = [1, 1]} : vector<8x288xf32> to vector<2x16xf32>
    %298 = vector.extract_strided_slice %278 {offsets = [6, 18], sizes = [2, 16], strides = [1, 1]} : vector<8x288xf32> to vector<2x16xf32>
    %cst_195 = arith.constant dense<0.000000e+00> : vector<2x32xf32>
    %299 = tpu.matmul %295, %265, %cst_195 {dimension_numbers = #tpu.dot_dimension_numbers<[1], [0], [0], [1], [0, 0, 1, 1], [], []>} : vector<2x16xf32>, vector<16x32xf32>, vector<2x32xf32> -> vector<2x32xf32>
    %cst_196 = arith.constant dense<0.000000e+00> : vector<2x32xf32>
    %300 = tpu.matmul %296, %272, %cst_196 {dimension_numbers = #tpu.dot_dimension_numbers<[1], [0], [0], [1], [0, 0, 1, 1], [], []>} : vector<2x16xf32>, vector<16x32xf32>, vector<2x32xf32> -> vector<2x32xf32>
    %301 = arith.addf %299, %300 : vector<2x32xf32>
    %cst_197 = arith.constant dense<0.000000e+00> : vector<2x32xf32>
    %302 = tpu.matmul %297, %265, %cst_197 {dimension_numbers = #tpu.dot_dimension_numbers<[1], [0], [0], [1], [0, 0, 1, 1], [], []>} : vector<2x16xf32>, vector<16x32xf32>, vector<2x32xf32> -> vector<2x32xf32>
    %cst_198 = arith.constant dense<0.000000e+00> : vector<2x32xf32>
    %303 = tpu.matmul %298, %272, %cst_198 {dimension_numbers = #tpu.dot_dimension_numbers<[1], [0], [0], [1], [0, 0, 1, 1], [], []>} : vector<2x16xf32>, vector<16x32xf32>, vector<2x32xf32> -> vector<2x32xf32>
    %304 = arith.addf %302, %303 : vector<2x32xf32>
    %c0_199 = arith.constant 0 : index
    %c0_200 = arith.constant 0 : index
    %c64 = arith.constant 64 : index
    %305 = vector.load %arg5[%c0_199, %c0_200, %c64] : memref<2x2x1024xf32, #tpu.memory_space<vmem>>, vector<1x2x32xf32>
    %306 = vector.shape_cast %305 : vector<1x2x32xf32> to vector<2x32xf32>
    %307 = vector.shape_cast %301 : vector<2x32xf32> to vector<1x2x32xf32>
    tpu.vector_store %arg5[%c0_199, %c0_200, %c64], %307 {strides = array<i32>} : memref<2x2x1024xf32, #tpu.memory_space<vmem>>, vector<1x2x32xf32>,
    %c0_201 = arith.constant 0 : index
    %c0_202 = arith.constant 0 : index
    %c96 = arith.constant 96 : index
    %308 = vector.load %arg5[%c0_201, %c0_202, %c96] : memref<2x2x1024xf32, #tpu.memory_space<vmem>>, vector<1x2x32xf32>
    %309 = vector.shape_cast %308 : vector<1x2x32xf32> to vector<2x32xf32>
    %310 = vector.shape_cast %304 : vector<2x32xf32> to vector<1x2x32xf32>
    tpu.vector_store %arg5[%c0_201, %c0_202, %c96], %310 {strides = array<i32>} : memref<2x2x1024xf32, #tpu.memory_space<vmem>>, vector<1x2x32xf32>,
    %311 = vector.extract_strided_slice %278 {offsets = [0, 36], sizes = [2, 16], strides = [1, 1]} : vector<8x288xf32> to vector<2x16xf32>
    %312 = vector.extract_strided_slice %278 {offsets = [2, 36], sizes = [2, 16], strides = [1, 1]} : vector<8x288xf32> to vector<2x16xf32>
    %313 = vector.extract_strided_slice %278 {offsets = [4, 36], sizes = [2, 16], strides = [1, 1]} : vector<8x288xf32> to vector<2x16xf32>
    %314 = vector.extract_strided_slice %278 {offsets = [6, 36], sizes = [2, 16], strides = [1, 1]} : vector<8x288xf32> to vector<2x16xf32>
    %cst_203 = arith.constant dense<0.000000e+00> : vector<2x32xf32>
    %315 = tpu.matmul %311, %265, %cst_203 {dimension_numbers = #tpu.dot_dimension_numbers<[1], [0], [0], [1], [0, 0, 1, 1], [], []>} : vector<2x16xf32>, vector<16x32xf32>, vector<2x32xf32> -> vector<2x32xf32>
    %cst_204 = arith.constant dense<0.000000e+00> : vector<2x32xf32>
    %316 = tpu.matmul %312, %272, %cst_204 {dimension_numbers = #tpu.dot_dimension_numbers<[1], [0], [0], [1], [0, 0, 1, 1], [], []>} : vector<2x16xf32>, vector<16x32xf32>, vector<2x32xf32> -> vector<2x32xf32>
    %317 = arith.addf %315, %316 : vector<2x32xf32>
    %cst_205 = arith.constant dense<0.000000e+00> : vector<2x32xf32>
    %318 = tpu.matmul %313, %265, %cst_205 {dimension_numbers = #tpu.dot_dimension_numbers<[1], [0], [0], [1], [0, 0, 1, 1], [], []>} : vector<2x16xf32>, vector<16x32xf32>, vector<2x32xf32> -> vector<2x32xf32>
    %cst_206 = arith.constant dense<0.000000e+00> : vector<2x32xf32>
    %319 = tpu.matmul %314, %272, %cst_206 {dimension_numbers = #tpu.dot_dimension_numbers<[1], [0], [0], [1], [0, 0, 1, 1], [], []>} : vector<2x16xf32>, vector<16x32xf32>, vector<2x32xf32> -> vector<2x32xf32>
    %320 = arith.addf %318, %319 : vector<2x32xf32>
    %c0_207 = arith.constant 0 : index
    %c0_208 = arith.constant 0 : index
    %c128 = arith.constant 128 : index
    %321 = vector.load %arg5[%c0_207, %c0_208, %c128] : memref<2x2x1024xf32, #tpu.memory_space<vmem>>, vector<1x2x32xf32>
    %322 = vector.shape_cast %321 : vector<1x2x32xf32> to vector<2x32xf32>
    %323 = vector.shape_cast %317 : vector<2x32xf32> to vector<1x2x32xf32>
    tpu.vector_store %arg5[%c0_207, %c0_208, %c128], %323 {strides = array<i32>} : memref<2x2x1024xf32, #tpu.memory_space<vmem>>, vector<1x2x32xf32>,
    %c0_209 = arith.constant 0 : index
    %c0_210 = arith.constant 0 : index
    %c160 = arith.constant 160 : index
    %324 = vector.load %arg5[%c0_209, %c0_210, %c160] : memref<2x2x1024xf32, #tpu.memory_space<vmem>>, vector<1x2x32xf32>
    %325 = vector.shape_cast %324 : vector<1x2x32xf32> to vector<2x32xf32>
    %326 = vector.shape_cast %320 : vector<2x32xf32> to vector<1x2x32xf32>
    tpu.vector_store %arg5[%c0_209, %c0_210, %c160], %326 {strides = array<i32>} : memref<2x2x1024xf32, #tpu.memory_space<vmem>>, vector<1x2x32xf32>,
    %327 = vector.extract_strided_slice %278 {offsets = [0, 54], sizes = [2, 16], strides = [1, 1]} : vector<8x288xf32> to vector<2x16xf32>
    %328 = vector.extract_strided_slice %278 {offsets = [2, 54], sizes = [2, 16], strides = [1, 1]} : vector<8x288xf32> to vector<2x16xf32>
    %329 = vector.extract_strided_slice %278 {offsets = [4, 54], sizes = [2, 16], strides = [1, 1]} : vector<8x288xf32> to vector<2x16xf32>
    %330 = vector.extract_strided_slice %278 {offsets = [6, 54], sizes = [2, 16], strides = [1, 1]} : vector<8x288xf32> to vector<2x16xf32>
    %cst_211 = arith.constant dense<0.000000e+00> : vector<2x32xf32>
    %331 = tpu.matmul %327, %265, %cst_211 {dimension_numbers = #tpu.dot_dimension_numbers<[1], [0], [0], [1], [0, 0, 1, 1], [], []>} : vector<2x16xf32>, vector<16x32xf32>, vector<2x32xf32> -> vector<2x32xf32>
    %cst_212 = arith.constant dense<0.000000e+00> : vector<2x32xf32>
    %332 = tpu.matmul %328, %272, %cst_212 {dimension_numbers = #tpu.dot_dimension_numbers<[1], [0], [0], [1], [0, 0, 1, 1], [], []>} : vector<2x16xf32>, vector<16x32xf32>, vector<2x32xf32> -> vector<2x32xf32>
    %333 = arith.addf %331, %332 : vector<2x32xf32>
    %cst_213 = arith.constant dense<0.000000e+00> : vector<2x32xf32>
    %334 = tpu.matmul %329, %265, %cst_213 {dimension_numbers = #tpu.dot_dimension_numbers<[1], [0], [0], [1], [0, 0, 1, 1], [], []>} : vector<2x16xf32>, vector<16x32xf32>, vector<2x32xf32> -> vector<2x32xf32>
    %cst_214 = arith.constant dense<0.000000e+00> : vector<2x32xf32>
    %335 = tpu.matmul %330, %272, %cst_214 {dimension_numbers = #tpu.dot_dimension_numbers<[1], [0], [0], [1], [0, 0, 1, 1], [], []>} : vector<2x16xf32>, vector<16x32xf32>, vector<2x32xf32> -> vector<2x32xf32>
    %336 = arith.addf %334, %335 : vector<2x32xf32>
    %c0_215 = arith.constant 0 : index
    %c0_216 = arith.constant 0 : index
    %c192 = arith.constant 192 : index
    %337 = vector.load %arg5[%c0_215, %c0_216, %c192] : memref<2x2x1024xf32, #tpu.memory_space<vmem>>, vector<1x2x32xf32>
    %338 = vector.shape_cast %337 : vector<1x2x32xf32> to vector<2x32xf32>
    %339 = vector.shape_cast %333 : vector<2x32xf32> to vector<1x2x32xf32>
    tpu.vector_store %arg5[%c0_215, %c0_216, %c192], %339 {strides = array<i32>} : memref<2x2x1024xf32, #tpu.memory_space<vmem>>, vector<1x2x32xf32>,
    %c0_217 = arith.constant 0 : index
    %c0_218 = arith.constant 0 : index
    %c224 = arith.constant 224 : index
    %340 = vector.load %arg5[%c0_217, %c0_218, %c224] : memref<2x2x1024xf32, #tpu.memory_space<vmem>>, vector<1x2x32xf32>
    %341 = vector.shape_cast %340 : vector<1x2x32xf32> to vector<2x32xf32>
    %342 = vector.shape_cast %336 : vector<2x32xf32> to vector<1x2x32xf32>
    tpu.vector_store %arg5[%c0_217, %c0_218, %c224], %342 {strides = array<i32>} : memref<2x2x1024xf32, #tpu.memory_space<vmem>>, vector<1x2x32xf32>,
    %343 = vector.extract_strided_slice %278 {offsets = [0, 72], sizes = [2, 16], strides = [1, 1]} : vector<8x288xf32> to vector<2x16xf32>
    %344 = vector.extract_strided_slice %278 {offsets = [2, 72], sizes = [2, 16], strides = [1, 1]} : vector<8x288xf32> to vector<2x16xf32>
    %345 = vector.extract_strided_slice %278 {offsets = [4, 72], sizes = [2, 16], strides = [1, 1]} : vector<8x288xf32> to vector<2x16xf32>
    %346 = vector.extract_strided_slice %278 {offsets = [6, 72], sizes = [2, 16], strides = [1, 1]} : vector<8x288xf32> to vector<2x16xf32>
    %cst_219 = arith.constant dense<0.000000e+00> : vector<2x32xf32>
    %347 = tpu.matmul %343, %265, %cst_219 {dimension_numbers = #tpu.dot_dimension_numbers<[1], [0], [0], [1], [0, 0, 1, 1], [], []>} : vector<2x16xf32>, vector<16x32xf32>, vector<2x32xf32> -> vector<2x32xf32>
    %cst_220 = arith.constant dense<0.000000e+00> : vector<2x32xf32>
    %348 = tpu.matmul %344, %272, %cst_220 {dimension_numbers = #tpu.dot_dimension_numbers<[1], [0], [0], [1], [0, 0, 1, 1], [], []>} : vector<2x16xf32>, vector<16x32xf32>, vector<2x32xf32> -> vector<2x32xf32>
    %349 = arith.addf %347, %348 : vector<2x32xf32>
    %cst_221 = arith.constant dense<0.000000e+00> : vector<2x32xf32>
    %350 = tpu.matmul %345, %265, %cst_221 {dimension_numbers = #tpu.dot_dimension_numbers<[1], [0], [0], [1], [0, 0, 1, 1], [], []>} : vector<2x16xf32>, vector<16x32xf32>, vector<2x32xf32> -> vector<2x32xf32>
    %cst_222 = arith.constant dense<0.000000e+00> : vector<2x32xf32>
    %351 = tpu.matmul %346, %272, %cst_222 {dimension_numbers = #tpu.dot_dimension_numbers<[1], [0], [0], [1], [0, 0, 1, 1], [], []>} : vector<2x16xf32>, vector<16x32xf32>, vector<2x32xf32> -> vector<2x32xf32>
    %352 = arith.addf %350, %351 : vector<2x32xf32>
    %c0_223 = arith.constant 0 : index
    %c0_224 = arith.constant 0 : index
    %c256 = arith.constant 256 : index
    %353 = vector.load %arg5[%c0_223, %c0_224, %c256] : memref<2x2x1024xf32, #tpu.memory_space<vmem>>, vector<1x2x32xf32>
    %354 = vector.shape_cast %353 : vector<1x2x32xf32> to vector<2x32xf32>
    %355 = vector.shape_cast %349 : vector<2x32xf32> to vector<1x2x32xf32>
    tpu.vector_store %arg5[%c0_223, %c0_224, %c256], %355 {strides = array<i32>} : memref<2x2x1024xf32, #tpu.memory_space<vmem>>, vector<1x2x32xf32>,
    %c0_225 = arith.constant 0 : index
    %c0_226 = arith.constant 0 : index
    %c288 = arith.constant 288 : index
    %356 = vector.load %arg5[%c0_225, %c0_226, %c288] : memref<2x2x1024xf32, #tpu.memory_space<vmem>>, vector<1x2x32xf32>
    %357 = vector.shape_cast %356 : vector<1x2x32xf32> to vector<2x32xf32>
    %358 = vector.shape_cast %352 : vector<2x32xf32> to vector<1x2x32xf32>
    tpu.vector_store %arg5[%c0_225, %c0_226, %c288], %358 {strides = array<i32>} : memref<2x2x1024xf32, #tpu.memory_space<vmem>>, vector<1x2x32xf32>,
    %359 = vector.extract_strided_slice %278 {offsets = [0, 90], sizes = [2, 16], strides = [1, 1]} : vector<8x288xf32> to vector<2x16xf32>
    %360 = vector.extract_strided_slice %278 {offsets = [2, 90], sizes = [2, 16], strides = [1, 1]} : vector<8x288xf32> to vector<2x16xf32>
    %361 = vector.extract_strided_slice %278 {offsets = [4, 90], sizes = [2, 16], strides = [1, 1]} : vector<8x288xf32> to vector<2x16xf32>
    %362 = vector.extract_strided_slice %278 {offsets = [6, 90], sizes = [2, 16], strides = [1, 1]} : vector<8x288xf32> to vector<2x16xf32>
    %cst_227 = arith.constant dense<0.000000e+00> : vector<2x32xf32>
    %363 = tpu.matmul %359, %265, %cst_227 {dimension_numbers = #tpu.dot_dimension_numbers<[1], [0], [0], [1], [0, 0, 1, 1], [], []>} : vector<2x16xf32>, vector<16x32xf32>, vector<2x32xf32> -> vector<2x32xf32>
    %cst_228 = arith.constant dense<0.000000e+00> : vector<2x32xf32>
    %364 = tpu.matmul %360, %272, %cst_228 {dimension_numbers = #tpu.dot_dimension_numbers<[1], [0], [0], [1], [0, 0, 1, 1], [], []>} : vector<2x16xf32>, vector<16x32xf32>, vector<2x32xf32> -> vector<2x32xf32>
    %365 = arith.addf %363, %364 : vector<2x32xf32>
    %cst_229 = arith.constant dense<0.000000e+00> : vector<2x32xf32>
    %366 = tpu.matmul %361, %265, %cst_229 {dimension_numbers = #tpu.dot_dimension_numbers<[1], [0], [0], [1], [0, 0, 1, 1], [], []>} : vector<2x16xf32>, vector<16x32xf32>, vector<2x32xf32> -> vector<2x32xf32>
    %cst_230 = arith.constant dense<0.000000e+00> : vector<2x32xf32>
    %367 = tpu.matmul %362, %272, %cst_230 {dimension_numbers = #tpu.dot_dimension_numbers<[1], [0], [0], [1], [0, 0, 1, 1], [], []>} : vector<2x16xf32>, vector<16x32xf32>, vector<2x32xf32> -> vector<2x32xf32>
    %368 = arith.addf %366, %367 : vector<2x32xf32>
    %c0_231 = arith.constant 0 : index
    %c0_232 = arith.constant 0 : index
    %c320 = arith.constant 320 : index
    %369 = vector.load %arg5[%c0_231, %c0_232, %c320] : memref<2x2x1024xf32, #tpu.memory_space<vmem>>, vector<1x2x32xf32>
    %370 = vector.shape_cast %369 : vector<1x2x32xf32> to vector<2x32xf32>
    %371 = vector.shape_cast %365 : vector<2x32xf32> to vector<1x2x32xf32>
    tpu.vector_store %arg5[%c0_231, %c0_232, %c320], %371 {strides = array<i32>} : memref<2x2x1024xf32, #tpu.memory_space<vmem>>, vector<1x2x32xf32>,
    %c0_233 = arith.constant 0 : index
    %c0_234 = arith.constant 0 : index
    %c352 = arith.constant 352 : index
    %372 = vector.load %arg5[%c0_233, %c0_234, %c352] : memref<2x2x1024xf32, #tpu.memory_space<vmem>>, vector<1x2x32xf32>
    %373 = vector.shape_cast %372 : vector<1x2x32xf32> to vector<2x32xf32>
    %374 = vector.shape_cast %368 : vector<2x32xf32> to vector<1x2x32xf32>
    tpu.vector_store %arg5[%c0_233, %c0_234, %c352], %374 {strides = array<i32>} : memref<2x2x1024xf32, #tpu.memory_space<vmem>>, vector<1x2x32xf32>,
    %375 = vector.extract_strided_slice %278 {offsets = [0, 108], sizes = [2, 16], strides = [1, 1]} : vector<8x288xf32> to vector<2x16xf32>
    %376 = vector.extract_strided_slice %278 {offsets = [2, 108], sizes = [2, 16], strides = [1, 1]} : vector<8x288xf32> to vector<2x16xf32>
    %377 = vector.extract_strided_slice %278 {offsets = [4, 108], sizes = [2, 16], strides = [1, 1]} : vector<8x288xf32> to vector<2x16xf32>
    %378 = vector.extract_strided_slice %278 {offsets = [6, 108], sizes = [2, 16], strides = [1, 1]} : vector<8x288xf32> to vector<2x16xf32>
    %cst_235 = arith.constant dense<0.000000e+00> : vector<2x32xf32>
    %379 = tpu.matmul %375, %265, %cst_235 {dimension_numbers = #tpu.dot_dimension_numbers<[1], [0], [0], [1], [0, 0, 1, 1], [], []>} : vector<2x16xf32>, vector<16x32xf32>, vector<2x32xf32> -> vector<2x32xf32>
    %cst_236 = arith.constant dense<0.000000e+00> : vector<2x32xf32>
    %380 = tpu.matmul %376, %272, %cst_236 {dimension_numbers = #tpu.dot_dimension_numbers<[1], [0], [0], [1], [0, 0, 1, 1], [], []>} : vector<2x16xf32>, vector<16x32xf32>, vector<2x32xf32> -> vector<2x32xf32>
    %381 = arith.addf %379, %380 : vector<2x32xf32>
    %cst_237 = arith.constant dense<0.000000e+00> : vector<2x32xf32>
    %382 = tpu.matmul %377, %265, %cst_237 {dimension_numbers = #tpu.dot_dimension_numbers<[1], [0], [0], [1], [0, 0, 1, 1], [], []>} : vector<2x16xf32>, vector<16x32xf32>, vector<2x32xf32> -> vector<2x32xf32>
    %cst_238 = arith.constant dense<0.000000e+00> : vector<2x32xf32>
    %383 = tpu.matmul %378, %272, %cst_238 {dimension_numbers = #tpu.dot_dimension_numbers<[1], [0], [0], [1], [0, 0, 1, 1], [], []>} : vector<2x16xf32>, vector<16x32xf32>, vector<2x32xf32> -> vector<2x32xf32>
    %384 = arith.addf %382, %383 : vector<2x32xf32>
    %c0_239 = arith.constant 0 : index
    %c0_240 = arith.constant 0 : index
    %c384 = arith.constant 384 : index
    %385 = vector.load %arg5[%c0_239, %c0_240, %c384] : memref<2x2x1024xf32, #tpu.memory_space<vmem>>, vector<1x2x32xf32>
    %386 = vector.shape_cast %385 : vector<1x2x32xf32> to vector<2x32xf32>
    %387 = vector.shape_cast %381 : vector<2x32xf32> to vector<1x2x32xf32>
    tpu.vector_store %arg5[%c0_239, %c0_240, %c384], %387 {strides = array<i32>} : memref<2x2x1024xf32, #tpu.memory_space<vmem>>, vector<1x2x32xf32>,
    %c0_241 = arith.constant 0 : index
    %c0_242 = arith.constant 0 : index
    %c416 = arith.constant 416 : index
    %388 = vector.load %arg5[%c0_241, %c0_242, %c416] : memref<2x2x1024xf32, #tpu.memory_space<vmem>>, vector<1x2x32xf32>
    %389 = vector.shape_cast %388 : vector<1x2x32xf32> to vector<2x32xf32>
    %390 = vector.shape_cast %384 : vector<2x32xf32> to vector<1x2x32xf32>
    tpu.vector_store %arg5[%c0_241, %c0_242, %c416], %390 {strides = array<i32>} : memref<2x2x1024xf32, #tpu.memory_space<vmem>>, vector<1x2x32xf32>,
    %391 = vector.extract_strided_slice %278 {offsets = [0, 126], sizes = [2, 16], strides = [1, 1]} : vector<8x288xf32> to vector<2x16xf32>
    %392 = vector.extract_strided_slice %278 {offsets = [2, 126], sizes = [2, 16], strides = [1, 1]} : vector<8x288xf32> to vector<2x16xf32>
    %393 = vector.extract_strided_slice %278 {offsets = [4, 126], sizes = [2, 16], strides = [1, 1]} : vector<8x288xf32> to vector<2x16xf32>
    %394 = vector.extract_strided_slice %278 {offsets = [6, 126], sizes = [2, 16], strides = [1, 1]} : vector<8x288xf32> to vector<2x16xf32>
    %cst_243 = arith.constant dense<0.000000e+00> : vector<2x32xf32>
    %395 = tpu.matmul %391, %265, %cst_243 {dimension_numbers = #tpu.dot_dimension_numbers<[1], [0], [0], [1], [0, 0, 1, 1], [], []>} : vector<2x16xf32>, vector<16x32xf32>, vector<2x32xf32> -> vector<2x32xf32>
    %cst_244 = arith.constant dense<0.000000e+00> : vector<2x32xf32>
    %396 = tpu.matmul %392, %272, %cst_244 {dimension_numbers = #tpu.dot_dimension_numbers<[1], [0], [0], [1], [0, 0, 1, 1], [], []>} : vector<2x16xf32>, vector<16x32xf32>, vector<2x32xf32> -> vector<2x32xf32>
    %397 = arith.addf %395, %396 : vector<2x32xf32>
    %cst_245 = arith.constant dense<0.000000e+00> : vector<2x32xf32>
    %398 = tpu.matmul %393, %265, %cst_245 {dimension_numbers = #tpu.dot_dimension_numbers<[1], [0], [0], [1], [0, 0, 1, 1], [], []>} : vector<2x16xf32>, vector<16x32xf32>, vector<2x32xf32> -> vector<2x32xf32>
    %cst_246 = arith.constant dense<0.000000e+00> : vector<2x32xf32>
    %399 = tpu.matmul %394, %272, %cst_246 {dimension_numbers = #tpu.dot_dimension_numbers<[1], [0], [0], [1], [0, 0, 1, 1], [], []>} : vector<2x16xf32>, vector<16x32xf32>, vector<2x32xf32> -> vector<2x32xf32>
    %400 = arith.addf %398, %399 : vector<2x32xf32>
    %c0_247 = arith.constant 0 : index
    %c0_248 = arith.constant 0 : index
    %c448 = arith.constant 448 : index
    %401 = vector.load %arg5[%c0_247, %c0_248, %c448] : memref<2x2x1024xf32, #tpu.memory_space<vmem>>, vector<1x2x32xf32>
    %402 = vector.shape_cast %401 : vector<1x2x32xf32> to vector<2x32xf32>
    %403 = vector.shape_cast %397 : vector<2x32xf32> to vector<1x2x32xf32>
    tpu.vector_store %arg5[%c0_247, %c0_248, %c448], %403 {strides = array<i32>} : memref<2x2x1024xf32, #tpu.memory_space<vmem>>, vector<1x2x32xf32>,
    %c0_249 = arith.constant 0 : index
    %c0_250 = arith.constant 0 : index
    %c480 = arith.constant 480 : index
    %404 = vector.load %arg5[%c0_249, %c0_250, %c480] : memref<2x2x1024xf32, #tpu.memory_space<vmem>>, vector<1x2x32xf32>
    %405 = vector.shape_cast %404 : vector<1x2x32xf32> to vector<2x32xf32>
    %406 = vector.shape_cast %400 : vector<2x32xf32> to vector<1x2x32xf32>
    tpu.vector_store %arg5[%c0_249, %c0_250, %c480], %406 {strides = array<i32>} : memref<2x2x1024xf32, #tpu.memory_space<vmem>>, vector<1x2x32xf32>,
    %407 = vector.extract_strided_slice %278 {offsets = [0, 144], sizes = [2, 16], strides = [1, 1]} : vector<8x288xf32> to vector<2x16xf32>
    %408 = vector.extract_strided_slice %278 {offsets = [2, 144], sizes = [2, 16], strides = [1, 1]} : vector<8x288xf32> to vector<2x16xf32>
    %409 = vector.extract_strided_slice %278 {offsets = [4, 144], sizes = [2, 16], strides = [1, 1]} : vector<8x288xf32> to vector<2x16xf32>
    %410 = vector.extract_strided_slice %278 {offsets = [6, 144], sizes = [2, 16], strides = [1, 1]} : vector<8x288xf32> to vector<2x16xf32>
    %cst_251 = arith.constant dense<0.000000e+00> : vector<2x32xf32>
    %411 = tpu.matmul %407, %265, %cst_251 {dimension_numbers = #tpu.dot_dimension_numbers<[1], [0], [0], [1], [0, 0, 1, 1], [], []>} : vector<2x16xf32>, vector<16x32xf32>, vector<2x32xf32> -> vector<2x32xf32>
    %cst_252 = arith.constant dense<0.000000e+00> : vector<2x32xf32>
    %412 = tpu.matmul %408, %272, %cst_252 {dimension_numbers = #tpu.dot_dimension_numbers<[1], [0], [0], [1], [0, 0, 1, 1], [], []>} : vector<2x16xf32>, vector<16x32xf32>, vector<2x32xf32> -> vector<2x32xf32>
    %413 = arith.addf %411, %412 : vector<2x32xf32>
    %cst_253 = arith.constant dense<0.000000e+00> : vector<2x32xf32>
    %414 = tpu.matmul %409, %265, %cst_253 {dimension_numbers = #tpu.dot_dimension_numbers<[1], [0], [0], [1], [0, 0, 1, 1], [], []>} : vector<2x16xf32>, vector<16x32xf32>, vector<2x32xf32> -> vector<2x32xf32>
    %cst_254 = arith.constant dense<0.000000e+00> : vector<2x32xf32>
    %415 = tpu.matmul %410, %272, %cst_254 {dimension_numbers = #tpu.dot_dimension_numbers<[1], [0], [0], [1], [0, 0, 1, 1], [], []>} : vector<2x16xf32>, vector<16x32xf32>, vector<2x32xf32> -> vector<2x32xf32>
    %416 = arith.addf %414, %415 : vector<2x32xf32>
    %c0_255 = arith.constant 0 : index
    %c0_256 = arith.constant 0 : index
    %c512 = arith.constant 512 : index
    %417 = vector.load %arg5[%c0_255, %c0_256, %c512] : memref<2x2x1024xf32, #tpu.memory_space<vmem>>, vector<1x2x32xf32>
    %418 = vector.shape_cast %417 : vector<1x2x32xf32> to vector<2x32xf32>
    %419 = vector.shape_cast %413 : vector<2x32xf32> to vector<1x2x32xf32>
    tpu.vector_store %arg5[%c0_255, %c0_256, %c512], %419 {strides = array<i32>} : memref<2x2x1024xf32, #tpu.memory_space<vmem>>, vector<1x2x32xf32>,
    %c0_257 = arith.constant 0 : index
    %c0_258 = arith.constant 0 : index
    %c544 = arith.constant 544 : index
    %420 = vector.load %arg5[%c0_257, %c0_258, %c544] : memref<2x2x1024xf32, #tpu.memory_space<vmem>>, vector<1x2x32xf32>
    %421 = vector.shape_cast %420 : vector<1x2x32xf32> to vector<2x32xf32>
    %422 = vector.shape_cast %416 : vector<2x32xf32> to vector<1x2x32xf32>
    tpu.vector_store %arg5[%c0_257, %c0_258, %c544], %422 {strides = array<i32>} : memref<2x2x1024xf32, #tpu.memory_space<vmem>>, vector<1x2x32xf32>,
    %423 = vector.extract_strided_slice %278 {offsets = [0, 162], sizes = [2, 16], strides = [1, 1]} : vector<8x288xf32> to vector<2x16xf32>
    %424 = vector.extract_strided_slice %278 {offsets = [2, 162], sizes = [2, 16], strides = [1, 1]} : vector<8x288xf32> to vector<2x16xf32>
    %425 = vector.extract_strided_slice %278 {offsets = [4, 162], sizes = [2, 16], strides = [1, 1]} : vector<8x288xf32> to vector<2x16xf32>
    %426 = vector.extract_strided_slice %278 {offsets = [6, 162], sizes = [2, 16], strides = [1, 1]} : vector<8x288xf32> to vector<2x16xf32>
    %cst_259 = arith.constant dense<0.000000e+00> : vector<2x32xf32>
    %427 = tpu.matmul %423, %265, %cst_259 {dimension_numbers = #tpu.dot_dimension_numbers<[1], [0], [0], [1], [0, 0, 1, 1], [], []>} : vector<2x16xf32>, vector<16x32xf32>, vector<2x32xf32> -> vector<2x32xf32>
    %cst_260 = arith.constant dense<0.000000e+00> : vector<2x32xf32>
    %428 = tpu.matmul %424, %272, %cst_260 {dimension_numbers = #tpu.dot_dimension_numbers<[1], [0], [0], [1], [0, 0, 1, 1], [], []>} : vector<2x16xf32>, vector<16x32xf32>, vector<2x32xf32> -> vector<2x32xf32>
    %429 = arith.addf %427, %428 : vector<2x32xf32>
    %cst_261 = arith.constant dense<0.000000e+00> : vector<2x32xf32>
    %430 = tpu.matmul %425, %265, %cst_261 {dimension_numbers = #tpu.dot_dimension_numbers<[1], [0], [0], [1], [0, 0, 1, 1], [], []>} : vector<2x16xf32>, vector<16x32xf32>, vector<2x32xf32> -> vector<2x32xf32>
    %cst_262 = arith.constant dense<0.000000e+00> : vector<2x32xf32>
    %431 = tpu.matmul %426, %272, %cst_262 {dimension_numbers = #tpu.dot_dimension_numbers<[1], [0], [0], [1], [0, 0, 1, 1], [], []>} : vector<2x16xf32>, vector<16x32xf32>, vector<2x32xf32> -> vector<2x32xf32>
    %432 = arith.addf %430, %431 : vector<2x32xf32>
    %c0_263 = arith.constant 0 : index
    %c0_264 = arith.constant 0 : index
    %c576 = arith.constant 576 : index
    %433 = vector.load %arg5[%c0_263, %c0_264, %c576] : memref<2x2x1024xf32, #tpu.memory_space<vmem>>, vector<1x2x32xf32>
    %434 = vector.shape_cast %433 : vector<1x2x32xf32> to vector<2x32xf32>
    %435 = vector.shape_cast %429 : vector<2x32xf32> to vector<1x2x32xf32>
    tpu.vector_store %arg5[%c0_263, %c0_264, %c576], %435 {strides = array<i32>} : memref<2x2x1024xf32, #tpu.memory_space<vmem>>, vector<1x2x32xf32>,
    %c0_265 = arith.constant 0 : index
    %c0_266 = arith.constant 0 : index
    %c608 = arith.constant 608 : index
    %436 = vector.load %arg5[%c0_265, %c0_266, %c608] : memref<2x2x1024xf32, #tpu.memory_space<vmem>>, vector<1x2x32xf32>
    %437 = vector.shape_cast %436 : vector<1x2x32xf32> to vector<2x32xf32>
    %438 = vector.shape_cast %432 : vector<2x32xf32> to vector<1x2x32xf32>
    tpu.vector_store %arg5[%c0_265, %c0_266, %c608], %438 {strides = array<i32>} : memref<2x2x1024xf32, #tpu.memory_space<vmem>>, vector<1x2x32xf32>,
    %439 = vector.extract_strided_slice %278 {offsets = [0, 180], sizes = [2, 16], strides = [1, 1]} : vector<8x288xf32> to vector<2x16xf32>
    %440 = vector.extract_strided_slice %278 {offsets = [2, 180], sizes = [2, 16], strides = [1, 1]} : vector<8x288xf32> to vector<2x16xf32>
    %441 = vector.extract_strided_slice %278 {offsets = [4, 180], sizes = [2, 16], strides = [1, 1]} : vector<8x288xf32> to vector<2x16xf32>
    %442 = vector.extract_strided_slice %278 {offsets = [6, 180], sizes = [2, 16], strides = [1, 1]} : vector<8x288xf32> to vector<2x16xf32>
    %cst_267 = arith.constant dense<0.000000e+00> : vector<2x32xf32>
    %443 = tpu.matmul %439, %265, %cst_267 {dimension_numbers = #tpu.dot_dimension_numbers<[1], [0], [0], [1], [0, 0, 1, 1], [], []>} : vector<2x16xf32>, vector<16x32xf32>, vector<2x32xf32> -> vector<2x32xf32>
    %cst_268 = arith.constant dense<0.000000e+00> : vector<2x32xf32>
    %444 = tpu.matmul %440, %272, %cst_268 {dimension_numbers = #tpu.dot_dimension_numbers<[1], [0], [0], [1], [0, 0, 1, 1], [], []>} : vector<2x16xf32>, vector<16x32xf32>, vector<2x32xf32> -> vector<2x32xf32>
    %445 = arith.addf %443, %444 : vector<2x32xf32>
    %cst_269 = arith.constant dense<0.000000e+00> : vector<2x32xf32>
    %446 = tpu.matmul %441, %265, %cst_269 {dimension_numbers = #tpu.dot_dimension_numbers<[1], [0], [0], [1], [0, 0, 1, 1], [], []>} : vector<2x16xf32>, vector<16x32xf32>, vector<2x32xf32> -> vector<2x32xf32>
    %cst_270 = arith.constant dense<0.000000e+00> : vector<2x32xf32>
    %447 = tpu.matmul %442, %272, %cst_270 {dimension_numbers = #tpu.dot_dimension_numbers<[1], [0], [0], [1], [0, 0, 1, 1], [], []>} : vector<2x16xf32>, vector<16x32xf32>, vector<2x32xf32> -> vector<2x32xf32>
    %448 = arith.addf %446, %447 : vector<2x32xf32>
    %c0_271 = arith.constant 0 : index
    %c0_272 = arith.constant 0 : index
    %c640 = arith.constant 640 : index
    %449 = vector.load %arg5[%c0_271, %c0_272, %c640] : memref<2x2x1024xf32, #tpu.memory_space<vmem>>, vector<1x2x32xf32>
    %450 = vector.shape_cast %449 : vector<1x2x32xf32> to vector<2x32xf32>
    %451 = vector.shape_cast %445 : vector<2x32xf32> to vector<1x2x32xf32>
    tpu.vector_store %arg5[%c0_271, %c0_272, %c640], %451 {strides = array<i32>} : memref<2x2x1024xf32, #tpu.memory_space<vmem>>, vector<1x2x32xf32>,
    %c0_273 = arith.constant 0 : index
    %c0_274 = arith.constant 0 : index
    %c672 = arith.constant 672 : index
    %452 = vector.load %arg5[%c0_273, %c0_274, %c672] : memref<2x2x1024xf32, #tpu.memory_space<vmem>>, vector<1x2x32xf32>
    %453 = vector.shape_cast %452 : vector<1x2x32xf32> to vector<2x32xf32>
    %454 = vector.shape_cast %448 : vector<2x32xf32> to vector<1x2x32xf32>
    tpu.vector_store %arg5[%c0_273, %c0_274, %c672], %454 {strides = array<i32>} : memref<2x2x1024xf32, #tpu.memory_space<vmem>>, vector<1x2x32xf32>,
    %455 = vector.extract_strided_slice %278 {offsets = [0, 198], sizes = [2, 16], strides = [1, 1]} : vector<8x288xf32> to vector<2x16xf32>
    %456 = vector.extract_strided_slice %278 {offsets = [2, 198], sizes = [2, 16], strides = [1, 1]} : vector<8x288xf32> to vector<2x16xf32>
    %457 = vector.extract_strided_slice %278 {offsets = [4, 198], sizes = [2, 16], strides = [1, 1]} : vector<8x288xf32> to vector<2x16xf32>
    %458 = vector.extract_strided_slice %278 {offsets = [6, 198], sizes = [2, 16], strides = [1, 1]} : vector<8x288xf32> to vector<2x16xf32>
    %cst_275 = arith.constant dense<0.000000e+00> : vector<2x32xf32>
    %459 = tpu.matmul %455, %265, %cst_275 {dimension_numbers = #tpu.dot_dimension_numbers<[1], [0], [0], [1], [0, 0, 1, 1], [], []>} : vector<2x16xf32>, vector<16x32xf32>, vector<2x32xf32> -> vector<2x32xf32>
    %cst_276 = arith.constant dense<0.000000e+00> : vector<2x32xf32>
    %460 = tpu.matmul %456, %272, %cst_276 {dimension_numbers = #tpu.dot_dimension_numbers<[1], [0], [0], [1], [0, 0, 1, 1], [], []>} : vector<2x16xf32>, vector<16x32xf32>, vector<2x32xf32> -> vector<2x32xf32>
    %461 = arith.addf %459, %460 : vector<2x32xf32>
    %cst_277 = arith.constant dense<0.000000e+00> : vector<2x32xf32>
    %462 = tpu.matmul %457, %265, %cst_277 {dimension_numbers = #tpu.dot_dimension_numbers<[1], [0], [0], [1], [0, 0, 1, 1], [], []>} : vector<2x16xf32>, vector<16x32xf32>, vector<2x32xf32> -> vector<2x32xf32>
    %cst_278 = arith.constant dense<0.000000e+00> : vector<2x32xf32>
    %463 = tpu.matmul %458, %272, %cst_278 {dimension_numbers = #tpu.dot_dimension_numbers<[1], [0], [0], [1], [0, 0, 1, 1], [], []>} : vector<2x16xf32>, vector<16x32xf32>, vector<2x32xf32> -> vector<2x32xf32>
    %464 = arith.addf %462, %463 : vector<2x32xf32>
    %c0_279 = arith.constant 0 : index
    %c0_280 = arith.constant 0 : index
    %c704 = arith.constant 704 : index
    %465 = vector.load %arg5[%c0_279, %c0_280, %c704] : memref<2x2x1024xf32, #tpu.memory_space<vmem>>, vector<1x2x32xf32>
    %466 = vector.shape_cast %465 : vector<1x2x32xf32> to vector<2x32xf32>
    %467 = vector.shape_cast %461 : vector<2x32xf32> to vector<1x2x32xf32>
    tpu.vector_store %arg5[%c0_279, %c0_280, %c704], %467 {strides = array<i32>} : memref<2x2x1024xf32, #tpu.memory_space<vmem>>, vector<1x2x32xf32>,
    %c0_281 = arith.constant 0 : index
    %c0_282 = arith.constant 0 : index
    %c736 = arith.constant 736 : index
    %468 = vector.load %arg5[%c0_281, %c0_282, %c736] : memref<2x2x1024xf32, #tpu.memory_space<vmem>>, vector<1x2x32xf32>
    %469 = vector.shape_cast %468 : vector<1x2x32xf32> to vector<2x32xf32>
    %470 = vector.shape_cast %464 : vector<2x32xf32> to vector<1x2x32xf32>
    tpu.vector_store %arg5[%c0_281, %c0_282, %c736], %470 {strides = array<i32>} : memref<2x2x1024xf32, #tpu.memory_space<vmem>>, vector<1x2x32xf32>,
    %471 = vector.extract_strided_slice %278 {offsets = [0, 216], sizes = [2, 16], strides = [1, 1]} : vector<8x288xf32> to vector<2x16xf32>
    %472 = vector.extract_strided_slice %278 {offsets = [2, 216], sizes = [2, 16], strides = [1, 1]} : vector<8x288xf32> to vector<2x16xf32>
    %473 = vector.extract_strided_slice %278 {offsets = [4, 216], sizes = [2, 16], strides = [1, 1]} : vector<8x288xf32> to vector<2x16xf32>
    %474 = vector.extract_strided_slice %278 {offsets = [6, 216], sizes = [2, 16], strides = [1, 1]} : vector<8x288xf32> to vector<2x16xf32>
    %cst_283 = arith.constant dense<0.000000e+00> : vector<2x32xf32>
    %475 = tpu.matmul %471, %265, %cst_283 {dimension_numbers = #tpu.dot_dimension_numbers<[1], [0], [0], [1], [0, 0, 1, 1], [], []>} : vector<2x16xf32>, vector<16x32xf32>, vector<2x32xf32> -> vector<2x32xf32>
    %cst_284 = arith.constant dense<0.000000e+00> : vector<2x32xf32>
    %476 = tpu.matmul %472, %272, %cst_284 {dimension_numbers = #tpu.dot_dimension_numbers<[1], [0], [0], [1], [0, 0, 1, 1], [], []>} : vector<2x16xf32>, vector<16x32xf32>, vector<2x32xf32> -> vector<2x32xf32>
    %477 = arith.addf %475, %476 : vector<2x32xf32>
    %cst_285 = arith.constant dense<0.000000e+00> : vector<2x32xf32>
    %478 = tpu.matmul %473, %265, %cst_285 {dimension_numbers = #tpu.dot_dimension_numbers<[1], [0], [0], [1], [0, 0, 1, 1], [], []>} : vector<2x16xf32>, vector<16x32xf32>, vector<2x32xf32> -> vector<2x32xf32>
    %cst_286 = arith.constant dense<0.000000e+00> : vector<2x32xf32>
    %479 = tpu.matmul %474, %272, %cst_286 {dimension_numbers = #tpu.dot_dimension_numbers<[1], [0], [0], [1], [0, 0, 1, 1], [], []>} : vector<2x16xf32>, vector<16x32xf32>, vector<2x32xf32> -> vector<2x32xf32>
    %480 = arith.addf %478, %479 : vector<2x32xf32>
    %c0_287 = arith.constant 0 : index
    %c0_288 = arith.constant 0 : index
    %c768 = arith.constant 768 : index
    %481 = vector.load %arg5[%c0_287, %c0_288, %c768] : memref<2x2x1024xf32, #tpu.memory_space<vmem>>, vector<1x2x32xf32>
    %482 = vector.shape_cast %481 : vector<1x2x32xf32> to vector<2x32xf32>
    %483 = vector.shape_cast %477 : vector<2x32xf32> to vector<1x2x32xf32>
    tpu.vector_store %arg5[%c0_287, %c0_288, %c768], %483 {strides = array<i32>} : memref<2x2x1024xf32, #tpu.memory_space<vmem>>, vector<1x2x32xf32>,
    %c0_289 = arith.constant 0 : index
    %c0_290 = arith.constant 0 : index
    %c800 = arith.constant 800 : index
    %484 = vector.load %arg5[%c0_289, %c0_290, %c800] : memref<2x2x1024xf32, #tpu.memory_space<vmem>>, vector<1x2x32xf32>
    %485 = vector.shape_cast %484 : vector<1x2x32xf32> to vector<2x32xf32>
    %486 = vector.shape_cast %480 : vector<2x32xf32> to vector<1x2x32xf32>
    tpu.vector_store %arg5[%c0_289, %c0_290, %c800], %486 {strides = array<i32>} : memref<2x2x1024xf32, #tpu.memory_space<vmem>>, vector<1x2x32xf32>,
    %487 = vector.extract_strided_slice %278 {offsets = [0, 234], sizes = [2, 16], strides = [1, 1]} : vector<8x288xf32> to vector<2x16xf32>
    %488 = vector.extract_strided_slice %278 {offsets = [2, 234], sizes = [2, 16], strides = [1, 1]} : vector<8x288xf32> to vector<2x16xf32>
    %489 = vector.extract_strided_slice %278 {offsets = [4, 234], sizes = [2, 16], strides = [1, 1]} : vector<8x288xf32> to vector<2x16xf32>
    %490 = vector.extract_strided_slice %278 {offsets = [6, 234], sizes = [2, 16], strides = [1, 1]} : vector<8x288xf32> to vector<2x16xf32>
    %cst_291 = arith.constant dense<0.000000e+00> : vector<2x32xf32>
    %491 = tpu.matmul %487, %265, %cst_291 {dimension_numbers = #tpu.dot_dimension_numbers<[1], [0], [0], [1], [0, 0, 1, 1], [], []>} : vector<2x16xf32>, vector<16x32xf32>, vector<2x32xf32> -> vector<2x32xf32>
    %cst_292 = arith.constant dense<0.000000e+00> : vector<2x32xf32>
    %492 = tpu.matmul %488, %272, %cst_292 {dimension_numbers = #tpu.dot_dimension_numbers<[1], [0], [0], [1], [0, 0, 1, 1], [], []>} : vector<2x16xf32>, vector<16x32xf32>, vector<2x32xf32> -> vector<2x32xf32>
    %493 = arith.addf %491, %492 : vector<2x32xf32>
    %cst_293 = arith.constant dense<0.000000e+00> : vector<2x32xf32>
    %494 = tpu.matmul %489, %265, %cst_293 {dimension_numbers = #tpu.dot_dimension_numbers<[1], [0], [0], [1], [0, 0, 1, 1], [], []>} : vector<2x16xf32>, vector<16x32xf32>, vector<2x32xf32> -> vector<2x32xf32>
    %cst_294 = arith.constant dense<0.000000e+00> : vector<2x32xf32>
    %495 = tpu.matmul %490, %272, %cst_294 {dimension_numbers = #tpu.dot_dimension_numbers<[1], [0], [0], [1], [0, 0, 1, 1], [], []>} : vector<2x16xf32>, vector<16x32xf32>, vector<2x32xf32> -> vector<2x32xf32>
    %496 = arith.addf %494, %495 : vector<2x32xf32>
    %c0_295 = arith.constant 0 : index
    %c0_296 = arith.constant 0 : index
    %c832 = arith.constant 832 : index
    %497 = vector.load %arg5[%c0_295, %c0_296, %c832] : memref<2x2x1024xf32, #tpu.memory_space<vmem>>, vector<1x2x32xf32>
    %498 = vector.shape_cast %497 : vector<1x2x32xf32> to vector<2x32xf32>
    %499 = vector.shape_cast %493 : vector<2x32xf32> to vector<1x2x32xf32>
    tpu.vector_store %arg5[%c0_295, %c0_296, %c832], %499 {strides = array<i32>} : memref<2x2x1024xf32, #tpu.memory_space<vmem>>, vector<1x2x32xf32>,
    %c0_297 = arith.constant 0 : index
    %c0_298 = arith.constant 0 : index
    %c864 = arith.constant 864 : index
    %500 = vector.load %arg5[%c0_297, %c0_298, %c864] : memref<2x2x1024xf32, #tpu.memory_space<vmem>>, vector<1x2x32xf32>
    %501 = vector.shape_cast %500 : vector<1x2x32xf32> to vector<2x32xf32>
    %502 = vector.shape_cast %496 : vector<2x32xf32> to vector<1x2x32xf32>
    tpu.vector_store %arg5[%c0_297, %c0_298, %c864], %502 {strides = array<i32>} : memref<2x2x1024xf32, #tpu.memory_space<vmem>>, vector<1x2x32xf32>,
    %503 = vector.extract_strided_slice %278 {offsets = [0, 252], sizes = [2, 16], strides = [1, 1]} : vector<8x288xf32> to vector<2x16xf32>
    %504 = vector.extract_strided_slice %278 {offsets = [2, 252], sizes = [2, 16], strides = [1, 1]} : vector<8x288xf32> to vector<2x16xf32>
    %505 = vector.extract_strided_slice %278 {offsets = [4, 252], sizes = [2, 16], strides = [1, 1]} : vector<8x288xf32> to vector<2x16xf32>
    %506 = vector.extract_strided_slice %278 {offsets = [6, 252], sizes = [2, 16], strides = [1, 1]} : vector<8x288xf32> to vector<2x16xf32>
    %cst_299 = arith.constant dense<0.000000e+00> : vector<2x32xf32>
    %507 = tpu.matmul %503, %265, %cst_299 {dimension_numbers = #tpu.dot_dimension_numbers<[1], [0], [0], [1], [0, 0, 1, 1], [], []>} : vector<2x16xf32>, vector<16x32xf32>, vector<2x32xf32> -> vector<2x32xf32>
    %cst_300 = arith.constant dense<0.000000e+00> : vector<2x32xf32>
    %508 = tpu.matmul %504, %272, %cst_300 {dimension_numbers = #tpu.dot_dimension_numbers<[1], [0], [0], [1], [0, 0, 1, 1], [], []>} : vector<2x16xf32>, vector<16x32xf32>, vector<2x32xf32> -> vector<2x32xf32>
    %509 = arith.addf %507, %508 : vector<2x32xf32>
    %cst_301 = arith.constant dense<0.000000e+00> : vector<2x32xf32>
    %510 = tpu.matmul %505, %265, %cst_301 {dimension_numbers = #tpu.dot_dimension_numbers<[1], [0], [0], [1], [0, 0, 1, 1], [], []>} : vector<2x16xf32>, vector<16x32xf32>, vector<2x32xf32> -> vector<2x32xf32>
    %cst_302 = arith.constant dense<0.000000e+00> : vector<2x32xf32>
    %511 = tpu.matmul %506, %272, %cst_302 {dimension_numbers = #tpu.dot_dimension_numbers<[1], [0], [0], [1], [0, 0, 1, 1], [], []>} : vector<2x16xf32>, vector<16x32xf32>, vector<2x32xf32> -> vector<2x32xf32>
    %512 = arith.addf %510, %511 : vector<2x32xf32>
    %c0_303 = arith.constant 0 : index
    %c0_304 = arith.constant 0 : index
    %c896 = arith.constant 896 : index
    %513 = vector.load %arg5[%c0_303, %c0_304, %c896] : memref<2x2x1024xf32, #tpu.memory_space<vmem>>, vector<1x2x32xf32>
    %514 = vector.shape_cast %513 : vector<1x2x32xf32> to vector<2x32xf32>
    %515 = vector.shape_cast %509 : vector<2x32xf32> to vector<1x2x32xf32>
    tpu.vector_store %arg5[%c0_303, %c0_304, %c896], %515 {strides = array<i32>} : memref<2x2x1024xf32, #tpu.memory_space<vmem>>, vector<1x2x32xf32>,
    %c0_305 = arith.constant 0 : index
    %c0_306 = arith.constant 0 : index
    %c928 = arith.constant 928 : index
    %516 = vector.load %arg5[%c0_305, %c0_306, %c928] : memref<2x2x1024xf32, #tpu.memory_space<vmem>>, vector<1x2x32xf32>
    %517 = vector.shape_cast %516 : vector<1x2x32xf32> to vector<2x32xf32>
    %518 = vector.shape_cast %512 : vector<2x32xf32> to vector<1x2x32xf32>
    tpu.vector_store %arg5[%c0_305, %c0_306, %c928], %518 {strides = array<i32>} : memref<2x2x1024xf32, #tpu.memory_space<vmem>>, vector<1x2x32xf32>,
    %519 = vector.extract_strided_slice %278 {offsets = [0, 270], sizes = [2, 16], strides = [1, 1]} : vector<8x288xf32> to vector<2x16xf32>
    %520 = vector.extract_strided_slice %278 {offsets = [2, 270], sizes = [2, 16], strides = [1, 1]} : vector<8x288xf32> to vector<2x16xf32>
    %521 = vector.extract_strided_slice %278 {offsets = [4, 270], sizes = [2, 16], strides = [1, 1]} : vector<8x288xf32> to vector<2x16xf32>
    %522 = vector.extract_strided_slice %278 {offsets = [6, 270], sizes = [2, 16], strides = [1, 1]} : vector<8x288xf32> to vector<2x16xf32>
    %cst_307 = arith.constant dense<0.000000e+00> : vector<2x32xf32>
    %523 = tpu.matmul %519, %265, %cst_307 {dimension_numbers = #tpu.dot_dimension_numbers<[1], [0], [0], [1], [0, 0, 1, 1], [], []>} : vector<2x16xf32>, vector<16x32xf32>, vector<2x32xf32> -> vector<2x32xf32>
    %cst_308 = arith.constant dense<0.000000e+00> : vector<2x32xf32>
    %524 = tpu.matmul %520, %272, %cst_308 {dimension_numbers = #tpu.dot_dimension_numbers<[1], [0], [0], [1], [0, 0, 1, 1], [], []>} : vector<2x16xf32>, vector<16x32xf32>, vector<2x32xf32> -> vector<2x32xf32>
    %525 = arith.addf %523, %524 : vector<2x32xf32>
    %cst_309 = arith.constant dense<0.000000e+00> : vector<2x32xf32>
    %526 = tpu.matmul %521, %265, %cst_309 {dimension_numbers = #tpu.dot_dimension_numbers<[1], [0], [0], [1], [0, 0, 1, 1], [], []>} : vector<2x16xf32>, vector<16x32xf32>, vector<2x32xf32> -> vector<2x32xf32>
    %cst_310 = arith.constant dense<0.000000e+00> : vector<2x32xf32>
    %527 = tpu.matmul %522, %272, %cst_310 {dimension_numbers = #tpu.dot_dimension_numbers<[1], [0], [0], [1], [0, 0, 1, 1], [], []>} : vector<2x16xf32>, vector<16x32xf32>, vector<2x32xf32> -> vector<2x32xf32>
    %528 = arith.addf %526, %527 : vector<2x32xf32>
    %c0_311 = arith.constant 0 : index
    %c0_312 = arith.constant 0 : index
    %c960 = arith.constant 960 : index
    %529 = vector.load %arg5[%c0_311, %c0_312, %c960] : memref<2x2x1024xf32, #tpu.memory_space<vmem>>, vector<1x2x32xf32>
    %530 = vector.shape_cast %529 : vector<1x2x32xf32> to vector<2x32xf32>
    %531 = vector.shape_cast %525 : vector<2x32xf32> to vector<1x2x32xf32>
    tpu.vector_store %arg5[%c0_311, %c0_312, %c960], %531 {strides = array<i32>} : memref<2x2x1024xf32, #tpu.memory_space<vmem>>, vector<1x2x32xf32>,
    %c0_313 = arith.constant 0 : index
    %c0_314 = arith.constant 0 : index
    %c992 = arith.constant 992 : index
    %532 = vector.load %arg5[%c0_313, %c0_314, %c992] : memref<2x2x1024xf32, #tpu.memory_space<vmem>>, vector<1x2x32xf32>
    %533 = vector.shape_cast %532 : vector<1x2x32xf32> to vector<2x32xf32>
    %534 = vector.shape_cast %528 : vector<2x32xf32> to vector<1x2x32xf32>
    tpu.vector_store %arg5[%c0_313, %c0_314, %c992], %534 {strides = array<i32>} : memref<2x2x1024xf32, #tpu.memory_space<vmem>>, vector<1x2x32xf32>,
    %c1_315 = arith.constant 1 : index
    %c0_316 = arith.constant 0 : index
    %c0_317 = arith.constant 0 : index
    %535 = vector.load %arg7[%c1_315, %c0_316, %c0_317] : memref<2x8x288xf32, #tpu.memory_space<vmem>>, vector<1x8x288xf32>
    %536 = vector.shape_cast %535 : vector<1x8x288xf32> to vector<8x288xf32>
    %537 = vector.broadcast %255 : vector<8x1xf32> to vector<8x288xf32>
    %538 = arith.mulf %536, %537 : vector<8x288xf32>
    %539 = vector.broadcast %258 : vector<8x1xf32> to vector<8x288xf32>
    %540 = arith.addf %538, %539 : vector<8x288xf32>
    %541 = vector.extract_strided_slice %540 {offsets = [0, 0], sizes = [2, 16], strides = [1, 1]} : vector<8x288xf32> to vector<2x16xf32>
    %542 = vector.extract_strided_slice %540 {offsets = [2, 0], sizes = [2, 16], strides = [1, 1]} : vector<8x288xf32> to vector<2x16xf32>
    %543 = vector.extract_strided_slice %540 {offsets = [4, 0], sizes = [2, 16], strides = [1, 1]} : vector<8x288xf32> to vector<2x16xf32>
    %544 = vector.extract_strided_slice %540 {offsets = [6, 0], sizes = [2, 16], strides = [1, 1]} : vector<8x288xf32> to vector<2x16xf32>
    %cst_318 = arith.constant dense<0.000000e+00> : vector<2x32xf32>
    %545 = tpu.matmul %541, %265, %cst_318 {dimension_numbers = #tpu.dot_dimension_numbers<[1], [0], [0], [1], [0, 0, 1, 1], [], []>} : vector<2x16xf32>, vector<16x32xf32>, vector<2x32xf32> -> vector<2x32xf32>
    %cst_319 = arith.constant dense<0.000000e+00> : vector<2x32xf32>
    %546 = tpu.matmul %542, %272, %cst_319 {dimension_numbers = #tpu.dot_dimension_numbers<[1], [0], [0], [1], [0, 0, 1, 1], [], []>} : vector<2x16xf32>, vector<16x32xf32>, vector<2x32xf32> -> vector<2x32xf32>
    %547 = arith.addf %545, %546 : vector<2x32xf32>
    %cst_320 = arith.constant dense<0.000000e+00> : vector<2x32xf32>
    %548 = tpu.matmul %543, %265, %cst_320 {dimension_numbers = #tpu.dot_dimension_numbers<[1], [0], [0], [1], [0, 0, 1, 1], [], []>} : vector<2x16xf32>, vector<16x32xf32>, vector<2x32xf32> -> vector<2x32xf32>
    %cst_321 = arith.constant dense<0.000000e+00> : vector<2x32xf32>
    %549 = tpu.matmul %544, %272, %cst_321 {dimension_numbers = #tpu.dot_dimension_numbers<[1], [0], [0], [1], [0, 0, 1, 1], [], []>} : vector<2x16xf32>, vector<16x32xf32>, vector<2x32xf32> -> vector<2x32xf32>
    %550 = arith.addf %548, %549 : vector<2x32xf32>
    %c1_322 = arith.constant 1 : index
    %c0_323 = arith.constant 0 : index
    %c0_324 = arith.constant 0 : index
    %551 = vector.load %arg5[%c1_322, %c0_323, %c0_324] : memref<2x2x1024xf32, #tpu.memory_space<vmem>>, vector<1x2x32xf32>
    %552 = vector.shape_cast %551 : vector<1x2x32xf32> to vector<2x32xf32>
    %553 = vector.shape_cast %547 : vector<2x32xf32> to vector<1x2x32xf32>
    tpu.vector_store %arg5[%c1_322, %c0_323, %c0_324], %553 {strides = array<i32>} : memref<2x2x1024xf32, #tpu.memory_space<vmem>>, vector<1x2x32xf32>,
    %c1_325 = arith.constant 1 : index
    %c0_326 = arith.constant 0 : index
    %c32_327 = arith.constant 32 : index
    %554 = vector.load %arg5[%c1_325, %c0_326, %c32_327] : memref<2x2x1024xf32, #tpu.memory_space<vmem>>, vector<1x2x32xf32>
    %555 = vector.shape_cast %554 : vector<1x2x32xf32> to vector<2x32xf32>
    %556 = vector.shape_cast %550 : vector<2x32xf32> to vector<1x2x32xf32>
    tpu.vector_store %arg5[%c1_325, %c0_326, %c32_327], %556 {strides = array<i32>} : memref<2x2x1024xf32, #tpu.memory_space<vmem>>, vector<1x2x32xf32>,
    %557 = vector.extract_strided_slice %540 {offsets = [0, 18], sizes = [2, 16], strides = [1, 1]} : vector<8x288xf32> to vector<2x16xf32>
    %558 = vector.extract_strided_slice %540 {offsets = [2, 18], sizes = [2, 16], strides = [1, 1]} : vector<8x288xf32> to vector<2x16xf32>
    %559 = vector.extract_strided_slice %540 {offsets = [4, 18], sizes = [2, 16], strides = [1, 1]} : vector<8x288xf32> to vector<2x16xf32>
    %560 = vector.extract_strided_slice %540 {offsets = [6, 18], sizes = [2, 16], strides = [1, 1]} : vector<8x288xf32> to vector<2x16xf32>
    %cst_328 = arith.constant dense<0.000000e+00> : vector<2x32xf32>
    %561 = tpu.matmul %557, %265, %cst_328 {dimension_numbers = #tpu.dot_dimension_numbers<[1], [0], [0], [1], [0, 0, 1, 1], [], []>} : vector<2x16xf32>, vector<16x32xf32>, vector<2x32xf32> -> vector<2x32xf32>
    %cst_329 = arith.constant dense<0.000000e+00> : vector<2x32xf32>
    %562 = tpu.matmul %558, %272, %cst_329 {dimension_numbers = #tpu.dot_dimension_numbers<[1], [0], [0], [1], [0, 0, 1, 1], [], []>} : vector<2x16xf32>, vector<16x32xf32>, vector<2x32xf32> -> vector<2x32xf32>
    %563 = arith.addf %561, %562 : vector<2x32xf32>
    %cst_330 = arith.constant dense<0.000000e+00> : vector<2x32xf32>
    %564 = tpu.matmul %559, %265, %cst_330 {dimension_numbers = #tpu.dot_dimension_numbers<[1], [0], [0], [1], [0, 0, 1, 1], [], []>} : vector<2x16xf32>, vector<16x32xf32>, vector<2x32xf32> -> vector<2x32xf32>
    %cst_331 = arith.constant dense<0.000000e+00> : vector<2x32xf32>
    %565 = tpu.matmul %560, %272, %cst_331 {dimension_numbers = #tpu.dot_dimension_numbers<[1], [0], [0], [1], [0, 0, 1, 1], [], []>} : vector<2x16xf32>, vector<16x32xf32>, vector<2x32xf32> -> vector<2x32xf32>
    %566 = arith.addf %564, %565 : vector<2x32xf32>
    %c1_332 = arith.constant 1 : index
    %c0_333 = arith.constant 0 : index
    %c64_334 = arith.constant 64 : index
    %567 = vector.load %arg5[%c1_332, %c0_333, %c64_334] : memref<2x2x1024xf32, #tpu.memory_space<vmem>>, vector<1x2x32xf32>
    %568 = vector.shape_cast %567 : vector<1x2x32xf32> to vector<2x32xf32>
    %569 = vector.shape_cast %563 : vector<2x32xf32> to vector<1x2x32xf32>
    tpu.vector_store %arg5[%c1_332, %c0_333, %c64_334], %569 {strides = array<i32>} : memref<2x2x1024xf32, #tpu.memory_space<vmem>>, vector<1x2x32xf32>,
    %c1_335 = arith.constant 1 : index
    %c0_336 = arith.constant 0 : index
    %c96_337 = arith.constant 96 : index
    %570 = vector.load %arg5[%c1_335, %c0_336, %c96_337] : memref<2x2x1024xf32, #tpu.memory_space<vmem>>, vector<1x2x32xf32>
    %571 = vector.shape_cast %570 : vector<1x2x32xf32> to vector<2x32xf32>
    %572 = vector.shape_cast %566 : vector<2x32xf32> to vector<1x2x32xf32>
    tpu.vector_store %arg5[%c1_335, %c0_336, %c96_337], %572 {strides = array<i32>} : memref<2x2x1024xf32, #tpu.memory_space<vmem>>, vector<1x2x32xf32>,
    %573 = vector.extract_strided_slice %540 {offsets = [0, 36], sizes = [2, 16], strides = [1, 1]} : vector<8x288xf32> to vector<2x16xf32>
    %574 = vector.extract_strided_slice %540 {offsets = [2, 36], sizes = [2, 16], strides = [1, 1]} : vector<8x288xf32> to vector<2x16xf32>
    %575 = vector.extract_strided_slice %540 {offsets = [4, 36], sizes = [2, 16], strides = [1, 1]} : vector<8x288xf32> to vector<2x16xf32>
    %576 = vector.extract_strided_slice %540 {offsets = [6, 36], sizes = [2, 16], strides = [1, 1]} : vector<8x288xf32> to vector<2x16xf32>
    %cst_338 = arith.constant dense<0.000000e+00> : vector<2x32xf32>
    %577 = tpu.matmul %573, %265, %cst_338 {dimension_numbers = #tpu.dot_dimension_numbers<[1], [0], [0], [1], [0, 0, 1, 1], [], []>} : vector<2x16xf32>, vector<16x32xf32>, vector<2x32xf32> -> vector<2x32xf32>
    %cst_339 = arith.constant dense<0.000000e+00> : vector<2x32xf32>
    %578 = tpu.matmul %574, %272, %cst_339 {dimension_numbers = #tpu.dot_dimension_numbers<[1], [0], [0], [1], [0, 0, 1, 1], [], []>} : vector<2x16xf32>, vector<16x32xf32>, vector<2x32xf32> -> vector<2x32xf32>
    %579 = arith.addf %577, %578 : vector<2x32xf32>
    %cst_340 = arith.constant dense<0.000000e+00> : vector<2x32xf32>
    %580 = tpu.matmul %575, %265, %cst_340 {dimension_numbers = #tpu.dot_dimension_numbers<[1], [0], [0], [1], [0, 0, 1, 1], [], []>} : vector<2x16xf32>, vector<16x32xf32>, vector<2x32xf32> -> vector<2x32xf32>
    %cst_341 = arith.constant dense<0.000000e+00> : vector<2x32xf32>
    %581 = tpu.matmul %576, %272, %cst_341 {dimension_numbers = #tpu.dot_dimension_numbers<[1], [0], [0], [1], [0, 0, 1, 1], [], []>} : vector<2x16xf32>, vector<16x32xf32>, vector<2x32xf32> -> vector<2x32xf32>
    %582 = arith.addf %580, %581 : vector<2x32xf32>
    %c1_342 = arith.constant 1 : index
    %c0_343 = arith.constant 0 : index
    %c128_344 = arith.constant 128 : index
    %583 = vector.load %arg5[%c1_342, %c0_343, %c128_344] : memref<2x2x1024xf32, #tpu.memory_space<vmem>>, vector<1x2x32xf32>
    %584 = vector.shape_cast %583 : vector<1x2x32xf32> to vector<2x32xf32>
    %585 = vector.shape_cast %579 : vector<2x32xf32> to vector<1x2x32xf32>
    tpu.vector_store %arg5[%c1_342, %c0_343, %c128_344], %585 {strides = array<i32>} : memref<2x2x1024xf32, #tpu.memory_space<vmem>>, vector<1x2x32xf32>,
    %c1_345 = arith.constant 1 : index
    %c0_346 = arith.constant 0 : index
    %c160_347 = arith.constant 160 : index
    %586 = vector.load %arg5[%c1_345, %c0_346, %c160_347] : memref<2x2x1024xf32, #tpu.memory_space<vmem>>, vector<1x2x32xf32>
    %587 = vector.shape_cast %586 : vector<1x2x32xf32> to vector<2x32xf32>
    %588 = vector.shape_cast %582 : vector<2x32xf32> to vector<1x2x32xf32>
    tpu.vector_store %arg5[%c1_345, %c0_346, %c160_347], %588 {strides = array<i32>} : memref<2x2x1024xf32, #tpu.memory_space<vmem>>, vector<1x2x32xf32>,
    %589 = vector.extract_strided_slice %540 {offsets = [0, 54], sizes = [2, 16], strides = [1, 1]} : vector<8x288xf32> to vector<2x16xf32>
    %590 = vector.extract_strided_slice %540 {offsets = [2, 54], sizes = [2, 16], strides = [1, 1]} : vector<8x288xf32> to vector<2x16xf32>
    %591 = vector.extract_strided_slice %540 {offsets = [4, 54], sizes = [2, 16], strides = [1, 1]} : vector<8x288xf32> to vector<2x16xf32>
    %592 = vector.extract_strided_slice %540 {offsets = [6, 54], sizes = [2, 16], strides = [1, 1]} : vector<8x288xf32> to vector<2x16xf32>
    %cst_348 = arith.constant dense<0.000000e+00> : vector<2x32xf32>
    %593 = tpu.matmul %589, %265, %cst_348 {dimension_numbers = #tpu.dot_dimension_numbers<[1], [0], [0], [1], [0, 0, 1, 1], [], []>} : vector<2x16xf32>, vector<16x32xf32>, vector<2x32xf32> -> vector<2x32xf32>
    %cst_349 = arith.constant dense<0.000000e+00> : vector<2x32xf32>
    %594 = tpu.matmul %590, %272, %cst_349 {dimension_numbers = #tpu.dot_dimension_numbers<[1], [0], [0], [1], [0, 0, 1, 1], [], []>} : vector<2x16xf32>, vector<16x32xf32>, vector<2x32xf32> -> vector<2x32xf32>
    %595 = arith.addf %593, %594 : vector<2x32xf32>
    %cst_350 = arith.constant dense<0.000000e+00> : vector<2x32xf32>
    %596 = tpu.matmul %591, %265, %cst_350 {dimension_numbers = #tpu.dot_dimension_numbers<[1], [0], [0], [1], [0, 0, 1, 1], [], []>} : vector<2x16xf32>, vector<16x32xf32>, vector<2x32xf32> -> vector<2x32xf32>
    %cst_351 = arith.constant dense<0.000000e+00> : vector<2x32xf32>
    %597 = tpu.matmul %592, %272, %cst_351 {dimension_numbers = #tpu.dot_dimension_numbers<[1], [0], [0], [1], [0, 0, 1, 1], [], []>} : vector<2x16xf32>, vector<16x32xf32>, vector<2x32xf32> -> vector<2x32xf32>
    %598 = arith.addf %596, %597 : vector<2x32xf32>
    %c1_352 = arith.constant 1 : index
    %c0_353 = arith.constant 0 : index
    %c192_354 = arith.constant 192 : index
    %599 = vector.load %arg5[%c1_352, %c0_353, %c192_354] : memref<2x2x1024xf32, #tpu.memory_space<vmem>>, vector<1x2x32xf32>
    %600 = vector.shape_cast %599 : vector<1x2x32xf32> to vector<2x32xf32>
    %601 = vector.shape_cast %595 : vector<2x32xf32> to vector<1x2x32xf32>
    tpu.vector_store %arg5[%c1_352, %c0_353, %c192_354], %601 {strides = array<i32>} : memref<2x2x1024xf32, #tpu.memory_space<vmem>>, vector<1x2x32xf32>,
    %c1_355 = arith.constant 1 : index
    %c0_356 = arith.constant 0 : index
    %c224_357 = arith.constant 224 : index
    %602 = vector.load %arg5[%c1_355, %c0_356, %c224_357] : memref<2x2x1024xf32, #tpu.memory_space<vmem>>, vector<1x2x32xf32>
    %603 = vector.shape_cast %602 : vector<1x2x32xf32> to vector<2x32xf32>
    %604 = vector.shape_cast %598 : vector<2x32xf32> to vector<1x2x32xf32>
    tpu.vector_store %arg5[%c1_355, %c0_356, %c224_357], %604 {strides = array<i32>} : memref<2x2x1024xf32, #tpu.memory_space<vmem>>, vector<1x2x32xf32>,
    %605 = vector.extract_strided_slice %540 {offsets = [0, 72], sizes = [2, 16], strides = [1, 1]} : vector<8x288xf32> to vector<2x16xf32>
    %606 = vector.extract_strided_slice %540 {offsets = [2, 72], sizes = [2, 16], strides = [1, 1]} : vector<8x288xf32> to vector<2x16xf32>
    %607 = vector.extract_strided_slice %540 {offsets = [4, 72], sizes = [2, 16], strides = [1, 1]} : vector<8x288xf32> to vector<2x16xf32>
    %608 = vector.extract_strided_slice %540 {offsets = [6, 72], sizes = [2, 16], strides = [1, 1]} : vector<8x288xf32> to vector<2x16xf32>
    %cst_358 = arith.constant dense<0.000000e+00> : vector<2x32xf32>
    %609 = tpu.matmul %605, %265, %cst_358 {dimension_numbers = #tpu.dot_dimension_numbers<[1], [0], [0], [1], [0, 0, 1, 1], [], []>} : vector<2x16xf32>, vector<16x32xf32>, vector<2x32xf32> -> vector<2x32xf32>
    %cst_359 = arith.constant dense<0.000000e+00> : vector<2x32xf32>
    %610 = tpu.matmul %606, %272, %cst_359 {dimension_numbers = #tpu.dot_dimension_numbers<[1], [0], [0], [1], [0, 0, 1, 1], [], []>} : vector<2x16xf32>, vector<16x32xf32>, vector<2x32xf32> -> vector<2x32xf32>
    %611 = arith.addf %609, %610 : vector<2x32xf32>
    %cst_360 = arith.constant dense<0.000000e+00> : vector<2x32xf32>
    %612 = tpu.matmul %607, %265, %cst_360 {dimension_numbers = #tpu.dot_dimension_numbers<[1], [0], [0], [1], [0, 0, 1, 1], [], []>} : vector<2x16xf32>, vector<16x32xf32>, vector<2x32xf32> -> vector<2x32xf32>
    %cst_361 = arith.constant dense<0.000000e+00> : vector<2x32xf32>
    %613 = tpu.matmul %608, %272, %cst_361 {dimension_numbers = #tpu.dot_dimension_numbers<[1], [0], [0], [1], [0, 0, 1, 1], [], []>} : vector<2x16xf32>, vector<16x32xf32>, vector<2x32xf32> -> vector<2x32xf32>
    %614 = arith.addf %612, %613 : vector<2x32xf32>
    %c1_362 = arith.constant 1 : index
    %c0_363 = arith.constant 0 : index
    %c256_364 = arith.constant 256 : index
    %615 = vector.load %arg5[%c1_362, %c0_363, %c256_364] : memref<2x2x1024xf32, #tpu.memory_space<vmem>>, vector<1x2x32xf32>
    %616 = vector.shape_cast %615 : vector<1x2x32xf32> to vector<2x32xf32>
    %617 = vector.shape_cast %611 : vector<2x32xf32> to vector<1x2x32xf32>
    tpu.vector_store %arg5[%c1_362, %c0_363, %c256_364], %617 {strides = array<i32>} : memref<2x2x1024xf32, #tpu.memory_space<vmem>>, vector<1x2x32xf32>,
    %c1_365 = arith.constant 1 : index
    %c0_366 = arith.constant 0 : index
    %c288_367 = arith.constant 288 : index
    %618 = vector.load %arg5[%c1_365, %c0_366, %c288_367] : memref<2x2x1024xf32, #tpu.memory_space<vmem>>, vector<1x2x32xf32>
    %619 = vector.shape_cast %618 : vector<1x2x32xf32> to vector<2x32xf32>
    %620 = vector.shape_cast %614 : vector<2x32xf32> to vector<1x2x32xf32>
    tpu.vector_store %arg5[%c1_365, %c0_366, %c288_367], %620 {strides = array<i32>} : memref<2x2x1024xf32, #tpu.memory_space<vmem>>, vector<1x2x32xf32>,
    %621 = vector.extract_strided_slice %540 {offsets = [0, 90], sizes = [2, 16], strides = [1, 1]} : vector<8x288xf32> to vector<2x16xf32>
    %622 = vector.extract_strided_slice %540 {offsets = [2, 90], sizes = [2, 16], strides = [1, 1]} : vector<8x288xf32> to vector<2x16xf32>
    %623 = vector.extract_strided_slice %540 {offsets = [4, 90], sizes = [2, 16], strides = [1, 1]} : vector<8x288xf32> to vector<2x16xf32>
    %624 = vector.extract_strided_slice %540 {offsets = [6, 90], sizes = [2, 16], strides = [1, 1]} : vector<8x288xf32> to vector<2x16xf32>
    %cst_368 = arith.constant dense<0.000000e+00> : vector<2x32xf32>
    %625 = tpu.matmul %621, %265, %cst_368 {dimension_numbers = #tpu.dot_dimension_numbers<[1], [0], [0], [1], [0, 0, 1, 1], [], []>} : vector<2x16xf32>, vector<16x32xf32>, vector<2x32xf32> -> vector<2x32xf32>
    %cst_369 = arith.constant dense<0.000000e+00> : vector<2x32xf32>
    %626 = tpu.matmul %622, %272, %cst_369 {dimension_numbers = #tpu.dot_dimension_numbers<[1], [0], [0], [1], [0, 0, 1, 1], [], []>} : vector<2x16xf32>, vector<16x32xf32>, vector<2x32xf32> -> vector<2x32xf32>
    %627 = arith.addf %625, %626 : vector<2x32xf32>
    %cst_370 = arith.constant dense<0.000000e+00> : vector<2x32xf32>
    %628 = tpu.matmul %623, %265, %cst_370 {dimension_numbers = #tpu.dot_dimension_numbers<[1], [0], [0], [1], [0, 0, 1, 1], [], []>} : vector<2x16xf32>, vector<16x32xf32>, vector<2x32xf32> -> vector<2x32xf32>
    %cst_371 = arith.constant dense<0.000000e+00> : vector<2x32xf32>
    %629 = tpu.matmul %624, %272, %cst_371 {dimension_numbers = #tpu.dot_dimension_numbers<[1], [0], [0], [1], [0, 0, 1, 1], [], []>} : vector<2x16xf32>, vector<16x32xf32>, vector<2x32xf32> -> vector<2x32xf32>
    %630 = arith.addf %628, %629 : vector<2x32xf32>
    %c1_372 = arith.constant 1 : index
    %c0_373 = arith.constant 0 : index
    %c320_374 = arith.constant 320 : index
    %631 = vector.load %arg5[%c1_372, %c0_373, %c320_374] : memref<2x2x1024xf32, #tpu.memory_space<vmem>>, vector<1x2x32xf32>
    %632 = vector.shape_cast %631 : vector<1x2x32xf32> to vector<2x32xf32>
    %633 = vector.shape_cast %627 : vector<2x32xf32> to vector<1x2x32xf32>
    tpu.vector_store %arg5[%c1_372, %c0_373, %c320_374], %633 {strides = array<i32>} : memref<2x2x1024xf32, #tpu.memory_space<vmem>>, vector<1x2x32xf32>,
    %c1_375 = arith.constant 1 : index
    %c0_376 = arith.constant 0 : index
    %c352_377 = arith.constant 352 : index
    %634 = vector.load %arg5[%c1_375, %c0_376, %c352_377] : memref<2x2x1024xf32, #tpu.memory_space<vmem>>, vector<1x2x32xf32>
    %635 = vector.shape_cast %634 : vector<1x2x32xf32> to vector<2x32xf32>
    %636 = vector.shape_cast %630 : vector<2x32xf32> to vector<1x2x32xf32>
    tpu.vector_store %arg5[%c1_375, %c0_376, %c352_377], %636 {strides = array<i32>} : memref<2x2x1024xf32, #tpu.memory_space<vmem>>, vector<1x2x32xf32>,
    %637 = vector.extract_strided_slice %540 {offsets = [0, 108], sizes = [2, 16], strides = [1, 1]} : vector<8x288xf32> to vector<2x16xf32>
    %638 = vector.extract_strided_slice %540 {offsets = [2, 108], sizes = [2, 16], strides = [1, 1]} : vector<8x288xf32> to vector<2x16xf32>
    %639 = vector.extract_strided_slice %540 {offsets = [4, 108], sizes = [2, 16], strides = [1, 1]} : vector<8x288xf32> to vector<2x16xf32>
    %640 = vector.extract_strided_slice %540 {offsets = [6, 108], sizes = [2, 16], strides = [1, 1]} : vector<8x288xf32> to vector<2x16xf32>
    %cst_378 = arith.constant dense<0.000000e+00> : vector<2x32xf32>
    %641 = tpu.matmul %637, %265, %cst_378 {dimension_numbers = #tpu.dot_dimension_numbers<[1], [0], [0], [1], [0, 0, 1, 1], [], []>} : vector<2x16xf32>, vector<16x32xf32>, vector<2x32xf32> -> vector<2x32xf32>
    %cst_379 = arith.constant dense<0.000000e+00> : vector<2x32xf32>
    %642 = tpu.matmul %638, %272, %cst_379 {dimension_numbers = #tpu.dot_dimension_numbers<[1], [0], [0], [1], [0, 0, 1, 1], [], []>} : vector<2x16xf32>, vector<16x32xf32>, vector<2x32xf32> -> vector<2x32xf32>
    %643 = arith.addf %641, %642 : vector<2x32xf32>
    %cst_380 = arith.constant dense<0.000000e+00> : vector<2x32xf32>
    %644 = tpu.matmul %639, %265, %cst_380 {dimension_numbers = #tpu.dot_dimension_numbers<[1], [0], [0], [1], [0, 0, 1, 1], [], []>} : vector<2x16xf32>, vector<16x32xf32>, vector<2x32xf32> -> vector<2x32xf32>
    %cst_381 = arith.constant dense<0.000000e+00> : vector<2x32xf32>
    %645 = tpu.matmul %640, %272, %cst_381 {dimension_numbers = #tpu.dot_dimension_numbers<[1], [0], [0], [1], [0, 0, 1, 1], [], []>} : vector<2x16xf32>, vector<16x32xf32>, vector<2x32xf32> -> vector<2x32xf32>
    %646 = arith.addf %644, %645 : vector<2x32xf32>
    %c1_382 = arith.constant 1 : index
    %c0_383 = arith.constant 0 : index
    %c384_384 = arith.constant 384 : index
    %647 = vector.load %arg5[%c1_382, %c0_383, %c384_384] : memref<2x2x1024xf32, #tpu.memory_space<vmem>>, vector<1x2x32xf32>
    %648 = vector.shape_cast %647 : vector<1x2x32xf32> to vector<2x32xf32>
    %649 = vector.shape_cast %643 : vector<2x32xf32> to vector<1x2x32xf32>
    tpu.vector_store %arg5[%c1_382, %c0_383, %c384_384], %649 {strides = array<i32>} : memref<2x2x1024xf32, #tpu.memory_space<vmem>>, vector<1x2x32xf32>,
    %c1_385 = arith.constant 1 : index
    %c0_386 = arith.constant 0 : index
    %c416_387 = arith.constant 416 : index
    %650 = vector.load %arg5[%c1_385, %c0_386, %c416_387] : memref<2x2x1024xf32, #tpu.memory_space<vmem>>, vector<1x2x32xf32>
    %651 = vector.shape_cast %650 : vector<1x2x32xf32> to vector<2x32xf32>
    %652 = vector.shape_cast %646 : vector<2x32xf32> to vector<1x2x32xf32>
    tpu.vector_store %arg5[%c1_385, %c0_386, %c416_387], %652 {strides = array<i32>} : memref<2x2x1024xf32, #tpu.memory_space<vmem>>, vector<1x2x32xf32>,
    %653 = vector.extract_strided_slice %540 {offsets = [0, 126], sizes = [2, 16], strides = [1, 1]} : vector<8x288xf32> to vector<2x16xf32>
    %654 = vector.extract_strided_slice %540 {offsets = [2, 126], sizes = [2, 16], strides = [1, 1]} : vector<8x288xf32> to vector<2x16xf32>
    %655 = vector.extract_strided_slice %540 {offsets = [4, 126], sizes = [2, 16], strides = [1, 1]} : vector<8x288xf32> to vector<2x16xf32>
    %656 = vector.extract_strided_slice %540 {offsets = [6, 126], sizes = [2, 16], strides = [1, 1]} : vector<8x288xf32> to vector<2x16xf32>
    %cst_388 = arith.constant dense<0.000000e+00> : vector<2x32xf32>
    %657 = tpu.matmul %653, %265, %cst_388 {dimension_numbers = #tpu.dot_dimension_numbers<[1], [0], [0], [1], [0, 0, 1, 1], [], []>} : vector<2x16xf32>, vector<16x32xf32>, vector<2x32xf32> -> vector<2x32xf32>
    %cst_389 = arith.constant dense<0.000000e+00> : vector<2x32xf32>
    %658 = tpu.matmul %654, %272, %cst_389 {dimension_numbers = #tpu.dot_dimension_numbers<[1], [0], [0], [1], [0, 0, 1, 1], [], []>} : vector<2x16xf32>, vector<16x32xf32>, vector<2x32xf32> -> vector<2x32xf32>
    %659 = arith.addf %657, %658 : vector<2x32xf32>
    %cst_390 = arith.constant dense<0.000000e+00> : vector<2x32xf32>
    %660 = tpu.matmul %655, %265, %cst_390 {dimension_numbers = #tpu.dot_dimension_numbers<[1], [0], [0], [1], [0, 0, 1, 1], [], []>} : vector<2x16xf32>, vector<16x32xf32>, vector<2x32xf32> -> vector<2x32xf32>
    %cst_391 = arith.constant dense<0.000000e+00> : vector<2x32xf32>
    %661 = tpu.matmul %656, %272, %cst_391 {dimension_numbers = #tpu.dot_dimension_numbers<[1], [0], [0], [1], [0, 0, 1, 1], [], []>} : vector<2x16xf32>, vector<16x32xf32>, vector<2x32xf32> -> vector<2x32xf32>
    %662 = arith.addf %660, %661 : vector<2x32xf32>
    %c1_392 = arith.constant 1 : index
    %c0_393 = arith.constant 0 : index
    %c448_394 = arith.constant 448 : index
    %663 = vector.load %arg5[%c1_392, %c0_393, %c448_394] : memref<2x2x1024xf32, #tpu.memory_space<vmem>>, vector<1x2x32xf32>
    %664 = vector.shape_cast %663 : vector<1x2x32xf32> to vector<2x32xf32>
    %665 = vector.shape_cast %659 : vector<2x32xf32> to vector<1x2x32xf32>
    tpu.vector_store %arg5[%c1_392, %c0_393, %c448_394], %665 {strides = array<i32>} : memref<2x2x1024xf32, #tpu.memory_space<vmem>>, vector<1x2x32xf32>,
    %c1_395 = arith.constant 1 : index
    %c0_396 = arith.constant 0 : index
    %c480_397 = arith.constant 480 : index
    %666 = vector.load %arg5[%c1_395, %c0_396, %c480_397] : memref<2x2x1024xf32, #tpu.memory_space<vmem>>, vector<1x2x32xf32>
    %667 = vector.shape_cast %666 : vector<1x2x32xf32> to vector<2x32xf32>
    %668 = vector.shape_cast %662 : vector<2x32xf32> to vector<1x2x32xf32>
    tpu.vector_store %arg5[%c1_395, %c0_396, %c480_397], %668 {strides = array<i32>} : memref<2x2x1024xf32, #tpu.memory_space<vmem>>, vector<1x2x32xf32>,
    %669 = vector.extract_strided_slice %540 {offsets = [0, 144], sizes = [2, 16], strides = [1, 1]} : vector<8x288xf32> to vector<2x16xf32>
    %670 = vector.extract_strided_slice %540 {offsets = [2, 144], sizes = [2, 16], strides = [1, 1]} : vector<8x288xf32> to vector<2x16xf32>
    %671 = vector.extract_strided_slice %540 {offsets = [4, 144], sizes = [2, 16], strides = [1, 1]} : vector<8x288xf32> to vector<2x16xf32>
    %672 = vector.extract_strided_slice %540 {offsets = [6, 144], sizes = [2, 16], strides = [1, 1]} : vector<8x288xf32> to vector<2x16xf32>
    %cst_398 = arith.constant dense<0.000000e+00> : vector<2x32xf32>
    %673 = tpu.matmul %669, %265, %cst_398 {dimension_numbers = #tpu.dot_dimension_numbers<[1], [0], [0], [1], [0, 0, 1, 1], [], []>} : vector<2x16xf32>, vector<16x32xf32>, vector<2x32xf32> -> vector<2x32xf32>
    %cst_399 = arith.constant dense<0.000000e+00> : vector<2x32xf32>
    %674 = tpu.matmul %670, %272, %cst_399 {dimension_numbers = #tpu.dot_dimension_numbers<[1], [0], [0], [1], [0, 0, 1, 1], [], []>} : vector<2x16xf32>, vector<16x32xf32>, vector<2x32xf32> -> vector<2x32xf32>
    %675 = arith.addf %673, %674 : vector<2x32xf32>
    %cst_400 = arith.constant dense<0.000000e+00> : vector<2x32xf32>
    %676 = tpu.matmul %671, %265, %cst_400 {dimension_numbers = #tpu.dot_dimension_numbers<[1], [0], [0], [1], [0, 0, 1, 1], [], []>} : vector<2x16xf32>, vector<16x32xf32>, vector<2x32xf32> -> vector<2x32xf32>
    %cst_401 = arith.constant dense<0.000000e+00> : vector<2x32xf32>
    %677 = tpu.matmul %672, %272, %cst_401 {dimension_numbers = #tpu.dot_dimension_numbers<[1], [0], [0], [1], [0, 0, 1, 1], [], []>} : vector<2x16xf32>, vector<16x32xf32>, vector<2x32xf32> -> vector<2x32xf32>
    %678 = arith.addf %676, %677 : vector<2x32xf32>
    %c1_402 = arith.constant 1 : index
    %c0_403 = arith.constant 0 : index
    %c512_404 = arith.constant 512 : index
    %679 = vector.load %arg5[%c1_402, %c0_403, %c512_404] : memref<2x2x1024xf32, #tpu.memory_space<vmem>>, vector<1x2x32xf32>
    %680 = vector.shape_cast %679 : vector<1x2x32xf32> to vector<2x32xf32>
    %681 = vector.shape_cast %675 : vector<2x32xf32> to vector<1x2x32xf32>
    tpu.vector_store %arg5[%c1_402, %c0_403, %c512_404], %681 {strides = array<i32>} : memref<2x2x1024xf32, #tpu.memory_space<vmem>>, vector<1x2x32xf32>,
    %c1_405 = arith.constant 1 : index
    %c0_406 = arith.constant 0 : index
    %c544_407 = arith.constant 544 : index
    %682 = vector.load %arg5[%c1_405, %c0_406, %c544_407] : memref<2x2x1024xf32, #tpu.memory_space<vmem>>, vector<1x2x32xf32>
    %683 = vector.shape_cast %682 : vector<1x2x32xf32> to vector<2x32xf32>
    %684 = vector.shape_cast %678 : vector<2x32xf32> to vector<1x2x32xf32>
    tpu.vector_store %arg5[%c1_405, %c0_406, %c544_407], %684 {strides = array<i32>} : memref<2x2x1024xf32, #tpu.memory_space<vmem>>, vector<1x2x32xf32>,
    %685 = vector.extract_strided_slice %540 {offsets = [0, 162], sizes = [2, 16], strides = [1, 1]} : vector<8x288xf32> to vector<2x16xf32>
    %686 = vector.extract_strided_slice %540 {offsets = [2, 162], sizes = [2, 16], strides = [1, 1]} : vector<8x288xf32> to vector<2x16xf32>
    %687 = vector.extract_strided_slice %540 {offsets = [4, 162], sizes = [2, 16], strides = [1, 1]} : vector<8x288xf32> to vector<2x16xf32>
    %688 = vector.extract_strided_slice %540 {offsets = [6, 162], sizes = [2, 16], strides = [1, 1]} : vector<8x288xf32> to vector<2x16xf32>
    %cst_408 = arith.constant dense<0.000000e+00> : vector<2x32xf32>
    %689 = tpu.matmul %685, %265, %cst_408 {dimension_numbers = #tpu.dot_dimension_numbers<[1], [0], [0], [1], [0, 0, 1, 1], [], []>} : vector<2x16xf32>, vector<16x32xf32>, vector<2x32xf32> -> vector<2x32xf32>
    %cst_409 = arith.constant dense<0.000000e+00> : vector<2x32xf32>
    %690 = tpu.matmul %686, %272, %cst_409 {dimension_numbers = #tpu.dot_dimension_numbers<[1], [0], [0], [1], [0, 0, 1, 1], [], []>} : vector<2x16xf32>, vector<16x32xf32>, vector<2x32xf32> -> vector<2x32xf32>
    %691 = arith.addf %689, %690 : vector<2x32xf32>
    %cst_410 = arith.constant dense<0.000000e+00> : vector<2x32xf32>
    %692 = tpu.matmul %687, %265, %cst_410 {dimension_numbers = #tpu.dot_dimension_numbers<[1], [0], [0], [1], [0, 0, 1, 1], [], []>} : vector<2x16xf32>, vector<16x32xf32>, vector<2x32xf32> -> vector<2x32xf32>
    %cst_411 = arith.constant dense<0.000000e+00> : vector<2x32xf32>
    %693 = tpu.matmul %688, %272, %cst_411 {dimension_numbers = #tpu.dot_dimension_numbers<[1], [0], [0], [1], [0, 0, 1, 1], [], []>} : vector<2x16xf32>, vector<16x32xf32>, vector<2x32xf32> -> vector<2x32xf32>
    %694 = arith.addf %692, %693 : vector<2x32xf32>
    %c1_412 = arith.constant 1 : index
    %c0_413 = arith.constant 0 : index
    %c576_414 = arith.constant 576 : index
    %695 = vector.load %arg5[%c1_412, %c0_413, %c576_414] : memref<2x2x1024xf32, #tpu.memory_space<vmem>>, vector<1x2x32xf32>
    %696 = vector.shape_cast %695 : vector<1x2x32xf32> to vector<2x32xf32>
    %697 = vector.shape_cast %691 : vector<2x32xf32> to vector<1x2x32xf32>
    tpu.vector_store %arg5[%c1_412, %c0_413, %c576_414], %697 {strides = array<i32>} : memref<2x2x1024xf32, #tpu.memory_space<vmem>>, vector<1x2x32xf32>,
    %c1_415 = arith.constant 1 : index
    %c0_416 = arith.constant 0 : index
    %c608_417 = arith.constant 608 : index
    %698 = vector.load %arg5[%c1_415, %c0_416, %c608_417] : memref<2x2x1024xf32, #tpu.memory_space<vmem>>, vector<1x2x32xf32>
    %699 = vector.shape_cast %698 : vector<1x2x32xf32> to vector<2x32xf32>
    %700 = vector.shape_cast %694 : vector<2x32xf32> to vector<1x2x32xf32>
    tpu.vector_store %arg5[%c1_415, %c0_416, %c608_417], %700 {strides = array<i32>} : memref<2x2x1024xf32, #tpu.memory_space<vmem>>, vector<1x2x32xf32>,
    %701 = vector.extract_strided_slice %540 {offsets = [0, 180], sizes = [2, 16], strides = [1, 1]} : vector<8x288xf32> to vector<2x16xf32>
    %702 = vector.extract_strided_slice %540 {offsets = [2, 180], sizes = [2, 16], strides = [1, 1]} : vector<8x288xf32> to vector<2x16xf32>
    %703 = vector.extract_strided_slice %540 {offsets = [4, 180], sizes = [2, 16], strides = [1, 1]} : vector<8x288xf32> to vector<2x16xf32>
    %704 = vector.extract_strided_slice %540 {offsets = [6, 180], sizes = [2, 16], strides = [1, 1]} : vector<8x288xf32> to vector<2x16xf32>
    %cst_418 = arith.constant dense<0.000000e+00> : vector<2x32xf32>
    %705 = tpu.matmul %701, %265, %cst_418 {dimension_numbers = #tpu.dot_dimension_numbers<[1], [0], [0], [1], [0, 0, 1, 1], [], []>} : vector<2x16xf32>, vector<16x32xf32>, vector<2x32xf32> -> vector<2x32xf32>
    %cst_419 = arith.constant dense<0.000000e+00> : vector<2x32xf32>
    %706 = tpu.matmul %702, %272, %cst_419 {dimension_numbers = #tpu.dot_dimension_numbers<[1], [0], [0], [1], [0, 0, 1, 1], [], []>} : vector<2x16xf32>, vector<16x32xf32>, vector<2x32xf32> -> vector<2x32xf32>
    %707 = arith.addf %705, %706 : vector<2x32xf32>
    %cst_420 = arith.constant dense<0.000000e+00> : vector<2x32xf32>
    %708 = tpu.matmul %703, %265, %cst_420 {dimension_numbers = #tpu.dot_dimension_numbers<[1], [0], [0], [1], [0, 0, 1, 1], [], []>} : vector<2x16xf32>, vector<16x32xf32>, vector<2x32xf32> -> vector<2x32xf32>
    %cst_421 = arith.constant dense<0.000000e+00> : vector<2x32xf32>
    %709 = tpu.matmul %704, %272, %cst_421 {dimension_numbers = #tpu.dot_dimension_numbers<[1], [0], [0], [1], [0, 0, 1, 1], [], []>} : vector<2x16xf32>, vector<16x32xf32>, vector<2x32xf32> -> vector<2x32xf32>
    %710 = arith.addf %708, %709 : vector<2x32xf32>
    %c1_422 = arith.constant 1 : index
    %c0_423 = arith.constant 0 : index
    %c640_424 = arith.constant 640 : index
    %711 = vector.load %arg5[%c1_422, %c0_423, %c640_424] : memref<2x2x1024xf32, #tpu.memory_space<vmem>>, vector<1x2x32xf32>
    %712 = vector.shape_cast %711 : vector<1x2x32xf32> to vector<2x32xf32>
    %713 = vector.shape_cast %707 : vector<2x32xf32> to vector<1x2x32xf32>
    tpu.vector_store %arg5[%c1_422, %c0_423, %c640_424], %713 {strides = array<i32>} : memref<2x2x1024xf32, #tpu.memory_space<vmem>>, vector<1x2x32xf32>,
    %c1_425 = arith.constant 1 : index
    %c0_426 = arith.constant 0 : index
    %c672_427 = arith.constant 672 : index
    %714 = vector.load %arg5[%c1_425, %c0_426, %c672_427] : memref<2x2x1024xf32, #tpu.memory_space<vmem>>, vector<1x2x32xf32>
    %715 = vector.shape_cast %714 : vector<1x2x32xf32> to vector<2x32xf32>
    %716 = vector.shape_cast %710 : vector<2x32xf32> to vector<1x2x32xf32>
    tpu.vector_store %arg5[%c1_425, %c0_426, %c672_427], %716 {strides = array<i32>} : memref<2x2x1024xf32, #tpu.memory_space<vmem>>, vector<1x2x32xf32>,
    %717 = vector.extract_strided_slice %540 {offsets = [0, 198], sizes = [2, 16], strides = [1, 1]} : vector<8x288xf32> to vector<2x16xf32>
    %718 = vector.extract_strided_slice %540 {offsets = [2, 198], sizes = [2, 16], strides = [1, 1]} : vector<8x288xf32> to vector<2x16xf32>
    %719 = vector.extract_strided_slice %540 {offsets = [4, 198], sizes = [2, 16], strides = [1, 1]} : vector<8x288xf32> to vector<2x16xf32>
    %720 = vector.extract_strided_slice %540 {offsets = [6, 198], sizes = [2, 16], strides = [1, 1]} : vector<8x288xf32> to vector<2x16xf32>
    %cst_428 = arith.constant dense<0.000000e+00> : vector<2x32xf32>
    %721 = tpu.matmul %717, %265, %cst_428 {dimension_numbers = #tpu.dot_dimension_numbers<[1], [0], [0], [1], [0, 0, 1, 1], [], []>} : vector<2x16xf32>, vector<16x32xf32>, vector<2x32xf32> -> vector<2x32xf32>
    %cst_429 = arith.constant dense<0.000000e+00> : vector<2x32xf32>
    %722 = tpu.matmul %718, %272, %cst_429 {dimension_numbers = #tpu.dot_dimension_numbers<[1], [0], [0], [1], [0, 0, 1, 1], [], []>} : vector<2x16xf32>, vector<16x32xf32>, vector<2x32xf32> -> vector<2x32xf32>
    %723 = arith.addf %721, %722 : vector<2x32xf32>
    %cst_430 = arith.constant dense<0.000000e+00> : vector<2x32xf32>
    %724 = tpu.matmul %719, %265, %cst_430 {dimension_numbers = #tpu.dot_dimension_numbers<[1], [0], [0], [1], [0, 0, 1, 1], [], []>} : vector<2x16xf32>, vector<16x32xf32>, vector<2x32xf32> -> vector<2x32xf32>
    %cst_431 = arith.constant dense<0.000000e+00> : vector<2x32xf32>
    %725 = tpu.matmul %720, %272, %cst_431 {dimension_numbers = #tpu.dot_dimension_numbers<[1], [0], [0], [1], [0, 0, 1, 1], [], []>} : vector<2x16xf32>, vector<16x32xf32>, vector<2x32xf32> -> vector<2x32xf32>
    %726 = arith.addf %724, %725 : vector<2x32xf32>
    %c1_432 = arith.constant 1 : index
    %c0_433 = arith.constant 0 : index
    %c704_434 = arith.constant 704 : index
    %727 = vector.load %arg5[%c1_432, %c0_433, %c704_434] : memref<2x2x1024xf32, #tpu.memory_space<vmem>>, vector<1x2x32xf32>
    %728 = vector.shape_cast %727 : vector<1x2x32xf32> to vector<2x32xf32>
    %729 = vector.shape_cast %723 : vector<2x32xf32> to vector<1x2x32xf32>
    tpu.vector_store %arg5[%c1_432, %c0_433, %c704_434], %729 {strides = array<i32>} : memref<2x2x1024xf32, #tpu.memory_space<vmem>>, vector<1x2x32xf32>,
    %c1_435 = arith.constant 1 : index
    %c0_436 = arith.constant 0 : index
    %c736_437 = arith.constant 736 : index
    %730 = vector.load %arg5[%c1_435, %c0_436, %c736_437] : memref<2x2x1024xf32, #tpu.memory_space<vmem>>, vector<1x2x32xf32>
    %731 = vector.shape_cast %730 : vector<1x2x32xf32> to vector<2x32xf32>
    %732 = vector.shape_cast %726 : vector<2x32xf32> to vector<1x2x32xf32>
    tpu.vector_store %arg5[%c1_435, %c0_436, %c736_437], %732 {strides = array<i32>} : memref<2x2x1024xf32, #tpu.memory_space<vmem>>, vector<1x2x32xf32>,
    %733 = vector.extract_strided_slice %540 {offsets = [0, 216], sizes = [2, 16], strides = [1, 1]} : vector<8x288xf32> to vector<2x16xf32>
    %734 = vector.extract_strided_slice %540 {offsets = [2, 216], sizes = [2, 16], strides = [1, 1]} : vector<8x288xf32> to vector<2x16xf32>
    %735 = vector.extract_strided_slice %540 {offsets = [4, 216], sizes = [2, 16], strides = [1, 1]} : vector<8x288xf32> to vector<2x16xf32>
    %736 = vector.extract_strided_slice %540 {offsets = [6, 216], sizes = [2, 16], strides = [1, 1]} : vector<8x288xf32> to vector<2x16xf32>
    %cst_438 = arith.constant dense<0.000000e+00> : vector<2x32xf32>
    %737 = tpu.matmul %733, %265, %cst_438 {dimension_numbers = #tpu.dot_dimension_numbers<[1], [0], [0], [1], [0, 0, 1, 1], [], []>} : vector<2x16xf32>, vector<16x32xf32>, vector<2x32xf32> -> vector<2x32xf32>
    %cst_439 = arith.constant dense<0.000000e+00> : vector<2x32xf32>
    %738 = tpu.matmul %734, %272, %cst_439 {dimension_numbers = #tpu.dot_dimension_numbers<[1], [0], [0], [1], [0, 0, 1, 1], [], []>} : vector<2x16xf32>, vector<16x32xf32>, vector<2x32xf32> -> vector<2x32xf32>
    %739 = arith.addf %737, %738 : vector<2x32xf32>
    %cst_440 = arith.constant dense<0.000000e+00> : vector<2x32xf32>
    %740 = tpu.matmul %735, %265, %cst_440 {dimension_numbers = #tpu.dot_dimension_numbers<[1], [0], [0], [1], [0, 0, 1, 1], [], []>} : vector<2x16xf32>, vector<16x32xf32>, vector<2x32xf32> -> vector<2x32xf32>
    %cst_441 = arith.constant dense<0.000000e+00> : vector<2x32xf32>
    %741 = tpu.matmul %736, %272, %cst_441 {dimension_numbers = #tpu.dot_dimension_numbers<[1], [0], [0], [1], [0, 0, 1, 1], [], []>} : vector<2x16xf32>, vector<16x32xf32>, vector<2x32xf32> -> vector<2x32xf32>
    %742 = arith.addf %740, %741 : vector<2x32xf32>
    %c1_442 = arith.constant 1 : index
    %c0_443 = arith.constant 0 : index
    %c768_444 = arith.constant 768 : index
    %743 = vector.load %arg5[%c1_442, %c0_443, %c768_444] : memref<2x2x1024xf32, #tpu.memory_space<vmem>>, vector<1x2x32xf32>
    %744 = vector.shape_cast %743 : vector<1x2x32xf32> to vector<2x32xf32>
    %745 = vector.shape_cast %739 : vector<2x32xf32> to vector<1x2x32xf32>
    tpu.vector_store %arg5[%c1_442, %c0_443, %c768_444], %745 {strides = array<i32>} : memref<2x2x1024xf32, #tpu.memory_space<vmem>>, vector<1x2x32xf32>,
    %c1_445 = arith.constant 1 : index
    %c0_446 = arith.constant 0 : index
    %c800_447 = arith.constant 800 : index
    %746 = vector.load %arg5[%c1_445, %c0_446, %c800_447] : memref<2x2x1024xf32, #tpu.memory_space<vmem>>, vector<1x2x32xf32>
    %747 = vector.shape_cast %746 : vector<1x2x32xf32> to vector<2x32xf32>
    %748 = vector.shape_cast %742 : vector<2x32xf32> to vector<1x2x32xf32>
    tpu.vector_store %arg5[%c1_445, %c0_446, %c800_447], %748 {strides = array<i32>} : memref<2x2x1024xf32, #tpu.memory_space<vmem>>, vector<1x2x32xf32>,
    %749 = vector.extract_strided_slice %540 {offsets = [0, 234], sizes = [2, 16], strides = [1, 1]} : vector<8x288xf32> to vector<2x16xf32>
    %750 = vector.extract_strided_slice %540 {offsets = [2, 234], sizes = [2, 16], strides = [1, 1]} : vector<8x288xf32> to vector<2x16xf32>
    %751 = vector.extract_strided_slice %540 {offsets = [4, 234], sizes = [2, 16], strides = [1, 1]} : vector<8x288xf32> to vector<2x16xf32>
    %752 = vector.extract_strided_slice %540 {offsets = [6, 234], sizes = [2, 16], strides = [1, 1]} : vector<8x288xf32> to vector<2x16xf32>
    %cst_448 = arith.constant dense<0.000000e+00> : vector<2x32xf32>
    %753 = tpu.matmul %749, %265, %cst_448 {dimension_numbers = #tpu.dot_dimension_numbers<[1], [0], [0], [1], [0, 0, 1, 1], [], []>} : vector<2x16xf32>, vector<16x32xf32>, vector<2x32xf32> -> vector<2x32xf32>
    %cst_449 = arith.constant dense<0.000000e+00> : vector<2x32xf32>
    %754 = tpu.matmul %750, %272, %cst_449 {dimension_numbers = #tpu.dot_dimension_numbers<[1], [0], [0], [1], [0, 0, 1, 1], [], []>} : vector<2x16xf32>, vector<16x32xf32>, vector<2x32xf32> -> vector<2x32xf32>
    %755 = arith.addf %753, %754 : vector<2x32xf32>
    %cst_450 = arith.constant dense<0.000000e+00> : vector<2x32xf32>
    %756 = tpu.matmul %751, %265, %cst_450 {dimension_numbers = #tpu.dot_dimension_numbers<[1], [0], [0], [1], [0, 0, 1, 1], [], []>} : vector<2x16xf32>, vector<16x32xf32>, vector<2x32xf32> -> vector<2x32xf32>
    %cst_451 = arith.constant dense<0.000000e+00> : vector<2x32xf32>
    %757 = tpu.matmul %752, %272, %cst_451 {dimension_numbers = #tpu.dot_dimension_numbers<[1], [0], [0], [1], [0, 0, 1, 1], [], []>} : vector<2x16xf32>, vector<16x32xf32>, vector<2x32xf32> -> vector<2x32xf32>
    %758 = arith.addf %756, %757 : vector<2x32xf32>
    %c1_452 = arith.constant 1 : index
    %c0_453 = arith.constant 0 : index
    %c832_454 = arith.constant 832 : index
    %759 = vector.load %arg5[%c1_452, %c0_453, %c832_454] : memref<2x2x1024xf32, #tpu.memory_space<vmem>>, vector<1x2x32xf32>
    %760 = vector.shape_cast %759 : vector<1x2x32xf32> to vector<2x32xf32>
    %761 = vector.shape_cast %755 : vector<2x32xf32> to vector<1x2x32xf32>
    tpu.vector_store %arg5[%c1_452, %c0_453, %c832_454], %761 {strides = array<i32>} : memref<2x2x1024xf32, #tpu.memory_space<vmem>>, vector<1x2x32xf32>,
    %c1_455 = arith.constant 1 : index
    %c0_456 = arith.constant 0 : index
    %c864_457 = arith.constant 864 : index
    %762 = vector.load %arg5[%c1_455, %c0_456, %c864_457] : memref<2x2x1024xf32, #tpu.memory_space<vmem>>, vector<1x2x32xf32>
    %763 = vector.shape_cast %762 : vector<1x2x32xf32> to vector<2x32xf32>
    %764 = vector.shape_cast %758 : vector<2x32xf32> to vector<1x2x32xf32>
    tpu.vector_store %arg5[%c1_455, %c0_456, %c864_457], %764 {strides = array<i32>} : memref<2x2x1024xf32, #tpu.memory_space<vmem>>, vector<1x2x32xf32>,
    %765 = vector.extract_strided_slice %540 {offsets = [0, 252], sizes = [2, 16], strides = [1, 1]} : vector<8x288xf32> to vector<2x16xf32>
    %766 = vector.extract_strided_slice %540 {offsets = [2, 252], sizes = [2, 16], strides = [1, 1]} : vector<8x288xf32> to vector<2x16xf32>
    %767 = vector.extract_strided_slice %540 {offsets = [4, 252], sizes = [2, 16], strides = [1, 1]} : vector<8x288xf32> to vector<2x16xf32>
    %768 = vector.extract_strided_slice %540 {offsets = [6, 252], sizes = [2, 16], strides = [1, 1]} : vector<8x288xf32> to vector<2x16xf32>
    %cst_458 = arith.constant dense<0.000000e+00> : vector<2x32xf32>
    %769 = tpu.matmul %765, %265, %cst_458 {dimension_numbers = #tpu.dot_dimension_numbers<[1], [0], [0], [1], [0, 0, 1, 1], [], []>} : vector<2x16xf32>, vector<16x32xf32>, vector<2x32xf32> -> vector<2x32xf32>
    %cst_459 = arith.constant dense<0.000000e+00> : vector<2x32xf32>
    %770 = tpu.matmul %766, %272, %cst_459 {dimension_numbers = #tpu.dot_dimension_numbers<[1], [0], [0], [1], [0, 0, 1, 1], [], []>} : vector<2x16xf32>, vector<16x32xf32>, vector<2x32xf32> -> vector<2x32xf32>
    %771 = arith.addf %769, %770 : vector<2x32xf32>
    %cst_460 = arith.constant dense<0.000000e+00> : vector<2x32xf32>
    %772 = tpu.matmul %767, %265, %cst_460 {dimension_numbers = #tpu.dot_dimension_numbers<[1], [0], [0], [1], [0, 0, 1, 1], [], []>} : vector<2x16xf32>, vector<16x32xf32>, vector<2x32xf32> -> vector<2x32xf32>
    %cst_461 = arith.constant dense<0.000000e+00> : vector<2x32xf32>
    %773 = tpu.matmul %768, %272, %cst_461 {dimension_numbers = #tpu.dot_dimension_numbers<[1], [0], [0], [1], [0, 0, 1, 1], [], []>} : vector<2x16xf32>, vector<16x32xf32>, vector<2x32xf32> -> vector<2x32xf32>
    %774 = arith.addf %772, %773 : vector<2x32xf32>
    %c1_462 = arith.constant 1 : index
    %c0_463 = arith.constant 0 : index
    %c896_464 = arith.constant 896 : index
    %775 = vector.load %arg5[%c1_462, %c0_463, %c896_464] : memref<2x2x1024xf32, #tpu.memory_space<vmem>>, vector<1x2x32xf32>
    %776 = vector.shape_cast %775 : vector<1x2x32xf32> to vector<2x32xf32>
    %777 = vector.shape_cast %771 : vector<2x32xf32> to vector<1x2x32xf32>
    tpu.vector_store %arg5[%c1_462, %c0_463, %c896_464], %777 {strides = array<i32>} : memref<2x2x1024xf32, #tpu.memory_space<vmem>>, vector<1x2x32xf32>,
    %c1_465 = arith.constant 1 : index
    %c0_466 = arith.constant 0 : index
    %c928_467 = arith.constant 928 : index
    %778 = vector.load %arg5[%c1_465, %c0_466, %c928_467] : memref<2x2x1024xf32, #tpu.memory_space<vmem>>, vector<1x2x32xf32>
    %779 = vector.shape_cast %778 : vector<1x2x32xf32> to vector<2x32xf32>
    %780 = vector.shape_cast %774 : vector<2x32xf32> to vector<1x2x32xf32>
    tpu.vector_store %arg5[%c1_465, %c0_466, %c928_467], %780 {strides = array<i32>} : memref<2x2x1024xf32, #tpu.memory_space<vmem>>, vector<1x2x32xf32>,
    %781 = vector.extract_strided_slice %540 {offsets = [0, 270], sizes = [2, 16], strides = [1, 1]} : vector<8x288xf32> to vector<2x16xf32>
    %782 = vector.extract_strided_slice %540 {offsets = [2, 270], sizes = [2, 16], strides = [1, 1]} : vector<8x288xf32> to vector<2x16xf32>
    %783 = vector.extract_strided_slice %540 {offsets = [4, 270], sizes = [2, 16], strides = [1, 1]} : vector<8x288xf32> to vector<2x16xf32>
    %784 = vector.extract_strided_slice %540 {offsets = [6, 270], sizes = [2, 16], strides = [1, 1]} : vector<8x288xf32> to vector<2x16xf32>
    %cst_468 = arith.constant dense<0.000000e+00> : vector<2x32xf32>
    %785 = tpu.matmul %781, %265, %cst_468 {dimension_numbers = #tpu.dot_dimension_numbers<[1], [0], [0], [1], [0, 0, 1, 1], [], []>} : vector<2x16xf32>, vector<16x32xf32>, vector<2x32xf32> -> vector<2x32xf32>
    %cst_469 = arith.constant dense<0.000000e+00> : vector<2x32xf32>
    %786 = tpu.matmul %782, %272, %cst_469 {dimension_numbers = #tpu.dot_dimension_numbers<[1], [0], [0], [1], [0, 0, 1, 1], [], []>} : vector<2x16xf32>, vector<16x32xf32>, vector<2x32xf32> -> vector<2x32xf32>
    %787 = arith.addf %785, %786 : vector<2x32xf32>
    %cst_470 = arith.constant dense<0.000000e+00> : vector<2x32xf32>
    %788 = tpu.matmul %783, %265, %cst_470 {dimension_numbers = #tpu.dot_dimension_numbers<[1], [0], [0], [1], [0, 0, 1, 1], [], []>} : vector<2x16xf32>, vector<16x32xf32>, vector<2x32xf32> -> vector<2x32xf32>
    %cst_471 = arith.constant dense<0.000000e+00> : vector<2x32xf32>
    %789 = tpu.matmul %784, %272, %cst_471 {dimension_numbers = #tpu.dot_dimension_numbers<[1], [0], [0], [1], [0, 0, 1, 1], [], []>} : vector<2x16xf32>, vector<16x32xf32>, vector<2x32xf32> -> vector<2x32xf32>
    %790 = arith.addf %788, %789 : vector<2x32xf32>
    %c1_472 = arith.constant 1 : index
    %c0_473 = arith.constant 0 : index
    %c960_474 = arith.constant 960 : index
    %791 = vector.load %arg5[%c1_472, %c0_473, %c960_474] : memref<2x2x1024xf32, #tpu.memory_space<vmem>>, vector<1x2x32xf32>
    %792 = vector.shape_cast %791 : vector<1x2x32xf32> to vector<2x32xf32>
    %793 = vector.shape_cast %787 : vector<2x32xf32> to vector<1x2x32xf32>
    tpu.vector_store %arg5[%c1_472, %c0_473, %c960_474], %793 {strides = array<i32>} : memref<2x2x1024xf32, #tpu.memory_space<vmem>>, vector<1x2x32xf32>,
    %c1_475 = arith.constant 1 : index
    %c0_476 = arith.constant 0 : index
    %c992_477 = arith.constant 992 : index
    %794 = vector.load %arg5[%c1_475, %c0_476, %c992_477] : memref<2x2x1024xf32, #tpu.memory_space<vmem>>, vector<1x2x32xf32>
    %795 = vector.shape_cast %794 : vector<1x2x32xf32> to vector<2x32xf32>
    %796 = vector.shape_cast %790 : vector<2x32xf32> to vector<1x2x32xf32>
    tpu.vector_store %arg5[%c1_475, %c0_476, %c992_477], %796 {strides = array<i32>} : memref<2x2x1024xf32, #tpu.memory_space<vmem>>, vector<1x2x32xf32>,
    return
  }
  func.func @transform_0(%arg0: i32) -> (i32, i32, i32, i32) {
    %c0_i32 = arith.constant 0 : i32
    %c0_i32_0 = arith.constant 0 : i32
    %c0_i32_1 = arith.constant 0 : i32
    %c0_i32_2 = arith.constant 0 : i32
    %c0_i32_3 = arith.constant 0 : i32
    return %c0_i32, %c0_i32_0, %c0_i32_1, %c0_i32_2 : i32, i32, i32, i32
  }
  func.func @transform_1(%arg0: i32) -> (i32, i32, i32) {
    %c0_i32 = arith.constant 0 : i32
    %c0_i32_0 = arith.constant 0 : i32
    %c0_i32_1 = arith.constant 0 : i32
    %c0_i32_2 = arith.constant 0 : i32
    return %c0_i32, %c0_i32_0, %c0_i32_1 : i32, i32, i32
  }
  func.func @transform_2(%arg0: i32) -> (i32, i32) {
    %c0_i32 = arith.constant 0 : i32
    %c0_i32_0 = arith.constant 0 : i32
    %c0_i32_1 = arith.constant 0 : i32
    return %c0_i32, %c0_i32_0 : i32, i32
  }
  func.func @transform_3(%arg0: i32) -> (i32, i32) {
    %c0_i32 = arith.constant 0 : i32
    %c0_i32_0 = arith.constant 0 : i32
    %c0_i32_1 = arith.constant 0 : i32
    return %c0_i32, %c0_i32_0 : i32, i32
  }
  func.func @transform_4(%arg0: i32) -> (i32, i32, i32) {
    %c0_i32 = arith.constant 0 : i32
    %c0_i32_0 = arith.constant 0 : i32
    %c0_i32_1 = arith.constant 0 : i32
    %c0_i32_2 = arith.constant 0 : i32
    return %c0_i32, %c0_i32_0, %c0_i32_1 : i32, i32, i32
  }
}

</mosaic_0001>

<llo_original>
// kernel: tpu_custom_call.1
$region0: #{tpu_custom_call.1}
  #allocation0 [shape = 'u32[]', space=smem, size = 0x4, offset = 0x4, fixed_abs, tag = 'smem constant byte address 0x4 - core index']
  #allocation1 [shape = 'u32[72,128]{1,0:T(1,128)}', space=vmem, size = 0x9000, scoped, tag = 'internal scratch']
  #allocation2 [shape = 'f32[4,326]{1,0:T(4,128)}', space=vmem, size = 0x1800, scoped, tag = 'scratch operand']
  #allocation3 [shape = 'f32[2,8,288]{2,1,0:T(8,128)}', space=vmem, size = 0x6000, scoped, tag = 'scratch operand']
  %s0 = inlined_call_operand.hbm [shape: f32[2,4,16,16], index: 0, kind: input, shape index: {}]
  %s1 = inlined_call_operand.vmem [shape: f32[9,8,4], index: 1, kind: input, shape index: {}]
  %s2 = inlined_call_operand.vmem [shape: f32[8,1], index: 2, kind: input, shape index: {}]
  %s3 = inlined_call_operand.vmem [shape: f32[8,1], index: 3, kind: input, shape index: {}]
  %s4 = inlined_call_operand.hbm [shape: f32[2,2,1024], index: 4, kind: output, shape index: {}]
  %s5 = sld [smem:[#allocation0]]
  $region30: #{tpu_custom_call.1} parent=0
    _
  %s7 = ssub.s32 1, %s5
  %s8 = scalar_select 0, %s7, %s5
  $region1: #{tpu_custom_call.1} parent=0
    #allocation4 [shape = 'u8[65536]{0}', space=vmem, size = 0x10000, scoped, tag = 'input window, operand 0, single buffered']
    #allocation5 [shape = 's32[1]{0}', space=sflag, size = 0x4, scoped, tag = 'scoped memory for tpu_custom_call.1']
    #allocation6 [shape = 's32[1]{0}', space=sflag, size = 0x4, scoped, tag = 'scoped memory for tpu_custom_call.1']
    #allocation7 [shape = 'u8[16384]{0}', space=vmem, size = 0x4000, scoped, tag = 'output window, operand 0, single buffered']
    %9 = vsyncpa [#allocation5], 0
    %10 = vsyncpa [#allocation6], 0
    // Predicated region
    $region2: #{tpu_custom_call.1} parent=1 // pred_check
      _
    $region3: #{tpu_custom_call.1} parent=1 // pred_check_branch
      %12 = sbr.rel (0) target = $region5
    $region4: #{tpu_custom_call.1} parent=1 // pred_region
      %14 = vsyncadd [#allocation5], 0
      %s15 = sshll.u32 %s0, 4
      %s16 = int_to_ptr.hbm [resolvable:$true] %s15
      %s17 = sshll.u32 [#allocation4], 4
      %s18 = int_to_ptr.vmem [resolvable:$true] %s17
      %23 = dma.hbm_to_vmem [thread:$0]  %s16, 2048, %s18, [#allocation5], 128, 128, 8
    $region5: #{tpu_custom_call.1} parent=1 // pred_fallthru
      _
    // Predicated region
    $region6: #{tpu_custom_call.1} parent=1 // pred_check
      _
    $region7: #{tpu_custom_call.1} parent=1 // pred_check_branch
      %25 = sbr.rel (0) target = $region9
    $region8: #{tpu_custom_call.1} parent=1 // pred_region
      _
    $region9: #{tpu_custom_call.1} parent=1 // pred_fallthru
      _
    // Predicated region
    $region10: #{tpu_custom_call.1} parent=1 // pred_check
      _
    $region11: #{tpu_custom_call.1} parent=1 // pred_check_branch
      %27 = sbr.rel (0) target = $region13
    $region12: #{tpu_custom_call.1} parent=1 // pred_region
      _
    $region13: #{tpu_custom_call.1} parent=1 // pred_fallthru
      _
    // Predicated region
    $region14: #{tpu_custom_call.1} parent=1 // pred_check
      _
    $region15: #{tpu_custom_call.1} parent=1 // pred_check_branch
      %29 = sbr.rel (0) target = $region17
    $region16: #{tpu_custom_call.1} parent=1 // pred_region
      _
    $region17: #{tpu_custom_call.1} parent=1 // pred_fallthru
      _
    // Predicated region
    $region18: #{tpu_custom_call.1} parent=1 // pred_check
      _
    $region19: #{tpu_custom_call.1} parent=1 // pred_check_branch
      %31 = sbr.rel (0) target = $region21
    $region20: #{tpu_custom_call.1} parent=1 // pred_region
      %33 = dma.done [#allocation5], 2048
    $region21: #{tpu_custom_call.1} parent=1 // pred_fallthru
      _
    %v34 = vlaneseq
    %v35 = vand.u32 %v34, 127
    %v36 = vadd.s32 %v35, 128
    %v37 = vadd.s32 %v35, 256
    %vm38 = vcmp.lt.s32.totalorder %v35, 0
    %v39 = vsub.s32 0, %v35
    %v40 = vsel %vm38, %v39, %v35
    %v41 = vand.u32 %v40, 65535
    %v42 = vshrl.u32 %v40, 16
    %v44 = vmul.u32 %v41, 14564
    %v45 = vmul.u32 %v41, 58254
    %v46 = vmul.u32 %v42, 14564
    %v47 = vmul.u32 %v42, 58254
    %v48 = vshll.u32 %v45, 16
    %v49 = vshrl.u32 %v45, 16
    %v50 = vshll.u32 %v46, 16
    %v51 = vshrl.u32 %v46, 16
    %vm52 = vc.u32 %v44, %v48
    %v53 = vsel %vm52, 1, 0
    %v54 = vadd.s32 %v44, %v48
    %v55 = vadd.s32 %v47, %v53
    %vm56 = vc.u32 %v54, %v50
    %v57 = vsel %vm56, 1, 0
    %v58 = vadd.s32 %v54, %v50
    %v59 = vadd.s32 %v55, %v57
    %v60 = vadd.s32 %v59, %v49
    %v61 = vadd.s32 %v60, %v51
    %v62 = vshrl.u32 %v61, 4
    %v63 = vmul.u32 %v62, 18
    %v64 = vsub.s32 %v40, %v63
    %v65 = vsub.s32 0, %v64
    %v66 = vsel %vm38, %v65, %v64
    %vm67 = vcmp.lt.s32.totalorder %v36, 0
    %v68 = vsub.s32 0, %v36
    %v69 = vsel %vm67, %v68, %v36
    %v70 = vand.u32 %v69, 65535
    %v71 = vshrl.u32 %v69, 16
    %v73 = vmul.u32 %v70, 14564
    %v74 = vmul.u32 %v70, 58254
    %v75 = vmul.u32 %v71, 14564
    %v76 = vmul.u32 %v71, 58254
    %v77 = vshll.u32 %v74, 16
    %v78 = vshrl.u32 %v74, 16
    %v79 = vshll.u32 %v75, 16
    %v80 = vshrl.u32 %v75, 16
    %vm81 = vc.u32 %v73, %v77
    %v82 = vsel %vm81, 1, 0
    %v83 = vadd.s32 %v73, %v77
    %v84 = vadd.s32 %v76, %v82
    %vm85 = vc.u32 %v83, %v79
    %v86 = vsel %vm85, 1, 0
    %v87 = vadd.s32 %v83, %v79
    %v88 = vadd.s32 %v84, %v86
    %v89 = vadd.s32 %v88, %v78
    %v90 = vadd.s32 %v89, %v80
    %v91 = vshrl.u32 %v90, 4
    %v92 = vmul.u32 %v91, 18
    %v93 = vsub.s32 %v69, %v92
    %v94 = vsub.s32 0, %v93
    %v95 = vsel %vm67, %v94, %v93
    %vm96 = vcmp.lt.s32.totalorder %v37, 0
    %v97 = vsub.s32 0, %v37
    %v98 = vsel %vm96, %v97, %v37
    %v99 = vand.u32 %v98, 65535
    %v100 = vshrl.u32 %v98, 16
    %v102 = vmul.u32 %v99, 14564
    %v103 = vmul.u32 %v99, 58254
    %v104 = vmul.u32 %v100, 14564
    %v105 = vmul.u32 %v100, 58254
    %v106 = vshll.u32 %v103, 16
    %v107 = vshrl.u32 %v103, 16
    %v108 = vshll.u32 %v104, 16
    %v109 = vshrl.u32 %v104, 16
    %vm110 = vc.u32 %v102, %v106
    %v111 = vsel %vm110, 1, 0
    %v112 = vadd.s32 %v102, %v106
    %v113 = vadd.s32 %v105, %v111
    %vm114 = vc.u32 %v112, %v108
    %v115 = vsel %vm114, 1, 0
    %v116 = vadd.s32 %v112, %v108
    %v117 = vadd.s32 %v113, %v115
    %v118 = vadd.s32 %v117, %v107
    %v119 = vadd.s32 %v118, %v109
    %v120 = vshrl.u32 %v119, 4
    %v121 = vmul.u32 %v120, 18
    %v122 = vsub.s32 %v98, %v121
    %v123 = vsub.s32 0, %v122
    %v124 = vsel %vm96, %v123, %v122
    %vm125 = vcmp.ne.s32.totalorder %v66, 0
    %vm126 = vcmp.ne.s32.totalorder %v95, 0
    %vm127 = vcmp.ne.s32.totalorder %v124, 0
    %vm128 = vcmp.lt.s32.totalorder %v66, 0
    %vm129 = vcmp.lt.s32.totalorder %v95, 0
    %vm130 = vcmp.lt.s32.totalorder %v124, 0
    %vm131 = vmand %vm128, %vm125
    %vm132 = vmand %vm129, %vm126
    %vm133 = vmand %vm130, %vm127
    %v134 = vadd.s32 %v66, 18
    %v135 = vadd.s32 %v95, 18
    %v136 = vadd.s32 %v124, 18
    %v137 = vsel %vm131, %v134, %v66
    %v138 = vsel %vm132, %v135, %v95
    %v139 = vsel %vm133, %v136, %v124
    %vm140 = vcmp.lt.s32.totalorder %v137, 16
    %vm141 = vcmp.lt.s32.totalorder %v138, 16
    %vm142 = vcmp.lt.s32.totalorder %v139, 16
    %v143 = vsel %vm140, 1, 0
    %v144 = vsel %vm141, 1, 0
    %v145 = vsel %vm142, 1, 0
    %v146 = vcvt.s32.f32 %v143
    %v147 = vcvt.s32.f32 %v144
    %v148 = vcvt.s32.f32 %v145
    %v149 = vld [vmem:[#allocation4] sm:$0xff]
    %v150 = vld [vmem:[#allocation4 + $0x8] sm:$0xff]
    %v151 = vld [vmem:[#allocation4 + $0x10] sm:$0xff]
    %v152 = vld [vmem:[#allocation4 + $0x18] sm:$0xff]
    %v153 = vld [vmem:[#allocation4 + $0x20] sm:$0xff]
    %v154 = vld [vmem:[#allocation4 + $0x28] sm:$0xff]
    %v155 = vld [vmem:[#allocation4 + $0x30] sm:$0xff]
    %v156 = vld [vmem:[#allocation4 + $0x38] sm:$0xff]
    %157 = vst [vmem:[#allocation2] sm:$0xff] 0.0
    %vm158 = vcmask 568320
    %159 = vst.msk [vmem:[#allocation2 + $0x8] sm:$0xf] %vm158, 0.0
    %v164 = vrot.slane %v151, 7
    %vm165 = vcmask 1041409
    %v166 = vsel %vm165, %v164, %v149
    %vm167 = vcmask 1045509
    %v168 = vsel %vm167, %v164, %v166
    %v169 = vrot.slane %v153, 6
    %vm170 = vcmask 1042434
    %v171 = vsel %vm170, %v169, %v168
    %vm172 = vcmask 1046534
    %v173 = vsel %vm172, %v169, %v171
    %v174 = vrot.slane %v155, 5
    %vm175 = vcmask 1043459
    %v176 = vsel %vm175, %v174, %v173
    %vm177 = vcmask 1047559
    %v178 = vsel %vm177, %v174, %v176
    %179 = vrot.lane.b32.xlu0 %v178, 19
    %v180 = vpop.permute.xlu0 %179
    %vm182 = vcmask 281752
    %183 = vst.msk [vmem:[#allocation2] sm:$0xf] %vm182, %v180
    %v184 = vrot.slane %v149, 1
    %v185 = vsel %vm165, %v151, %v184
    %v186 = vsel %vm167, %v151, %v185
    %v187 = vrot.slane %v153, 7
    %v188 = vsel %vm170, %v187, %v186
    %v189 = vsel %vm172, %v187, %v188
    %v190 = vrot.slane %v155, 6
    %v191 = vsel %vm175, %v190, %v189
    %v192 = vsel %vm177, %v190, %v191
    %193 = vrot.lane.b32.xlu0 %v192, 37
    %v194 = vpop.permute.xlu0 %193
    %vm196 = vcmask 429352
    %197 = vst.msk [vmem:[#allocation2] sm:$0xf] %vm196, %v194
    %v198 = vrot.slane %v149, 2
    %v199 = vrot.slane %v151, 1
    %v200 = vsel %vm165, %v199, %v198
    %v201 = vsel %vm167, %v199, %v200
    %v202 = vsel %vm170, %v153, %v201
    %v203 = vsel %vm172, %v153, %v202
    %v204 = vrot.slane %v155, 7
    %v205 = vsel %vm175, %v204, %v203
    %v206 = vsel %vm177, %v204, %v205
    %207 = vrot.lane.b32.xlu0 %v206, 55
    %v208 = vpop.permute.xlu0 %207
    %vm210 = vcmask 576952
    %211 = vst.msk [vmem:[#allocation2] sm:$0xf] %vm210, %v208
    %v212 = vrot.slane %v149, 3
    %v213 = vrot.slane %v151, 2
    %v214 = vsel %vm165, %v213, %v212
    %v215 = vsel %vm167, %v213, %v214
    %v216 = vrot.slane %v153, 1
    %v217 = vsel %vm170, %v216, %v215
    %v218 = vsel %vm172, %v216, %v217
    %v219 = vsel %vm175, %v155, %v218
    %v220 = vsel %vm177, %v155, %v219
    %221 = vrot.lane.b32.xlu0 %v220, 73
    %v222 = vpop.permute.xlu0 %221
    %vm224 = vcmask 724552
    %225 = vst.msk [vmem:[#allocation2] sm:$0xf] %vm224, %v222
    %226 = vst.sshfl [vmem:[#allocation1] sm:$0xff pattern:$0x75316420] %v149
    %s227 = scalar_lea.vmem [#allocation1], 1
    %v228 = vld [vmem:[%s227] ss:$2 sm:$0xff]
    %229 = vst.sshfl [vmem:[#allocation1 + $0x10] sm:$0xff pattern:$0x75316420] %v151
    %s230 = scalar_lea.vmem [#allocation1], 17
    %v231 = vld [vmem:[%s230] ss:$2 sm:$0xff]
    %232 = vst.sshfl [vmem:[#allocation1 + $0x20] sm:$0xff pattern:$0x75316420] %v153
    %s233 = scalar_lea.vmem [#allocation1], 33
    %v234 = vld [vmem:[%s233] ss:$2 sm:$0xff]
    %235 = vst.sshfl [vmem:[#allocation1 + $0x30] sm:$0xff pattern:$0x75316420] %v155
    %s236 = scalar_lea.vmem [#allocation1], 49
    %v237 = vld [vmem:[%s236] ss:$2 sm:$0xff]
    %v238 = vrot.slane %v231, 7
    %v239 = vsel %vm165, %v238, %v228
    %v240 = vsel %vm167, %v238, %v239
    %v241 = vrot.slane %v234, 6
    %v242 = vsel %vm170, %v241, %v240
    %v243 = vsel %vm172, %v241, %v242
    %v244 = vrot.slane %v237, 5
    %v245 = vsel %vm175, %v244, %v243
    %v246 = vsel %vm177, %v244, %v245
    %247 = vrot.lane.b32.xlu0 %v246, 91
    %v248 = vpop.permute.xlu0 %247
    %vm250 = vcmask 872152
    %251 = vst.msk [vmem:[#allocation2] sm:$0xf] %vm250, %v248
    %252 = vst.sshfl [vmem:[#allocation1] sm:$0xff pattern:$0x75316420] %v149
    %s253 = scalar_lea.vmem [#allocation1], 1
    %v254 = vld [vmem:[%s253] ss:$2 sm:$0xff]
    %255 = vst.sshfl [vmem:[#allocation1 + $0x10] sm:$0xff pattern:$0x75316420] %v151
    %s256 = scalar_lea.vmem [#allocation1], 17
    %v257 = vld [vmem:[%s256] ss:$2 sm:$0xff]
    %258 = vst.sshfl [vmem:[#allocation1 + $0x20] sm:$0xff pattern:$0x75316420] %v153
    %s259 = scalar_lea.vmem [#allocation1], 33
    %v260 = vld [vmem:[%s259] ss:$2 sm:$0xff]
    %261 = vst.sshfl [vmem:[#allocation1 + $0x30] sm:$0xff pattern:$0x75316420] %v155
    %s262 = scalar_lea.vmem [#allocation1], 49
    %v263 = vld [vmem:[%s262] ss:$2 sm:$0xff]
    %v264 = vrot.slane %v254, 1
    %v265 = vsel %vm165, %v257, %v264
    %v266 = vsel %vm167, %v257, %v265
    %v267 = vrot.slane %v260, 7
    %v268 = vsel %vm170, %v267, %v266
    %v269 = vsel %vm172, %v267, %v268
    %v270 = vrot.slane %v263, 6
    %v271 = vsel %vm175, %v270, %v269
    %v272 = vsel %vm177, %v270, %v271
    %273 = vrot.lane.b32.xlu0 %v272, 109
    %v274 = vpop.permute.xlu0 %273
    %vm276 = vcmask 1019752
    %277 = vst.msk [vmem:[#allocation2] sm:$0xf] %vm276, %v274
    %278 = vst.sshfl [vmem:[#allocation1] sm:$0xff pattern:$0x75316420] %v149
    %s279 = scalar_lea.vmem [#allocation1], 1
    %v280 = vld [vmem:[%s279] ss:$2 sm:$0xff]
    %281 = vst.sshfl [vmem:[#allocation1 + $0x10] sm:$0xff pattern:$0x75316420] %v151
    %s282 = scalar_lea.vmem [#allocation1], 17
    %v283 = vld [vmem:[%s282] ss:$2 sm:$0xff]
    %284 = vst.sshfl [vmem:[#allocation1 + $0x20] sm:$0xff pattern:$0x75316420] %v153
    %s285 = scalar_lea.vmem [#allocation1], 33
    %v286 = vld [vmem:[%s285] ss:$2 sm:$0xff]
    %287 = vst.sshfl [vmem:[#allocation1 + $0x30] sm:$0xff pattern:$0x75316420] %v155
    %s288 = scalar_lea.vmem [#allocation1], 49
    %v289 = vld [vmem:[%s288] ss:$2 sm:$0xff]
    %v290 = vrot.slane %v280, 2
    %v291 = vrot.slane %v283, 1
    %v292 = vsel %vm165, %v291, %v290
    %v293 = vsel %vm167, %v291, %v292
    %v294 = vsel %vm170, %v286, %v293
    %v295 = vsel %vm172, %v286, %v294
    %v296 = vrot.slane %v289, 7
    %v297 = vsel %vm175, %v296, %v295
    %v298 = vsel %vm177, %v296, %v297
    %299 = vrot.lane.b32.xlu0 %v298, 127
    %v300 = vpop.permute.xlu0 %299
    %v301 = vrot.slane %v300, 4
    %vm302 = vcmask 1039360
    %v303 = vsel %vm302, %v301, %v300
    %vm305 = vcmask 1044472
    %vm306 = vcmask 121860
    %vm307 = vmor %vm306, %vm305
    %308 = vst.msk [vmem:[#allocation2] sm:$0xff] %vm307, %v303
    %309 = vst.sshfl [vmem:[#allocation1] sm:$0xff pattern:$0x75316420] %v149
    %s310 = scalar_lea.vmem [#allocation1], 1
    %v311 = vld [vmem:[%s310] ss:$2 sm:$0xff]
    %312 = vst.sshfl [vmem:[#allocation1 + $0x10] sm:$0xff pattern:$0x75316420] %v151
    %s313 = scalar_lea.vmem [#allocation1], 17
    %v314 = vld [vmem:[%s313] ss:$2 sm:$0xff]
    %315 = vst.sshfl [vmem:[#allocation1 + $0x20] sm:$0xff pattern:$0x75316420] %v153
    %s316 = scalar_lea.vmem [#allocation1], 33
    %v317 = vld [vmem:[%s316] ss:$2 sm:$0xff]
    %318 = vst.sshfl [vmem:[#allocation1 + $0x30] sm:$0xff pattern:$0x75316420] %v155
    %s319 = scalar_lea.vmem [#allocation1], 49
    %v320 = vld [vmem:[%s319] ss:$2 sm:$0xff]
    %v321 = vrot.slane %v311, 3
    %v322 = vrot.slane %v314, 2
    %v323 = vsel %vm165, %v322, %v321
    %v324 = vsel %vm167, %v322, %v323
    %v325 = vrot.slane %v317, 1
    %v326 = vsel %vm170, %v325, %v324
    %v327 = vsel %vm172, %v325, %v326
    %v328 = vsel %vm175, %v320, %v327
    %v329 = vsel %vm177, %v320, %v328
    %330 = vrot.lane.b32.xlu0 %v329, 17
    %v331 = vpop.permute.xlu0 %330
    %vm333 = vcmask 265352
    %334 = vst.msk [vmem:[#allocation2 + $0x4] sm:$0xf] %vm333, %v331
    %v339 = vrot.slane %v152, 7
    %v340 = vsel %vm165, %v339, %v150
    %v341 = vsel %vm167, %v339, %v340
    %v342 = vrot.slane %v154, 6
    %v343 = vsel %vm170, %v342, %v341
    %v344 = vsel %vm172, %v342, %v343
    %v345 = vrot.slane %v156, 5
    %v346 = vsel %vm175, %v345, %v344
    %v347 = vsel %vm177, %v345, %v346
    %348 = vrot.lane.b32.xlu0 %v347, 35
    %v349 = vpop.permute.xlu0 %348
    %vm351 = vcmask 412952
    %352 = vst.msk [vmem:[#allocation2 + $0x4] sm:$0xf] %vm351, %v349
    %v353 = vrot.slane %v150, 1
    %v354 = vsel %vm165, %v152, %v353
    %v355 = vsel %vm167, %v152, %v354
    %v356 = vrot.slane %v154, 7
    %v357 = vsel %vm170, %v356, %v355
    %v358 = vsel %vm172, %v356, %v357
    %v359 = vrot.slane %v156, 6
    %v360 = vsel %vm175, %v359, %v358
    %v361 = vsel %vm177, %v359, %v360
    %362 = vrot.lane.b32.xlu0 %v361, 53
    %v363 = vpop.permute.xlu0 %362
    %vm365 = vcmask 560552
    %366 = vst.msk [vmem:[#allocation2 + $0x4] sm:$0xf] %vm365, %v363
    %v367 = vrot.slane %v150, 2
    %v368 = vrot.slane %v152, 1
    %v369 = vsel %vm165, %v368, %v367
    %v370 = vsel %vm167, %v368, %v369
    %v371 = vsel %vm170, %v154, %v370
    %v372 = vsel %vm172, %v154, %v371
    %v373 = vrot.slane %v156, 7
    %v374 = vsel %vm175, %v373, %v372
    %v375 = vsel %vm177, %v373, %v374
    %376 = vrot.lane.b32.xlu0 %v375, 71
    %v377 = vpop.permute.xlu0 %376
    %vm379 = vcmask 708152
    %380 = vst.msk [vmem:[#allocation2 + $0x4] sm:$0xf] %vm379, %v377
    %v381 = vrot.slane %v150, 3
    %v382 = vrot.slane %v152, 2
    %v383 = vsel %vm165, %v382, %v381
    %v384 = vsel %vm167, %v382, %v383
    %v385 = vrot.slane %v154, 1
    %v386 = vsel %vm170, %v385, %v384
    %v387 = vsel %vm172, %v385, %v386
    %v388 = vsel %vm175, %v156, %v387
    %v389 = vsel %vm177, %v156, %v388
    %390 = vrot.lane.b32.xlu0 %v389, 89
    %v391 = vpop.permute.xlu0 %390
    %vm393 = vcmask 855752
    %394 = vst.msk [vmem:[#allocation2 + $0x4] sm:$0xf] %vm393, %v391
    %395 = vst.sshfl [vmem:[#allocation1] sm:$0xff pattern:$0x75316420] %v150
    %s396 = scalar_lea.vmem [#allocation1], 1
    %v397 = vld [vmem:[%s396] ss:$2 sm:$0xff]
    %398 = vst.sshfl [vmem:[#allocation1 + $0x10] sm:$0xff pattern:$0x75316420] %v152
    %s399 = scalar_lea.vmem [#allocation1], 17
    %v400 = vld [vmem:[%s399] ss:$2 sm:$0xff]
    %401 = vst.sshfl [vmem:[#allocation1 + $0x20] sm:$0xff pattern:$0x75316420] %v154
    %s402 = scalar_lea.vmem [#allocation1], 33
    %v403 = vld [vmem:[%s402] ss:$2 sm:$0xff]
    %404 = vst.sshfl [vmem:[#allocation1 + $0x30] sm:$0xff pattern:$0x75316420] %v156
    %s405 = scalar_lea.vmem [#allocation1], 49
    %v406 = vld [vmem:[%s405] ss:$2 sm:$0xff]
    %v407 = vrot.slane %v400, 7
    %v408 = vsel %vm165, %v407, %v397
    %v409 = vsel %vm167, %v407, %v408
    %v410 = vrot.slane %v403, 6
    %v411 = vsel %vm170, %v410, %v409
    %v412 = vsel %vm172, %v410, %v411
    %v413 = vrot.slane %v406, 5
    %v414 = vsel %vm175, %v413, %v412
    %v415 = vsel %vm177, %v413, %v414
    %416 = vrot.lane.b32.xlu0 %v415, 107
    %v417 = vpop.permute.xlu0 %416
    %vm419 = vcmask 1003352
    %420 = vst.msk [vmem:[#allocation2 + $0x4] sm:$0xf] %vm419, %v417
    %421 = vst.sshfl [vmem:[#allocation1] sm:$0xff pattern:$0x75316420] %v150
    %s422 = scalar_lea.vmem [#allocation1], 1
    %v423 = vld [vmem:[%s422] ss:$2 sm:$0xff]
    %424 = vst.sshfl [vmem:[#allocation1 + $0x10] sm:$0xff pattern:$0x75316420] %v152
    %s425 = scalar_lea.vmem [#allocation1], 17
    %v426 = vld [vmem:[%s425] ss:$2 sm:$0xff]
    %427 = vst.sshfl [vmem:[#allocation1 + $0x20] sm:$0xff pattern:$0x75316420] %v154
    %s428 = scalar_lea.vmem [#allocation1], 33
    %v429 = vld [vmem:[%s428] ss:$2 sm:$0xff]
    %430 = vst.sshfl [vmem:[#allocation1 + $0x30] sm:$0xff pattern:$0x75316420] %v156
    %s431 = scalar_lea.vmem [#allocation1], 49
    %v432 = vld [vmem:[%s431] ss:$2 sm:$0xff]
    %v433 = vrot.slane %v423, 1
    %v434 = vsel %vm165, %v426, %v433
    %v435 = vsel %vm167, %v426, %v434
    %v436 = vrot.slane %v429, 7
    %v437 = vsel %vm170, %v436, %v435
    %v438 = vsel %vm172, %v436, %v437
    %v439 = vrot.slane %v432, 6
    %v440 = vsel %vm175, %v439, %v438
    %v441 = vsel %vm177, %v439, %v440
    %442 = vrot.lane.b32.xlu0 %v441, 125
    %v443 = vpop.permute.xlu0 %442
    %v444 = vrot.slane %v443, 4
    %vm445 = vcmask 1022976
    %v446 = vsel %vm445, %v444, %v443
    %vm448 = vcmask 1044456
    %vm449 = vcmask 105476
    %vm450 = vmor %vm449, %vm448
    %451 = vst.msk [vmem:[#allocation2 + $0x4] sm:$0xff] %vm450, %v446
    %452 = vst.sshfl [vmem:[#allocation1] sm:$0xff pattern:$0x75316420] %v150
    %s453 = scalar_lea.vmem [#allocation1], 1
    %v454 = vld [vmem:[%s453] ss:$2 sm:$0xff]
    %455 = vst.sshfl [vmem:[#allocation1 + $0x10] sm:$0xff pattern:$0x75316420] %v152
    %s456 = scalar_lea.vmem [#allocation1], 17
    %v457 = vld [vmem:[%s456] ss:$2 sm:$0xff]
    %458 = vst.sshfl [vmem:[#allocation1 + $0x20] sm:$0xff pattern:$0x75316420] %v154
    %s459 = scalar_lea.vmem [#allocation1], 33
    %v460 = vld [vmem:[%s459] ss:$2 sm:$0xff]
    %461 = vst.sshfl [vmem:[#allocation1 + $0x30] sm:$0xff pattern:$0x75316420] %v156
    %s462 = scalar_lea.vmem [#allocation1], 49
    %v463 = vld [vmem:[%s462] ss:$2 sm:$0xff]
    %v464 = vrot.slane %v454, 2
    %v465 = vrot.slane %v457, 1
    %v466 = vsel %vm165, %v465, %v464
    %v467 = vsel %vm167, %v465, %v466
    %v468 = vsel %vm170, %v460, %v467
    %v469 = vsel %vm172, %v460, %v468
    %v470 = vrot.slane %v463, 7
    %v471 = vsel %vm175, %v470, %v469
    %v472 = vsel %vm177, %v470, %v471
    %473 = vrot.lane.b32.xlu0 %v472, 15
    %v474 = vpop.permute.xlu0 %473
    %vm476 = vcmask 248952
    %477 = vst.msk [vmem:[#allocation2 + $0x8] sm:$0xf] %vm476, %v474
    %478 = vst.sshfl [vmem:[#allocation1] sm:$0xff pattern:$0x75316420] %v150
    %s479 = scalar_lea.vmem [#allocation1], 1
    %v480 = vld [vmem:[%s479] ss:$2 sm:$0xff]
    %481 = vst.sshfl [vmem:[#allocation1 + $0x10] sm:$0xff pattern:$0x75316420] %v152
    %s482 = scalar_lea.vmem [#allocation1], 17
    %v483 = vld [vmem:[%s482] ss:$2 sm:$0xff]
    %484 = vst.sshfl [vmem:[#allocation1 + $0x20] sm:$0xff pattern:$0x75316420] %v154
    %s485 = scalar_lea.vmem [#allocation1], 33
    %v486 = vld [vmem:[%s485] ss:$2 sm:$0xff]
    %487 = vst.sshfl [vmem:[#allocation1 + $0x30] sm:$0xff pattern:$0x75316420] %v156
    %s488 = scalar_lea.vmem [#allocation1], 49
    %v489 = vld [vmem:[%s488] ss:$2 sm:$0xff]
    %v490 = vrot.slane %v480, 3
    %v491 = vrot.slane %v483, 2
    %v492 = vsel %vm165, %v491, %v490
    %v493 = vsel %vm167, %v491, %v492
    %v494 = vrot.slane %v486, 1
    %v495 = vsel %vm170, %v494, %v493
    %v496 = vsel %vm172, %v494, %v495
    %v497 = vsel %vm175, %v489, %v496
    %v498 = vsel %vm177, %v489, %v497
    %499 = vrot.lane.b32.xlu0 %v498, 33
    %v500 = vpop.permute.xlu0 %499
    %vm502 = vcmask 396552
    %503 = vst.msk [vmem:[#allocation2 + $0x8] sm:$0xf] %vm502, %v500
    %v504 = vld [vmem:[%s1] sm:$0xff]
    %v505 = vld [vmem:[#allocation2] sm:$0xff]
    %v506 = vld [vmem:[#allocation2 + $0x8] sm:$0xf]
    %s507 = scalar_lea.vmem %s1, 8
    %v508 = vld [vmem:[%s507] sm:$0xff]
    %511 = vst [vmem:[#allocation1] ss:$2 sm:$0xff] %v505
    %s512 = scalar_lea.vmem [#allocation1], 16
    %513 = vst [vmem:[%s512] ss:$2 sm:$0xff] %v506
    %v514 = vld.sshfl [vmem:[#allocation1] sm:$0xff pattern:$0x75316420]
    %v515 = vld.sshfl [vmem:[#allocation1 + $0x8] sm:$0xff pattern:$0x75316420]
    %v516 = vld.sshfl [vmem:[#allocation1 + $0x10] sm:$0xff pattern:$0x75316420]
    %517 = vrot.lane.b32.xlu0 %v514, 127
    %v518 = vpop.permute.xlu0 %517
    %519 = vrot.lane.b32.xlu0 %v515, 127
    %v520 = vpop.permute.xlu0 %519
    %521 = vrot.lane.b32.xlu0 %v516, 127
    %v522 = vpop.permute.xlu0 %521
    %v523 = vsel %vm302, %v518, %v520
    %v524 = vsel %vm302, %v520, %v522
    %vm525 = vcmask 31744
    %v527 = vsel %vm525, %v508, 0
    %vm529 = vcmask 1043456
    %v530 = vsel %vm529, %v523, 0
    %v532 = vsel %vm529, %v524, 0
    %v534 = vsel %vm529, %v522, 0
    %536 = vmatpush.msra.mxu0 0.0
    %537 = vmatpush.msra.mxu0 0.0
    %538 = vmatpush.msra.mxu0 0.0
    %539 = vmatpush.msra.mxu0 0.0
    %540 = vmatpush.msra.mxu0 0.0
    %541 = vmatpush.msra.mxu0 0.0
    %542 = vmatpush.msra.mxu0 0.0
    %543 = vmatpush.msra.mxu0 0.0
    %544 = vmatpush.msra.mxu0 0.0
    %545 = vmatpush.msra.mxu0 0.0
    %546 = vmatpush.msra.mxu0 0.0
    %547 = vmatpush.msra.mxu0 0.0
    %548 = vmatpush.msra.mxu0 0.0
    %549 = vmatpush.msra.mxu0 0.0
    %550 = vmatpush.msra.mxu0 0.0
    %551 = vmatpush.msra.mxu0 %v530
    %552 = vmatmul.f32.gmra.mxu0 %v527
    %v553 = vpop.f32.mrf.mxu0
    %v554 = vadd.f32 0.0, %v553
    %555 = vdwg.mxu0
    %556 = vmatpush.msra.mxu0 0.0
    %557 = vmatpush.msra.mxu0 0.0
    %558 = vmatpush.msra.mxu0 0.0
    %559 = vmatpush.msra.mxu0 0.0
    %560 = vmatpush.msra.mxu0 0.0
    %561 = vmatpush.msra.mxu0 0.0
    %562 = vmatpush.msra.mxu0 0.0
    %563 = vmatpush.msra.mxu0 0.0
    %564 = vmatpush.msra.mxu0 0.0
    %565 = vmatpush.msra.mxu0 0.0
    %566 = vmatpush.msra.mxu0 0.0
    %567 = vmatpush.msra.mxu0 0.0
    %568 = vmatpush.msra.mxu0 0.0
    %569 = vmatpush.msra.mxu0 0.0
    %570 = vmatpush.msra.mxu0 0.0
    %571 = vmatpush.msra.mxu0 %v532
    %572 = vmatmul.f32.gmra.mxu0 %v527
    %v573 = vpop.f32.mrf.mxu0
    %v574 = vadd.f32 0.0, %v573
    %575 = vdwg.mxu0
    %576 = vmatpush.msra.mxu0 0.0
    %577 = vmatpush.msra.mxu0 0.0
    %578 = vmatpush.msra.mxu0 0.0
    %579 = vmatpush.msra.mxu0 0.0
    %580 = vmatpush.msra.mxu0 0.0
    %581 = vmatpush.msra.mxu0 0.0
    %582 = vmatpush.msra.mxu0 0.0
    %583 = vmatpush.msra.mxu0 0.0
    %584 = vmatpush.msra.mxu0 0.0
    %585 = vmatpush.msra.mxu0 0.0
    %586 = vmatpush.msra.mxu0 0.0
    %587 = vmatpush.msra.mxu0 0.0
    %588 = vmatpush.msra.mxu0 0.0
    %589 = vmatpush.msra.mxu0 0.0
    %590 = vmatpush.msra.mxu0 0.0
    %591 = vmatpush.msra.mxu0 %v534
    %592 = vmatmul.f32.gmra.mxu0 %v527
    %v593 = vpop.f32.mrf.mxu0
    %v594 = vadd.f32 0.0, %v593
    %595 = vdwg.mxu0
    %596 = vst [vmem:[#allocation1] ss:$2 sm:$0xff] %v505
    %s597 = scalar_lea.vmem [#allocation1], 16
    %598 = vst [vmem:[%s597] ss:$2 sm:$0xff] %v506
    %v599 = vld.sshfl [vmem:[#allocation1] sm:$0xff pattern:$0x75316420]
    %v600 = vld.sshfl [vmem:[#allocation1 + $0x8] sm:$0xff pattern:$0x75316420]
    %v601 = vld.sshfl [vmem:[#allocation1 + $0x10] sm:$0xff pattern:$0x75316420]
    %v603 = vsel %vm525, %v504, 0
    %v605 = vsel %vm529, %v599, 0
    %v607 = vsel %vm529, %v600, 0
    %v609 = vsel %vm529, %v601, 0
    %611 = vmatpush.msra.mxu0 0.0
    %612 = vmatpush.msra.mxu0 0.0
    %613 = vmatpush.msra.mxu0 0.0
    %614 = vmatpush.msra.mxu0 0.0
    %615 = vmatpush.msra.mxu0 0.0
    %616 = vmatpush.msra.mxu0 0.0
    %617 = vmatpush.msra.mxu0 0.0
    %618 = vmatpush.msra.mxu0 0.0
    %619 = vmatpush.msra.mxu0 0.0
    %620 = vmatpush.msra.mxu0 0.0
    %621 = vmatpush.msra.mxu0 0.0
    %622 = vmatpush.msra.mxu0 0.0
    %623 = vmatpush.msra.mxu0 0.0
    %624 = vmatpush.msra.mxu0 0.0
    %625 = vmatpush.msra.mxu0 0.0
    %626 = vmatpush.msra.mxu0 %v605
    %627 = vmatmul.f32.gmra.mxu0 %v603
    %v628 = vpop.f32.mrf.mxu0
    %v629 = vadd.f32 %v554, %v628
    %630 = vdwg.mxu0
    %631 = vmatpush.msra.mxu0 0.0
    %632 = vmatpush.msra.mxu0 0.0
    %633 = vmatpush.msra.mxu0 0.0
    %634 = vmatpush.msra.mxu0 0.0
    %635 = vmatpush.msra.mxu0 0.0
    %636 = vmatpush.msra.mxu0 0.0
    %637 = vmatpush.msra.mxu0 0.0
    %638 = vmatpush.msra.mxu0 0.0
    %639 = vmatpush.msra.mxu0 0.0
    %640 = vmatpush.msra.mxu0 0.0
    %641 = vmatpush.msra.mxu0 0.0
    %642 = vmatpush.msra.mxu0 0.0
    %643 = vmatpush.msra.mxu0 0.0
    %644 = vmatpush.msra.mxu0 0.0
    %645 = vmatpush.msra.mxu0 0.0
    %646 = vmatpush.msra.mxu0 %v607
    %647 = vmatmul.f32.gmra.mxu0 %v603
    %v648 = vpop.f32.mrf.mxu0
    %v649 = vadd.f32 %v574, %v648
    %650 = vdwg.mxu0
    %651 = vmatpush.msra.mxu0 0.0
    %652 = vmatpush.msra.mxu0 0.0
    %653 = vmatpush.msra.mxu0 0.0
    %654 = vmatpush.msra.mxu0 0.0
    %655 = vmatpush.msra.mxu0 0.0
    %656 = vmatpush.msra.mxu0 0.0
    %657 = vmatpush.msra.mxu0 0.0
    %658 = vmatpush.msra.mxu0 0.0
    %659 = vmatpush.msra.mxu0 0.0
    %660 = vmatpush.msra.mxu0 0.0
    %661 = vmatpush.msra.mxu0 0.0
    %662 = vmatpush.msra.mxu0 0.0
    %663 = vmatpush.msra.mxu0 0.0
    %664 = vmatpush.msra.mxu0 0.0
    %665 = vmatpush.msra.mxu0 0.0
    %666 = vmatpush.msra.mxu0 %v609
    %667 = vmatmul.f32.gmra.mxu0 %v603
    %v668 = vpop.f32.mrf.mxu0
    %v669 = vadd.f32 %v594, %v668
    %670 = vdwg.mxu0
    %s671 = scalar_lea.vmem %s1, 16
    %v672 = vld [vmem:[%s671] sm:$0xff]
    %v673 = vld [vmem:[#allocation2] sm:$0xff]
    %v674 = vld [vmem:[#allocation2 + $0x8] sm:$0xf]
    %677 = vst [vmem:[#allocation1] ss:$2 sm:$0xff] %v673
    %s678 = scalar_lea.vmem [#allocation1], 16
    %679 = vst [vmem:[%s678] ss:$2 sm:$0xff] %v674
    %v680 = vld.sshfl [vmem:[#allocation1] sm:$0xff pattern:$0x75316420]
    %v681 = vld.sshfl [vmem:[#allocation1 + $0x8] sm:$0xff pattern:$0x75316420]
    %v682 = vld.sshfl [vmem:[#allocation1 + $0x10] sm:$0xff pattern:$0x75316420]
    %683 = vrot.lane.b32.xlu0 %v680, 126
    %v684 = vpop.permute.xlu0 %683
    %685 = vrot.lane.b32.xlu0 %v681, 126
    %v686 = vpop.permute.xlu0 %685
    %687 = vrot.lane.b32.xlu0 %v682, 126
    %v688 = vpop.permute.xlu0 %687
    %vm689 = vcmask 1031168
    %v690 = vsel %vm689, %v684, %v686
    %v691 = vsel %vm689, %v686, %v688
    %v693 = vsel %vm525, %v672, 0
    %v695 = vsel %vm529, %v690, 0
    %v697 = vsel %vm529, %v691, 0
    %v699 = vsel %vm529, %v688, 0
    %701 = vmatpush.msra.mxu0 0.0
    %702 = vmatpush.msra.mxu0 0.0
    %703 = vmatpush.msra.mxu0 0.0
    %704 = vmatpush.msra.mxu0 0.0
    %705 = vmatpush.msra.mxu0 0.0
    %706 = vmatpush.msra.mxu0 0.0
    %707 = vmatpush.msra.mxu0 0.0
    %708 = vmatpush.msra.mxu0 0.0
    %709 = vmatpush.msra.mxu0 0.0
    %710 = vmatpush.msra.mxu0 0.0
    %711 = vmatpush.msra.mxu0 0.0
    %712 = vmatpush.msra.mxu0 0.0
    %713 = vmatpush.msra.mxu0 0.0
    %714 = vmatpush.msra.mxu0 0.0
    %715 = vmatpush.msra.mxu0 0.0
    %716 = vmatpush.msra.mxu0 %v695
    %717 = vmatmul.f32.gmra.mxu0 %v693
    %v718 = vpop.f32.mrf.mxu0
    %v719 = vadd.f32 0.0, %v718
    %720 = vdwg.mxu0
    %721 = vmatpush.msra.mxu0 0.0
    %722 = vmatpush.msra.mxu0 0.0
    %723 = vmatpush.msra.mxu0 0.0
    %724 = vmatpush.msra.mxu0 0.0
    %725 = vmatpush.msra.mxu0 0.0
    %726 = vmatpush.msra.mxu0 0.0
    %727 = vmatpush.msra.mxu0 0.0
    %728 = vmatpush.msra.mxu0 0.0
    %729 = vmatpush.msra.mxu0 0.0
    %730 = vmatpush.msra.mxu0 0.0
    %731 = vmatpush.msra.mxu0 0.0
    %732 = vmatpush.msra.mxu0 0.0
    %733 = vmatpush.msra.mxu0 0.0
    %734 = vmatpush.msra.mxu0 0.0
    %735 = vmatpush.msra.mxu0 0.0
    %736 = vmatpush.msra.mxu0 %v697
    %737 = vmatmul.f32.gmra.mxu0 %v693
    %v738 = vpop.f32.mrf.mxu0
    %v739 = vadd.f32 0.0, %v738
    %740 = vdwg.mxu0
    %741 = vmatpush.msra.mxu0 0.0
    %742 = vmatpush.msra.mxu0 0.0
    %743 = vmatpush.msra.mxu0 0.0
    %744 = vmatpush.msra.mxu0 0.0
    %745 = vmatpush.msra.mxu0 0.0
    %746 = vmatpush.msra.mxu0 0.0
    %747 = vmatpush.msra.mxu0 0.0
    %748 = vmatpush.msra.mxu0 0.0
    %749 = vmatpush.msra.mxu0 0.0
    %750 = vmatpush.msra.mxu0 0.0
    %751 = vmatpush.msra.mxu0 0.0
    %752 = vmatpush.msra.mxu0 0.0
    %753 = vmatpush.msra.mxu0 0.0
    %754 = vmatpush.msra.mxu0 0.0
    %755 = vmatpush.msra.mxu0 0.0
    %756 = vmatpush.msra.mxu0 %v699
    %757 = vmatmul.f32.gmra.mxu0 %v693
    %v758 = vpop.f32.mrf.mxu0
    %v759 = vadd.f32 0.0, %v758
    %760 = vdwg.mxu0
    %v761 = vadd.f32 %v629, %v719
    %v762 = vadd.f32 %v649, %v739
    %v763 = vadd.f32 %v669, %v759
    %s764 = scalar_lea.vmem %s1, 24
    %v765 = vld [vmem:[%s764] sm:$0xff]
    %v766 = vld [vmem:[#allocation2] sm:$0xff]
    %v767 = vld [vmem:[#allocation2 + $0x8] sm:$0xf]
    %770 = vst [vmem:[#allocation1] ss:$2 sm:$0xff] %v766
    %s771 = scalar_lea.vmem [#allocation1], 16
    %772 = vst [vmem:[%s771] ss:$2 sm:$0xff] %v767
    %v773 = vld.sshfl [vmem:[#allocation1] sm:$0xff pattern:$0x75316420]
    %v774 = vld.sshfl [vmem:[#allocation1 + $0x8] sm:$0xff pattern:$0x75316420]
    %v775 = vld.sshfl [vmem:[#allocation1 + $0x10] sm:$0xff pattern:$0x75316420]
    %776 = vrot.lane.b32.xlu0 %v773, 110
    %v777 = vpop.permute.xlu0 %776
    %778 = vrot.lane.b32.xlu0 %v774, 110
    %v779 = vpop.permute.xlu0 %778
    %780 = vrot.lane.b32.xlu0 %v775, 110
    %v781 = vpop.permute.xlu0 %780
    %vm782 = vcmask 900096
    %v783 = vsel %vm782, %v777, %v779
    %v784 = vsel %vm782, %v779, %v781
    %v786 = vsel %vm525, %v765, 0
    %v788 = vsel %vm529, %v783, 0
    %v790 = vsel %vm529, %v784, 0
    %v792 = vsel %vm529, %v781, 0
    %794 = vmatpush.msra.mxu0 0.0
    %795 = vmatpush.msra.mxu0 0.0
    %796 = vmatpush.msra.mxu0 0.0
    %797 = vmatpush.msra.mxu0 0.0
    %798 = vmatpush.msra.mxu0 0.0
    %799 = vmatpush.msra.mxu0 0.0
    %800 = vmatpush.msra.mxu0 0.0
    %801 = vmatpush.msra.mxu0 0.0
    %802 = vmatpush.msra.mxu0 0.0
    %803 = vmatpush.msra.mxu0 0.0
    %804 = vmatpush.msra.mxu0 0.0
    %805 = vmatpush.msra.mxu0 0.0
    %806 = vmatpush.msra.mxu0 0.0
    %807 = vmatpush.msra.mxu0 0.0
    %808 = vmatpush.msra.mxu0 0.0
    %809 = vmatpush.msra.mxu0 %v788
    %810 = vmatmul.f32.gmra.mxu0 %v786
    %v811 = vpop.f32.mrf.mxu0
    %v812 = vadd.f32 0.0, %v811
    %813 = vdwg.mxu0
    %814 = vmatpush.msra.mxu0 0.0
    %815 = vmatpush.msra.mxu0 0.0
    %816 = vmatpush.msra.mxu0 0.0
    %817 = vmatpush.msra.mxu0 0.0
    %818 = vmatpush.msra.mxu0 0.0
    %819 = vmatpush.msra.mxu0 0.0
    %820 = vmatpush.msra.mxu0 0.0
    %821 = vmatpush.msra.mxu0 0.0
    %822 = vmatpush.msra.mxu0 0.0
    %823 = vmatpush.msra.mxu0 0.0
    %824 = vmatpush.msra.mxu0 0.0
    %825 = vmatpush.msra.mxu0 0.0
    %826 = vmatpush.msra.mxu0 0.0
    %827 = vmatpush.msra.mxu0 0.0
    %828 = vmatpush.msra.mxu0 0.0
    %829 = vmatpush.msra.mxu0 %v790
    %830 = vmatmul.f32.gmra.mxu0 %v786
    %v831 = vpop.f32.mrf.mxu0
    %v832 = vadd.f32 0.0, %v831
    %833 = vdwg.mxu0
    %834 = vmatpush.msra.mxu0 0.0
    %835 = vmatpush.msra.mxu0 0.0
    %836 = vmatpush.msra.mxu0 0.0
    %837 = vmatpush.msra.mxu0 0.0
    %838 = vmatpush.msra.mxu0 0.0
    %839 = vmatpush.msra.mxu0 0.0
    %840 = vmatpush.msra.mxu0 0.0
    %841 = vmatpush.msra.mxu0 0.0
    %842 = vmatpush.msra.mxu0 0.0
    %843 = vmatpush.msra.mxu0 0.0
    %844 = vmatpush.msra.mxu0 0.0
    %845 = vmatpush.msra.mxu0 0.0
    %846 = vmatpush.msra.mxu0 0.0
    %847 = vmatpush.msra.mxu0 0.0
    %848 = vmatpush.msra.mxu0 0.0
    %849 = vmatpush.msra.mxu0 %v792
    %850 = vmatmul.f32.gmra.mxu0 %v786
    %v851 = vpop.f32.mrf.mxu0
    %v852 = vadd.f32 0.0, %v851
    %853 = vdwg.mxu0
    %v854 = vadd.f32 %v761, %v812
    %v855 = vadd.f32 %v762, %v832
    %v856 = vadd.f32 %v763, %v852
    %s857 = scalar_lea.vmem %s1, 32
    %v858 = vld [vmem:[%s857] sm:$0xff]
    %v859 = vld [vmem:[#allocation2] sm:$0xff]
    %v860 = vld [vmem:[#allocation2 + $0x8] sm:$0xf]
    %863 = vst [vmem:[#allocation1] ss:$2 sm:$0xff] %v859
    %s864 = scalar_lea.vmem [#allocation1], 16
    %865 = vst [vmem:[%s864] ss:$2 sm:$0xff] %v860
    %v866 = vld.sshfl [vmem:[#allocation1] sm:$0xff pattern:$0x75316420]
    %v867 = vld.sshfl [vmem:[#allocation1 + $0x8] sm:$0xff pattern:$0x75316420]
    %v868 = vld.sshfl [vmem:[#allocation1 + $0x10] sm:$0xff pattern:$0x75316420]
    %869 = vrot.lane.b32.xlu0 %v866, 109
    %v870 = vpop.permute.xlu0 %869
    %871 = vrot.lane.b32.xlu0 %v867, 109
    %v872 = vpop.permute.xlu0 %871
    %873 = vrot.lane.b32.xlu0 %v868, 109
    %v874 = vpop.permute.xlu0 %873
    %vm875 = vcmask 891904
    %v876 = vsel %vm875, %v870, %v872
    %v877 = vsel %vm875, %v872, %v874
    %v879 = vsel %vm525, %v858, 0
    %v881 = vsel %vm529, %v876, 0
    %v883 = vsel %vm529, %v877, 0
    %v885 = vsel %vm529, %v874, 0
    %887 = vmatpush.msra.mxu0 0.0
    %888 = vmatpush.msra.mxu0 0.0
    %889 = vmatpush.msra.mxu0 0.0
    %890 = vmatpush.msra.mxu0 0.0
    %891 = vmatpush.msra.mxu0 0.0
    %892 = vmatpush.msra.mxu0 0.0
    %893 = vmatpush.msra.mxu0 0.0
    %894 = vmatpush.msra.mxu0 0.0
    %895 = vmatpush.msra.mxu0 0.0
    %896 = vmatpush.msra.mxu0 0.0
    %897 = vmatpush.msra.mxu0 0.0
    %898 = vmatpush.msra.mxu0 0.0
    %899 = vmatpush.msra.mxu0 0.0
    %900 = vmatpush.msra.mxu0 0.0
    %901 = vmatpush.msra.mxu0 0.0
    %902 = vmatpush.msra.mxu0 %v881
    %903 = vmatmul.f32.gmra.mxu0 %v879
    %v904 = vpop.f32.mrf.mxu0
    %v905 = vadd.f32 0.0, %v904
    %906 = vdwg.mxu0
    %907 = vmatpush.msra.mxu0 0.0
    %908 = vmatpush.msra.mxu0 0.0
    %909 = vmatpush.msra.mxu0 0.0
    %910 = vmatpush.msra.mxu0 0.0
    %911 = vmatpush.msra.mxu0 0.0
    %912 = vmatpush.msra.mxu0 0.0
    %913 = vmatpush.msra.mxu0 0.0
    %914 = vmatpush.msra.mxu0 0.0
    %915 = vmatpush.msra.mxu0 0.0
    %916 = vmatpush.msra.mxu0 0.0
    %917 = vmatpush.msra.mxu0 0.0
    %918 = vmatpush.msra.mxu0 0.0
    %919 = vmatpush.msra.mxu0 0.0
    %920 = vmatpush.msra.mxu0 0.0
    %921 = vmatpush.msra.mxu0 0.0
    %922 = vmatpush.msra.mxu0 %v883
    %923 = vmatmul.f32.gmra.mxu0 %v879
    %v924 = vpop.f32.mrf.mxu0
    %v925 = vadd.f32 0.0, %v924
    %926 = vdwg.mxu0
    %927 = vmatpush.msra.mxu0 0.0
    %928 = vmatpush.msra.mxu0 0.0
    %929 = vmatpush.msra.mxu0 0.0
    %930 = vmatpush.msra.mxu0 0.0
    %931 = vmatpush.msra.mxu0 0.0
    %932 = vmatpush.msra.mxu0 0.0
    %933 = vmatpush.msra.mxu0 0.0
    %934 = vmatpush.msra.mxu0 0.0
    %935 = vmatpush.msra.mxu0 0.0
    %936 = vmatpush.msra.mxu0 0.0
    %937 = vmatpush.msra.mxu0 0.0
    %938 = vmatpush.msra.mxu0 0.0
    %939 = vmatpush.msra.mxu0 0.0
    %940 = vmatpush.msra.mxu0 0.0
    %941 = vmatpush.msra.mxu0 0.0
    %942 = vmatpush.msra.mxu0 %v885
    %943 = vmatmul.f32.gmra.mxu0 %v879
    %v944 = vpop.f32.mrf.mxu0
    %v945 = vadd.f32 0.0, %v944
    %946 = vdwg.mxu0
    %v947 = vadd.f32 %v854, %v905
    %v948 = vadd.f32 %v855, %v925
    %v949 = vadd.f32 %v856, %v945
    %s950 = scalar_lea.vmem %s1, 40
    %v951 = vld [vmem:[%s950] sm:$0xff]
    %v952 = vld [vmem:[#allocation2] sm:$0xff]
    %v953 = vld [vmem:[#allocation2 + $0x8] sm:$0xf]
    %956 = vst [vmem:[#allocation1] ss:$2 sm:$0xff] %v952
    %s957 = scalar_lea.vmem [#allocation1], 16
    %958 = vst [vmem:[%s957] ss:$2 sm:$0xff] %v953
    %v959 = vld.sshfl [vmem:[#allocation1] sm:$0xff pattern:$0x75316420]
    %v960 = vld.sshfl [vmem:[#allocation1 + $0x8] sm:$0xff pattern:$0x75316420]
    %v961 = vld.sshfl [vmem:[#allocation1 + $0x10] sm:$0xff pattern:$0x75316420]
    %962 = vrot.lane.b32.xlu0 %v959, 108
    %v963 = vpop.permute.xlu0 %962
    %964 = vrot.lane.b32.xlu0 %v960, 108
    %v965 = vpop.permute.xlu0 %964
    %966 = vrot.lane.b32.xlu0 %v961, 108
    %v967 = vpop.permute.xlu0 %966
    %vm968 = vcmask 883712
    %v969 = vsel %vm968, %v963, %v965
    %v970 = vsel %vm968, %v965, %v967
    %v972 = vsel %vm525, %v951, 0
    %v974 = vsel %vm529, %v969, 0
    %v976 = vsel %vm529, %v970, 0
    %v978 = vsel %vm529, %v967, 0
    %980 = vmatpush.msra.mxu0 0.0
    %981 = vmatpush.msra.mxu0 0.0
    %982 = vmatpush.msra.mxu0 0.0
    %983 = vmatpush.msra.mxu0 0.0
    %984 = vmatpush.msra.mxu0 0.0
    %985 = vmatpush.msra.mxu0 0.0
    %986 = vmatpush.msra.mxu0 0.0
    %987 = vmatpush.msra.mxu0 0.0
    %988 = vmatpush.msra.mxu0 0.0
    %989 = vmatpush.msra.mxu0 0.0
    %990 = vmatpush.msra.mxu0 0.0
    %991 = vmatpush.msra.mxu0 0.0
    %992 = vmatpush.msra.mxu0 0.0
    %993 = vmatpush.msra.mxu0 0.0
    %994 = vmatpush.msra.mxu0 0.0
    %995 = vmatpush.msra.mxu0 %v974
    %996 = vmatmul.f32.gmra.mxu0 %v972
    %v997 = vpop.f32.mrf.mxu0
    %v998 = vadd.f32 0.0, %v997
    %999 = vdwg.mxu0
    %1000 = vmatpush.msra.mxu0 0.0
    %1001 = vmatpush.msra.mxu0 0.0
    %1002 = vmatpush.msra.mxu0 0.0
    %1003 = vmatpush.msra.mxu0 0.0
    %1004 = vmatpush.msra.mxu0 0.0
    %1005 = vmatpush.msra.mxu0 0.0
    %1006 = vmatpush.msra.mxu0 0.0
    %1007 = vmatpush.msra.mxu0 0.0
    %1008 = vmatpush.msra.mxu0 0.0
    %1009 = vmatpush.msra.mxu0 0.0
    %1010 = vmatpush.msra.mxu0 0.0
    %1011 = vmatpush.msra.mxu0 0.0
    %1012 = vmatpush.msra.mxu0 0.0
    %1013 = vmatpush.msra.mxu0 0.0
    %1014 = vmatpush.msra.mxu0 0.0
    %1015 = vmatpush.msra.mxu0 %v976
    %1016 = vmatmul.f32.gmra.mxu0 %v972
    %v1017 = vpop.f32.mrf.mxu0
    %v1018 = vadd.f32 0.0, %v1017
    %1019 = vdwg.mxu0
    %1020 = vmatpush.msra.mxu0 0.0
    %1021 = vmatpush.msra.mxu0 0.0
    %1022 = vmatpush.msra.mxu0 0.0
    %1023 = vmatpush.msra.mxu0 0.0
    %1024 = vmatpush.msra.mxu0 0.0
    %1025 = vmatpush.msra.mxu0 0.0
    %1026 = vmatpush.msra.mxu0 0.0
    %1027 = vmatpush.msra.mxu0 0.0
    %1028 = vmatpush.msra.mxu0 0.0
    %1029 = vmatpush.msra.mxu0 0.0
    %1030 = vmatpush.msra.mxu0 0.0
    %1031 = vmatpush.msra.mxu0 0.0
    %1032 = vmatpush.msra.mxu0 0.0
    %1033 = vmatpush.msra.mxu0 0.0
    %1034 = vmatpush.msra.mxu0 0.0
    %1035 = vmatpush.msra.mxu0 %v978
    %1036 = vmatmul.f32.gmra.mxu0 %v972
    %v1037 = vpop.f32.mrf.mxu0
    %v1038 = vadd.f32 0.0, %v1037
    %1039 = vdwg.mxu0
    %v1040 = vadd.f32 %v947, %v998
    %v1041 = vadd.f32 %v948, %v1018
    %v1042 = vadd.f32 %v949, %v1038
    %s1043 = scalar_lea.vmem %s1, 48
    %v1044 = vld [vmem:[%s1043] sm:$0xff]
    %v1045 = vld [vmem:[#allocation2] sm:$0xff]
    %v1046 = vld [vmem:[#allocation2 + $0x8] sm:$0xf]
    %1049 = vst [vmem:[#allocation1] ss:$2 sm:$0xff] %v1045
    %s1050 = scalar_lea.vmem [#allocation1], 16
    %1051 = vst [vmem:[%s1050] ss:$2 sm:$0xff] %v1046
    %v1052 = vld.sshfl [vmem:[#allocation1] sm:$0xff pattern:$0x75316420]
    %v1053 = vld.sshfl [vmem:[#allocation1 + $0x8] sm:$0xff pattern:$0x75316420]
    %v1054 = vld.sshfl [vmem:[#allocation1 + $0x10] sm:$0xff pattern:$0x75316420]
    %1055 = vrot.lane.b32.xlu0 %v1052, 92
    %v1056 = vpop.permute.xlu0 %1055
    %1057 = vrot.lane.b32.xlu0 %v1053, 92
    %v1058 = vpop.permute.xlu0 %1057
    %1059 = vrot.lane.b32.xlu0 %v1054, 92
    %v1060 = vpop.permute.xlu0 %1059
    %vm1061 = vcmask 752640
    %v1062 = vsel %vm1061, %v1056, %v1058
    %v1063 = vsel %vm1061, %v1058, %v1060
    %v1065 = vsel %vm525, %v1044, 0
    %v1067 = vsel %vm529, %v1062, 0
    %v1069 = vsel %vm529, %v1063, 0
    %v1071 = vsel %vm529, %v1060, 0
    %1073 = vmatpush.msra.mxu0 0.0
    %1074 = vmatpush.msra.mxu0 0.0
    %1075 = vmatpush.msra.mxu0 0.0
    %1076 = vmatpush.msra.mxu0 0.0
    %1077 = vmatpush.msra.mxu0 0.0
    %1078 = vmatpush.msra.mxu0 0.0
    %1079 = vmatpush.msra.mxu0 0.0
    %1080 = vmatpush.msra.mxu0 0.0
    %1081 = vmatpush.msra.mxu0 0.0
    %1082 = vmatpush.msra.mxu0 0.0
    %1083 = vmatpush.msra.mxu0 0.0
    %1084 = vmatpush.msra.mxu0 0.0
    %1085 = vmatpush.msra.mxu0 0.0
    %1086 = vmatpush.msra.mxu0 0.0
    %1087 = vmatpush.msra.mxu0 0.0
    %1088 = vmatpush.msra.mxu0 %v1067
    %1089 = vmatmul.f32.gmra.mxu0 %v1065
    %v1090 = vpop.f32.mrf.mxu0
    %v1091 = vadd.f32 0.0, %v1090
    %1092 = vdwg.mxu0
    %1093 = vmatpush.msra.mxu0 0.0
    %1094 = vmatpush.msra.mxu0 0.0
    %1095 = vmatpush.msra.mxu0 0.0
    %1096 = vmatpush.msra.mxu0 0.0
    %1097 = vmatpush.msra.mxu0 0.0
    %1098 = vmatpush.msra.mxu0 0.0
    %1099 = vmatpush.msra.mxu0 0.0
    %1100 = vmatpush.msra.mxu0 0.0
    %1101 = vmatpush.msra.mxu0 0.0
    %1102 = vmatpush.msra.mxu0 0.0
    %1103 = vmatpush.msra.mxu0 0.0
    %1104 = vmatpush.msra.mxu0 0.0
    %1105 = vmatpush.msra.mxu0 0.0
    %1106 = vmatpush.msra.mxu0 0.0
    %1107 = vmatpush.msra.mxu0 0.0
    %1108 = vmatpush.msra.mxu0 %v1069
    %1109 = vmatmul.f32.gmra.mxu0 %v1065
    %v1110 = vpop.f32.mrf.mxu0
    %v1111 = vadd.f32 0.0, %v1110
    %1112 = vdwg.mxu0
    %1113 = vmatpush.msra.mxu0 0.0
    %1114 = vmatpush.msra.mxu0 0.0
    %1115 = vmatpush.msra.mxu0 0.0
    %1116 = vmatpush.msra.mxu0 0.0
    %1117 = vmatpush.msra.mxu0 0.0
    %1118 = vmatpush.msra.mxu0 0.0
    %1119 = vmatpush.msra.mxu0 0.0
    %1120 = vmatpush.msra.mxu0 0.0
    %1121 = vmatpush.msra.mxu0 0.0
    %1122 = vmatpush.msra.mxu0 0.0
    %1123 = vmatpush.msra.mxu0 0.0
    %1124 = vmatpush.msra.mxu0 0.0
    %1125 = vmatpush.msra.mxu0 0.0
    %1126 = vmatpush.msra.mxu0 0.0
    %1127 = vmatpush.msra.mxu0 0.0
    %1128 = vmatpush.msra.mxu0 %v1071
    %1129 = vmatmul.f32.gmra.mxu0 %v1065
    %v1130 = vpop.f32.mrf.mxu0
    %v1131 = vadd.f32 0.0, %v1130
    %1132 = vdwg.mxu0
    %v1133 = vadd.f32 %v1040, %v1091
    %v1134 = vadd.f32 %v1041, %v1111
    %v1135 = vadd.f32 %v1042, %v1131
    %s1136 = scalar_lea.vmem %s1, 56
    %v1137 = vld [vmem:[%s1136] sm:$0xff]
    %v1138 = vld [vmem:[#allocation2] sm:$0xff]
    %v1139 = vld [vmem:[#allocation2 + $0x8] sm:$0xf]
    %1142 = vst [vmem:[#allocation1] ss:$2 sm:$0xff] %v1138
    %s1143 = scalar_lea.vmem [#allocation1], 16
    %1144 = vst [vmem:[%s1143] ss:$2 sm:$0xff] %v1139
    %v1145 = vld.sshfl [vmem:[#allocation1] sm:$0xff pattern:$0x75316420]
    %v1146 = vld.sshfl [vmem:[#allocation1 + $0x8] sm:$0xff pattern:$0x75316420]
    %v1147 = vld.sshfl [vmem:[#allocation1 + $0x10] sm:$0xff pattern:$0x75316420]
    %1148 = vrot.lane.b32.xlu0 %v1145, 91
    %v1149 = vpop.permute.xlu0 %1148
    %1150 = vrot.lane.b32.xlu0 %v1146, 91
    %v1151 = vpop.permute.xlu0 %1150
    %1152 = vrot.lane.b32.xlu0 %v1147, 91
    %v1153 = vpop.permute.xlu0 %1152
    %vm1154 = vcmask 744448
    %v1155 = vsel %vm1154, %v1149, %v1151
    %v1156 = vsel %vm1154, %v1151, %v1153
    %v1158 = vsel %vm525, %v1137, 0
    %v1160 = vsel %vm529, %v1155, 0
    %v1162 = vsel %vm529, %v1156, 0
    %v1164 = vsel %vm529, %v1153, 0
    %1166 = vmatpush.msra.mxu0 0.0
    %1167 = vmatpush.msra.mxu0 0.0
    %1168 = vmatpush.msra.mxu0 0.0
    %1169 = vmatpush.msra.mxu0 0.0
    %1170 = vmatpush.msra.mxu0 0.0
    %1171 = vmatpush.msra.mxu0 0.0
    %1172 = vmatpush.msra.mxu0 0.0
    %1173 = vmatpush.msra.mxu0 0.0
    %1174 = vmatpush.msra.mxu0 0.0
    %1175 = vmatpush.msra.mxu0 0.0
    %1176 = vmatpush.msra.mxu0 0.0
    %1177 = vmatpush.msra.mxu0 0.0
    %1178 = vmatpush.msra.mxu0 0.0
    %1179 = vmatpush.msra.mxu0 0.0
    %1180 = vmatpush.msra.mxu0 0.0
    %1181 = vmatpush.msra.mxu0 %v1160
    %1182 = vmatmul.f32.gmra.mxu0 %v1158
    %v1183 = vpop.f32.mrf.mxu0
    %v1184 = vadd.f32 0.0, %v1183
    %1185 = vdwg.mxu0
    %1186 = vmatpush.msra.mxu0 0.0
    %1187 = vmatpush.msra.mxu0 0.0
    %1188 = vmatpush.msra.mxu0 0.0
    %1189 = vmatpush.msra.mxu0 0.0
    %1190 = vmatpush.msra.mxu0 0.0
    %1191 = vmatpush.msra.mxu0 0.0
    %1192 = vmatpush.msra.mxu0 0.0
    %1193 = vmatpush.msra.mxu0 0.0
    %1194 = vmatpush.msra.mxu0 0.0
    %1195 = vmatpush.msra.mxu0 0.0
    %1196 = vmatpush.msra.mxu0 0.0
    %1197 = vmatpush.msra.mxu0 0.0
    %1198 = vmatpush.msra.mxu0 0.0
    %1199 = vmatpush.msra.mxu0 0.0
    %1200 = vmatpush.msra.mxu0 0.0
    %1201 = vmatpush.msra.mxu0 %v1162
    %1202 = vmatmul.f32.gmra.mxu0 %v1158
    %v1203 = vpop.f32.mrf.mxu0
    %v1204 = vadd.f32 0.0, %v1203
    %1205 = vdwg.mxu0
    %1206 = vmatpush.msra.mxu0 0.0
    %1207 = vmatpush.msra.mxu0 0.0
    %1208 = vmatpush.msra.mxu0 0.0
    %1209 = vmatpush.msra.mxu0 0.0
    %1210 = vmatpush.msra.mxu0 0.0
    %1211 = vmatpush.msra.mxu0 0.0
    %1212 = vmatpush.msra.mxu0 0.0
    %1213 = vmatpush.msra.mxu0 0.0
    %1214 = vmatpush.msra.mxu0 0.0
    %1215 = vmatpush.msra.mxu0 0.0
    %1216 = vmatpush.msra.mxu0 0.0
    %1217 = vmatpush.msra.mxu0 0.0
    %1218 = vmatpush.msra.mxu0 0.0
    %1219 = vmatpush.msra.mxu0 0.0
    %1220 = vmatpush.msra.mxu0 0.0
    %1221 = vmatpush.msra.mxu0 %v1164
    %1222 = vmatmul.f32.gmra.mxu0 %v1158
    %v1223 = vpop.f32.mrf.mxu0
    %v1224 = vadd.f32 0.0, %v1223
    %1225 = vdwg.mxu0
    %v1226 = vadd.f32 %v1133, %v1184
    %v1227 = vadd.f32 %v1134, %v1204
    %v1228 = vadd.f32 %v1135, %v1224
    %s1229 = scalar_lea.vmem %s1, 64
    %v1230 = vld [vmem:[%s1229] sm:$0xff]
    %v1231 = vld [vmem:[#allocation2] sm:$0xff]
    %v1232 = vld [vmem:[#allocation2 + $0x8] sm:$0xf]
    %1235 = vst [vmem:[#allocation1] ss:$2 sm:$0xff] %v1231
    %s1236 = scalar_lea.vmem [#allocation1], 16
    %1237 = vst [vmem:[%s1236] ss:$2 sm:$0xff] %v1232
    %v1238 = vld.sshfl [vmem:[#allocation1] sm:$0xff pattern:$0x75316420]
    %v1239 = vld.sshfl [vmem:[#allocation1 + $0x8] sm:$0xff pattern:$0x75316420]
    %v1240 = vld.sshfl [vmem:[#allocation1 + $0x10] sm:$0xff pattern:$0x75316420]
    %1241 = vrot.lane.b32.xlu0 %v1238, 90
    %v1242 = vpop.permute.xlu0 %1241
    %1243 = vrot.lane.b32.xlu0 %v1239, 90
    %v1244 = vpop.permute.xlu0 %1243
    %1245 = vrot.lane.b32.xlu0 %v1240, 90
    %v1246 = vpop.permute.xlu0 %1245
    %vm1247 = vcmask 736256
    %v1248 = vsel %vm1247, %v1242, %v1244
    %v1249 = vsel %vm1247, %v1244, %v1246
    %v1251 = vsel %vm525, %v1230, 0
    %v1253 = vsel %vm529, %v1248, 0
    %v1255 = vsel %vm529, %v1249, 0
    %v1257 = vsel %vm529, %v1246, 0
    %1259 = vmatpush.msra.mxu0 0.0
    %1260 = vmatpush.msra.mxu0 0.0
    %1261 = vmatpush.msra.mxu0 0.0
    %1262 = vmatpush.msra.mxu0 0.0
    %1263 = vmatpush.msra.mxu0 0.0
    %1264 = vmatpush.msra.mxu0 0.0
    %1265 = vmatpush.msra.mxu0 0.0
    %1266 = vmatpush.msra.mxu0 0.0
    %1267 = vmatpush.msra.mxu0 0.0
    %1268 = vmatpush.msra.mxu0 0.0
    %1269 = vmatpush.msra.mxu0 0.0
    %1270 = vmatpush.msra.mxu0 0.0
    %1271 = vmatpush.msra.mxu0 0.0
    %1272 = vmatpush.msra.mxu0 0.0
    %1273 = vmatpush.msra.mxu0 0.0
    %1274 = vmatpush.msra.mxu0 %v1253
    %1275 = vmatmul.f32.gmra.mxu0 %v1251
    %v1276 = vpop.f32.mrf.mxu0
    %v1277 = vadd.f32 0.0, %v1276
    %1278 = vdwg.mxu0
    %1279 = vmatpush.msra.mxu0 0.0
    %1280 = vmatpush.msra.mxu0 0.0
    %1281 = vmatpush.msra.mxu0 0.0
    %1282 = vmatpush.msra.mxu0 0.0
    %1283 = vmatpush.msra.mxu0 0.0
    %1284 = vmatpush.msra.mxu0 0.0
    %1285 = vmatpush.msra.mxu0 0.0
    %1286 = vmatpush.msra.mxu0 0.0
    %1287 = vmatpush.msra.mxu0 0.0
    %1288 = vmatpush.msra.mxu0 0.0
    %1289 = vmatpush.msra.mxu0 0.0
    %1290 = vmatpush.msra.mxu0 0.0
    %1291 = vmatpush.msra.mxu0 0.0
    %1292 = vmatpush.msra.mxu0 0.0
    %1293 = vmatpush.msra.mxu0 0.0
    %1294 = vmatpush.msra.mxu0 %v1255
    %1295 = vmatmul.f32.gmra.mxu0 %v1251
    %v1296 = vpop.f32.mrf.mxu0
    %v1297 = vadd.f32 0.0, %v1296
    %1298 = vdwg.mxu0
    %1299 = vmatpush.msra.mxu0 0.0
    %1300 = vmatpush.msra.mxu0 0.0
    %1301 = vmatpush.msra.mxu0 0.0
    %1302 = vmatpush.msra.mxu0 0.0
    %1303 = vmatpush.msra.mxu0 0.0
    %1304 = vmatpush.msra.mxu0 0.0
    %1305 = vmatpush.msra.mxu0 0.0
    %1306 = vmatpush.msra.mxu0 0.0
    %1307 = vmatpush.msra.mxu0 0.0
    %1308 = vmatpush.msra.mxu0 0.0
    %1309 = vmatpush.msra.mxu0 0.0
    %1310 = vmatpush.msra.mxu0 0.0
    %1311 = vmatpush.msra.mxu0 0.0
    %1312 = vmatpush.msra.mxu0 0.0
    %1313 = vmatpush.msra.mxu0 0.0
    %1314 = vmatpush.msra.mxu0 %v1257
    %1315 = vmatmul.f32.gmra.mxu0 %v1251
    %v1316 = vpop.f32.mrf.mxu0
    %v1317 = vadd.f32 0.0, %v1316
    %1318 = vdwg.mxu0
    %v1319 = vadd.f32 %v1226, %v1277
    %v1320 = vadd.f32 %v1227, %v1297
    %v1321 = vadd.f32 %v1228, %v1317
    %1322 = vst [vmem:[#allocation3] sm:$0xff] %v1319
    %1323 = vst [vmem:[#allocation3 + $0x8] sm:$0xff] %v1320
    %vm1324 = vcmask 261120
    %1325 = vst.msk [vmem:[#allocation3 + $0x10] sm:$0xff] %vm1324, %v1321
    %v1326 = vmul.f32 %v1319, %v146
    %v1327 = vmul.f32 %v1320, %v147
    %v1328 = vmul.f32 %v1321, %v148
    %v1329 = vadd.f32 %v1326, %v1327
    %v1330 = vsel %vm1324, %v1328, 0.0
    %v1331 = vadd.f32 %v1329, %v1330
    %1332 = vadd.xlane.f32.xlu0 %v1331
    %v1333 = vpop.xlane.xlu0 %1332
    %v1334 = vadd.f32 %v1333, 0.0
    %v1335 = vmul.f32 %v1326, %v1319
    %v1336 = vmul.f32 %v1327, %v1320
    %v1337 = vmul.f32 %v1328, %v1321
    %v1338 = vadd.f32 %v1335, %v1336
    %v1339 = vsel %vm1324, %v1337, 0.0
    %v1340 = vadd.f32 %v1338, %v1339
    %1341 = vadd.xlane.f32.xlu0 %v1340
    %v1342 = vpop.xlane.xlu0 %1341
    %v1343 = vadd.f32 %v1342, 0.0
    %s1344 = scalar_lea.vmem [#allocation4], 64
    %v1345 = vld [vmem:[%s1344] sm:$0xff]
    %v1346 = vld [vmem:[%s1344 + $0x8] sm:$0xff]
    %v1347 = vld [vmem:[%s1344 + $0x10] sm:$0xff]
    %v1348 = vld [vmem:[%s1344 + $0x18] sm:$0xff]
    %v1349 = vld [vmem:[%s1344 + $0x20] sm:$0xff]
    %v1350 = vld [vmem:[%s1344 + $0x28] sm:$0xff]
    %v1351 = vld [vmem:[%s1344 + $0x30] sm:$0xff]
    %v1352 = vld [vmem:[%s1344 + $0x38] sm:$0xff]
    %1353 = vst [vmem:[#allocation2] sm:$0xff] 0.0
    %1354 = vst.msk [vmem:[#allocation2 + $0x8] sm:$0xf] %vm158, 0.0
    %v1359 = vrot.slane %v1347, 7
    %v1360 = vsel %vm165, %v1359, %v1345
    %v1361 = vsel %vm167, %v1359, %v1360
    %v1362 = vrot.slane %v1349, 6
    %v1363 = vsel %vm170, %v1362, %v1361
    %v1364 = vsel %vm172, %v1362, %v1363
    %v1365 = vrot.slane %v1351, 5
    %v1366 = vsel %vm175, %v1365, %v1364
    %v1367 = vsel %vm177, %v1365, %v1366
    %1368 = vrot.lane.b32.xlu0 %v1367, 19
    %v1369 = vpop.permute.xlu0 %1368
    %1371 = vst.msk [vmem:[#allocation2] sm:$0xf] %vm182, %v1369
    %v1372 = vrot.slane %v1345, 1
    %v1373 = vsel %vm165, %v1347, %v1372
    %v1374 = vsel %vm167, %v1347, %v1373
    %v1375 = vrot.slane %v1349, 7
    %v1376 = vsel %vm170, %v1375, %v1374
    %v1377 = vsel %vm172, %v1375, %v1376
    %v1378 = vrot.slane %v1351, 6
    %v1379 = vsel %vm175, %v1378, %v1377
    %v1380 = vsel %vm177, %v1378, %v1379
    %1381 = vrot.lane.b32.xlu0 %v1380, 37
    %v1382 = vpop.permute.xlu0 %1381
    %1384 = vst.msk [vmem:[#allocation2] sm:$0xf] %vm196, %v1382
    %v1385 = vrot.slane %v1345, 2
    %v1386 = vrot.slane %v1347, 1
    %v1387 = vsel %vm165, %v1386, %v1385
    %v1388 = vsel %vm167, %v1386, %v1387
    %v1389 = vsel %vm170, %v1349, %v1388
    %v1390 = vsel %vm172, %v1349, %v1389
    %v1391 = vrot.slane %v1351, 7
    %v1392 = vsel %vm175, %v1391, %v1390
    %v1393 = vsel %vm177, %v1391, %v1392
    %1394 = vrot.lane.b32.xlu0 %v1393, 55
    %v1395 = vpop.permute.xlu0 %1394
    %1397 = vst.msk [vmem:[#allocation2] sm:$0xf] %vm210, %v1395
    %v1398 = vrot.slane %v1345, 3
    %v1399 = vrot.slane %v1347, 2
    %v1400 = vsel %vm165, %v1399, %v1398
    %v1401 = vsel %vm167, %v1399, %v1400
    %v1402 = vrot.slane %v1349, 1
    %v1403 = vsel %vm170, %v1402, %v1401
    %v1404 = vsel %vm172, %v1402, %v1403
    %v1405 = vsel %vm175, %v1351, %v1404
    %v1406 = vsel %vm177, %v1351, %v1405
    %1407 = vrot.lane.b32.xlu0 %v1406, 73
    %v1408 = vpop.permute.xlu0 %1407
    %1410 = vst.msk [vmem:[#allocation2] sm:$0xf] %vm224, %v1408
    %1411 = vst.sshfl [vmem:[#allocation1] sm:$0xff pattern:$0x75316420] %v1345
    %s1412 = scalar_lea.vmem [#allocation1], 1
    %v1413 = vld [vmem:[%s1412] ss:$2 sm:$0xff]
    %1414 = vst.sshfl [vmem:[#allocation1 + $0x10] sm:$0xff pattern:$0x75316420] %v1347
    %s1415 = scalar_lea.vmem [#allocation1], 17
    %v1416 = vld [vmem:[%s1415] ss:$2 sm:$0xff]
    %1417 = vst.sshfl [vmem:[#allocation1 + $0x20] sm:$0xff pattern:$0x75316420] %v1349
    %s1418 = scalar_lea.vmem [#allocation1], 33
    %v1419 = vld [vmem:[%s1418] ss:$2 sm:$0xff]
    %1420 = vst.sshfl [vmem:[#allocation1 + $0x30] sm:$0xff pattern:$0x75316420] %v1351
    %s1421 = scalar_lea.vmem [#allocation1], 49
    %v1422 = vld [vmem:[%s1421] ss:$2 sm:$0xff]
    %v1423 = vrot.slane %v1416, 7
    %v1424 = vsel %vm165, %v1423, %v1413
    %v1425 = vsel %vm167, %v1423, %v1424
    %v1426 = vrot.slane %v1419, 6
    %v1427 = vsel %vm170, %v1426, %v1425
    %v1428 = vsel %vm172, %v1426, %v1427
    %v1429 = vrot.slane %v1422, 5
    %v1430 = vsel %vm175, %v1429, %v1428
    %v1431 = vsel %vm177, %v1429, %v1430
    %1432 = vrot.lane.b32.xlu0 %v1431, 91
    %v1433 = vpop.permute.xlu0 %1432
    %1435 = vst.msk [vmem:[#allocation2] sm:$0xf] %vm250, %v1433
    %1436 = vst.sshfl [vmem:[#allocation1] sm:$0xff pattern:$0x75316420] %v1345
    %s1437 = scalar_lea.vmem [#allocation1], 1
    %v1438 = vld [vmem:[%s1437] ss:$2 sm:$0xff]
    %1439 = vst.sshfl [vmem:[#allocation1 + $0x10] sm:$0xff pattern:$0x75316420] %v1347
    %s1440 = scalar_lea.vmem [#allocation1], 17
    %v1441 = vld [vmem:[%s1440] ss:$2 sm:$0xff]
    %1442 = vst.sshfl [vmem:[#allocation1 + $0x20] sm:$0xff pattern:$0x75316420] %v1349
    %s1443 = scalar_lea.vmem [#allocation1], 33
    %v1444 = vld [vmem:[%s1443] ss:$2 sm:$0xff]
    %1445 = vst.sshfl [vmem:[#allocation1 + $0x30] sm:$0xff pattern:$0x75316420] %v1351
    %s1446 = scalar_lea.vmem [#allocation1], 49
    %v1447 = vld [vmem:[%s1446] ss:$2 sm:$0xff]
    %v1448 = vrot.slane %v1438, 1
    %v1449 = vsel %vm165, %v1441, %v1448
    %v1450 = vsel %vm167, %v1441, %v1449
    %v1451 = vrot.slane %v1444, 7
    %v1452 = vsel %vm170, %v1451, %v1450
    %v1453 = vsel %vm172, %v1451, %v1452
    %v1454 = vrot.slane %v1447, 6
    %v1455 = vsel %vm175, %v1454, %v1453
    %v1456 = vsel %vm177, %v1454, %v1455
    %1457 = vrot.lane.b32.xlu0 %v1456, 109
    %v1458 = vpop.permute.xlu0 %1457
    %1460 = vst.msk [vmem:[#allocation2] sm:$0xf] %vm276, %v1458
    %1461 = vst.sshfl [vmem:[#allocation1] sm:$0xff pattern:$0x75316420] %v1345
    %s1462 = scalar_lea.vmem [#allocation1], 1
    %v1463 = vld [vmem:[%s1462] ss:$2 sm:$0xff]
    %1464 = vst.sshfl [vmem:[#allocation1 + $0x10] sm:$0xff pattern:$0x75316420] %v1347
    %s1465 = scalar_lea.vmem [#allocation1], 17
    %v1466 = vld [vmem:[%s1465] ss:$2 sm:$0xff]
    %1467 = vst.sshfl [vmem:[#allocation1 + $0x20] sm:$0xff pattern:$0x75316420] %v1349
    %s1468 = scalar_lea.vmem [#allocation1], 33
    %v1469 = vld [vmem:[%s1468] ss:$2 sm:$0xff]
    %1470 = vst.sshfl [vmem:[#allocation1 + $0x30] sm:$0xff pattern:$0x75316420] %v1351
    %s1471 = scalar_lea.vmem [#allocation1], 49
    %v1472 = vld [vmem:[%s1471] ss:$2 sm:$0xff]
    %v1473 = vrot.slane %v1463, 2
    %v1474 = vrot.slane %v1466, 1
    %v1475 = vsel %vm165, %v1474, %v1473
    %v1476 = vsel %vm167, %v1474, %v1475
    %v1477 = vsel %vm170, %v1469, %v1476
    %v1478 = vsel %vm172, %v1469, %v1477
    %v1479 = vrot.slane %v1472, 7
    %v1480 = vsel %vm175, %v1479, %v1478
    %v1481 = vsel %vm177, %v1479, %v1480
    %1482 = vrot.lane.b32.xlu0 %v1481, 127
    %v1483 = vpop.permute.xlu0 %1482
    %v1484 = vrot.slane %v1483, 4
    %v1485 = vsel %vm302, %v1484, %v1483
    %1487 = vst.msk [vmem:[#allocation2] sm:$0xff] %vm307, %v1485
    %1488 = vst.sshfl [vmem:[#allocation1] sm:$0xff pattern:$0x75316420] %v1345
    %s1489 = scalar_lea.vmem [#allocation1], 1
    %v1490 = vld [vmem:[%s1489] ss:$2 sm:$0xff]
    %1491 = vst.sshfl [vmem:[#allocation1 + $0x10] sm:$0xff pattern:$0x75316420] %v1347
    %s1492 = scalar_lea.vmem [#allocation1], 17
    %v1493 = vld [vmem:[%s1492] ss:$2 sm:$0xff]
    %1494 = vst.sshfl [vmem:[#allocation1 + $0x20] sm:$0xff pattern:$0x75316420] %v1349
    %s1495 = scalar_lea.vmem [#allocation1], 33
    %v1496 = vld [vmem:[%s1495] ss:$2 sm:$0xff]
    %1497 = vst.sshfl [vmem:[#allocation1 + $0x30] sm:$0xff pattern:$0x75316420] %v1351
    %s1498 = scalar_lea.vmem [#allocation1], 49
    %v1499 = vld [vmem:[%s1498] ss:$2 sm:$0xff]
    %v1500 = vrot.slane %v1490, 3
    %v1501 = vrot.slane %v1493, 2
    %v1502 = vsel %vm165, %v1501, %v1500
    %v1503 = vsel %vm167, %v1501, %v1502
    %v1504 = vrot.slane %v1496, 1
    %v1505 = vsel %vm170, %v1504, %v1503
    %v1506 = vsel %vm172, %v1504, %v1505
    %v1507 = vsel %vm175, %v1499, %v1506
    %v1508 = vsel %vm177, %v1499, %v1507
    %1509 = vrot.lane.b32.xlu0 %v1508, 17
    %v1510 = vpop.permute.xlu0 %1509
    %1512 = vst.msk [vmem:[#allocation2 + $0x4] sm:$0xf] %vm333, %v1510
    %v1517 = vrot.slane %v1348, 7
    %v1518 = vsel %vm165, %v1517, %v1346
    %v1519 = vsel %vm167, %v1517, %v1518
    %v1520 = vrot.slane %v1350, 6
    %v1521 = vsel %vm170, %v1520, %v1519
    %v1522 = vsel %vm172, %v1520, %v1521
    %v1523 = vrot.slane %v1352, 5
    %v1524 = vsel %vm175, %v1523, %v1522
    %v1525 = vsel %vm177, %v1523, %v1524
    %1526 = vrot.lane.b32.xlu0 %v1525, 35
    %v1527 = vpop.permute.xlu0 %1526
    %1529 = vst.msk [vmem:[#allocation2 + $0x4] sm:$0xf] %vm351, %v1527
    %v1530 = vrot.slane %v1346, 1
    %v1531 = vsel %vm165, %v1348, %v1530
    %v1532 = vsel %vm167, %v1348, %v1531
    %v1533 = vrot.slane %v1350, 7
    %v1534 = vsel %vm170, %v1533, %v1532
    %v1535 = vsel %vm172, %v1533, %v1534
    %v1536 = vrot.slane %v1352, 6
    %v1537 = vsel %vm175, %v1536, %v1535
    %v1538 = vsel %vm177, %v1536, %v1537
    %1539 = vrot.lane.b32.xlu0 %v1538, 53
    %v1540 = vpop.permute.xlu0 %1539
    %1542 = vst.msk [vmem:[#allocation2 + $0x4] sm:$0xf] %vm365, %v1540
    %v1543 = vrot.slane %v1346, 2
    %v1544 = vrot.slane %v1348, 1
    %v1545 = vsel %vm165, %v1544, %v1543
    %v1546 = vsel %vm167, %v1544, %v1545
    %v1547 = vsel %vm170, %v1350, %v1546
    %v1548 = vsel %vm172, %v1350, %v1547
    %v1549 = vrot.slane %v1352, 7
    %v1550 = vsel %vm175, %v1549, %v1548
    %v1551 = vsel %vm177, %v1549, %v1550
    %1552 = vrot.lane.b32.xlu0 %v1551, 71
    %v1553 = vpop.permute.xlu0 %1552
    %1555 = vst.msk [vmem:[#allocation2 + $0x4] sm:$0xf] %vm379, %v1553
    %v1556 = vrot.slane %v1346, 3
    %v1557 = vrot.slane %v1348, 2
    %v1558 = vsel %vm165, %v1557, %v1556
    %v1559 = vsel %vm167, %v1557, %v1558
    %v1560 = vrot.slane %v1350, 1
    %v1561 = vsel %vm170, %v1560, %v1559
    %v1562 = vsel %vm172, %v1560, %v1561
    %v1563 = vsel %vm175, %v1352, %v1562
    %v1564 = vsel %vm177, %v1352, %v1563
    %1565 = vrot.lane.b32.xlu0 %v1564, 89
    %v1566 = vpop.permute.xlu0 %1565
    %1568 = vst.msk [vmem:[#allocation2 + $0x4] sm:$0xf] %vm393, %v1566
    %1569 = vst.sshfl [vmem:[#allocation1] sm:$0xff pattern:$0x75316420] %v1346
    %s1570 = scalar_lea.vmem [#allocation1], 1
    %v1571 = vld [vmem:[%s1570] ss:$2 sm:$0xff]
    %1572 = vst.sshfl [vmem:[#allocation1 + $0x10] sm:$0xff pattern:$0x75316420] %v1348
    %s1573 = scalar_lea.vmem [#allocation1], 17
    %v1574 = vld [vmem:[%s1573] ss:$2 sm:$0xff]
    %1575 = vst.sshfl [vmem:[#allocation1 + $0x20] sm:$0xff pattern:$0x75316420] %v1350
    %s1576 = scalar_lea.vmem [#allocation1], 33
    %v1577 = vld [vmem:[%s1576] ss:$2 sm:$0xff]
    %1578 = vst.sshfl [vmem:[#allocation1 + $0x30] sm:$0xff pattern:$0x75316420] %v1352
    %s1579 = scalar_lea.vmem [#allocation1], 49
    %v1580 = vld [vmem:[%s1579] ss:$2 sm:$0xff]
    %v1581 = vrot.slane %v1574, 7
    %v1582 = vsel %vm165, %v1581, %v1571
    %v1583 = vsel %vm167, %v1581, %v1582
    %v1584 = vrot.slane %v1577, 6
    %v1585 = vsel %vm170, %v1584, %v1583
    %v1586 = vsel %vm172, %v1584, %v1585
    %v1587 = vrot.slane %v1580, 5
    %v1588 = vsel %vm175, %v1587, %v1586
    %v1589 = vsel %vm177, %v1587, %v1588
    %1590 = vrot.lane.b32.xlu0 %v1589, 107
    %v1591 = vpop.permute.xlu0 %1590
    %1593 = vst.msk [vmem:[#allocation2 + $0x4] sm:$0xf] %vm419, %v1591
    %1594 = vst.sshfl [vmem:[#allocation1] sm:$0xff pattern:$0x75316420] %v1346
    %s1595 = scalar_lea.vmem [#allocation1], 1
    %v1596 = vld [vmem:[%s1595] ss:$2 sm:$0xff]
    %1597 = vst.sshfl [vmem:[#allocation1 + $0x10] sm:$0xff pattern:$0x75316420] %v1348
    %s1598 = scalar_lea.vmem [#allocation1], 17
    %v1599 = vld [vmem:[%s1598] ss:$2 sm:$0xff]
    %1600 = vst.sshfl [vmem:[#allocation1 + $0x20] sm:$0xff pattern:$0x75316420] %v1350
    %s1601 = scalar_lea.vmem [#allocation1], 33
    %v1602 = vld [vmem:[%s1601] ss:$2 sm:$0xff]
    %1603 = vst.sshfl [vmem:[#allocation1 + $0x30] sm:$0xff pattern:$0x75316420] %v1352
    %s1604 = scalar_lea.vmem [#allocation1], 49
    %v1605 = vld [vmem:[%s1604] ss:$2 sm:$0xff]
    %v1606 = vrot.slane %v1596, 1
    %v1607 = vsel %vm165, %v1599, %v1606
    %v1608 = vsel %vm167, %v1599, %v1607
    %v1609 = vrot.slane %v1602, 7
    %v1610 = vsel %vm170, %v1609, %v1608
    %v1611 = vsel %vm172, %v1609, %v1610
    %v1612 = vrot.slane %v1605, 6
    %v1613 = vsel %vm175, %v1612, %v1611
    %v1614 = vsel %vm177, %v1612, %v1613
    %1615 = vrot.lane.b32.xlu0 %v1614, 125
    %v1616 = vpop.permute.xlu0 %1615
    %v1617 = vrot.slane %v1616, 4
    %v1618 = vsel %vm445, %v1617, %v1616
    %1620 = vst.msk [vmem:[#allocation2 + $0x4] sm:$0xff] %vm450, %v1618
    %1621 = vst.sshfl [vmem:[#allocation1] sm:$0xff pattern:$0x75316420] %v1346
    %s1622 = scalar_lea.vmem [#allocation1], 1
    %v1623 = vld [vmem:[%s1622] ss:$2 sm:$0xff]
    %1624 = vst.sshfl [vmem:[#allocation1 + $0x10] sm:$0xff pattern:$0x75316420] %v1348
    %s1625 = scalar_lea.vmem [#allocation1], 17
    %v1626 = vld [vmem:[%s1625] ss:$2 sm:$0xff]
    %1627 = vst.sshfl [vmem:[#allocation1 + $0x20] sm:$0xff pattern:$0x75316420] %v1350
    %s1628 = scalar_lea.vmem [#allocation1], 33
    %v1629 = vld [vmem:[%s1628] ss:$2 sm:$0xff]
    %1630 = vst.sshfl [vmem:[#allocation1 + $0x30] sm:$0xff pattern:$0x75316420] %v1352
    %s1631 = scalar_lea.vmem [#allocation1], 49
    %v1632 = vld [vmem:[%s1631] ss:$2 sm:$0xff]
    %v1633 = vrot.slane %v1623, 2
    %v1634 = vrot.slane %v1626, 1
    %v1635 = vsel %vm165, %v1634, %v1633
    %v1636 = vsel %vm167, %v1634, %v1635
    %v1637 = vsel %vm170, %v1629, %v1636
    %v1638 = vsel %vm172, %v1629, %v1637
    %v1639 = vrot.slane %v1632, 7
    %v1640 = vsel %vm175, %v1639, %v1638
    %v1641 = vsel %vm177, %v1639, %v1640
    %1642 = vrot.lane.b32.xlu0 %v1641, 15
    %v1643 = vpop.permute.xlu0 %1642
    %1645 = vst.msk [vmem:[#allocation2 + $0x8] sm:$0xf] %vm476, %v1643
    %1646 = vst.sshfl [vmem:[#allocation1] sm:$0xff pattern:$0x75316420] %v1346
    %s1647 = scalar_lea.vmem [#allocation1], 1
    %v1648 = vld [vmem:[%s1647] ss:$2 sm:$0xff]
    %1649 = vst.sshfl [vmem:[#allocation1 + $0x10] sm:$0xff pattern:$0x75316420] %v1348
    %s1650 = scalar_lea.vmem [#allocation1], 17
    %v1651 = vld [vmem:[%s1650] ss:$2 sm:$0xff]
    %1652 = vst.sshfl [vmem:[#allocation1 + $0x20] sm:$0xff pattern:$0x75316420] %v1350
    %s1653 = scalar_lea.vmem [#allocation1], 33
    %v1654 = vld [vmem:[%s1653] ss:$2 sm:$0xff]
    %1655 = vst.sshfl [vmem:[#allocation1 + $0x30] sm:$0xff pattern:$0x75316420] %v1352
    %s1656 = scalar_lea.vmem [#allocation1], 49
    %v1657 = vld [vmem:[%s1656] ss:$2 sm:$0xff]
    %v1658 = vrot.slane %v1648, 3
    %v1659 = vrot.slane %v1651, 2
    %v1660 = vsel %vm165, %v1659, %v1658
    %v1661 = vsel %vm167, %v1659, %v1660
    %v1662 = vrot.slane %v1654, 1
    %v1663 = vsel %vm170, %v1662, %v1661
    %v1664 = vsel %vm172, %v1662, %v1663
    %v1665 = vsel %vm175, %v1657, %v1664
    %v1666 = vsel %vm177, %v1657, %v1665
    %1667 = vrot.lane.b32.xlu0 %v1666, 33
    %v1668 = vpop.permute.xlu0 %1667
    %1670 = vst.msk [vmem:[#allocation2 + $0x8] sm:$0xf] %vm502, %v1668
    %v1671 = vld [vmem:[%s1] sm:$0xff]
    %v1672 = vld [vmem:[#allocation2] sm:$0xff]
    %v1673 = vld [vmem:[#allocation2 + $0x8] sm:$0xf]
    %v1674 = vld [vmem:[%s507] sm:$0xff]
    %1677 = vst [vmem:[#allocation1] ss:$2 sm:$0xff] %v1672
    %s1678 = scalar_lea.vmem [#allocation1], 16
    %1679 = vst [vmem:[%s1678] ss:$2 sm:$0xff] %v1673
    %v1680 = vld.sshfl [vmem:[#allocation1] sm:$0xff pattern:$0x75316420]
    %v1681 = vld.sshfl [vmem:[#allocation1 + $0x8] sm:$0xff pattern:$0x75316420]
    %v1682 = vld.sshfl [vmem:[#allocation1 + $0x10] sm:$0xff pattern:$0x75316420]
    %1683 = vrot.lane.b32.xlu0 %v1680, 127
    %v1684 = vpop.permute.xlu0 %1683
    %1685 = vrot.lane.b32.xlu0 %v1681, 127
    %v1686 = vpop.permute.xlu0 %1685
    %1687 = vrot.lane.b32.xlu0 %v1682, 127
    %v1688 = vpop.permute.xlu0 %1687
    %v1689 = vsel %vm302, %v1684, %v1686
    %v1690 = vsel %vm302, %v1686, %v1688
    %v1692 = vsel %vm525, %v1674, 0
    %v1694 = vsel %vm529, %v1689, 0
    %v1696 = vsel %vm529, %v1690, 0
    %v1698 = vsel %vm529, %v1688, 0
    %1700 = vmatpush.msra.mxu0 0.0
    %1701 = vmatpush.msra.mxu0 0.0
    %1702 = vmatpush.msra.mxu0 0.0
    %1703 = vmatpush.msra.mxu0 0.0
    %1704 = vmatpush.msra.mxu0 0.0
    %1705 = vmatpush.msra.mxu0 0.0
    %1706 = vmatpush.msra.mxu0 0.0
    %1707 = vmatpush.msra.mxu0 0.0
    %1708 = vmatpush.msra.mxu0 0.0
    %1709 = vmatpush.msra.mxu0 0.0
    %1710 = vmatpush.msra.mxu0 0.0
    %1711 = vmatpush.msra.mxu0 0.0
    %1712 = vmatpush.msra.mxu0 0.0
    %1713 = vmatpush.msra.mxu0 0.0
    %1714 = vmatpush.msra.mxu0 0.0
    %1715 = vmatpush.msra.mxu0 %v1694
    %1716 = vmatmul.f32.gmra.mxu0 %v1692
    %v1717 = vpop.f32.mrf.mxu0
    %v1718 = vadd.f32 0.0, %v1717
    %1719 = vdwg.mxu0
    %1720 = vmatpush.msra.mxu0 0.0
    %1721 = vmatpush.msra.mxu0 0.0
    %1722 = vmatpush.msra.mxu0 0.0
    %1723 = vmatpush.msra.mxu0 0.0
    %1724 = vmatpush.msra.mxu0 0.0
    %1725 = vmatpush.msra.mxu0 0.0
    %1726 = vmatpush.msra.mxu0 0.0
    %1727 = vmatpush.msra.mxu0 0.0
    %1728 = vmatpush.msra.mxu0 0.0
    %1729 = vmatpush.msra.mxu0 0.0
    %1730 = vmatpush.msra.mxu0 0.0
    %1731 = vmatpush.msra.mxu0 0.0
    %1732 = vmatpush.msra.mxu0 0.0
    %1733 = vmatpush.msra.mxu0 0.0
    %1734 = vmatpush.msra.mxu0 0.0
    %1735 = vmatpush.msra.mxu0 %v1696
    %1736 = vmatmul.f32.gmra.mxu0 %v1692
    %v1737 = vpop.f32.mrf.mxu0
    %v1738 = vadd.f32 0.0, %v1737
    %1739 = vdwg.mxu0
    %1740 = vmatpush.msra.mxu0 0.0
    %1741 = vmatpush.msra.mxu0 0.0
    %1742 = vmatpush.msra.mxu0 0.0
    %1743 = vmatpush.msra.mxu0 0.0
    %1744 = vmatpush.msra.mxu0 0.0
    %1745 = vmatpush.msra.mxu0 0.0
    %1746 = vmatpush.msra.mxu0 0.0
    %1747 = vmatpush.msra.mxu0 0.0
    %1748 = vmatpush.msra.mxu0 0.0
    %1749 = vmatpush.msra.mxu0 0.0
    %1750 = vmatpush.msra.mxu0 0.0
    %1751 = vmatpush.msra.mxu0 0.0
    %1752 = vmatpush.msra.mxu0 0.0
    %1753 = vmatpush.msra.mxu0 0.0
    %1754 = vmatpush.msra.mxu0 0.0
    %1755 = vmatpush.msra.mxu0 %v1698
    %1756 = vmatmul.f32.gmra.mxu0 %v1692
    %v1757 = vpop.f32.mrf.mxu0
    %v1758 = vadd.f32 0.0, %v1757
    %1759 = vdwg.mxu0
    %1760 = vst [vmem:[#allocation1] ss:$2 sm:$0xff] %v1672
    %s1761 = scalar_lea.vmem [#allocation1], 16
    %1762 = vst [vmem:[%s1761] ss:$2 sm:$0xff] %v1673
    %v1763 = vld.sshfl [vmem:[#allocation1] sm:$0xff pattern:$0x75316420]
    %v1764 = vld.sshfl [vmem:[#allocation1 + $0x8] sm:$0xff pattern:$0x75316420]
    %v1765 = vld.sshfl [vmem:[#allocation1 + $0x10] sm:$0xff pattern:$0x75316420]
    %v1767 = vsel %vm525, %v1671, 0
    %v1769 = vsel %vm529, %v1763, 0
    %v1771 = vsel %vm529, %v1764, 0
    %v1773 = vsel %vm529, %v1765, 0
    %1775 = vmatpush.msra.mxu0 0.0
    %1776 = vmatpush.msra.mxu0 0.0
    %1777 = vmatpush.msra.mxu0 0.0
    %1778 = vmatpush.msra.mxu0 0.0
    %1779 = vmatpush.msra.mxu0 0.0
    %1780 = vmatpush.msra.mxu0 0.0
    %1781 = vmatpush.msra.mxu0 0.0
    %1782 = vmatpush.msra.mxu0 0.0
    %1783 = vmatpush.msra.mxu0 0.0
    %1784 = vmatpush.msra.mxu0 0.0
    %1785 = vmatpush.msra.mxu0 0.0
    %1786 = vmatpush.msra.mxu0 0.0
    %1787 = vmatpush.msra.mxu0 0.0
    %1788 = vmatpush.msra.mxu0 0.0
    %1789 = vmatpush.msra.mxu0 0.0
    %1790 = vmatpush.msra.mxu0 %v1769
    %1791 = vmatmul.f32.gmra.mxu0 %v1767
    %v1792 = vpop.f32.mrf.mxu0
    %v1793 = vadd.f32 %v1718, %v1792
    %1794 = vdwg.mxu0
    %1795 = vmatpush.msra.mxu0 0.0
    %1796 = vmatpush.msra.mxu0 0.0
    %1797 = vmatpush.msra.mxu0 0.0
    %1798 = vmatpush.msra.mxu0 0.0
    %1799 = vmatpush.msra.mxu0 0.0
    %1800 = vmatpush.msra.mxu0 0.0
    %1801 = vmatpush.msra.mxu0 0.0
    %1802 = vmatpush.msra.mxu0 0.0
    %1803 = vmatpush.msra.mxu0 0.0
    %1804 = vmatpush.msra.mxu0 0.0
    %1805 = vmatpush.msra.mxu0 0.0
    %1806 = vmatpush.msra.mxu0 0.0
    %1807 = vmatpush.msra.mxu0 0.0
    %1808 = vmatpush.msra.mxu0 0.0
    %1809 = vmatpush.msra.mxu0 0.0
    %1810 = vmatpush.msra.mxu0 %v1771
    %1811 = vmatmul.f32.gmra.mxu0 %v1767
    %v1812 = vpop.f32.mrf.mxu0
    %v1813 = vadd.f32 %v1738, %v1812
    %1814 = vdwg.mxu0
    %1815 = vmatpush.msra.mxu0 0.0
    %1816 = vmatpush.msra.mxu0 0.0
    %1817 = vmatpush.msra.mxu0 0.0
    %1818 = vmatpush.msra.mxu0 0.0
    %1819 = vmatpush.msra.mxu0 0.0
    %1820 = vmatpush.msra.mxu0 0.0
    %1821 = vmatpush.msra.mxu0 0.0
    %1822 = vmatpush.msra.mxu0 0.0
    %1823 = vmatpush.msra.mxu0 0.0
    %1824 = vmatpush.msra.mxu0 0.0
    %1825 = vmatpush.msra.mxu0 0.0
    %1826 = vmatpush.msra.mxu0 0.0
    %1827 = vmatpush.msra.mxu0 0.0
    %1828 = vmatpush.msra.mxu0 0.0
    %1829 = vmatpush.msra.mxu0 0.0
    %1830 = vmatpush.msra.mxu0 %v1773
    %1831 = vmatmul.f32.gmra.mxu0 %v1767
    %v1832 = vpop.f32.mrf.mxu0
    %v1833 = vadd.f32 %v1758, %v1832
    %1834 = vdwg.mxu0
    %v1835 = vld [vmem:[%s671] sm:$0xff]
    %v1836 = vld [vmem:[#allocation2] sm:$0xff]
    %v1837 = vld [vmem:[#allocation2 + $0x8] sm:$0xf]
    %1840 = vst [vmem:[#allocation1] ss:$2 sm:$0xff] %v1836
    %s1841 = scalar_lea.vmem [#allocation1], 16
    %1842 = vst [vmem:[%s1841] ss:$2 sm:$0xff] %v1837
    %v1843 = vld.sshfl [vmem:[#allocation1] sm:$0xff pattern:$0x75316420]
    %v1844 = vld.sshfl [vmem:[#allocation1 + $0x8] sm:$0xff pattern:$0x75316420]
    %v1845 = vld.sshfl [vmem:[#allocation1 + $0x10] sm:$0xff pattern:$0x75316420]
    %1846 = vrot.lane.b32.xlu0 %v1843, 126
    %v1847 = vpop.permute.xlu0 %1846
    %1848 = vrot.lane.b32.xlu0 %v1844, 126
    %v1849 = vpop.permute.xlu0 %1848
    %1850 = vrot.lane.b32.xlu0 %v1845, 126
    %v1851 = vpop.permute.xlu0 %1850
    %v1852 = vsel %vm689, %v1847, %v1849
    %v1853 = vsel %vm689, %v1849, %v1851
    %v1855 = vsel %vm525, %v1835, 0
    %v1857 = vsel %vm529, %v1852, 0
    %v1859 = vsel %vm529, %v1853, 0
    %v1861 = vsel %vm529, %v1851, 0
    %1863 = vmatpush.msra.mxu0 0.0
    %1864 = vmatpush.msra.mxu0 0.0
    %1865 = vmatpush.msra.mxu0 0.0
    %1866 = vmatpush.msra.mxu0 0.0
    %1867 = vmatpush.msra.mxu0 0.0
    %1868 = vmatpush.msra.mxu0 0.0
    %1869 = vmatpush.msra.mxu0 0.0
    %1870 = vmatpush.msra.mxu0 0.0
    %1871 = vmatpush.msra.mxu0 0.0
    %1872 = vmatpush.msra.mxu0 0.0
    %1873 = vmatpush.msra.mxu0 0.0
    %1874 = vmatpush.msra.mxu0 0.0
    %1875 = vmatpush.msra.mxu0 0.0
    %1876 = vmatpush.msra.mxu0 0.0
    %1877 = vmatpush.msra.mxu0 0.0
    %1878 = vmatpush.msra.mxu0 %v1857
    %1879 = vmatmul.f32.gmra.mxu0 %v1855
    %v1880 = vpop.f32.mrf.mxu0
    %v1881 = vadd.f32 0.0, %v1880
    %1882 = vdwg.mxu0
    %1883 = vmatpush.msra.mxu0 0.0
    %1884 = vmatpush.msra.mxu0 0.0
    %1885 = vmatpush.msra.mxu0 0.0
    %1886 = vmatpush.msra.mxu0 0.0
    %1887 = vmatpush.msra.mxu0 0.0
    %1888 = vmatpush.msra.mxu0 0.0
    %1889 = vmatpush.msra.mxu0 0.0
    %1890 = vmatpush.msra.mxu0 0.0
    %1891 = vmatpush.msra.mxu0 0.0
    %1892 = vmatpush.msra.mxu0 0.0
    %1893 = vmatpush.msra.mxu0 0.0
    %1894 = vmatpush.msra.mxu0 0.0
    %1895 = vmatpush.msra.mxu0 0.0
    %1896 = vmatpush.msra.mxu0 0.0
    %1897 = vmatpush.msra.mxu0 0.0
    %1898 = vmatpush.msra.mxu0 %v1859
    %1899 = vmatmul.f32.gmra.mxu0 %v1855
    %v1900 = vpop.f32.mrf.mxu0
    %v1901 = vadd.f32 0.0, %v1900
    %1902 = vdwg.mxu0
    %1903 = vmatpush.msra.mxu0 0.0
    %1904 = vmatpush.msra.mxu0 0.0
    %1905 = vmatpush.msra.mxu0 0.0
    %1906 = vmatpush.msra.mxu0 0.0
    %1907 = vmatpush.msra.mxu0 0.0
    %1908 = vmatpush.msra.mxu0 0.0
    %1909 = vmatpush.msra.mxu0 0.0
    %1910 = vmatpush.msra.mxu0 0.0
    %1911 = vmatpush.msra.mxu0 0.0
    %1912 = vmatpush.msra.mxu0 0.0
    %1913 = vmatpush.msra.mxu0 0.0
    %1914 = vmatpush.msra.mxu0 0.0
    %1915 = vmatpush.msra.mxu0 0.0
    %1916 = vmatpush.msra.mxu0 0.0
    %1917 = vmatpush.msra.mxu0 0.0
    %1918 = vmatpush.msra.mxu0 %v1861
    %1919 = vmatmul.f32.gmra.mxu0 %v1855
    %v1920 = vpop.f32.mrf.mxu0
    %v1921 = vadd.f32 0.0, %v1920
    %1922 = vdwg.mxu0
    %v1923 = vadd.f32 %v1793, %v1881
    %v1924 = vadd.f32 %v1813, %v1901
    %v1925 = vadd.f32 %v1833, %v1921
    %v1926 = vld [vmem:[%s764] sm:$0xff]
    %v1927 = vld [vmem:[#allocation2] sm:$0xff]
    %v1928 = vld [vmem:[#allocation2 + $0x8] sm:$0xf]
    %1931 = vst [vmem:[#allocation1] ss:$2 sm:$0xff] %v1927
    %s1932 = scalar_lea.vmem [#allocation1], 16
    %1933 = vst [vmem:[%s1932] ss:$2 sm:$0xff] %v1928
    %v1934 = vld.sshfl [vmem:[#allocation1] sm:$0xff pattern:$0x75316420]
    %v1935 = vld.sshfl [vmem:[#allocation1 + $0x8] sm:$0xff pattern:$0x75316420]
    %v1936 = vld.sshfl [vmem:[#allocation1 + $0x10] sm:$0xff pattern:$0x75316420]
    %1937 = vrot.lane.b32.xlu0 %v1934, 110
    %v1938 = vpop.permute.xlu0 %1937
    %1939 = vrot.lane.b32.xlu0 %v1935, 110
    %v1940 = vpop.permute.xlu0 %1939
    %1941 = vrot.lane.b32.xlu0 %v1936, 110
    %v1942 = vpop.permute.xlu0 %1941
    %v1943 = vsel %vm782, %v1938, %v1940
    %v1944 = vsel %vm782, %v1940, %v1942
    %v1946 = vsel %vm525, %v1926, 0
    %v1948 = vsel %vm529, %v1943, 0
    %v1950 = vsel %vm529, %v1944, 0
    %v1952 = vsel %vm529, %v1942, 0
    %1954 = vmatpush.msra.mxu0 0.0
    %1955 = vmatpush.msra.mxu0 0.0
    %1956 = vmatpush.msra.mxu0 0.0
    %1957 = vmatpush.msra.mxu0 0.0
    %1958 = vmatpush.msra.mxu0 0.0
    %1959 = vmatpush.msra.mxu0 0.0
    %1960 = vmatpush.msra.mxu0 0.0
    %1961 = vmatpush.msra.mxu0 0.0
    %1962 = vmatpush.msra.mxu0 0.0
    %1963 = vmatpush.msra.mxu0 0.0
    %1964 = vmatpush.msra.mxu0 0.0
    %1965 = vmatpush.msra.mxu0 0.0
    %1966 = vmatpush.msra.mxu0 0.0
    %1967 = vmatpush.msra.mxu0 0.0
    %1968 = vmatpush.msra.mxu0 0.0
    %1969 = vmatpush.msra.mxu0 %v1948
    %1970 = vmatmul.f32.gmra.mxu0 %v1946
    %v1971 = vpop.f32.mrf.mxu0
    %v1972 = vadd.f32 0.0, %v1971
    %1973 = vdwg.mxu0
    %1974 = vmatpush.msra.mxu0 0.0
    %1975 = vmatpush.msra.mxu0 0.0
    %1976 = vmatpush.msra.mxu0 0.0
    %1977 = vmatpush.msra.mxu0 0.0
    %1978 = vmatpush.msra.mxu0 0.0
    %1979 = vmatpush.msra.mxu0 0.0
    %1980 = vmatpush.msra.mxu0 0.0
    %1981 = vmatpush.msra.mxu0 0.0
    %1982 = vmatpush.msra.mxu0 0.0
    %1983 = vmatpush.msra.mxu0 0.0
    %1984 = vmatpush.msra.mxu0 0.0
    %1985 = vmatpush.msra.mxu0 0.0
    %1986 = vmatpush.msra.mxu0 0.0
    %1987 = vmatpush.msra.mxu0 0.0
    %1988 = vmatpush.msra.mxu0 0.0
    %1989 = vmatpush.msra.mxu0 %v1950
    %1990 = vmatmul.f32.gmra.mxu0 %v1946
    %v1991 = vpop.f32.mrf.mxu0
    %v1992 = vadd.f32 0.0, %v1991
    %1993 = vdwg.mxu0
    %1994 = vmatpush.msra.mxu0 0.0
    %1995 = vmatpush.msra.mxu0 0.0
    %1996 = vmatpush.msra.mxu0 0.0
    %1997 = vmatpush.msra.mxu0 0.0
    %1998 = vmatpush.msra.mxu0 0.0
    %1999 = vmatpush.msra.mxu0 0.0
    %2000 = vmatpush.msra.mxu0 0.0
    %2001 = vmatpush.msra.mxu0 0.0
    %2002 = vmatpush.msra.mxu0 0.0
    %2003 = vmatpush.msra.mxu0 0.0
    %2004 = vmatpush.msra.mxu0 0.0
    %2005 = vmatpush.msra.mxu0 0.0
    %2006 = vmatpush.msra.mxu0 0.0
    %2007 = vmatpush.msra.mxu0 0.0
    %2008 = vmatpush.msra.mxu0 0.0
    %2009 = vmatpush.msra.mxu0 %v1952
    %2010 = vmatmul.f32.gmra.mxu0 %v1946
    %v2011 = vpop.f32.mrf.mxu0
    %v2012 = vadd.f32 0.0, %v2011
    %2013 = vdwg.mxu0
    %v2014 = vadd.f32 %v1923, %v1972
    %v2015 = vadd.f32 %v1924, %v1992
    %v2016 = vadd.f32 %v1925, %v2012
    %v2017 = vld [vmem:[%s857] sm:$0xff]
    %v2018 = vld [vmem:[#allocation2] sm:$0xff]
    %v2019 = vld [vmem:[#allocation2 + $0x8] sm:$0xf]
    %2022 = vst [vmem:[#allocation1] ss:$2 sm:$0xff] %v2018
    %s2023 = scalar_lea.vmem [#allocation1], 16
    %2024 = vst [vmem:[%s2023] ss:$2 sm:$0xff] %v2019
    %v2025 = vld.sshfl [vmem:[#allocation1] sm:$0xff pattern:$0x75316420]
    %v2026 = vld.sshfl [vmem:[#allocation1 + $0x8] sm:$0xff pattern:$0x75316420]
    %v2027 = vld.sshfl [vmem:[#allocation1 + $0x10] sm:$0xff pattern:$0x75316420]
    %2028 = vrot.lane.b32.xlu0 %v2025, 109
    %v2029 = vpop.permute.xlu0 %2028
    %2030 = vrot.lane.b32.xlu0 %v2026, 109
    %v2031 = vpop.permute.xlu0 %2030
    %2032 = vrot.lane.b32.xlu0 %v2027, 109
    %v2033 = vpop.permute.xlu0 %2032
    %v2034 = vsel %vm875, %v2029, %v2031
    %v2035 = vsel %vm875, %v2031, %v2033
    %v2037 = vsel %vm525, %v2017, 0
    %v2039 = vsel %vm529, %v2034, 0
    %v2041 = vsel %vm529, %v2035, 0
    %v2043 = vsel %vm529, %v2033, 0
    %2045 = vmatpush.msra.mxu0 0.0
    %2046 = vmatpush.msra.mxu0 0.0
    %2047 = vmatpush.msra.mxu0 0.0
    %2048 = vmatpush.msra.mxu0 0.0
    %2049 = vmatpush.msra.mxu0 0.0
    %2050 = vmatpush.msra.mxu0 0.0
    %2051 = vmatpush.msra.mxu0 0.0
    %2052 = vmatpush.msra.mxu0 0.0
    %2053 = vmatpush.msra.mxu0 0.0
    %2054 = vmatpush.msra.mxu0 0.0
    %2055 = vmatpush.msra.mxu0 0.0
    %2056 = vmatpush.msra.mxu0 0.0
    %2057 = vmatpush.msra.mxu0 0.0
    %2058 = vmatpush.msra.mxu0 0.0
    %2059 = vmatpush.msra.mxu0 0.0
    %2060 = vmatpush.msra.mxu0 %v2039
    %2061 = vmatmul.f32.gmra.mxu0 %v2037
    %v2062 = vpop.f32.mrf.mxu0
    %v2063 = vadd.f32 0.0, %v2062
    %2064 = vdwg.mxu0
    %2065 = vmatpush.msra.mxu0 0.0
    %2066 = vmatpush.msra.mxu0 0.0
    %2067 = vmatpush.msra.mxu0 0.0
    %2068 = vmatpush.msra.mxu0 0.0
    %2069 = vmatpush.msra.mxu0 0.0
    %2070 = vmatpush.msra.mxu0 0.0
    %2071 = vmatpush.msra.mxu0 0.0
    %2072 = vmatpush.msra.mxu0 0.0
    %2073 = vmatpush.msra.mxu0 0.0
    %2074 = vmatpush.msra.mxu0 0.0
    %2075 = vmatpush.msra.mxu0 0.0
    %2076 = vmatpush.msra.mxu0 0.0
    %2077 = vmatpush.msra.mxu0 0.0
    %2078 = vmatpush.msra.mxu0 0.0
    %2079 = vmatpush.msra.mxu0 0.0
    %2080 = vmatpush.msra.mxu0 %v2041
    %2081 = vmatmul.f32.gmra.mxu0 %v2037
    %v2082 = vpop.f32.mrf.mxu0
    %v2083 = vadd.f32 0.0, %v2082
    %2084 = vdwg.mxu0
    %2085 = vmatpush.msra.mxu0 0.0
    %2086 = vmatpush.msra.mxu0 0.0
    %2087 = vmatpush.msra.mxu0 0.0
    %2088 = vmatpush.msra.mxu0 0.0
    %2089 = vmatpush.msra.mxu0 0.0
    %2090 = vmatpush.msra.mxu0 0.0
    %2091 = vmatpush.msra.mxu0 0.0
    %2092 = vmatpush.msra.mxu0 0.0
    %2093 = vmatpush.msra.mxu0 0.0
    %2094 = vmatpush.msra.mxu0 0.0
    %2095 = vmatpush.msra.mxu0 0.0
    %2096 = vmatpush.msra.mxu0 0.0
    %2097 = vmatpush.msra.mxu0 0.0
    %2098 = vmatpush.msra.mxu0 0.0
    %2099 = vmatpush.msra.mxu0 0.0
    %2100 = vmatpush.msra.mxu0 %v2043
    %2101 = vmatmul.f32.gmra.mxu0 %v2037
    %v2102 = vpop.f32.mrf.mxu0
    %v2103 = vadd.f32 0.0, %v2102
    %2104 = vdwg.mxu0
    %v2105 = vadd.f32 %v2014, %v2063
    %v2106 = vadd.f32 %v2015, %v2083
    %v2107 = vadd.f32 %v2016, %v2103
    %v2108 = vld [vmem:[%s950] sm:$0xff]
    %v2109 = vld [vmem:[#allocation2] sm:$0xff]
    %v2110 = vld [vmem:[#allocation2 + $0x8] sm:$0xf]
    %2113 = vst [vmem:[#allocation1] ss:$2 sm:$0xff] %v2109
    %s2114 = scalar_lea.vmem [#allocation1], 16
    %2115 = vst [vmem:[%s2114] ss:$2 sm:$0xff] %v2110
    %v2116 = vld.sshfl [vmem:[#allocation1] sm:$0xff pattern:$0x75316420]
    %v2117 = vld.sshfl [vmem:[#allocation1 + $0x8] sm:$0xff pattern:$0x75316420]
    %v2118 = vld.sshfl [vmem:[#allocation1 + $0x10] sm:$0xff pattern:$0x75316420]
    %2119 = vrot.lane.b32.xlu0 %v2116, 108
    %v2120 = vpop.permute.xlu0 %2119
    %2121 = vrot.lane.b32.xlu0 %v2117, 108
    %v2122 = vpop.permute.xlu0 %2121
    %2123 = vrot.lane.b32.xlu0 %v2118, 108
    %v2124 = vpop.permute.xlu0 %2123
    %v2125 = vsel %vm968, %v2120, %v2122
    %v2126 = vsel %vm968, %v2122, %v2124
    %v2128 = vsel %vm525, %v2108, 0
    %v2130 = vsel %vm529, %v2125, 0
    %v2132 = vsel %vm529, %v2126, 0
    %v2134 = vsel %vm529, %v2124, 0
    %2136 = vmatpush.msra.mxu0 0.0
    %2137 = vmatpush.msra.mxu0 0.0
    %2138 = vmatpush.msra.mxu0 0.0
    %2139 = vmatpush.msra.mxu0 0.0
    %2140 = vmatpush.msra.mxu0 0.0
    %2141 = vmatpush.msra.mxu0 0.0
    %2142 = vmatpush.msra.mxu0 0.0
    %2143 = vmatpush.msra.mxu0 0.0
    %2144 = vmatpush.msra.mxu0 0.0
    %2145 = vmatpush.msra.mxu0 0.0
    %2146 = vmatpush.msra.mxu0 0.0
    %2147 = vmatpush.msra.mxu0 0.0
    %2148 = vmatpush.msra.mxu0 0.0
    %2149 = vmatpush.msra.mxu0 0.0
    %2150 = vmatpush.msra.mxu0 0.0
    %2151 = vmatpush.msra.mxu0 %v2130
    %2152 = vmatmul.f32.gmra.mxu0 %v2128
    %v2153 = vpop.f32.mrf.mxu0
    %v2154 = vadd.f32 0.0, %v2153
    %2155 = vdwg.mxu0
    %2156 = vmatpush.msra.mxu0 0.0
    %2157 = vmatpush.msra.mxu0 0.0
    %2158 = vmatpush.msra.mxu0 0.0
    %2159 = vmatpush.msra.mxu0 0.0
    %2160 = vmatpush.msra.mxu0 0.0
    %2161 = vmatpush.msra.mxu0 0.0
    %2162 = vmatpush.msra.mxu0 0.0
    %2163 = vmatpush.msra.mxu0 0.0
    %2164 = vmatpush.msra.mxu0 0.0
    %2165 = vmatpush.msra.mxu0 0.0
    %2166 = vmatpush.msra.mxu0 0.0
    %2167 = vmatpush.msra.mxu0 0.0
    %2168 = vmatpush.msra.mxu0 0.0
    %2169 = vmatpush.msra.mxu0 0.0
    %2170 = vmatpush.msra.mxu0 0.0
    %2171 = vmatpush.msra.mxu0 %v2132
    %2172 = vmatmul.f32.gmra.mxu0 %v2128
    %v2173 = vpop.f32.mrf.mxu0
    %v2174 = vadd.f32 0.0, %v2173
    %2175 = vdwg.mxu0
    %2176 = vmatpush.msra.mxu0 0.0
    %2177 = vmatpush.msra.mxu0 0.0
    %2178 = vmatpush.msra.mxu0 0.0
    %2179 = vmatpush.msra.mxu0 0.0
    %2180 = vmatpush.msra.mxu0 0.0
    %2181 = vmatpush.msra.mxu0 0.0
    %2182 = vmatpush.msra.mxu0 0.0
    %2183 = vmatpush.msra.mxu0 0.0
    %2184 = vmatpush.msra.mxu0 0.0
    %2185 = vmatpush.msra.mxu0 0.0
    %2186 = vmatpush.msra.mxu0 0.0
    %2187 = vmatpush.msra.mxu0 0.0
    %2188 = vmatpush.msra.mxu0 0.0
    %2189 = vmatpush.msra.mxu0 0.0
    %2190 = vmatpush.msra.mxu0 0.0
    %2191 = vmatpush.msra.mxu0 %v2134
    %2192 = vmatmul.f32.gmra.mxu0 %v2128
    %v2193 = vpop.f32.mrf.mxu0
    %v2194 = vadd.f32 0.0, %v2193
    %2195 = vdwg.mxu0
    %v2196 = vadd.f32 %v2105, %v2154
    %v2197 = vadd.f32 %v2106, %v2174
    %v2198 = vadd.f32 %v2107, %v2194
    %v2199 = vld [vmem:[%s1043] sm:$0xff]
    %v2200 = vld [vmem:[#allocation2] sm:$0xff]
    %v2201 = vld [vmem:[#allocation2 + $0x8] sm:$0xf]
    %2204 = vst [vmem:[#allocation1] ss:$2 sm:$0xff] %v2200
    %s2205 = scalar_lea.vmem [#allocation1], 16
    %2206 = vst [vmem:[%s2205] ss:$2 sm:$0xff] %v2201
    %v2207 = vld.sshfl [vmem:[#allocation1] sm:$0xff pattern:$0x75316420]
    %v2208 = vld.sshfl [vmem:[#allocation1 + $0x8] sm:$0xff pattern:$0x75316420]
    %v2209 = vld.sshfl [vmem:[#allocation1 + $0x10] sm:$0xff pattern:$0x75316420]
    %2210 = vrot.lane.b32.xlu0 %v2207, 92
    %v2211 = vpop.permute.xlu0 %2210
    %2212 = vrot.lane.b32.xlu0 %v2208, 92
    %v2213 = vpop.permute.xlu0 %2212
    %2214 = vrot.lane.b32.xlu0 %v2209, 92
    %v2215 = vpop.permute.xlu0 %2214
    %v2216 = vsel %vm1061, %v2211, %v2213
    %v2217 = vsel %vm1061, %v2213, %v2215
    %v2219 = vsel %vm525, %v2199, 0
    %v2221 = vsel %vm529, %v2216, 0
    %v2223 = vsel %vm529, %v2217, 0
    %v2225 = vsel %vm529, %v2215, 0
    %2227 = vmatpush.msra.mxu0 0.0
    %2228 = vmatpush.msra.mxu0 0.0
    %2229 = vmatpush.msra.mxu0 0.0
    %2230 = vmatpush.msra.mxu0 0.0
    %2231 = vmatpush.msra.mxu0 0.0
    %2232 = vmatpush.msra.mxu0 0.0
    %2233 = vmatpush.msra.mxu0 0.0
    %2234 = vmatpush.msra.mxu0 0.0
    %2235 = vmatpush.msra.mxu0 0.0
    %2236 = vmatpush.msra.mxu0 0.0
    %2237 = vmatpush.msra.mxu0 0.0
    %2238 = vmatpush.msra.mxu0 0.0
    %2239 = vmatpush.msra.mxu0 0.0
    %2240 = vmatpush.msra.mxu0 0.0
    %2241 = vmatpush.msra.mxu0 0.0
    %2242 = vmatpush.msra.mxu0 %v2221
    %2243 = vmatmul.f32.gmra.mxu0 %v2219
    %v2244 = vpop.f32.mrf.mxu0
    %v2245 = vadd.f32 0.0, %v2244
    %2246 = vdwg.mxu0
    %2247 = vmatpush.msra.mxu0 0.0
    %2248 = vmatpush.msra.mxu0 0.0
    %2249 = vmatpush.msra.mxu0 0.0
    %2250 = vmatpush.msra.mxu0 0.0
    %2251 = vmatpush.msra.mxu0 0.0
    %2252 = vmatpush.msra.mxu0 0.0
    %2253 = vmatpush.msra.mxu0 0.0
    %2254 = vmatpush.msra.mxu0 0.0
    %2255 = vmatpush.msra.mxu0 0.0
    %2256 = vmatpush.msra.mxu0 0.0
    %2257 = vmatpush.msra.mxu0 0.0
    %2258 = vmatpush.msra.mxu0 0.0
    %2259 = vmatpush.msra.mxu0 0.0
    %2260 = vmatpush.msra.mxu0 0.0
    %2261 = vmatpush.msra.mxu0 0.0
    %2262 = vmatpush.msra.mxu0 %v2223
    %2263 = vmatmul.f32.gmra.mxu0 %v2219
    %v2264 = vpop.f32.mrf.mxu0
    %v2265 = vadd.f32 0.0, %v2264
    %2266 = vdwg.mxu0
    %2267 = vmatpush.msra.mxu0 0.0
    %2268 = vmatpush.msra.mxu0 0.0
    %2269 = vmatpush.msra.mxu0 0.0
    %2270 = vmatpush.msra.mxu0 0.0
    %2271 = vmatpush.msra.mxu0 0.0
    %2272 = vmatpush.msra.mxu0 0.0
    %2273 = vmatpush.msra.mxu0 0.0
    %2274 = vmatpush.msra.mxu0 0.0
    %2275 = vmatpush.msra.mxu0 0.0
    %2276 = vmatpush.msra.mxu0 0.0
    %2277 = vmatpush.msra.mxu0 0.0
    %2278 = vmatpush.msra.mxu0 0.0
    %2279 = vmatpush.msra.mxu0 0.0
    %2280 = vmatpush.msra.mxu0 0.0
    %2281 = vmatpush.msra.mxu0 0.0
    %2282 = vmatpush.msra.mxu0 %v2225
    %2283 = vmatmul.f32.gmra.mxu0 %v2219
    %v2284 = vpop.f32.mrf.mxu0
    %v2285 = vadd.f32 0.0, %v2284
    %2286 = vdwg.mxu0
    %v2287 = vadd.f32 %v2196, %v2245
    %v2288 = vadd.f32 %v2197, %v2265
    %v2289 = vadd.f32 %v2198, %v2285
    %v2290 = vld [vmem:[%s1136] sm:$0xff]
    %v2291 = vld [vmem:[#allocation2] sm:$0xff]
    %v2292 = vld [vmem:[#allocation2 + $0x8] sm:$0xf]
    %2295 = vst [vmem:[#allocation1] ss:$2 sm:$0xff] %v2291
    %s2296 = scalar_lea.vmem [#allocation1], 16
    %2297 = vst [vmem:[%s2296] ss:$2 sm:$0xff] %v2292
    %v2298 = vld.sshfl [vmem:[#allocation1] sm:$0xff pattern:$0x75316420]
    %v2299 = vld.sshfl [vmem:[#allocation1 + $0x8] sm:$0xff pattern:$0x75316420]
    %v2300 = vld.sshfl [vmem:[#allocation1 + $0x10] sm:$0xff pattern:$0x75316420]
    %2301 = vrot.lane.b32.xlu0 %v2298, 91
    %v2302 = vpop.permute.xlu0 %2301
    %2303 = vrot.lane.b32.xlu0 %v2299, 91
    %v2304 = vpop.permute.xlu0 %2303
    %2305 = vrot.lane.b32.xlu0 %v2300, 91
    %v2306 = vpop.permute.xlu0 %2305
    %v2307 = vsel %vm1154, %v2302, %v2304
    %v2308 = vsel %vm1154, %v2304, %v2306
    %v2310 = vsel %vm525, %v2290, 0
    %v2312 = vsel %vm529, %v2307, 0
    %v2314 = vsel %vm529, %v2308, 0
    %v2316 = vsel %vm529, %v2306, 0
    %2318 = vmatpush.msra.mxu0 0.0
    %2319 = vmatpush.msra.mxu0 0.0
    %2320 = vmatpush.msra.mxu0 0.0
    %2321 = vmatpush.msra.mxu0 0.0
    %2322 = vmatpush.msra.mxu0 0.0
    %2323 = vmatpush.msra.mxu0 0.0
    %2324 = vmatpush.msra.mxu0 0.0
    %2325 = vmatpush.msra.mxu0 0.0
    %2326 = vmatpush.msra.mxu0 0.0
    %2327 = vmatpush.msra.mxu0 0.0
    %2328 = vmatpush.msra.mxu0 0.0
    %2329 = vmatpush.msra.mxu0 0.0
    %2330 = vmatpush.msra.mxu0 0.0
    %2331 = vmatpush.msra.mxu0 0.0
    %2332 = vmatpush.msra.mxu0 0.0
    %2333 = vmatpush.msra.mxu0 %v2312
    %2334 = vmatmul.f32.gmra.mxu0 %v2310
    %v2335 = vpop.f32.mrf.mxu0
    %v2336 = vadd.f32 0.0, %v2335
    %2337 = vdwg.mxu0
    %2338 = vmatpush.msra.mxu0 0.0
    %2339 = vmatpush.msra.mxu0 0.0
    %2340 = vmatpush.msra.mxu0 0.0
    %2341 = vmatpush.msra.mxu0 0.0
    %2342 = vmatpush.msra.mxu0 0.0
    %2343 = vmatpush.msra.mxu0 0.0
    %2344 = vmatpush.msra.mxu0 0.0
    %2345 = vmatpush.msra.mxu0 0.0
    %2346 = vmatpush.msra.mxu0 0.0
    %2347 = vmatpush.msra.mxu0 0.0
    %2348 = vmatpush.msra.mxu0 0.0
    %2349 = vmatpush.msra.mxu0 0.0
    %2350 = vmatpush.msra.mxu0 0.0
    %2351 = vmatpush.msra.mxu0 0.0
    %2352 = vmatpush.msra.mxu0 0.0
    %2353 = vmatpush.msra.mxu0 %v2314
    %2354 = vmatmul.f32.gmra.mxu0 %v2310
    %v2355 = vpop.f32.mrf.mxu0
    %v2356 = vadd.f32 0.0, %v2355
    %2357 = vdwg.mxu0
    %2358 = vmatpush.msra.mxu0 0.0
    %2359 = vmatpush.msra.mxu0 0.0
    %2360 = vmatpush.msra.mxu0 0.0
    %2361 = vmatpush.msra.mxu0 0.0
    %2362 = vmatpush.msra.mxu0 0.0
    %2363 = vmatpush.msra.mxu0 0.0
    %2364 = vmatpush.msra.mxu0 0.0
    %2365 = vmatpush.msra.mxu0 0.0
    %2366 = vmatpush.msra.mxu0 0.0
    %2367 = vmatpush.msra.mxu0 0.0
    %2368 = vmatpush.msra.mxu0 0.0
    %2369 = vmatpush.msra.mxu0 0.0
    %2370 = vmatpush.msra.mxu0 0.0
    %2371 = vmatpush.msra.mxu0 0.0
    %2372 = vmatpush.msra.mxu0 0.0
    %2373 = vmatpush.msra.mxu0 %v2316
    %2374 = vmatmul.f32.gmra.mxu0 %v2310
    %v2375 = vpop.f32.mrf.mxu0
    %v2376 = vadd.f32 0.0, %v2375
    %2377 = vdwg.mxu0
    %v2378 = vadd.f32 %v2287, %v2336
    %v2379 = vadd.f32 %v2288, %v2356
    %v2380 = vadd.f32 %v2289, %v2376
    %v2381 = vld [vmem:[%s1229] sm:$0xff]
    %v2382 = vld [vmem:[#allocation2] sm:$0xff]
    %v2383 = vld [vmem:[#allocation2 + $0x8] sm:$0xf]
    %2386 = vst [vmem:[#allocation1] ss:$2 sm:$0xff] %v2382
    %s2387 = scalar_lea.vmem [#allocation1], 16
    %2388 = vst [vmem:[%s2387] ss:$2 sm:$0xff] %v2383
    %v2389 = vld.sshfl [vmem:[#allocation1] sm:$0xff pattern:$0x75316420]
    %v2390 = vld.sshfl [vmem:[#allocation1 + $0x8] sm:$0xff pattern:$0x75316420]
    %v2391 = vld.sshfl [vmem:[#allocation1 + $0x10] sm:$0xff pattern:$0x75316420]
    %2392 = vrot.lane.b32.xlu0 %v2389, 90
    %v2393 = vpop.permute.xlu0 %2392
    %2394 = vrot.lane.b32.xlu0 %v2390, 90
    %v2395 = vpop.permute.xlu0 %2394
    %2396 = vrot.lane.b32.xlu0 %v2391, 90
    %v2397 = vpop.permute.xlu0 %2396
    %v2398 = vsel %vm1247, %v2393, %v2395
    %v2399 = vsel %vm1247, %v2395, %v2397
    %v2401 = vsel %vm525, %v2381, 0
    %v2403 = vsel %vm529, %v2398, 0
    %v2405 = vsel %vm529, %v2399, 0
    %v2407 = vsel %vm529, %v2397, 0
    %2409 = vmatpush.msra.mxu0 0.0
    %2410 = vmatpush.msra.mxu0 0.0
    %2411 = vmatpush.msra.mxu0 0.0
    %2412 = vmatpush.msra.mxu0 0.0
    %2413 = vmatpush.msra.mxu0 0.0
    %2414 = vmatpush.msra.mxu0 0.0
    %2415 = vmatpush.msra.mxu0 0.0
    %2416 = vmatpush.msra.mxu0 0.0
    %2417 = vmatpush.msra.mxu0 0.0
    %2418 = vmatpush.msra.mxu0 0.0
    %2419 = vmatpush.msra.mxu0 0.0
    %2420 = vmatpush.msra.mxu0 0.0
    %2421 = vmatpush.msra.mxu0 0.0
    %2422 = vmatpush.msra.mxu0 0.0
    %2423 = vmatpush.msra.mxu0 0.0
    %2424 = vmatpush.msra.mxu0 %v2403
    %2425 = vmatmul.f32.gmra.mxu0 %v2401
    %v2426 = vpop.f32.mrf.mxu0
    %v2427 = vadd.f32 0.0, %v2426
    %2428 = vdwg.mxu0
    %2429 = vmatpush.msra.mxu0 0.0
    %2430 = vmatpush.msra.mxu0 0.0
    %2431 = vmatpush.msra.mxu0 0.0
    %2432 = vmatpush.msra.mxu0 0.0
    %2433 = vmatpush.msra.mxu0 0.0
    %2434 = vmatpush.msra.mxu0 0.0
    %2435 = vmatpush.msra.mxu0 0.0
    %2436 = vmatpush.msra.mxu0 0.0
    %2437 = vmatpush.msra.mxu0 0.0
    %2438 = vmatpush.msra.mxu0 0.0
    %2439 = vmatpush.msra.mxu0 0.0
    %2440 = vmatpush.msra.mxu0 0.0
    %2441 = vmatpush.msra.mxu0 0.0
    %2442 = vmatpush.msra.mxu0 0.0
    %2443 = vmatpush.msra.mxu0 0.0
    %2444 = vmatpush.msra.mxu0 %v2405
    %2445 = vmatmul.f32.gmra.mxu0 %v2401
    %v2446 = vpop.f32.mrf.mxu0
    %v2447 = vadd.f32 0.0, %v2446
    %2448 = vdwg.mxu0
    %2449 = vmatpush.msra.mxu0 0.0
    %2450 = vmatpush.msra.mxu0 0.0
    %2451 = vmatpush.msra.mxu0 0.0
    %2452 = vmatpush.msra.mxu0 0.0
    %2453 = vmatpush.msra.mxu0 0.0
    %2454 = vmatpush.msra.mxu0 0.0
    %2455 = vmatpush.msra.mxu0 0.0
    %2456 = vmatpush.msra.mxu0 0.0
    %2457 = vmatpush.msra.mxu0 0.0
    %2458 = vmatpush.msra.mxu0 0.0
    %2459 = vmatpush.msra.mxu0 0.0
    %2460 = vmatpush.msra.mxu0 0.0
    %2461 = vmatpush.msra.mxu0 0.0
    %2462 = vmatpush.msra.mxu0 0.0
    %2463 = vmatpush.msra.mxu0 0.0
    %2464 = vmatpush.msra.mxu0 %v2407
    %2465 = vmatmul.f32.gmra.mxu0 %v2401
    %v2466 = vpop.f32.mrf.mxu0
    %v2467 = vadd.f32 0.0, %v2466
    %2468 = vdwg.mxu0
    %v2469 = vadd.f32 %v2378, %v2427
    %v2470 = vadd.f32 %v2379, %v2447
    %v2471 = vadd.f32 %v2380, %v2467
    %s2472 = scalar_lea.vmem [#allocation3], 24
    %2473 = vst [vmem:[%s2472] sm:$0xff] %v2469
    %2474 = vst [vmem:[%s2472 + $0x8] sm:$0xff] %v2470
    %2475 = vst.msk [vmem:[%s2472 + $0x10] sm:$0xff] %vm1324, %v2471
    %v2476 = vmul.f32 %v2469, %v146
    %v2477 = vmul.f32 %v2470, %v147
    %v2478 = vmul.f32 %v2471, %v148
    %v2479 = vadd.f32 %v2476, %v2477
    %v2480 = vsel %vm1324, %v2478, 0.0
    %v2481 = vadd.f32 %v2479, %v2480
    %2482 = vadd.xlane.f32.xlu0 %v2481
    %v2483 = vpop.xlane.xlu0 %2482
    %v2484 = vadd.f32 %v1334, %v2483
    %v2485 = vmul.f32 %v2476, %v2469
    %v2486 = vmul.f32 %v2477, %v2470
    %v2487 = vmul.f32 %v2478, %v2471
    %v2488 = vadd.f32 %v2485, %v2486
    %v2489 = vsel %vm1324, %v2487, 0.0
    %v2490 = vadd.f32 %v2488, %v2489
    %2491 = vadd.xlane.f32.xlu0 %v2490
    %v2492 = vpop.xlane.xlu0 %2491
    %v2493 = vadd.f32 %v1343, %v2492
    %v2494 = vmul.f32 %v2484, 0.001953125
    %v2495 = vmul.f32 %v2493, 0.001953125
    %v2496 = vmul.f32 %v2494, %v2494
    %v2497 = vsub.f32 %v2495, %v2496
    %v2498 = vmax.f32 %v2497, 0.0
    %v2499 = vld [vmem:[%s2] sm:$0xff]
    %v2500 = vadd.f32 %v2498, 1e-05
    %v2501 = vrsqrt.pop %v2500
    %v2502 = vmul.f32 %v2501, %v2500
    %v2503 = vmul.f32 %v2502, %v2501
    %v2504 = vmul.f32 0.5, %v2503
    %v2505 = vsub.f32 1.5, %v2504
    %v2506 = vmul.f32 %v2501, %v2505
    %vm2507 = vweird.f32 %v2500
    %vm2508 = vweird.f32 %v2501
    %vm2509 = vmor %vm2507, %vm2508
    %v2510 = vsel %vm2509, %v2501, %v2506
    %v2511 = vmul.f32 %v2499, %v2510
    %v2512 = vld [vmem:[%s3] sm:$0xff]
    %v2513 = vmul.f32 %v2494, %v2511
    %v2514 = vsub.f32 %v2512, %v2513
    %v2515 = vlaneseq
    %v2516 = vshrl.u32 %v2515, 7
    %v2517 = vadd.s32 %v2516, 8
    %v2518 = vmul.u32 %v2516, 2
    %v2519 = vmul.u32 %v2517, 2
    %vm2520 = vcmp.eq.s32.totalorder %v35, %v2518
    %vm2521 = vcmp.eq.s32.totalorder %v35, %v2519
    %v2522 = vsel %vm2520, 1, 0
    %v2523 = vsel %vm2521, 1, 0
    %v2524 = vcvt.s32.f32 %v2522
    %v2525 = vcvt.s32.f32 %v2523
    %v2526 = vadd.s32 %v2518, 1
    %v2527 = vadd.s32 %v2519, 1
    %vm2528 = vcmp.eq.s32.totalorder %v35, %v2526
    %vm2529 = vcmp.eq.s32.totalorder %v35, %v2527
    %v2530 = vsel %vm2528, 1, 0
    %v2531 = vsel %vm2529, 1, 0
    %v2532 = vcvt.s32.f32 %v2530
    %v2533 = vcvt.s32.f32 %v2531
    %v2534 = vld [vmem:[#allocation3] sm:$0xff]
    %v2535 = vld [vmem:[#allocation3 + $0x8] sm:$0xff]
    %v2536 = vld [vmem:[#allocation3 + $0x10] sm:$0xff]
    %2538 = vset.pattern.permute.xlu0 0
    %2539 = vperm.xlu0 %2538, %v2511
    %v2540 = vpop.permute.xlu0 %2539
    %v2542 = vmul.f32 %v2534, %v2540
    %v2543 = vmul.f32 %v2535, %v2540
    %v2544 = vmul.f32 %v2536, %v2540
    %2546 = vset.pattern.permute.xlu0 0
    %2547 = vperm.xlu0 %2546, %v2514
    %v2548 = vpop.permute.xlu0 %2547
    %v2550 = vadd.f32 %v2542, %v2548
    %v2551 = vadd.f32 %v2543, %v2548
    %v2552 = vadd.f32 %v2544, %v2548
    %v2554 = vrot.slane %v2550, 2
    %vm2555 = vcmask 130048
    %v2556 = vsel %vm2555, %v2554, 0
    %2558 = vmatpush.msra.mxu0 0.0
    %2559 = vmatpush.msra.mxu0 0.0
    %2560 = vmatpush.msra.mxu0 0.0
    %2561 = vmatpush.msra.mxu0 0.0
    %2562 = vmatpush.msra.mxu0 0.0
    %2563 = vmatpush.msra.mxu0 0.0
    %2564 = vmatpush.msra.mxu0 0.0
    %2565 = vmatpush.msra.mxu0 0.0
    %2566 = vmatpush.msra.mxu0 0.0
    %2567 = vmatpush.msra.mxu0 0.0
    %2568 = vmatpush.msra.mxu0 0.0
    %2569 = vmatpush.msra.mxu0 0.0
    %2570 = vmatpush.msra.mxu0 0.0
    %2571 = vmatpush.msra.mxu0 0.0
    %2572 = vmatpush.msra.mxu0 %v2533
    %2573 = vmatpush.msra.mxu0 %v2532
    %2574 = vmatmul.f32.gmra.mxu0 %v2556
    %v2575 = vpop.f32.mrf.mxu0
    %v2576 = vadd.f32 0.0, %v2575
    %2577 = vdwg.mxu0
    %v2578 = vsel %vm2555, %v2550, 0
    %2580 = vmatpush.msra.mxu0 0.0
    %2581 = vmatpush.msra.mxu0 0.0
    %2582 = vmatpush.msra.mxu0 0.0
    %2583 = vmatpush.msra.mxu0 0.0
    %2584 = vmatpush.msra.mxu0 0.0
    %2585 = vmatpush.msra.mxu0 0.0
    %2586 = vmatpush.msra.mxu0 0.0
    %2587 = vmatpush.msra.mxu0 0.0
    %2588 = vmatpush.msra.mxu0 0.0
    %2589 = vmatpush.msra.mxu0 0.0
    %2590 = vmatpush.msra.mxu0 0.0
    %2591 = vmatpush.msra.mxu0 0.0
    %2592 = vmatpush.msra.mxu0 0.0
    %2593 = vmatpush.msra.mxu0 0.0
    %2594 = vmatpush.msra.mxu0 %v2525
    %2595 = vmatpush.msra.mxu0 %v2524
    %2596 = vmatmul.f32.gmra.mxu0 %v2578
    %v2597 = vpop.f32.mrf.mxu0
    %v2598 = vadd.f32 %v2576, %v2597
    %2599 = vdwg.mxu0
    %v2600 = vrot.slane %v2550, 6
    %v2601 = vsel %vm2555, %v2600, 0
    %2603 = vmatpush.msra.mxu0 0.0
    %2604 = vmatpush.msra.mxu0 0.0
    %2605 = vmatpush.msra.mxu0 0.0
    %2606 = vmatpush.msra.mxu0 0.0
    %2607 = vmatpush.msra.mxu0 0.0
    %2608 = vmatpush.msra.mxu0 0.0
    %2609 = vmatpush.msra.mxu0 0.0
    %2610 = vmatpush.msra.mxu0 0.0
    %2611 = vmatpush.msra.mxu0 0.0
    %2612 = vmatpush.msra.mxu0 0.0
    %2613 = vmatpush.msra.mxu0 0.0
    %2614 = vmatpush.msra.mxu0 0.0
    %2615 = vmatpush.msra.mxu0 0.0
    %2616 = vmatpush.msra.mxu0 0.0
    %2617 = vmatpush.msra.mxu0 %v2533
    %2618 = vmatpush.msra.mxu0 %v2532
    %2619 = vmatmul.f32.gmra.mxu0 %v2601
    %v2620 = vpop.f32.mrf.mxu0
    %v2621 = vadd.f32 0.0, %v2620
    %2622 = vdwg.mxu0
    %v2623 = vrot.slane %v2550, 4
    %v2624 = vsel %vm2555, %v2623, 0
    %2626 = vmatpush.msra.mxu0 0.0
    %2627 = vmatpush.msra.mxu0 0.0
    %2628 = vmatpush.msra.mxu0 0.0
    %2629 = vmatpush.msra.mxu0 0.0
    %2630 = vmatpush.msra.mxu0 0.0
    %2631 = vmatpush.msra.mxu0 0.0
    %2632 = vmatpush.msra.mxu0 0.0
    %2633 = vmatpush.msra.mxu0 0.0
    %2634 = vmatpush.msra.mxu0 0.0
    %2635 = vmatpush.msra.mxu0 0.0
    %2636 = vmatpush.msra.mxu0 0.0
    %2637 = vmatpush.msra.mxu0 0.0
    %2638 = vmatpush.msra.mxu0 0.0
    %2639 = vmatpush.msra.mxu0 0.0
    %2640 = vmatpush.msra.mxu0 %v2525
    %2641 = vmatpush.msra.mxu0 %v2524
    %2642 = vmatmul.f32.gmra.mxu0 %v2624
    %v2643 = vpop.f32.mrf.mxu0
    %v2644 = vadd.f32 %v2621, %v2643
    %2645 = vdwg.mxu0
    %vm2646 = vcmask 254976
    %2647 = vst.msk [vmem:[#allocation7] sm:$0x3] %vm2646, %v2598
    %2649 = vrot.lane.b32.xlu0 %v2644, 32
    %v2650 = vpop.permute.xlu0 %2649
    %vm2652 = vcmask 517376
    %2653 = vst.msk [vmem:[#allocation7] sm:$0x3] %vm2652, %v2650
    %2654 = vrot.lane.b32.xlu0 %v2554, 110
    %v2655 = vpop.permute.xlu0 %2654
    %v2656 = vsel %vm2555, %v2655, 0
    %2658 = vmatpush.msra.mxu0 0.0
    %2659 = vmatpush.msra.mxu0 0.0
    %2660 = vmatpush.msra.mxu0 0.0
    %2661 = vmatpush.msra.mxu0 0.0
    %2662 = vmatpush.msra.mxu0 0.0
    %2663 = vmatpush.msra.mxu0 0.0
    %2664 = vmatpush.msra.mxu0 0.0
    %2665 = vmatpush.msra.mxu0 0.0
    %2666 = vmatpush.msra.mxu0 0.0
    %2667 = vmatpush.msra.mxu0 0.0
    %2668 = vmatpush.msra.mxu0 0.0
    %2669 = vmatpush.msra.mxu0 0.0
    %2670 = vmatpush.msra.mxu0 0.0
    %2671 = vmatpush.msra.mxu0 0.0
    %2672 = vmatpush.msra.mxu0 %v2533
    %2673 = vmatpush.msra.mxu0 %v2532
    %2674 = vmatmul.f32.gmra.mxu0 %v2656
    %v2675 = vpop.f32.mrf.mxu0
    %v2676 = vadd.f32 0.0, %v2675
    %2677 = vdwg.mxu0
    %2678 = vrot.lane.b32.xlu0 %v2550, 110
    %v2679 = vpop.permute.xlu0 %2678
    %v2680 = vsel %vm2555, %v2679, 0
    %2682 = vmatpush.msra.mxu0 0.0
    %2683 = vmatpush.msra.mxu0 0.0
    %2684 = vmatpush.msra.mxu0 0.0
    %2685 = vmatpush.msra.mxu0 0.0
    %2686 = vmatpush.msra.mxu0 0.0
    %2687 = vmatpush.msra.mxu0 0.0
    %2688 = vmatpush.msra.mxu0 0.0
    %2689 = vmatpush.msra.mxu0 0.0
    %2690 = vmatpush.msra.mxu0 0.0
    %2691 = vmatpush.msra.mxu0 0.0
    %2692 = vmatpush.msra.mxu0 0.0
    %2693 = vmatpush.msra.mxu0 0.0
    %2694 = vmatpush.msra.mxu0 0.0
    %2695 = vmatpush.msra.mxu0 0.0
    %2696 = vmatpush.msra.mxu0 %v2525
    %2697 = vmatpush.msra.mxu0 %v2524
    %2698 = vmatmul.f32.gmra.mxu0 %v2680
    %v2699 = vpop.f32.mrf.mxu0
    %v2700 = vadd.f32 %v2676, %v2699
    %2701 = vdwg.mxu0
    %2702 = vrot.lane.b32.xlu0 %v2600, 110
    %v2703 = vpop.permute.xlu0 %2702
    %v2704 = vsel %vm2555, %v2703, 0
    %2706 = vmatpush.msra.mxu0 0.0
    %2707 = vmatpush.msra.mxu0 0.0
    %2708 = vmatpush.msra.mxu0 0.0
    %2709 = vmatpush.msra.mxu0 0.0
    %2710 = vmatpush.msra.mxu0 0.0
    %2711 = vmatpush.msra.mxu0 0.0
    %2712 = vmatpush.msra.mxu0 0.0
    %2713 = vmatpush.msra.mxu0 0.0
    %2714 = vmatpush.msra.mxu0 0.0
    %2715 = vmatpush.msra.mxu0 0.0
    %2716 = vmatpush.msra.mxu0 0.0
    %2717 = vmatpush.msra.mxu0 0.0
    %2718 = vmatpush.msra.mxu0 0.0
    %2719 = vmatpush.msra.mxu0 0.0
    %2720 = vmatpush.msra.mxu0 %v2533
    %2721 = vmatpush.msra.mxu0 %v2532
    %2722 = vmatmul.f32.gmra.mxu0 %v2704
    %v2723 = vpop.f32.mrf.mxu0
    %v2724 = vadd.f32 0.0, %v2723
    %2725 = vdwg.mxu0
    %2726 = vrot.lane.b32.xlu0 %v2623, 110
    %v2727 = vpop.permute.xlu0 %2726
    %v2728 = vsel %vm2555, %v2727, 0
    %2730 = vmatpush.msra.mxu0 0.0
    %2731 = vmatpush.msra.mxu0 0.0
    %2732 = vmatpush.msra.mxu0 0.0
    %2733 = vmatpush.msra.mxu0 0.0
    %2734 = vmatpush.msra.mxu0 0.0
    %2735 = vmatpush.msra.mxu0 0.0
    %2736 = vmatpush.msra.mxu0 0.0
    %2737 = vmatpush.msra.mxu0 0.0
    %2738 = vmatpush.msra.mxu0 0.0
    %2739 = vmatpush.msra.mxu0 0.0
    %2740 = vmatpush.msra.mxu0 0.0
    %2741 = vmatpush.msra.mxu0 0.0
    %2742 = vmatpush.msra.mxu0 0.0
    %2743 = vmatpush.msra.mxu0 0.0
    %2744 = vmatpush.msra.mxu0 %v2525
    %2745 = vmatpush.msra.mxu0 %v2524
    %2746 = vmatmul.f32.gmra.mxu0 %v2728
    %v2747 = vpop.f32.mrf.mxu0
    %v2748 = vadd.f32 %v2724, %v2747
    %2749 = vdwg.mxu0
    %2751 = vrot.lane.b32.xlu0 %v2700, 64
    %v2752 = vpop.permute.xlu0 %2751
    %vm2754 = vcmask 779776
    %2755 = vst.msk [vmem:[#allocation7] sm:$0x3] %vm2754, %v2752
    %2757 = vrot.lane.b32.xlu0 %v2748, 96
    %v2758 = vpop.permute.xlu0 %2757
    %vm2760 = vcmask 1042176
    %2761 = vst.msk [vmem:[#allocation7] sm:$0x3] %vm2760, %v2758
    %2762 = vrot.lane.b32.xlu0 %v2554, 92
    %v2763 = vpop.permute.xlu0 %2762
    %v2764 = vsel %vm2555, %v2763, 0
    %2766 = vmatpush.msra.mxu0 0.0
    %2767 = vmatpush.msra.mxu0 0.0
    %2768 = vmatpush.msra.mxu0 0.0
    %2769 = vmatpush.msra.mxu0 0.0
    %2770 = vmatpush.msra.mxu0 0.0
    %2771 = vmatpush.msra.mxu0 0.0
    %2772 = vmatpush.msra.mxu0 0.0
    %2773 = vmatpush.msra.mxu0 0.0
    %2774 = vmatpush.msra.mxu0 0.0
    %2775 = vmatpush.msra.mxu0 0.0
    %2776 = vmatpush.msra.mxu0 0.0
    %2777 = vmatpush.msra.mxu0 0.0
    %2778 = vmatpush.msra.mxu0 0.0
    %2779 = vmatpush.msra.mxu0 0.0
    %2780 = vmatpush.msra.mxu0 %v2533
    %2781 = vmatpush.msra.mxu0 %v2532
    %2782 = vmatmul.f32.gmra.mxu0 %v2764
    %v2783 = vpop.f32.mrf.mxu0
    %v2784 = vadd.f32 0.0, %v2783
    %2785 = vdwg.mxu0
    %2786 = vrot.lane.b32.xlu0 %v2550, 92
    %v2787 = vpop.permute.xlu0 %2786
    %v2788 = vsel %vm2555, %v2787, 0
    %2790 = vmatpush.msra.mxu0 0.0
    %2791 = vmatpush.msra.mxu0 0.0
    %2792 = vmatpush.msra.mxu0 0.0
    %2793 = vmatpush.msra.mxu0 0.0
    %2794 = vmatpush.msra.mxu0 0.0
    %2795 = vmatpush.msra.mxu0 0.0
    %2796 = vmatpush.msra.mxu0 0.0
    %2797 = vmatpush.msra.mxu0 0.0
    %2798 = vmatpush.msra.mxu0 0.0
    %2799 = vmatpush.msra.mxu0 0.0
    %2800 = vmatpush.msra.mxu0 0.0
    %2801 = vmatpush.msra.mxu0 0.0
    %2802 = vmatpush.msra.mxu0 0.0
    %2803 = vmatpush.msra.mxu0 0.0
    %2804 = vmatpush.msra.mxu0 %v2525
    %2805 = vmatpush.msra.mxu0 %v2524
    %2806 = vmatmul.f32.gmra.mxu0 %v2788
    %v2807 = vpop.f32.mrf.mxu0
    %v2808 = vadd.f32 %v2784, %v2807
    %2809 = vdwg.mxu0
    %2810 = vrot.lane.b32.xlu0 %v2600, 92
    %v2811 = vpop.permute.xlu0 %2810
    %v2812 = vsel %vm2555, %v2811, 0
    %2814 = vmatpush.msra.mxu0 0.0
    %2815 = vmatpush.msra.mxu0 0.0
    %2816 = vmatpush.msra.mxu0 0.0
    %2817 = vmatpush.msra.mxu0 0.0
    %2818 = vmatpush.msra.mxu0 0.0
    %2819 = vmatpush.msra.mxu0 0.0
    %2820 = vmatpush.msra.mxu0 0.0
    %2821 = vmatpush.msra.mxu0 0.0
    %2822 = vmatpush.msra.mxu0 0.0
    %2823 = vmatpush.msra.mxu0 0.0
    %2824 = vmatpush.msra.mxu0 0.0
    %2825 = vmatpush.msra.mxu0 0.0
    %2826 = vmatpush.msra.mxu0 0.0
    %2827 = vmatpush.msra.mxu0 0.0
    %2828 = vmatpush.msra.mxu0 %v2533
    %2829 = vmatpush.msra.mxu0 %v2532
    %2830 = vmatmul.f32.gmra.mxu0 %v2812
    %v2831 = vpop.f32.mrf.mxu0
    %v2832 = vadd.f32 0.0, %v2831
    %2833 = vdwg.mxu0
    %2834 = vrot.lane.b32.xlu0 %v2623, 92
    %v2835 = vpop.permute.xlu0 %2834
    %v2836 = vsel %vm2555, %v2835, 0
    %2838 = vmatpush.msra.mxu0 0.0
    %2839 = vmatpush.msra.mxu0 0.0
    %2840 = vmatpush.msra.mxu0 0.0
    %2841 = vmatpush.msra.mxu0 0.0
    %2842 = vmatpush.msra.mxu0 0.0
    %2843 = vmatpush.msra.mxu0 0.0
    %2844 = vmatpush.msra.mxu0 0.0
    %2845 = vmatpush.msra.mxu0 0.0
    %2846 = vmatpush.msra.mxu0 0.0
    %2847 = vmatpush.msra.mxu0 0.0
    %2848 = vmatpush.msra.mxu0 0.0
    %2849 = vmatpush.msra.mxu0 0.0
    %2850 = vmatpush.msra.mxu0 0.0
    %2851 = vmatpush.msra.mxu0 0.0
    %2852 = vmatpush.msra.mxu0 %v2525
    %2853 = vmatpush.msra.mxu0 %v2524
    %2854 = vmatmul.f32.gmra.mxu0 %v2836
    %v2855 = vpop.f32.mrf.mxu0
    %v2856 = vadd.f32 %v2832, %v2855
    %2857 = vdwg.mxu0
    %2858 = vst.msk [vmem:[#allocation7 + $0x2] sm:$0x3] %vm2646, %v2808
    %2860 = vrot.lane.b32.xlu0 %v2856, 32
    %v2861 = vpop.permute.xlu0 %2860
    %2863 = vst.msk [vmem:[#allocation7 + $0x2] sm:$0x3] %vm2652, %v2861
    %2864 = vrot.lane.b32.xlu0 %v2554, 74
    %v2865 = vpop.permute.xlu0 %2864
    %v2866 = vsel %vm2555, %v2865, 0
    %2868 = vmatpush.msra.mxu0 0.0
    %2869 = vmatpush.msra.mxu0 0.0
    %2870 = vmatpush.msra.mxu0 0.0
    %2871 = vmatpush.msra.mxu0 0.0
    %2872 = vmatpush.msra.mxu0 0.0
    %2873 = vmatpush.msra.mxu0 0.0
    %2874 = vmatpush.msra.mxu0 0.0
    %2875 = vmatpush.msra.mxu0 0.0
    %2876 = vmatpush.msra.mxu0 0.0
    %2877 = vmatpush.msra.mxu0 0.0
    %2878 = vmatpush.msra.mxu0 0.0
    %2879 = vmatpush.msra.mxu0 0.0
    %2880 = vmatpush.msra.mxu0 0.0
    %2881 = vmatpush.msra.mxu0 0.0
    %2882 = vmatpush.msra.mxu0 %v2533
    %2883 = vmatpush.msra.mxu0 %v2532
    %2884 = vmatmul.f32.gmra.mxu0 %v2866
    %v2885 = vpop.f32.mrf.mxu0
    %v2886 = vadd.f32 0.0, %v2885
    %2887 = vdwg.mxu0
    %2888 = vrot.lane.b32.xlu0 %v2550, 74
    %v2889 = vpop.permute.xlu0 %2888
    %v2890 = vsel %vm2555, %v2889, 0
    %2892 = vmatpush.msra.mxu0 0.0
    %2893 = vmatpush.msra.mxu0 0.0
    %2894 = vmatpush.msra.mxu0 0.0
    %2895 = vmatpush.msra.mxu0 0.0
    %2896 = vmatpush.msra.mxu0 0.0
    %2897 = vmatpush.msra.mxu0 0.0
    %2898 = vmatpush.msra.mxu0 0.0
    %2899 = vmatpush.msra.mxu0 0.0
    %2900 = vmatpush.msra.mxu0 0.0
    %2901 = vmatpush.msra.mxu0 0.0
    %2902 = vmatpush.msra.mxu0 0.0
    %2903 = vmatpush.msra.mxu0 0.0
    %2904 = vmatpush.msra.mxu0 0.0
    %2905 = vmatpush.msra.mxu0 0.0
    %2906 = vmatpush.msra.mxu0 %v2525
    %2907 = vmatpush.msra.mxu0 %v2524
    %2908 = vmatmul.f32.gmra.mxu0 %v2890
    %v2909 = vpop.f32.mrf.mxu0
    %v2910 = vadd.f32 %v2886, %v2909
    %2911 = vdwg.mxu0
    %2912 = vrot.lane.b32.xlu0 %v2600, 74
    %v2913 = vpop.permute.xlu0 %2912
    %v2914 = vsel %vm2555, %v2913, 0
    %2916 = vmatpush.msra.mxu0 0.0
    %2917 = vmatpush.msra.mxu0 0.0
    %2918 = vmatpush.msra.mxu0 0.0
    %2919 = vmatpush.msra.mxu0 0.0
    %2920 = vmatpush.msra.mxu0 0.0
    %2921 = vmatpush.msra.mxu0 0.0
    %2922 = vmatpush.msra.mxu0 0.0
    %2923 = vmatpush.msra.mxu0 0.0
    %2924 = vmatpush.msra.mxu0 0.0
    %2925 = vmatpush.msra.mxu0 0.0
    %2926 = vmatpush.msra.mxu0 0.0
    %2927 = vmatpush.msra.mxu0 0.0
    %2928 = vmatpush.msra.mxu0 0.0
    %2929 = vmatpush.msra.mxu0 0.0
    %2930 = vmatpush.msra.mxu0 %v2533
    %2931 = vmatpush.msra.mxu0 %v2532
    %2932 = vmatmul.f32.gmra.mxu0 %v2914
    %v2933 = vpop.f32.mrf.mxu0
    %v2934 = vadd.f32 0.0, %v2933
    %2935 = vdwg.mxu0
    %2936 = vrot.lane.b32.xlu0 %v2623, 74
    %v2937 = vpop.permute.xlu0 %2936
    %v2938 = vsel %vm2555, %v2937, 0
    %2940 = vmatpush.msra.mxu0 0.0
    %2941 = vmatpush.msra.mxu0 0.0
    %2942 = vmatpush.msra.mxu0 0.0
    %2943 = vmatpush.msra.mxu0 0.0
    %2944 = vmatpush.msra.mxu0 0.0
    %2945 = vmatpush.msra.mxu0 0.0
    %2946 = vmatpush.msra.mxu0 0.0
    %2947 = vmatpush.msra.mxu0 0.0
    %2948 = vmatpush.msra.mxu0 0.0
    %2949 = vmatpush.msra.mxu0 0.0
    %2950 = vmatpush.msra.mxu0 0.0
    %2951 = vmatpush.msra.mxu0 0.0
    %2952 = vmatpush.msra.mxu0 0.0
    %2953 = vmatpush.msra.mxu0 0.0
    %2954 = vmatpush.msra.mxu0 %v2525
    %2955 = vmatpush.msra.mxu0 %v2524
    %2956 = vmatmul.f32.gmra.mxu0 %v2938
    %v2957 = vpop.f32.mrf.mxu0
    %v2958 = vadd.f32 %v2934, %v2957
    %2959 = vdwg.mxu0
    %2961 = vrot.lane.b32.xlu0 %v2910, 64
    %v2962 = vpop.permute.xlu0 %2961
    %2964 = vst.msk [vmem:[#allocation7 + $0x2] sm:$0x3] %vm2754, %v2962
    %2966 = vrot.lane.b32.xlu0 %v2958, 96
    %v2967 = vpop.permute.xlu0 %2966
    %2969 = vst.msk [vmem:[#allocation7 + $0x2] sm:$0x3] %vm2760, %v2967
    %2970 = vrot.lane.b32.xlu0 %v2554, 56
    %v2971 = vpop.permute.xlu0 %2970
    %v2972 = vsel %vm2555, %v2971, 0
    %2974 = vmatpush.msra.mxu0 0.0
    %2975 = vmatpush.msra.mxu0 0.0
    %2976 = vmatpush.msra.mxu0 0.0
    %2977 = vmatpush.msra.mxu0 0.0
    %2978 = vmatpush.msra.mxu0 0.0
    %2979 = vmatpush.msra.mxu0 0.0
    %2980 = vmatpush.msra.mxu0 0.0
    %2981 = vmatpush.msra.mxu0 0.0
    %2982 = vmatpush.msra.mxu0 0.0
    %2983 = vmatpush.msra.mxu0 0.0
    %2984 = vmatpush.msra.mxu0 0.0
    %2985 = vmatpush.msra.mxu0 0.0
    %2986 = vmatpush.msra.mxu0 0.0
    %2987 = vmatpush.msra.mxu0 0.0
    %2988 = vmatpush.msra.mxu0 %v2533
    %2989 = vmatpush.msra.mxu0 %v2532
    %2990 = vmatmul.f32.gmra.mxu0 %v2972
    %v2991 = vpop.f32.mrf.mxu0
    %v2992 = vadd.f32 0.0, %v2991
    %2993 = vdwg.mxu0
    %2994 = vrot.lane.b32.xlu0 %v2550, 56
    %v2995 = vpop.permute.xlu0 %2994
    %v2996 = vsel %vm2555, %v2995, 0
    %2998 = vmatpush.msra.mxu0 0.0
    %2999 = vmatpush.msra.mxu0 0.0
    %3000 = vmatpush.msra.mxu0 0.0
    %3001 = vmatpush.msra.mxu0 0.0
    %3002 = vmatpush.msra.mxu0 0.0
    %3003 = vmatpush.msra.mxu0 0.0
    %3004 = vmatpush.msra.mxu0 0.0
    %3005 = vmatpush.msra.mxu0 0.0
    %3006 = vmatpush.msra.mxu0 0.0
    %3007 = vmatpush.msra.mxu0 0.0
    %3008 = vmatpush.msra.mxu0 0.0
    %3009 = vmatpush.msra.mxu0 0.0
    %3010 = vmatpush.msra.mxu0 0.0
    %3011 = vmatpush.msra.mxu0 0.0
    %3012 = vmatpush.msra.mxu0 %v2525
    %3013 = vmatpush.msra.mxu0 %v2524
    %3014 = vmatmul.f32.gmra.mxu0 %v2996
    %v3015 = vpop.f32.mrf.mxu0
    %v3016 = vadd.f32 %v2992, %v3015
    %3017 = vdwg.mxu0
    %3018 = vrot.lane.b32.xlu0 %v2600, 56
    %v3019 = vpop.permute.xlu0 %3018
    %v3020 = vsel %vm2555, %v3019, 0
    %3022 = vmatpush.msra.mxu0 0.0
    %3023 = vmatpush.msra.mxu0 0.0
    %3024 = vmatpush.msra.mxu0 0.0
    %3025 = vmatpush.msra.mxu0 0.0
    %3026 = vmatpush.msra.mxu0 0.0
    %3027 = vmatpush.msra.mxu0 0.0
    %3028 = vmatpush.msra.mxu0 0.0
    %3029 = vmatpush.msra.mxu0 0.0
    %3030 = vmatpush.msra.mxu0 0.0
    %3031 = vmatpush.msra.mxu0 0.0
    %3032 = vmatpush.msra.mxu0 0.0
    %3033 = vmatpush.msra.mxu0 0.0
    %3034 = vmatpush.msra.mxu0 0.0
    %3035 = vmatpush.msra.mxu0 0.0
    %3036 = vmatpush.msra.mxu0 %v2533
    %3037 = vmatpush.msra.mxu0 %v2532
    %3038 = vmatmul.f32.gmra.mxu0 %v3020
    %v3039 = vpop.f32.mrf.mxu0
    %v3040 = vadd.f32 0.0, %v3039
    %3041 = vdwg.mxu0
    %3042 = vrot.lane.b32.xlu0 %v2623, 56
    %v3043 = vpop.permute.xlu0 %3042
    %v3044 = vsel %vm2555, %v3043, 0
    %3046 = vmatpush.msra.mxu0 0.0
    %3047 = vmatpush.msra.mxu0 0.0
    %3048 = vmatpush.msra.mxu0 0.0
    %3049 = vmatpush.msra.mxu0 0.0
    %3050 = vmatpush.msra.mxu0 0.0
    %3051 = vmatpush.msra.mxu0 0.0
    %3052 = vmatpush.msra.mxu0 0.0
    %3053 = vmatpush.msra.mxu0 0.0
    %3054 = vmatpush.msra.mxu0 0.0
    %3055 = vmatpush.msra.mxu0 0.0
    %3056 = vmatpush.msra.mxu0 0.0
    %3057 = vmatpush.msra.mxu0 0.0
    %3058 = vmatpush.msra.mxu0 0.0
    %3059 = vmatpush.msra.mxu0 0.0
    %3060 = vmatpush.msra.mxu0 %v2525
    %3061 = vmatpush.msra.mxu0 %v2524
    %3062 = vmatmul.f32.gmra.mxu0 %v3044
    %v3063 = vpop.f32.mrf.mxu0
    %v3064 = vadd.f32 %v3040, %v3063
    %3065 = vdwg.mxu0
    %3066 = vst.msk [vmem:[#allocation7 + $0x4] sm:$0x3] %vm2646, %v3016
    %3068 = vrot.lane.b32.xlu0 %v3064, 32
    %v3069 = vpop.permute.xlu0 %3068
    %3071 = vst.msk [vmem:[#allocation7 + $0x4] sm:$0x3] %vm2652, %v3069
    %3072 = vrot.lane.b32.xlu0 %v2554, 38
    %v3073 = vpop.permute.xlu0 %3072
    %v3074 = vsel %vm2555, %v3073, 0
    %3076 = vmatpush.msra.mxu0 0.0
    %3077 = vmatpush.msra.mxu0 0.0
    %3078 = vmatpush.msra.mxu0 0.0
    %3079 = vmatpush.msra.mxu0 0.0
    %3080 = vmatpush.msra.mxu0 0.0
    %3081 = vmatpush.msra.mxu0 0.0
    %3082 = vmatpush.msra.mxu0 0.0
    %3083 = vmatpush.msra.mxu0 0.0
    %3084 = vmatpush.msra.mxu0 0.0
    %3085 = vmatpush.msra.mxu0 0.0
    %3086 = vmatpush.msra.mxu0 0.0
    %3087 = vmatpush.msra.mxu0 0.0
    %3088 = vmatpush.msra.mxu0 0.0
    %3089 = vmatpush.msra.mxu0 0.0
    %3090 = vmatpush.msra.mxu0 %v2533
    %3091 = vmatpush.msra.mxu0 %v2532
    %3092 = vmatmul.f32.gmra.mxu0 %v3074
    %v3093 = vpop.f32.mrf.mxu0
    %v3094 = vadd.f32 0.0, %v3093
    %3095 = vdwg.mxu0
    %3096 = vrot.lane.b32.xlu0 %v2550, 38
    %v3097 = vpop.permute.xlu0 %3096
    %v3098 = vsel %vm2555, %v3097, 0
    %3100 = vmatpush.msra.mxu0 0.0
    %3101 = vmatpush.msra.mxu0 0.0
    %3102 = vmatpush.msra.mxu0 0.0
    %3103 = vmatpush.msra.mxu0 0.0
    %3104 = vmatpush.msra.mxu0 0.0
    %3105 = vmatpush.msra.mxu0 0.0
    %3106 = vmatpush.msra.mxu0 0.0
    %3107 = vmatpush.msra.mxu0 0.0
    %3108 = vmatpush.msra.mxu0 0.0
    %3109 = vmatpush.msra.mxu0 0.0
    %3110 = vmatpush.msra.mxu0 0.0
    %3111 = vmatpush.msra.mxu0 0.0
    %3112 = vmatpush.msra.mxu0 0.0
    %3113 = vmatpush.msra.mxu0 0.0
    %3114 = vmatpush.msra.mxu0 %v2525
    %3115 = vmatpush.msra.mxu0 %v2524
    %3116 = vmatmul.f32.gmra.mxu0 %v3098
    %v3117 = vpop.f32.mrf.mxu0
    %v3118 = vadd.f32 %v3094, %v3117
    %3119 = vdwg.mxu0
    %3120 = vrot.lane.b32.xlu0 %v2600, 38
    %v3121 = vpop.permute.xlu0 %3120
    %v3122 = vsel %vm2555, %v3121, 0
    %3124 = vmatpush.msra.mxu0 0.0
    %3125 = vmatpush.msra.mxu0 0.0
    %3126 = vmatpush.msra.mxu0 0.0
    %3127 = vmatpush.msra.mxu0 0.0
    %3128 = vmatpush.msra.mxu0 0.0
    %3129 = vmatpush.msra.mxu0 0.0
    %3130 = vmatpush.msra.mxu0 0.0
    %3131 = vmatpush.msra.mxu0 0.0
    %3132 = vmatpush.msra.mxu0 0.0
    %3133 = vmatpush.msra.mxu0 0.0
    %3134 = vmatpush.msra.mxu0 0.0
    %3135 = vmatpush.msra.mxu0 0.0
    %3136 = vmatpush.msra.mxu0 0.0
    %3137 = vmatpush.msra.mxu0 0.0
    %3138 = vmatpush.msra.mxu0 %v2533
    %3139 = vmatpush.msra.mxu0 %v2532
    %3140 = vmatmul.f32.gmra.mxu0 %v3122
    %v3141 = vpop.f32.mrf.mxu0
    %v3142 = vadd.f32 0.0, %v3141
    %3143 = vdwg.mxu0
    %3144 = vrot.lane.b32.xlu0 %v2623, 38
    %v3145 = vpop.permute.xlu0 %3144
    %v3146 = vsel %vm2555, %v3145, 0
    %3148 = vmatpush.msra.mxu0 0.0
    %3149 = vmatpush.msra.mxu0 0.0
    %3150 = vmatpush.msra.mxu0 0.0
    %3151 = vmatpush.msra.mxu0 0.0
    %3152 = vmatpush.msra.mxu0 0.0
    %3153 = vmatpush.msra.mxu0 0.0
    %3154 = vmatpush.msra.mxu0 0.0
    %3155 = vmatpush.msra.mxu0 0.0
    %3156 = vmatpush.msra.mxu0 0.0
    %3157 = vmatpush.msra.mxu0 0.0
    %3158 = vmatpush.msra.mxu0 0.0
    %3159 = vmatpush.msra.mxu0 0.0
    %3160 = vmatpush.msra.mxu0 0.0
    %3161 = vmatpush.msra.mxu0 0.0
    %3162 = vmatpush.msra.mxu0 %v2525
    %3163 = vmatpush.msra.mxu0 %v2524
    %3164 = vmatmul.f32.gmra.mxu0 %v3146
    %v3165 = vpop.f32.mrf.mxu0
    %v3166 = vadd.f32 %v3142, %v3165
    %3167 = vdwg.mxu0
    %3169 = vrot.lane.b32.xlu0 %v3118, 64
    %v3170 = vpop.permute.xlu0 %3169
    %3172 = vst.msk [vmem:[#allocation7 + $0x4] sm:$0x3] %vm2754, %v3170
    %3174 = vrot.lane.b32.xlu0 %v3166, 96
    %v3175 = vpop.permute.xlu0 %3174
    %3177 = vst.msk [vmem:[#allocation7 + $0x4] sm:$0x3] %vm2760, %v3175
    %3178 = vrot.lane.b32.xlu0 %v2554, 20
    %v3179 = vpop.permute.xlu0 %3178
    %v3180 = vsel %vm2555, %v3179, 0
    %3182 = vmatpush.msra.mxu0 0.0
    %3183 = vmatpush.msra.mxu0 0.0
    %3184 = vmatpush.msra.mxu0 0.0
    %3185 = vmatpush.msra.mxu0 0.0
    %3186 = vmatpush.msra.mxu0 0.0
    %3187 = vmatpush.msra.mxu0 0.0
    %3188 = vmatpush.msra.mxu0 0.0
    %3189 = vmatpush.msra.mxu0 0.0
    %3190 = vmatpush.msra.mxu0 0.0
    %3191 = vmatpush.msra.mxu0 0.0
    %3192 = vmatpush.msra.mxu0 0.0
    %3193 = vmatpush.msra.mxu0 0.0
    %3194 = vmatpush.msra.mxu0 0.0
    %3195 = vmatpush.msra.mxu0 0.0
    %3196 = vmatpush.msra.mxu0 %v2533
    %3197 = vmatpush.msra.mxu0 %v2532
    %3198 = vmatmul.f32.gmra.mxu0 %v3180
    %v3199 = vpop.f32.mrf.mxu0
    %v3200 = vadd.f32 0.0, %v3199
    %3201 = vdwg.mxu0
    %3202 = vrot.lane.b32.xlu0 %v2550, 20
    %v3203 = vpop.permute.xlu0 %3202
    %v3204 = vsel %vm2555, %v3203, 0
    %3206 = vmatpush.msra.mxu0 0.0
    %3207 = vmatpush.msra.mxu0 0.0
    %3208 = vmatpush.msra.mxu0 0.0
    %3209 = vmatpush.msra.mxu0 0.0
    %3210 = vmatpush.msra.mxu0 0.0
    %3211 = vmatpush.msra.mxu0 0.0
    %3212 = vmatpush.msra.mxu0 0.0
    %3213 = vmatpush.msra.mxu0 0.0
    %3214 = vmatpush.msra.mxu0 0.0
    %3215 = vmatpush.msra.mxu0 0.0
    %3216 = vmatpush.msra.mxu0 0.0
    %3217 = vmatpush.msra.mxu0 0.0
    %3218 = vmatpush.msra.mxu0 0.0
    %3219 = vmatpush.msra.mxu0 0.0
    %3220 = vmatpush.msra.mxu0 %v2525
    %3221 = vmatpush.msra.mxu0 %v2524
    %3222 = vmatmul.f32.gmra.mxu0 %v3204
    %v3223 = vpop.f32.mrf.mxu0
    %v3224 = vadd.f32 %v3200, %v3223
    %3225 = vdwg.mxu0
    %3226 = vrot.lane.b32.xlu0 %v2600, 20
    %v3227 = vpop.permute.xlu0 %3226
    %v3228 = vsel %vm2555, %v3227, 0
    %3230 = vmatpush.msra.mxu0 0.0
    %3231 = vmatpush.msra.mxu0 0.0
    %3232 = vmatpush.msra.mxu0 0.0
    %3233 = vmatpush.msra.mxu0 0.0
    %3234 = vmatpush.msra.mxu0 0.0
    %3235 = vmatpush.msra.mxu0 0.0
    %3236 = vmatpush.msra.mxu0 0.0
    %3237 = vmatpush.msra.mxu0 0.0
    %3238 = vmatpush.msra.mxu0 0.0
    %3239 = vmatpush.msra.mxu0 0.0
    %3240 = vmatpush.msra.mxu0 0.0
    %3241 = vmatpush.msra.mxu0 0.0
    %3242 = vmatpush.msra.mxu0 0.0
    %3243 = vmatpush.msra.mxu0 0.0
    %3244 = vmatpush.msra.mxu0 %v2533
    %3245 = vmatpush.msra.mxu0 %v2532
    %3246 = vmatmul.f32.gmra.mxu0 %v3228
    %v3247 = vpop.f32.mrf.mxu0
    %v3248 = vadd.f32 0.0, %v3247
    %3249 = vdwg.mxu0
    %3250 = vrot.lane.b32.xlu0 %v2623, 20
    %v3251 = vpop.permute.xlu0 %3250
    %v3252 = vsel %vm2555, %v3251, 0
    %3254 = vmatpush.msra.mxu0 0.0
    %3255 = vmatpush.msra.mxu0 0.0
    %3256 = vmatpush.msra.mxu0 0.0
    %3257 = vmatpush.msra.mxu0 0.0
    %3258 = vmatpush.msra.mxu0 0.0
    %3259 = vmatpush.msra.mxu0 0.0
    %3260 = vmatpush.msra.mxu0 0.0
    %3261 = vmatpush.msra.mxu0 0.0
    %3262 = vmatpush.msra.mxu0 0.0
    %3263 = vmatpush.msra.mxu0 0.0
    %3264 = vmatpush.msra.mxu0 0.0
    %3265 = vmatpush.msra.mxu0 0.0
    %3266 = vmatpush.msra.mxu0 0.0
    %3267 = vmatpush.msra.mxu0 0.0
    %3268 = vmatpush.msra.mxu0 %v2525
    %3269 = vmatpush.msra.mxu0 %v2524
    %3270 = vmatmul.f32.gmra.mxu0 %v3252
    %v3271 = vpop.f32.mrf.mxu0
    %v3272 = vadd.f32 %v3248, %v3271
    %3273 = vdwg.mxu0
    %3274 = vst.msk [vmem:[#allocation7 + $0x6] sm:$0x3] %vm2646, %v3224
    %3276 = vrot.lane.b32.xlu0 %v3272, 32
    %v3277 = vpop.permute.xlu0 %3276
    %3279 = vst.msk [vmem:[#allocation7 + $0x6] sm:$0x3] %vm2652, %v3277
    %v3281 = vrot.slane %v2551, 2
    %3282 = vrot.lane.b32.xlu0 %v2554, 2
    %v3283 = vpop.permute.xlu0 %3282
    %3284 = vrot.lane.b32.xlu0 %v3281, 2
    %v3285 = vpop.permute.xlu0 %3284
    %vm3286 = vcmask 15360
    %v3287 = vsel %vm3286, %v3283, %v3285
    %v3288 = vsel %vm2555, %v3287, 0
    %3290 = vmatpush.msra.mxu0 0.0
    %3291 = vmatpush.msra.mxu0 0.0
    %3292 = vmatpush.msra.mxu0 0.0
    %3293 = vmatpush.msra.mxu0 0.0
    %3294 = vmatpush.msra.mxu0 0.0
    %3295 = vmatpush.msra.mxu0 0.0
    %3296 = vmatpush.msra.mxu0 0.0
    %3297 = vmatpush.msra.mxu0 0.0
    %3298 = vmatpush.msra.mxu0 0.0
    %3299 = vmatpush.msra.mxu0 0.0
    %3300 = vmatpush.msra.mxu0 0.0
    %3301 = vmatpush.msra.mxu0 0.0
    %3302 = vmatpush.msra.mxu0 0.0
    %3303 = vmatpush.msra.mxu0 0.0
    %3304 = vmatpush.msra.mxu0 %v2533
    %3305 = vmatpush.msra.mxu0 %v2532
    %3306 = vmatmul.f32.gmra.mxu0 %v3288
    %v3307 = vpop.f32.mrf.mxu0
    %v3308 = vadd.f32 0.0, %v3307
    %3309 = vdwg.mxu0
    %3310 = vrot.lane.b32.xlu0 %v2550, 2
    %v3311 = vpop.permute.xlu0 %3310
    %3312 = vrot.lane.b32.xlu0 %v2551, 2
    %v3313 = vpop.permute.xlu0 %3312
    %v3314 = vsel %vm3286, %v3311, %v3313
    %v3315 = vsel %vm2555, %v3314, 0
    %3317 = vmatpush.msra.mxu0 0.0
    %3318 = vmatpush.msra.mxu0 0.0
    %3319 = vmatpush.msra.mxu0 0.0
    %3320 = vmatpush.msra.mxu0 0.0
    %3321 = vmatpush.msra.mxu0 0.0
    %3322 = vmatpush.msra.mxu0 0.0
    %3323 = vmatpush.msra.mxu0 0.0
    %3324 = vmatpush.msra.mxu0 0.0
    %3325 = vmatpush.msra.mxu0 0.0
    %3326 = vmatpush.msra.mxu0 0.0
    %3327 = vmatpush.msra.mxu0 0.0
    %3328 = vmatpush.msra.mxu0 0.0
    %3329 = vmatpush.msra.mxu0 0.0
    %3330 = vmatpush.msra.mxu0 0.0
    %3331 = vmatpush.msra.mxu0 %v2525
    %3332 = vmatpush.msra.mxu0 %v2524
    %3333 = vmatmul.f32.gmra.mxu0 %v3315
    %v3334 = vpop.f32.mrf.mxu0
    %v3335 = vadd.f32 %v3308, %v3334
    %3336 = vdwg.mxu0
    %v3337 = vrot.slane %v2551, 6
    %3338 = vrot.lane.b32.xlu0 %v2600, 2
    %v3339 = vpop.permute.xlu0 %3338
    %3340 = vrot.lane.b32.xlu0 %v3337, 2
    %v3341 = vpop.permute.xlu0 %3340
    %v3342 = vsel %vm3286, %v3339, %v3341
    %v3343 = vsel %vm2555, %v3342, 0
    %3345 = vmatpush.msra.mxu0 0.0
    %3346 = vmatpush.msra.mxu0 0.0
    %3347 = vmatpush.msra.mxu0 0.0
    %3348 = vmatpush.msra.mxu0 0.0
    %3349 = vmatpush.msra.mxu0 0.0
    %3350 = vmatpush.msra.mxu0 0.0
    %3351 = vmatpush.msra.mxu0 0.0
    %3352 = vmatpush.msra.mxu0 0.0
    %3353 = vmatpush.msra.mxu0 0.0
    %3354 = vmatpush.msra.mxu0 0.0
    %3355 = vmatpush.msra.mxu0 0.0
    %3356 = vmatpush.msra.mxu0 0.0
    %3357 = vmatpush.msra.mxu0 0.0
    %3358 = vmatpush.msra.mxu0 0.0
    %3359 = vmatpush.msra.mxu0 %v2533
    %3360 = vmatpush.msra.mxu0 %v2532
    %3361 = vmatmul.f32.gmra.mxu0 %v3343
    %v3362 = vpop.f32.mrf.mxu0
    %v3363 = vadd.f32 0.0, %v3362
    %3364 = vdwg.mxu0
    %v3365 = vrot.slane %v2551, 4
    %3366 = vrot.lane.b32.xlu0 %v2623, 2
    %v3367 = vpop.permute.xlu0 %3366
    %3368 = vrot.lane.b32.xlu0 %v3365, 2
    %v3369 = vpop.permute.xlu0 %3368
    %v3370 = vsel %vm3286, %v3367, %v3369
    %v3371 = vsel %vm2555, %v3370, 0
    %3373 = vmatpush.msra.mxu0 0.0
    %3374 = vmatpush.msra.mxu0 0.0
    %3375 = vmatpush.msra.mxu0 0.0
    %3376 = vmatpush.msra.mxu0 0.0
    %3377 = vmatpush.msra.mxu0 0.0
    %3378 = vmatpush.msra.mxu0 0.0
    %3379 = vmatpush.msra.mxu0 0.0
    %3380 = vmatpush.msra.mxu0 0.0
    %3381 = vmatpush.msra.mxu0 0.0
    %3382 = vmatpush.msra.mxu0 0.0
    %3383 = vmatpush.msra.mxu0 0.0
    %3384 = vmatpush.msra.mxu0 0.0
    %3385 = vmatpush.msra.mxu0 0.0
    %3386 = vmatpush.msra.mxu0 0.0
    %3387 = vmatpush.msra.mxu0 %v2525
    %3388 = vmatpush.msra.mxu0 %v2524
    %3389 = vmatmul.f32.gmra.mxu0 %v3371
    %v3390 = vpop.f32.mrf.mxu0
    %v3391 = vadd.f32 %v3363, %v3390
    %3392 = vdwg.mxu0
    %3394 = vrot.lane.b32.xlu0 %v3335, 64
    %v3395 = vpop.permute.xlu0 %3394
    %3397 = vst.msk [vmem:[#allocation7 + $0x6] sm:$0x3] %vm2754, %v3395
    %3399 = vrot.lane.b32.xlu0 %v3391, 96
    %v3400 = vpop.permute.xlu0 %3399
    %3402 = vst.msk [vmem:[#allocation7 + $0x6] sm:$0x3] %vm2760, %v3400
    %3403 = vrot.lane.b32.xlu0 %v3281, 112
    %v3404 = vpop.permute.xlu0 %3403
    %v3405 = vsel %vm2555, %v3404, 0
    %3407 = vmatpush.msra.mxu0 0.0
    %3408 = vmatpush.msra.mxu0 0.0
    %3409 = vmatpush.msra.mxu0 0.0
    %3410 = vmatpush.msra.mxu0 0.0
    %3411 = vmatpush.msra.mxu0 0.0
    %3412 = vmatpush.msra.mxu0 0.0
    %3413 = vmatpush.msra.mxu0 0.0
    %3414 = vmatpush.msra.mxu0 0.0
    %3415 = vmatpush.msra.mxu0 0.0
    %3416 = vmatpush.msra.mxu0 0.0
    %3417 = vmatpush.msra.mxu0 0.0
    %3418 = vmatpush.msra.mxu0 0.0
    %3419 = vmatpush.msra.mxu0 0.0
    %3420 = vmatpush.msra.mxu0 0.0
    %3421 = vmatpush.msra.mxu0 %v2533
    %3422 = vmatpush.msra.mxu0 %v2532
    %3423 = vmatmul.f32.gmra.mxu0 %v3405
    %v3424 = vpop.f32.mrf.mxu0
    %v3425 = vadd.f32 0.0, %v3424
    %3426 = vdwg.mxu0
    %3427 = vrot.lane.b32.xlu0 %v2551, 112
    %v3428 = vpop.permute.xlu0 %3427
    %v3429 = vsel %vm2555, %v3428, 0
    %3431 = vmatpush.msra.mxu0 0.0
    %3432 = vmatpush.msra.mxu0 0.0
    %3433 = vmatpush.msra.mxu0 0.0
    %3434 = vmatpush.msra.mxu0 0.0
    %3435 = vmatpush.msra.mxu0 0.0
    %3436 = vmatpush.msra.mxu0 0.0
    %3437 = vmatpush.msra.mxu0 0.0
    %3438 = vmatpush.msra.mxu0 0.0
    %3439 = vmatpush.msra.mxu0 0.0
    %3440 = vmatpush.msra.mxu0 0.0
    %3441 = vmatpush.msra.mxu0 0.0
    %3442 = vmatpush.msra.mxu0 0.0
    %3443 = vmatpush.msra.mxu0 0.0
    %3444 = vmatpush.msra.mxu0 0.0
    %3445 = vmatpush.msra.mxu0 %v2525
    %3446 = vmatpush.msra.mxu0 %v2524
    %3447 = vmatmul.f32.gmra.mxu0 %v3429
    %v3448 = vpop.f32.mrf.mxu0
    %v3449 = vadd.f32 %v3425, %v3448
    %3450 = vdwg.mxu0
    %3451 = vrot.lane.b32.xlu0 %v3337, 112
    %v3452 = vpop.permute.xlu0 %3451
    %v3453 = vsel %vm2555, %v3452, 0
    %3455 = vmatpush.msra.mxu0 0.0
    %3456 = vmatpush.msra.mxu0 0.0
    %3457 = vmatpush.msra.mxu0 0.0
    %3458 = vmatpush.msra.mxu0 0.0
    %3459 = vmatpush.msra.mxu0 0.0
    %3460 = vmatpush.msra.mxu0 0.0
    %3461 = vmatpush.msra.mxu0 0.0
    %3462 = vmatpush.msra.mxu0 0.0
    %3463 = vmatpush.msra.mxu0 0.0
    %3464 = vmatpush.msra.mxu0 0.0
    %3465 = vmatpush.msra.mxu0 0.0
    %3466 = vmatpush.msra.mxu0 0.0
    %3467 = vmatpush.msra.mxu0 0.0
    %3468 = vmatpush.msra.mxu0 0.0
    %3469 = vmatpush.msra.mxu0 %v2533
    %3470 = vmatpush.msra.mxu0 %v2532
    %3471 = vmatmul.f32.gmra.mxu0 %v3453
    %v3472 = vpop.f32.mrf.mxu0
    %v3473 = vadd.f32 0.0, %v3472
    %3474 = vdwg.mxu0
    %3475 = vrot.lane.b32.xlu0 %v3365, 112
    %v3476 = vpop.permute.xlu0 %3475
    %v3477 = vsel %vm2555, %v3476, 0
    %3479 = vmatpush.msra.mxu0 0.0
    %3480 = vmatpush.msra.mxu0 0.0
    %3481 = vmatpush.msra.mxu0 0.0
    %3482 = vmatpush.msra.mxu0 0.0
    %3483 = vmatpush.msra.mxu0 0.0
    %3484 = vmatpush.msra.mxu0 0.0
    %3485 = vmatpush.msra.mxu0 0.0
    %3486 = vmatpush.msra.mxu0 0.0
    %3487 = vmatpush.msra.mxu0 0.0
    %3488 = vmatpush.msra.mxu0 0.0
    %3489 = vmatpush.msra.mxu0 0.0
    %3490 = vmatpush.msra.mxu0 0.0
    %3491 = vmatpush.msra.mxu0 0.0
    %3492 = vmatpush.msra.mxu0 0.0
    %3493 = vmatpush.msra.mxu0 %v2525
    %3494 = vmatpush.msra.mxu0 %v2524
    %3495 = vmatmul.f32.gmra.mxu0 %v3477
    %v3496 = vpop.f32.mrf.mxu0
    %v3497 = vadd.f32 %v3473, %v3496
    %3498 = vdwg.mxu0
    %3499 = vst.msk [vmem:[#allocation7 + $0x8] sm:$0x3] %vm2646, %v3449
    %3501 = vrot.lane.b32.xlu0 %v3497, 32
    %v3502 = vpop.permute.xlu0 %3501
    %3504 = vst.msk [vmem:[#allocation7 + $0x8] sm:$0x3] %vm2652, %v3502
    %3505 = vrot.lane.b32.xlu0 %v3281, 94
    %v3506 = vpop.permute.xlu0 %3505
    %v3507 = vsel %vm2555, %v3506, 0
    %3509 = vmatpush.msra.mxu0 0.0
    %3510 = vmatpush.msra.mxu0 0.0
    %3511 = vmatpush.msra.mxu0 0.0
    %3512 = vmatpush.msra.mxu0 0.0
    %3513 = vmatpush.msra.mxu0 0.0
    %3514 = vmatpush.msra.mxu0 0.0
    %3515 = vmatpush.msra.mxu0 0.0
    %3516 = vmatpush.msra.mxu0 0.0
    %3517 = vmatpush.msra.mxu0 0.0
    %3518 = vmatpush.msra.mxu0 0.0
    %3519 = vmatpush.msra.mxu0 0.0
    %3520 = vmatpush.msra.mxu0 0.0
    %3521 = vmatpush.msra.mxu0 0.0
    %3522 = vmatpush.msra.mxu0 0.0
    %3523 = vmatpush.msra.mxu0 %v2533
    %3524 = vmatpush.msra.mxu0 %v2532
    %3525 = vmatmul.f32.gmra.mxu0 %v3507
    %v3526 = vpop.f32.mrf.mxu0
    %v3527 = vadd.f32 0.0, %v3526
    %3528 = vdwg.mxu0
    %3529 = vrot.lane.b32.xlu0 %v2551, 94
    %v3530 = vpop.permute.xlu0 %3529
    %v3531 = vsel %vm2555, %v3530, 0
    %3533 = vmatpush.msra.mxu0 0.0
    %3534 = vmatpush.msra.mxu0 0.0
    %3535 = vmatpush.msra.mxu0 0.0
    %3536 = vmatpush.msra.mxu0 0.0
    %3537 = vmatpush.msra.mxu0 0.0
    %3538 = vmatpush.msra.mxu0 0.0
    %3539 = vmatpush.msra.mxu0 0.0
    %3540 = vmatpush.msra.mxu0 0.0
    %3541 = vmatpush.msra.mxu0 0.0
    %3542 = vmatpush.msra.mxu0 0.0
    %3543 = vmatpush.msra.mxu0 0.0
    %3544 = vmatpush.msra.mxu0 0.0
    %3545 = vmatpush.msra.mxu0 0.0
    %3546 = vmatpush.msra.mxu0 0.0
    %3547 = vmatpush.msra.mxu0 %v2525
    %3548 = vmatpush.msra.mxu0 %v2524
    %3549 = vmatmul.f32.gmra.mxu0 %v3531
    %v3550 = vpop.f32.mrf.mxu0
    %v3551 = vadd.f32 %v3527, %v3550
    %3552 = vdwg.mxu0
    %3553 = vrot.lane.b32.xlu0 %v3337, 94
    %v3554 = vpop.permute.xlu0 %3553
    %v3555 = vsel %vm2555, %v3554, 0
    %3557 = vmatpush.msra.mxu0 0.0
    %3558 = vmatpush.msra.mxu0 0.0
    %3559 = vmatpush.msra.mxu0 0.0
    %3560 = vmatpush.msra.mxu0 0.0
    %3561 = vmatpush.msra.mxu0 0.0
    %3562 = vmatpush.msra.mxu0 0.0
    %3563 = vmatpush.msra.mxu0 0.0
    %3564 = vmatpush.msra.mxu0 0.0
    %3565 = vmatpush.msra.mxu0 0.0
    %3566 = vmatpush.msra.mxu0 0.0
    %3567 = vmatpush.msra.mxu0 0.0
    %3568 = vmatpush.msra.mxu0 0.0
    %3569 = vmatpush.msra.mxu0 0.0
    %3570 = vmatpush.msra.mxu0 0.0
    %3571 = vmatpush.msra.mxu0 %v2533
    %3572 = vmatpush.msra.mxu0 %v2532
    %3573 = vmatmul.f32.gmra.mxu0 %v3555
    %v3574 = vpop.f32.mrf.mxu0
    %v3575 = vadd.f32 0.0, %v3574
    %3576 = vdwg.mxu0
    %3577 = vrot.lane.b32.xlu0 %v3365, 94
    %v3578 = vpop.permute.xlu0 %3577
    %v3579 = vsel %vm2555, %v3578, 0
    %3581 = vmatpush.msra.mxu0 0.0
    %3582 = vmatpush.msra.mxu0 0.0
    %3583 = vmatpush.msra.mxu0 0.0
    %3584 = vmatpush.msra.mxu0 0.0
    %3585 = vmatpush.msra.mxu0 0.0
    %3586 = vmatpush.msra.mxu0 0.0
    %3587 = vmatpush.msra.mxu0 0.0
    %3588 = vmatpush.msra.mxu0 0.0
    %3589 = vmatpush.msra.mxu0 0.0
    %3590 = vmatpush.msra.mxu0 0.0
    %3591 = vmatpush.msra.mxu0 0.0
    %3592 = vmatpush.msra.mxu0 0.0
    %3593 = vmatpush.msra.mxu0 0.0
    %3594 = vmatpush.msra.mxu0 0.0
    %3595 = vmatpush.msra.mxu0 %v2525
    %3596 = vmatpush.msra.mxu0 %v2524
    %3597 = vmatmul.f32.gmra.mxu0 %v3579
    %v3598 = vpop.f32.mrf.mxu0
    %v3599 = vadd.f32 %v3575, %v3598
    %3600 = vdwg.mxu0
    %3602 = vrot.lane.b32.xlu0 %v3551, 64
    %v3603 = vpop.permute.xlu0 %3602
    %3605 = vst.msk [vmem:[#allocation7 + $0x8] sm:$0x3] %vm2754, %v3603
    %3607 = vrot.lane.b32.xlu0 %v3599, 96
    %v3608 = vpop.permute.xlu0 %3607
    %3610 = vst.msk [vmem:[#allocation7 + $0x8] sm:$0x3] %vm2760, %v3608
    %3611 = vrot.lane.b32.xlu0 %v3281, 76
    %v3612 = vpop.permute.xlu0 %3611
    %v3613 = vsel %vm2555, %v3612, 0
    %3615 = vmatpush.msra.mxu0 0.0
    %3616 = vmatpush.msra.mxu0 0.0
    %3617 = vmatpush.msra.mxu0 0.0
    %3618 = vmatpush.msra.mxu0 0.0
    %3619 = vmatpush.msra.mxu0 0.0
    %3620 = vmatpush.msra.mxu0 0.0
    %3621 = vmatpush.msra.mxu0 0.0
    %3622 = vmatpush.msra.mxu0 0.0
    %3623 = vmatpush.msra.mxu0 0.0
    %3624 = vmatpush.msra.mxu0 0.0
    %3625 = vmatpush.msra.mxu0 0.0
    %3626 = vmatpush.msra.mxu0 0.0
    %3627 = vmatpush.msra.mxu0 0.0
    %3628 = vmatpush.msra.mxu0 0.0
    %3629 = vmatpush.msra.mxu0 %v2533
    %3630 = vmatpush.msra.mxu0 %v2532
    %3631 = vmatmul.f32.gmra.mxu0 %v3613
    %v3632 = vpop.f32.mrf.mxu0
    %v3633 = vadd.f32 0.0, %v3632
    %3634 = vdwg.mxu0
    %3635 = vrot.lane.b32.xlu0 %v2551, 76
    %v3636 = vpop.permute.xlu0 %3635
    %v3637 = vsel %vm2555, %v3636, 0
    %3639 = vmatpush.msra.mxu0 0.0
    %3640 = vmatpush.msra.mxu0 0.0
    %3641 = vmatpush.msra.mxu0 0.0
    %3642 = vmatpush.msra.mxu0 0.0
    %3643 = vmatpush.msra.mxu0 0.0
    %3644 = vmatpush.msra.mxu0 0.0
    %3645 = vmatpush.msra.mxu0 0.0
    %3646 = vmatpush.msra.mxu0 0.0
    %3647 = vmatpush.msra.mxu0 0.0
    %3648 = vmatpush.msra.mxu0 0.0
    %3649 = vmatpush.msra.mxu0 0.0
    %3650 = vmatpush.msra.mxu0 0.0
    %3651 = vmatpush.msra.mxu0 0.0
    %3652 = vmatpush.msra.mxu0 0.0
    %3653 = vmatpush.msra.mxu0 %v2525
    %3654 = vmatpush.msra.mxu0 %v2524
    %3655 = vmatmul.f32.gmra.mxu0 %v3637
    %v3656 = vpop.f32.mrf.mxu0
    %v3657 = vadd.f32 %v3633, %v3656
    %3658 = vdwg.mxu0
    %3659 = vrot.lane.b32.xlu0 %v3337, 76
    %v3660 = vpop.permute.xlu0 %3659
    %v3661 = vsel %vm2555, %v3660, 0
    %3663 = vmatpush.msra.mxu0 0.0
    %3664 = vmatpush.msra.mxu0 0.0
    %3665 = vmatpush.msra.mxu0 0.0
    %3666 = vmatpush.msra.mxu0 0.0
    %3667 = vmatpush.msra.mxu0 0.0
    %3668 = vmatpush.msra.mxu0 0.0
    %3669 = vmatpush.msra.mxu0 0.0
    %3670 = vmatpush.msra.mxu0 0.0
    %3671 = vmatpush.msra.mxu0 0.0
    %3672 = vmatpush.msra.mxu0 0.0
    %3673 = vmatpush.msra.mxu0 0.0
    %3674 = vmatpush.msra.mxu0 0.0
    %3675 = vmatpush.msra.mxu0 0.0
    %3676 = vmatpush.msra.mxu0 0.0
    %3677 = vmatpush.msra.mxu0 %v2533
    %3678 = vmatpush.msra.mxu0 %v2532
    %3679 = vmatmul.f32.gmra.mxu0 %v3661
    %v3680 = vpop.f32.mrf.mxu0
    %v3681 = vadd.f32 0.0, %v3680
    %3682 = vdwg.mxu0
    %3683 = vrot.lane.b32.xlu0 %v3365, 76
    %v3684 = vpop.permute.xlu0 %3683
    %v3685 = vsel %vm2555, %v3684, 0
    %3687 = vmatpush.msra.mxu0 0.0
    %3688 = vmatpush.msra.mxu0 0.0
    %3689 = vmatpush.msra.mxu0 0.0
    %3690 = vmatpush.msra.mxu0 0.0
    %3691 = vmatpush.msra.mxu0 0.0
    %3692 = vmatpush.msra.mxu0 0.0
    %3693 = vmatpush.msra.mxu0 0.0
    %3694 = vmatpush.msra.mxu0 0.0
    %3695 = vmatpush.msra.mxu0 0.0
    %3696 = vmatpush.msra.mxu0 0.0
    %3697 = vmatpush.msra.mxu0 0.0
    %3698 = vmatpush.msra.mxu0 0.0
    %3699 = vmatpush.msra.mxu0 0.0
    %3700 = vmatpush.msra.mxu0 0.0
    %3701 = vmatpush.msra.mxu0 %v2525
    %3702 = vmatpush.msra.mxu0 %v2524
    %3703 = vmatmul.f32.gmra.mxu0 %v3685
    %v3704 = vpop.f32.mrf.mxu0
    %v3705 = vadd.f32 %v3681, %v3704
    %3706 = vdwg.mxu0
    %3707 = vst.msk [vmem:[#allocation7 + $0xa] sm:$0x3] %vm2646, %v3657
    %3709 = vrot.lane.b32.xlu0 %v3705, 32
    %v3710 = vpop.permute.xlu0 %3709
    %3712 = vst.msk [vmem:[#allocation7 + $0xa] sm:$0x3] %vm2652, %v3710
    %3713 = vrot.lane.b32.xlu0 %v3281, 58
    %v3714 = vpop.permute.xlu0 %3713
    %v3715 = vsel %vm2555, %v3714, 0
    %3717 = vmatpush.msra.mxu0 0.0
    %3718 = vmatpush.msra.mxu0 0.0
    %3719 = vmatpush.msra.mxu0 0.0
    %3720 = vmatpush.msra.mxu0 0.0
    %3721 = vmatpush.msra.mxu0 0.0
    %3722 = vmatpush.msra.mxu0 0.0
    %3723 = vmatpush.msra.mxu0 0.0
    %3724 = vmatpush.msra.mxu0 0.0
    %3725 = vmatpush.msra.mxu0 0.0
    %3726 = vmatpush.msra.mxu0 0.0
    %3727 = vmatpush.msra.mxu0 0.0
    %3728 = vmatpush.msra.mxu0 0.0
    %3729 = vmatpush.msra.mxu0 0.0
    %3730 = vmatpush.msra.mxu0 0.0
    %3731 = vmatpush.msra.mxu0 %v2533
    %3732 = vmatpush.msra.mxu0 %v2532
    %3733 = vmatmul.f32.gmra.mxu0 %v3715
    %v3734 = vpop.f32.mrf.mxu0
    %v3735 = vadd.f32 0.0, %v3734
    %3736 = vdwg.mxu0
    %3737 = vrot.lane.b32.xlu0 %v2551, 58
    %v3738 = vpop.permute.xlu0 %3737
    %v3739 = vsel %vm2555, %v3738, 0
    %3741 = vmatpush.msra.mxu0 0.0
    %3742 = vmatpush.msra.mxu0 0.0
    %3743 = vmatpush.msra.mxu0 0.0
    %3744 = vmatpush.msra.mxu0 0.0
    %3745 = vmatpush.msra.mxu0 0.0
    %3746 = vmatpush.msra.mxu0 0.0
    %3747 = vmatpush.msra.mxu0 0.0
    %3748 = vmatpush.msra.mxu0 0.0
    %3749 = vmatpush.msra.mxu0 0.0
    %3750 = vmatpush.msra.mxu0 0.0
    %3751 = vmatpush.msra.mxu0 0.0
    %3752 = vmatpush.msra.mxu0 0.0
    %3753 = vmatpush.msra.mxu0 0.0
    %3754 = vmatpush.msra.mxu0 0.0
    %3755 = vmatpush.msra.mxu0 %v2525
    %3756 = vmatpush.msra.mxu0 %v2524
    %3757 = vmatmul.f32.gmra.mxu0 %v3739
    %v3758 = vpop.f32.mrf.mxu0
    %v3759 = vadd.f32 %v3735, %v3758
    %3760 = vdwg.mxu0
    %3761 = vrot.lane.b32.xlu0 %v3337, 58
    %v3762 = vpop.permute.xlu0 %3761
    %v3763 = vsel %vm2555, %v3762, 0
    %3765 = vmatpush.msra.mxu0 0.0
    %3766 = vmatpush.msra.mxu0 0.0
    %3767 = vmatpush.msra.mxu0 0.0
    %3768 = vmatpush.msra.mxu0 0.0
    %3769 = vmatpush.msra.mxu0 0.0
    %3770 = vmatpush.msra.mxu0 0.0
    %3771 = vmatpush.msra.mxu0 0.0
    %3772 = vmatpush.msra.mxu0 0.0
    %3773 = vmatpush.msra.mxu0 0.0
    %3774 = vmatpush.msra.mxu0 0.0
    %3775 = vmatpush.msra.mxu0 0.0
    %3776 = vmatpush.msra.mxu0 0.0
    %3777 = vmatpush.msra.mxu0 0.0
    %3778 = vmatpush.msra.mxu0 0.0
    %3779 = vmatpush.msra.mxu0 %v2533
    %3780 = vmatpush.msra.mxu0 %v2532
    %3781 = vmatmul.f32.gmra.mxu0 %v3763
    %v3782 = vpop.f32.mrf.mxu0
    %v3783 = vadd.f32 0.0, %v3782
    %3784 = vdwg.mxu0
    %3785 = vrot.lane.b32.xlu0 %v3365, 58
    %v3786 = vpop.permute.xlu0 %3785
    %v3787 = vsel %vm2555, %v3786, 0
    %3789 = vmatpush.msra.mxu0 0.0
    %3790 = vmatpush.msra.mxu0 0.0
    %3791 = vmatpush.msra.mxu0 0.0
    %3792 = vmatpush.msra.mxu0 0.0
    %3793 = vmatpush.msra.mxu0 0.0
    %3794 = vmatpush.msra.mxu0 0.0
    %3795 = vmatpush.msra.mxu0 0.0
    %3796 = vmatpush.msra.mxu0 0.0
    %3797 = vmatpush.msra.mxu0 0.0
    %3798 = vmatpush.msra.mxu0 0.0
    %3799 = vmatpush.msra.mxu0 0.0
    %3800 = vmatpush.msra.mxu0 0.0
    %3801 = vmatpush.msra.mxu0 0.0
    %3802 = vmatpush.msra.mxu0 0.0
    %3803 = vmatpush.msra.mxu0 %v2525
    %3804 = vmatpush.msra.mxu0 %v2524
    %3805 = vmatmul.f32.gmra.mxu0 %v3787
    %v3806 = vpop.f32.mrf.mxu0
    %v3807 = vadd.f32 %v3783, %v3806
    %3808 = vdwg.mxu0
    %3810 = vrot.lane.b32.xlu0 %v3759, 64
    %v3811 = vpop.permute.xlu0 %3810
    %3813 = vst.msk [vmem:[#allocation7 + $0xa] sm:$0x3] %vm2754, %v3811
    %3815 = vrot.lane.b32.xlu0 %v3807, 96
    %v3816 = vpop.permute.xlu0 %3815
    %3818 = vst.msk [vmem:[#allocation7 + $0xa] sm:$0x3] %vm2760, %v3816
    %3819 = vrot.lane.b32.xlu0 %v3281, 40
    %v3820 = vpop.permute.xlu0 %3819
    %v3821 = vsel %vm2555, %v3820, 0
    %3823 = vmatpush.msra.mxu0 0.0
    %3824 = vmatpush.msra.mxu0 0.0
    %3825 = vmatpush.msra.mxu0 0.0
    %3826 = vmatpush.msra.mxu0 0.0
    %3827 = vmatpush.msra.mxu0 0.0
    %3828 = vmatpush.msra.mxu0 0.0
    %3829 = vmatpush.msra.mxu0 0.0
    %3830 = vmatpush.msra.mxu0 0.0
    %3831 = vmatpush.msra.mxu0 0.0
    %3832 = vmatpush.msra.mxu0 0.0
    %3833 = vmatpush.msra.mxu0 0.0
    %3834 = vmatpush.msra.mxu0 0.0
    %3835 = vmatpush.msra.mxu0 0.0
    %3836 = vmatpush.msra.mxu0 0.0
    %3837 = vmatpush.msra.mxu0 %v2533
    %3838 = vmatpush.msra.mxu0 %v2532
    %3839 = vmatmul.f32.gmra.mxu0 %v3821
    %v3840 = vpop.f32.mrf.mxu0
    %v3841 = vadd.f32 0.0, %v3840
    %3842 = vdwg.mxu0
    %3843 = vrot.lane.b32.xlu0 %v2551, 40
    %v3844 = vpop.permute.xlu0 %3843
    %v3845 = vsel %vm2555, %v3844, 0
    %3847 = vmatpush.msra.mxu0 0.0
    %3848 = vmatpush.msra.mxu0 0.0
    %3849 = vmatpush.msra.mxu0 0.0
    %3850 = vmatpush.msra.mxu0 0.0
    %3851 = vmatpush.msra.mxu0 0.0
    %3852 = vmatpush.msra.mxu0 0.0
    %3853 = vmatpush.msra.mxu0 0.0
    %3854 = vmatpush.msra.mxu0 0.0
    %3855 = vmatpush.msra.mxu0 0.0
    %3856 = vmatpush.msra.mxu0 0.0
    %3857 = vmatpush.msra.mxu0 0.0
    %3858 = vmatpush.msra.mxu0 0.0
    %3859 = vmatpush.msra.mxu0 0.0
    %3860 = vmatpush.msra.mxu0 0.0
    %3861 = vmatpush.msra.mxu0 %v2525
    %3862 = vmatpush.msra.mxu0 %v2524
    %3863 = vmatmul.f32.gmra.mxu0 %v3845
    %v3864 = vpop.f32.mrf.mxu0
    %v3865 = vadd.f32 %v3841, %v3864
    %3866 = vdwg.mxu0
    %3867 = vrot.lane.b32.xlu0 %v3337, 40
    %v3868 = vpop.permute.xlu0 %3867
    %v3869 = vsel %vm2555, %v3868, 0
    %3871 = vmatpush.msra.mxu0 0.0
    %3872 = vmatpush.msra.mxu0 0.0
    %3873 = vmatpush.msra.mxu0 0.0
    %3874 = vmatpush.msra.mxu0 0.0
    %3875 = vmatpush.msra.mxu0 0.0
    %3876 = vmatpush.msra.mxu0 0.0
    %3877 = vmatpush.msra.mxu0 0.0
    %3878 = vmatpush.msra.mxu0 0.0
    %3879 = vmatpush.msra.mxu0 0.0
    %3880 = vmatpush.msra.mxu0 0.0
    %3881 = vmatpush.msra.mxu0 0.0
    %3882 = vmatpush.msra.mxu0 0.0
    %3883 = vmatpush.msra.mxu0 0.0
    %3884 = vmatpush.msra.mxu0 0.0
    %3885 = vmatpush.msra.mxu0 %v2533
    %3886 = vmatpush.msra.mxu0 %v2532
    %3887 = vmatmul.f32.gmra.mxu0 %v3869
    %v3888 = vpop.f32.mrf.mxu0
    %v3889 = vadd.f32 0.0, %v3888
    %3890 = vdwg.mxu0
    %3891 = vrot.lane.b32.xlu0 %v3365, 40
    %v3892 = vpop.permute.xlu0 %3891
    %v3893 = vsel %vm2555, %v3892, 0
    %3895 = vmatpush.msra.mxu0 0.0
    %3896 = vmatpush.msra.mxu0 0.0
    %3897 = vmatpush.msra.mxu0 0.0
    %3898 = vmatpush.msra.mxu0 0.0
    %3899 = vmatpush.msra.mxu0 0.0
    %3900 = vmatpush.msra.mxu0 0.0
    %3901 = vmatpush.msra.mxu0 0.0
    %3902 = vmatpush.msra.mxu0 0.0
    %3903 = vmatpush.msra.mxu0 0.0
    %3904 = vmatpush.msra.mxu0 0.0
    %3905 = vmatpush.msra.mxu0 0.0
    %3906 = vmatpush.msra.mxu0 0.0
    %3907 = vmatpush.msra.mxu0 0.0
    %3908 = vmatpush.msra.mxu0 0.0
    %3909 = vmatpush.msra.mxu0 %v2525
    %3910 = vmatpush.msra.mxu0 %v2524
    %3911 = vmatmul.f32.gmra.mxu0 %v3893
    %v3912 = vpop.f32.mrf.mxu0
    %v3913 = vadd.f32 %v3889, %v3912
    %3914 = vdwg.mxu0
    %3915 = vst.msk [vmem:[#allocation7 + $0xc] sm:$0x3] %vm2646, %v3865
    %3917 = vrot.lane.b32.xlu0 %v3913, 32
    %v3918 = vpop.permute.xlu0 %3917
    %3920 = vst.msk [vmem:[#allocation7 + $0xc] sm:$0x3] %vm2652, %v3918
    %3921 = vrot.lane.b32.xlu0 %v3281, 22
    %v3922 = vpop.permute.xlu0 %3921
    %v3923 = vsel %vm2555, %v3922, 0
    %3925 = vmatpush.msra.mxu0 0.0
    %3926 = vmatpush.msra.mxu0 0.0
    %3927 = vmatpush.msra.mxu0 0.0
    %3928 = vmatpush.msra.mxu0 0.0
    %3929 = vmatpush.msra.mxu0 0.0
    %3930 = vmatpush.msra.mxu0 0.0
    %3931 = vmatpush.msra.mxu0 0.0
    %3932 = vmatpush.msra.mxu0 0.0
    %3933 = vmatpush.msra.mxu0 0.0
    %3934 = vmatpush.msra.mxu0 0.0
    %3935 = vmatpush.msra.mxu0 0.0
    %3936 = vmatpush.msra.mxu0 0.0
    %3937 = vmatpush.msra.mxu0 0.0
    %3938 = vmatpush.msra.mxu0 0.0
    %3939 = vmatpush.msra.mxu0 %v2533
    %3940 = vmatpush.msra.mxu0 %v2532
    %3941 = vmatmul.f32.gmra.mxu0 %v3923
    %v3942 = vpop.f32.mrf.mxu0
    %v3943 = vadd.f32 0.0, %v3942
    %3944 = vdwg.mxu0
    %3945 = vrot.lane.b32.xlu0 %v2551, 22
    %v3946 = vpop.permute.xlu0 %3945
    %v3947 = vsel %vm2555, %v3946, 0
    %3949 = vmatpush.msra.mxu0 0.0
    %3950 = vmatpush.msra.mxu0 0.0
    %3951 = vmatpush.msra.mxu0 0.0
    %3952 = vmatpush.msra.mxu0 0.0
    %3953 = vmatpush.msra.mxu0 0.0
    %3954 = vmatpush.msra.mxu0 0.0
    %3955 = vmatpush.msra.mxu0 0.0
    %3956 = vmatpush.msra.mxu0 0.0
    %3957 = vmatpush.msra.mxu0 0.0
    %3958 = vmatpush.msra.mxu0 0.0
    %3959 = vmatpush.msra.mxu0 0.0
    %3960 = vmatpush.msra.mxu0 0.0
    %3961 = vmatpush.msra.mxu0 0.0
    %3962 = vmatpush.msra.mxu0 0.0
    %3963 = vmatpush.msra.mxu0 %v2525
    %3964 = vmatpush.msra.mxu0 %v2524
    %3965 = vmatmul.f32.gmra.mxu0 %v3947
    %v3966 = vpop.f32.mrf.mxu0
    %v3967 = vadd.f32 %v3943, %v3966
    %3968 = vdwg.mxu0
    %3969 = vrot.lane.b32.xlu0 %v3337, 22
    %v3970 = vpop.permute.xlu0 %3969
    %v3971 = vsel %vm2555, %v3970, 0
    %3973 = vmatpush.msra.mxu0 0.0
    %3974 = vmatpush.msra.mxu0 0.0
    %3975 = vmatpush.msra.mxu0 0.0
    %3976 = vmatpush.msra.mxu0 0.0
    %3977 = vmatpush.msra.mxu0 0.0
    %3978 = vmatpush.msra.mxu0 0.0
    %3979 = vmatpush.msra.mxu0 0.0
    %3980 = vmatpush.msra.mxu0 0.0
    %3981 = vmatpush.msra.mxu0 0.0
    %3982 = vmatpush.msra.mxu0 0.0
    %3983 = vmatpush.msra.mxu0 0.0
    %3984 = vmatpush.msra.mxu0 0.0
    %3985 = vmatpush.msra.mxu0 0.0
    %3986 = vmatpush.msra.mxu0 0.0
    %3987 = vmatpush.msra.mxu0 %v2533
    %3988 = vmatpush.msra.mxu0 %v2532
    %3989 = vmatmul.f32.gmra.mxu0 %v3971
    %v3990 = vpop.f32.mrf.mxu0
    %v3991 = vadd.f32 0.0, %v3990
    %3992 = vdwg.mxu0
    %3993 = vrot.lane.b32.xlu0 %v3365, 22
    %v3994 = vpop.permute.xlu0 %3993
    %v3995 = vsel %vm2555, %v3994, 0
    %3997 = vmatpush.msra.mxu0 0.0
    %3998 = vmatpush.msra.mxu0 0.0
    %3999 = vmatpush.msra.mxu0 0.0
    %4000 = vmatpush.msra.mxu0 0.0
    %4001 = vmatpush.msra.mxu0 0.0
    %4002 = vmatpush.msra.mxu0 0.0
    %4003 = vmatpush.msra.mxu0 0.0
    %4004 = vmatpush.msra.mxu0 0.0
    %4005 = vmatpush.msra.mxu0 0.0
    %4006 = vmatpush.msra.mxu0 0.0
    %4007 = vmatpush.msra.mxu0 0.0
    %4008 = vmatpush.msra.mxu0 0.0
    %4009 = vmatpush.msra.mxu0 0.0
    %4010 = vmatpush.msra.mxu0 0.0
    %4011 = vmatpush.msra.mxu0 %v2525
    %4012 = vmatpush.msra.mxu0 %v2524
    %4013 = vmatmul.f32.gmra.mxu0 %v3995
    %v4014 = vpop.f32.mrf.mxu0
    %v4015 = vadd.f32 %v3991, %v4014
    %4016 = vdwg.mxu0
    %4018 = vrot.lane.b32.xlu0 %v3967, 64
    %v4019 = vpop.permute.xlu0 %4018
    %4021 = vst.msk [vmem:[#allocation7 + $0xc] sm:$0x3] %vm2754, %v4019
    %4023 = vrot.lane.b32.xlu0 %v4015, 96
    %v4024 = vpop.permute.xlu0 %4023
    %4026 = vst.msk [vmem:[#allocation7 + $0xc] sm:$0x3] %vm2760, %v4024
    %v4028 = vrot.slane %v2552, 2
    %4029 = vrot.lane.b32.xlu0 %v3281, 4
    %v4030 = vpop.permute.xlu0 %4029
    %4031 = vrot.lane.b32.xlu0 %v4028, 4
    %v4032 = vpop.permute.xlu0 %4031
    %v4033 = vsel %vm525, %v4030, %v4032
    %v4034 = vsel %vm2555, %v4033, 0
    %4036 = vmatpush.msra.mxu0 0.0
    %4037 = vmatpush.msra.mxu0 0.0
    %4038 = vmatpush.msra.mxu0 0.0
    %4039 = vmatpush.msra.mxu0 0.0
    %4040 = vmatpush.msra.mxu0 0.0
    %4041 = vmatpush.msra.mxu0 0.0
    %4042 = vmatpush.msra.mxu0 0.0
    %4043 = vmatpush.msra.mxu0 0.0
    %4044 = vmatpush.msra.mxu0 0.0
    %4045 = vmatpush.msra.mxu0 0.0
    %4046 = vmatpush.msra.mxu0 0.0
    %4047 = vmatpush.msra.mxu0 0.0
    %4048 = vmatpush.msra.mxu0 0.0
    %4049 = vmatpush.msra.mxu0 0.0
    %4050 = vmatpush.msra.mxu0 %v2533
    %4051 = vmatpush.msra.mxu0 %v2532
    %4052 = vmatmul.f32.gmra.mxu0 %v4034
    %v4053 = vpop.f32.mrf.mxu0
    %v4054 = vadd.f32 0.0, %v4053
    %4055 = vdwg.mxu0
    %4056 = vrot.lane.b32.xlu0 %v2551, 4
    %v4057 = vpop.permute.xlu0 %4056
    %4058 = vrot.lane.b32.xlu0 %v2552, 4
    %v4059 = vpop.permute.xlu0 %4058
    %v4060 = vsel %vm525, %v4057, %v4059
    %v4061 = vsel %vm2555, %v4060, 0
    %4063 = vmatpush.msra.mxu0 0.0
    %4064 = vmatpush.msra.mxu0 0.0
    %4065 = vmatpush.msra.mxu0 0.0
    %4066 = vmatpush.msra.mxu0 0.0
    %4067 = vmatpush.msra.mxu0 0.0
    %4068 = vmatpush.msra.mxu0 0.0
    %4069 = vmatpush.msra.mxu0 0.0
    %4070 = vmatpush.msra.mxu0 0.0
    %4071 = vmatpush.msra.mxu0 0.0
    %4072 = vmatpush.msra.mxu0 0.0
    %4073 = vmatpush.msra.mxu0 0.0
    %4074 = vmatpush.msra.mxu0 0.0
    %4075 = vmatpush.msra.mxu0 0.0
    %4076 = vmatpush.msra.mxu0 0.0
    %4077 = vmatpush.msra.mxu0 %v2525
    %4078 = vmatpush.msra.mxu0 %v2524
    %4079 = vmatmul.f32.gmra.mxu0 %v4061
    %v4080 = vpop.f32.mrf.mxu0
    %v4081 = vadd.f32 %v4054, %v4080
    %4082 = vdwg.mxu0
    %v4083 = vrot.slane %v2552, 6
    %4084 = vrot.lane.b32.xlu0 %v3337, 4
    %v4085 = vpop.permute.xlu0 %4084
    %4086 = vrot.lane.b32.xlu0 %v4083, 4
    %v4087 = vpop.permute.xlu0 %4086
    %v4088 = vsel %vm525, %v4085, %v4087
    %v4089 = vsel %vm2555, %v4088, 0
    %4091 = vmatpush.msra.mxu0 0.0
    %4092 = vmatpush.msra.mxu0 0.0
    %4093 = vmatpush.msra.mxu0 0.0
    %4094 = vmatpush.msra.mxu0 0.0
    %4095 = vmatpush.msra.mxu0 0.0
    %4096 = vmatpush.msra.mxu0 0.0
    %4097 = vmatpush.msra.mxu0 0.0
    %4098 = vmatpush.msra.mxu0 0.0
    %4099 = vmatpush.msra.mxu0 0.0
    %4100 = vmatpush.msra.mxu0 0.0
    %4101 = vmatpush.msra.mxu0 0.0
    %4102 = vmatpush.msra.mxu0 0.0
    %4103 = vmatpush.msra.mxu0 0.0
    %4104 = vmatpush.msra.mxu0 0.0
    %4105 = vmatpush.msra.mxu0 %v2533
    %4106 = vmatpush.msra.mxu0 %v2532
    %4107 = vmatmul.f32.gmra.mxu0 %v4089
    %v4108 = vpop.f32.mrf.mxu0
    %v4109 = vadd.f32 0.0, %v4108
    %4110 = vdwg.mxu0
    %v4111 = vrot.slane %v2552, 4
    %4112 = vrot.lane.b32.xlu0 %v3365, 4
    %v4113 = vpop.permute.xlu0 %4112
    %4114 = vrot.lane.b32.xlu0 %v4111, 4
    %v4115 = vpop.permute.xlu0 %4114
    %v4116 = vsel %vm525, %v4113, %v4115
    %v4117 = vsel %vm2555, %v4116, 0
    %4119 = vmatpush.msra.mxu0 0.0
    %4120 = vmatpush.msra.mxu0 0.0
    %4121 = vmatpush.msra.mxu0 0.0
    %4122 = vmatpush.msra.mxu0 0.0
    %4123 = vmatpush.msra.mxu0 0.0
    %4124 = vmatpush.msra.mxu0 0.0
    %4125 = vmatpush.msra.mxu0 0.0
    %4126 = vmatpush.msra.mxu0 0.0
    %4127 = vmatpush.msra.mxu0 0.0
    %4128 = vmatpush.msra.mxu0 0.0
    %4129 = vmatpush.msra.mxu0 0.0
    %4130 = vmatpush.msra.mxu0 0.0
    %4131 = vmatpush.msra.mxu0 0.0
    %4132 = vmatpush.msra.mxu0 0.0
    %4133 = vmatpush.msra.mxu0 %v2525
    %4134 = vmatpush.msra.mxu0 %v2524
    %4135 = vmatmul.f32.gmra.mxu0 %v4117
    %v4136 = vpop.f32.mrf.mxu0
    %v4137 = vadd.f32 %v4109, %v4136
    %4138 = vdwg.mxu0
    %4139 = vst.msk [vmem:[#allocation7 + $0xe] sm:$0x3] %vm2646, %v4081
    %4141 = vrot.lane.b32.xlu0 %v4137, 32
    %v4142 = vpop.permute.xlu0 %4141
    %4144 = vst.msk [vmem:[#allocation7 + $0xe] sm:$0x3] %vm2652, %v4142
    %4145 = vrot.lane.b32.xlu0 %v4028, 114
    %v4146 = vpop.permute.xlu0 %4145
    %v4147 = vsel %vm2555, %v4146, 0
    %4149 = vmatpush.msra.mxu0 0.0
    %4150 = vmatpush.msra.mxu0 0.0
    %4151 = vmatpush.msra.mxu0 0.0
    %4152 = vmatpush.msra.mxu0 0.0
    %4153 = vmatpush.msra.mxu0 0.0
    %4154 = vmatpush.msra.mxu0 0.0
    %4155 = vmatpush.msra.mxu0 0.0
    %4156 = vmatpush.msra.mxu0 0.0
    %4157 = vmatpush.msra.mxu0 0.0
    %4158 = vmatpush.msra.mxu0 0.0
    %4159 = vmatpush.msra.mxu0 0.0
    %4160 = vmatpush.msra.mxu0 0.0
    %4161 = vmatpush.msra.mxu0 0.0
    %4162 = vmatpush.msra.mxu0 0.0
    %4163 = vmatpush.msra.mxu0 %v2533
    %4164 = vmatpush.msra.mxu0 %v2532
    %4165 = vmatmul.f32.gmra.mxu0 %v4147
    %v4166 = vpop.f32.mrf.mxu0
    %v4167 = vadd.f32 0.0, %v4166
    %4168 = vdwg.mxu0
    %4169 = vrot.lane.b32.xlu0 %v2552, 114
    %v4170 = vpop.permute.xlu0 %4169
    %v4171 = vsel %vm2555, %v4170, 0
    %4173 = vmatpush.msra.mxu0 0.0
    %4174 = vmatpush.msra.mxu0 0.0
    %4175 = vmatpush.msra.mxu0 0.0
    %4176 = vmatpush.msra.mxu0 0.0
    %4177 = vmatpush.msra.mxu0 0.0
    %4178 = vmatpush.msra.mxu0 0.0
    %4179 = vmatpush.msra.mxu0 0.0
    %4180 = vmatpush.msra.mxu0 0.0
    %4181 = vmatpush.msra.mxu0 0.0
    %4182 = vmatpush.msra.mxu0 0.0
    %4183 = vmatpush.msra.mxu0 0.0
    %4184 = vmatpush.msra.mxu0 0.0
    %4185 = vmatpush.msra.mxu0 0.0
    %4186 = vmatpush.msra.mxu0 0.0
    %4187 = vmatpush.msra.mxu0 %v2525
    %4188 = vmatpush.msra.mxu0 %v2524
    %4189 = vmatmul.f32.gmra.mxu0 %v4171
    %v4190 = vpop.f32.mrf.mxu0
    %v4191 = vadd.f32 %v4167, %v4190
    %4192 = vdwg.mxu0
    %4193 = vrot.lane.b32.xlu0 %v4083, 114
    %v4194 = vpop.permute.xlu0 %4193
    %v4195 = vsel %vm2555, %v4194, 0
    %4197 = vmatpush.msra.mxu0 0.0
    %4198 = vmatpush.msra.mxu0 0.0
    %4199 = vmatpush.msra.mxu0 0.0
    %4200 = vmatpush.msra.mxu0 0.0
    %4201 = vmatpush.msra.mxu0 0.0
    %4202 = vmatpush.msra.mxu0 0.0
    %4203 = vmatpush.msra.mxu0 0.0
    %4204 = vmatpush.msra.mxu0 0.0
    %4205 = vmatpush.msra.mxu0 0.0
    %4206 = vmatpush.msra.mxu0 0.0
    %4207 = vmatpush.msra.mxu0 0.0
    %4208 = vmatpush.msra.mxu0 0.0
    %4209 = vmatpush.msra.mxu0 0.0
    %4210 = vmatpush.msra.mxu0 0.0
    %4211 = vmatpush.msra.mxu0 %v2533
    %4212 = vmatpush.msra.mxu0 %v2532
    %4213 = vmatmul.f32.gmra.mxu0 %v4195
    %v4214 = vpop.f32.mrf.mxu0
    %v4215 = vadd.f32 0.0, %v4214
    %4216 = vdwg.mxu0
    %4217 = vrot.lane.b32.xlu0 %v4111, 114
    %v4218 = vpop.permute.xlu0 %4217
    %v4219 = vsel %vm2555, %v4218, 0
    %4221 = vmatpush.msra.mxu0 0.0
    %4222 = vmatpush.msra.mxu0 0.0
    %4223 = vmatpush.msra.mxu0 0.0
    %4224 = vmatpush.msra.mxu0 0.0
    %4225 = vmatpush.msra.mxu0 0.0
    %4226 = vmatpush.msra.mxu0 0.0
    %4227 = vmatpush.msra.mxu0 0.0
    %4228 = vmatpush.msra.mxu0 0.0
    %4229 = vmatpush.msra.mxu0 0.0
    %4230 = vmatpush.msra.mxu0 0.0
    %4231 = vmatpush.msra.mxu0 0.0
    %4232 = vmatpush.msra.mxu0 0.0
    %4233 = vmatpush.msra.mxu0 0.0
    %4234 = vmatpush.msra.mxu0 0.0
    %4235 = vmatpush.msra.mxu0 %v2525
    %4236 = vmatpush.msra.mxu0 %v2524
    %4237 = vmatmul.f32.gmra.mxu0 %v4219
    %v4238 = vpop.f32.mrf.mxu0
    %v4239 = vadd.f32 %v4215, %v4238
    %4240 = vdwg.mxu0
    %4242 = vrot.lane.b32.xlu0 %v4191, 64
    %v4243 = vpop.permute.xlu0 %4242
    %4245 = vst.msk [vmem:[#allocation7 + $0xe] sm:$0x3] %vm2754, %v4243
    %4247 = vrot.lane.b32.xlu0 %v4239, 96
    %v4248 = vpop.permute.xlu0 %4247
    %4250 = vst.msk [vmem:[#allocation7 + $0xe] sm:$0x3] %vm2760, %v4248
    %v4251 = vld [vmem:[%s2472] sm:$0xff]
    %v4252 = vld [vmem:[%s2472 + $0x8] sm:$0xff]
    %v4253 = vld [vmem:[%s2472 + $0x10] sm:$0xff]
    %v4254 = vmul.f32 %v4251, %v2540
    %v4255 = vmul.f32 %v4252, %v2540
    %v4256 = vmul.f32 %v4253, %v2540
    %v4257 = vadd.f32 %v4254, %v2548
    %v4258 = vadd.f32 %v4255, %v2548
    %v4259 = vadd.f32 %v4256, %v2548
    %v4261 = vrot.slane %v4257, 2
    %v4262 = vsel %vm2555, %v4261, 0
    %4264 = vmatpush.msra.mxu0 0.0
    %4265 = vmatpush.msra.mxu0 0.0
    %4266 = vmatpush.msra.mxu0 0.0
    %4267 = vmatpush.msra.mxu0 0.0
    %4268 = vmatpush.msra.mxu0 0.0
    %4269 = vmatpush.msra.mxu0 0.0
    %4270 = vmatpush.msra.mxu0 0.0
    %4271 = vmatpush.msra.mxu0 0.0
    %4272 = vmatpush.msra.mxu0 0.0
    %4273 = vmatpush.msra.mxu0 0.0
    %4274 = vmatpush.msra.mxu0 0.0
    %4275 = vmatpush.msra.mxu0 0.0
    %4276 = vmatpush.msra.mxu0 0.0
    %4277 = vmatpush.msra.mxu0 0.0
    %4278 = vmatpush.msra.mxu0 %v2533
    %4279 = vmatpush.msra.mxu0 %v2532
    %4280 = vmatmul.f32.gmra.mxu0 %v4262
    %v4281 = vpop.f32.mrf.mxu0
    %v4282 = vadd.f32 0.0, %v4281
    %4283 = vdwg.mxu0
    %v4284 = vsel %vm2555, %v4257, 0
    %4286 = vmatpush.msra.mxu0 0.0
    %4287 = vmatpush.msra.mxu0 0.0
    %4288 = vmatpush.msra.mxu0 0.0
    %4289 = vmatpush.msra.mxu0 0.0
    %4290 = vmatpush.msra.mxu0 0.0
    %4291 = vmatpush.msra.mxu0 0.0
    %4292 = vmatpush.msra.mxu0 0.0
    %4293 = vmatpush.msra.mxu0 0.0
    %4294 = vmatpush.msra.mxu0 0.0
    %4295 = vmatpush.msra.mxu0 0.0
    %4296 = vmatpush.msra.mxu0 0.0
    %4297 = vmatpush.msra.mxu0 0.0
    %4298 = vmatpush.msra.mxu0 0.0
    %4299 = vmatpush.msra.mxu0 0.0
    %4300 = vmatpush.msra.mxu0 %v2525
    %4301 = vmatpush.msra.mxu0 %v2524
    %4302 = vmatmul.f32.gmra.mxu0 %v4284
    %v4303 = vpop.f32.mrf.mxu0
    %v4304 = vadd.f32 %v4282, %v4303
    %4305 = vdwg.mxu0
    %v4306 = vrot.slane %v4257, 6
    %v4307 = vsel %vm2555, %v4306, 0
    %4309 = vmatpush.msra.mxu0 0.0
    %4310 = vmatpush.msra.mxu0 0.0
    %4311 = vmatpush.msra.mxu0 0.0
    %4312 = vmatpush.msra.mxu0 0.0
    %4313 = vmatpush.msra.mxu0 0.0
    %4314 = vmatpush.msra.mxu0 0.0
    %4315 = vmatpush.msra.mxu0 0.0
    %4316 = vmatpush.msra.mxu0 0.0
    %4317 = vmatpush.msra.mxu0 0.0
    %4318 = vmatpush.msra.mxu0 0.0
    %4319 = vmatpush.msra.mxu0 0.0
    %4320 = vmatpush.msra.mxu0 0.0
    %4321 = vmatpush.msra.mxu0 0.0
    %4322 = vmatpush.msra.mxu0 0.0
    %4323 = vmatpush.msra.mxu0 %v2533
    %4324 = vmatpush.msra.mxu0 %v2532
    %4325 = vmatmul.f32.gmra.mxu0 %v4307
    %v4326 = vpop.f32.mrf.mxu0
    %v4327 = vadd.f32 0.0, %v4326
    %4328 = vdwg.mxu0
    %v4329 = vrot.slane %v4257, 4
    %v4330 = vsel %vm2555, %v4329, 0
    %4332 = vmatpush.msra.mxu0 0.0
    %4333 = vmatpush.msra.mxu0 0.0
    %4334 = vmatpush.msra.mxu0 0.0
    %4335 = vmatpush.msra.mxu0 0.0
    %4336 = vmatpush.msra.mxu0 0.0
    %4337 = vmatpush.msra.mxu0 0.0
    %4338 = vmatpush.msra.mxu0 0.0
    %4339 = vmatpush.msra.mxu0 0.0
    %4340 = vmatpush.msra.mxu0 0.0
    %4341 = vmatpush.msra.mxu0 0.0
    %4342 = vmatpush.msra.mxu0 0.0
    %4343 = vmatpush.msra.mxu0 0.0
    %4344 = vmatpush.msra.mxu0 0.0
    %4345 = vmatpush.msra.mxu0 0.0
    %4346 = vmatpush.msra.mxu0 %v2525
    %4347 = vmatpush.msra.mxu0 %v2524
    %4348 = vmatmul.f32.gmra.mxu0 %v4330
    %v4349 = vpop.f32.mrf.mxu0
    %v4350 = vadd.f32 %v4327, %v4349
    %4351 = vdwg.mxu0
    %s4352 = scalar_lea.vmem [#allocation7], 16
    %4353 = vst.msk [vmem:[%s4352] sm:$0x3] %vm2646, %v4304
    %4355 = vrot.lane.b32.xlu0 %v4350, 32
    %v4356 = vpop.permute.xlu0 %4355
    %4358 = vst.msk [vmem:[%s4352] sm:$0x3] %vm2652, %v4356
    %4359 = vrot.lane.b32.xlu0 %v4261, 110
    %v4360 = vpop.permute.xlu0 %4359
    %v4361 = vsel %vm2555, %v4360, 0
    %4363 = vmatpush.msra.mxu0 0.0
    %4364 = vmatpush.msra.mxu0 0.0
    %4365 = vmatpush.msra.mxu0 0.0
    %4366 = vmatpush.msra.mxu0 0.0
    %4367 = vmatpush.msra.mxu0 0.0
    %4368 = vmatpush.msra.mxu0 0.0
    %4369 = vmatpush.msra.mxu0 0.0
    %4370 = vmatpush.msra.mxu0 0.0
    %4371 = vmatpush.msra.mxu0 0.0
    %4372 = vmatpush.msra.mxu0 0.0
    %4373 = vmatpush.msra.mxu0 0.0
    %4374 = vmatpush.msra.mxu0 0.0
    %4375 = vmatpush.msra.mxu0 0.0
    %4376 = vmatpush.msra.mxu0 0.0
    %4377 = vmatpush.msra.mxu0 %v2533
    %4378 = vmatpush.msra.mxu0 %v2532
    %4379 = vmatmul.f32.gmra.mxu0 %v4361
    %v4380 = vpop.f32.mrf.mxu0
    %v4381 = vadd.f32 0.0, %v4380
    %4382 = vdwg.mxu0
    %4383 = vrot.lane.b32.xlu0 %v4257, 110
    %v4384 = vpop.permute.xlu0 %4383
    %v4385 = vsel %vm2555, %v4384, 0
    %4387 = vmatpush.msra.mxu0 0.0
    %4388 = vmatpush.msra.mxu0 0.0
    %4389 = vmatpush.msra.mxu0 0.0
    %4390 = vmatpush.msra.mxu0 0.0
    %4391 = vmatpush.msra.mxu0 0.0
    %4392 = vmatpush.msra.mxu0 0.0
    %4393 = vmatpush.msra.mxu0 0.0
    %4394 = vmatpush.msra.mxu0 0.0
    %4395 = vmatpush.msra.mxu0 0.0
    %4396 = vmatpush.msra.mxu0 0.0
    %4397 = vmatpush.msra.mxu0 0.0
    %4398 = vmatpush.msra.mxu0 0.0
    %4399 = vmatpush.msra.mxu0 0.0
    %4400 = vmatpush.msra.mxu0 0.0
    %4401 = vmatpush.msra.mxu0 %v2525
    %4402 = vmatpush.msra.mxu0 %v2524
    %4403 = vmatmul.f32.gmra.mxu0 %v4385
    %v4404 = vpop.f32.mrf.mxu0
    %v4405 = vadd.f32 %v4381, %v4404
    %4406 = vdwg.mxu0
    %4407 = vrot.lane.b32.xlu0 %v4306, 110
    %v4408 = vpop.permute.xlu0 %4407
    %v4409 = vsel %vm2555, %v4408, 0
    %4411 = vmatpush.msra.mxu0 0.0
    %4412 = vmatpush.msra.mxu0 0.0
    %4413 = vmatpush.msra.mxu0 0.0
    %4414 = vmatpush.msra.mxu0 0.0
    %4415 = vmatpush.msra.mxu0 0.0
    %4416 = vmatpush.msra.mxu0 0.0
    %4417 = vmatpush.msra.mxu0 0.0
    %4418 = vmatpush.msra.mxu0 0.0
    %4419 = vmatpush.msra.mxu0 0.0
    %4420 = vmatpush.msra.mxu0 0.0
    %4421 = vmatpush.msra.mxu0 0.0
    %4422 = vmatpush.msra.mxu0 0.0
    %4423 = vmatpush.msra.mxu0 0.0
    %4424 = vmatpush.msra.mxu0 0.0
    %4425 = vmatpush.msra.mxu0 %v2533
    %4426 = vmatpush.msra.mxu0 %v2532
    %4427 = vmatmul.f32.gmra.mxu0 %v4409
    %v4428 = vpop.f32.mrf.mxu0
    %v4429 = vadd.f32 0.0, %v4428
    %4430 = vdwg.mxu0
    %4431 = vrot.lane.b32.xlu0 %v4329, 110
    %v4432 = vpop.permute.xlu0 %4431
    %v4433 = vsel %vm2555, %v4432, 0
    %4435 = vmatpush.msra.mxu0 0.0
    %4436 = vmatpush.msra.mxu0 0.0
    %4437 = vmatpush.msra.mxu0 0.0
    %4438 = vmatpush.msra.mxu0 0.0
    %4439 = vmatpush.msra.mxu0 0.0
    %4440 = vmatpush.msra.mxu0 0.0
    %4441 = vmatpush.msra.mxu0 0.0
    %4442 = vmatpush.msra.mxu0 0.0
    %4443 = vmatpush.msra.mxu0 0.0
    %4444 = vmatpush.msra.mxu0 0.0
    %4445 = vmatpush.msra.mxu0 0.0
    %4446 = vmatpush.msra.mxu0 0.0
    %4447 = vmatpush.msra.mxu0 0.0
    %4448 = vmatpush.msra.mxu0 0.0
    %4449 = vmatpush.msra.mxu0 %v2525
    %4450 = vmatpush.msra.mxu0 %v2524
    %4451 = vmatmul.f32.gmra.mxu0 %v4433
    %v4452 = vpop.f32.mrf.mxu0
    %v4453 = vadd.f32 %v4429, %v4452
    %4454 = vdwg.mxu0
    %4456 = vrot.lane.b32.xlu0 %v4405, 64
    %v4457 = vpop.permute.xlu0 %4456
    %4459 = vst.msk [vmem:[%s4352] sm:$0x3] %vm2754, %v4457
    %4461 = vrot.lane.b32.xlu0 %v4453, 96
    %v4462 = vpop.permute.xlu0 %4461
    %4464 = vst.msk [vmem:[%s4352] sm:$0x3] %vm2760, %v4462
    %4465 = vrot.lane.b32.xlu0 %v4261, 92
    %v4466 = vpop.permute.xlu0 %4465
    %v4467 = vsel %vm2555, %v4466, 0
    %4469 = vmatpush.msra.mxu0 0.0
    %4470 = vmatpush.msra.mxu0 0.0
    %4471 = vmatpush.msra.mxu0 0.0
    %4472 = vmatpush.msra.mxu0 0.0
    %4473 = vmatpush.msra.mxu0 0.0
    %4474 = vmatpush.msra.mxu0 0.0
    %4475 = vmatpush.msra.mxu0 0.0
    %4476 = vmatpush.msra.mxu0 0.0
    %4477 = vmatpush.msra.mxu0 0.0
    %4478 = vmatpush.msra.mxu0 0.0
    %4479 = vmatpush.msra.mxu0 0.0
    %4480 = vmatpush.msra.mxu0 0.0
    %4481 = vmatpush.msra.mxu0 0.0
    %4482 = vmatpush.msra.mxu0 0.0
    %4483 = vmatpush.msra.mxu0 %v2533
    %4484 = vmatpush.msra.mxu0 %v2532
    %4485 = vmatmul.f32.gmra.mxu0 %v4467
    %v4486 = vpop.f32.mrf.mxu0
    %v4487 = vadd.f32 0.0, %v4486
    %4488 = vdwg.mxu0
    %4489 = vrot.lane.b32.xlu0 %v4257, 92
    %v4490 = vpop.permute.xlu0 %4489
    %v4491 = vsel %vm2555, %v4490, 0
    %4493 = vmatpush.msra.mxu0 0.0
    %4494 = vmatpush.msra.mxu0 0.0
    %4495 = vmatpush.msra.mxu0 0.0
    %4496 = vmatpush.msra.mxu0 0.0
    %4497 = vmatpush.msra.mxu0 0.0
    %4498 = vmatpush.msra.mxu0 0.0
    %4499 = vmatpush.msra.mxu0 0.0
    %4500 = vmatpush.msra.mxu0 0.0
    %4501 = vmatpush.msra.mxu0 0.0
    %4502 = vmatpush.msra.mxu0 0.0
    %4503 = vmatpush.msra.mxu0 0.0
    %4504 = vmatpush.msra.mxu0 0.0
    %4505 = vmatpush.msra.mxu0 0.0
    %4506 = vmatpush.msra.mxu0 0.0
    %4507 = vmatpush.msra.mxu0 %v2525
    %4508 = vmatpush.msra.mxu0 %v2524
    %4509 = vmatmul.f32.gmra.mxu0 %v4491
    %v4510 = vpop.f32.mrf.mxu0
    %v4511 = vadd.f32 %v4487, %v4510
    %4512 = vdwg.mxu0
    %4513 = vrot.lane.b32.xlu0 %v4306, 92
    %v4514 = vpop.permute.xlu0 %4513
    %v4515 = vsel %vm2555, %v4514, 0
    %4517 = vmatpush.msra.mxu0 0.0
    %4518 = vmatpush.msra.mxu0 0.0
    %4519 = vmatpush.msra.mxu0 0.0
    %4520 = vmatpush.msra.mxu0 0.0
    %4521 = vmatpush.msra.mxu0 0.0
    %4522 = vmatpush.msra.mxu0 0.0
    %4523 = vmatpush.msra.mxu0 0.0
    %4524 = vmatpush.msra.mxu0 0.0
    %4525 = vmatpush.msra.mxu0 0.0
    %4526 = vmatpush.msra.mxu0 0.0
    %4527 = vmatpush.msra.mxu0 0.0
    %4528 = vmatpush.msra.mxu0 0.0
    %4529 = vmatpush.msra.mxu0 0.0
    %4530 = vmatpush.msra.mxu0 0.0
    %4531 = vmatpush.msra.mxu0 %v2533
    %4532 = vmatpush.msra.mxu0 %v2532
    %4533 = vmatmul.f32.gmra.mxu0 %v4515
    %v4534 = vpop.f32.mrf.mxu0
    %v4535 = vadd.f32 0.0, %v4534
    %4536 = vdwg.mxu0
    %4537 = vrot.lane.b32.xlu0 %v4329, 92
    %v4538 = vpop.permute.xlu0 %4537
    %v4539 = vsel %vm2555, %v4538, 0
    %4541 = vmatpush.msra.mxu0 0.0
    %4542 = vmatpush.msra.mxu0 0.0
    %4543 = vmatpush.msra.mxu0 0.0
    %4544 = vmatpush.msra.mxu0 0.0
    %4545 = vmatpush.msra.mxu0 0.0
    %4546 = vmatpush.msra.mxu0 0.0
    %4547 = vmatpush.msra.mxu0 0.0
    %4548 = vmatpush.msra.mxu0 0.0
    %4549 = vmatpush.msra.mxu0 0.0
    %4550 = vmatpush.msra.mxu0 0.0
    %4551 = vmatpush.msra.mxu0 0.0
    %4552 = vmatpush.msra.mxu0 0.0
    %4553 = vmatpush.msra.mxu0 0.0
    %4554 = vmatpush.msra.mxu0 0.0
    %4555 = vmatpush.msra.mxu0 %v2525
    %4556 = vmatpush.msra.mxu0 %v2524
    %4557 = vmatmul.f32.gmra.mxu0 %v4539
    %v4558 = vpop.f32.mrf.mxu0
    %v4559 = vadd.f32 %v4535, %v4558
    %4560 = vdwg.mxu0
    %4561 = vst.msk [vmem:[%s4352 + $0x2] sm:$0x3] %vm2646, %v4511
    %4563 = vrot.lane.b32.xlu0 %v4559, 32
    %v4564 = vpop.permute.xlu0 %4563
    %4566 = vst.msk [vmem:[%s4352 + $0x2] sm:$0x3] %vm2652, %v4564
    %4567 = vrot.lane.b32.xlu0 %v4261, 74
    %v4568 = vpop.permute.xlu0 %4567
    %v4569 = vsel %vm2555, %v4568, 0
    %4571 = vmatpush.msra.mxu0 0.0
    %4572 = vmatpush.msra.mxu0 0.0
    %4573 = vmatpush.msra.mxu0 0.0
    %4574 = vmatpush.msra.mxu0 0.0
    %4575 = vmatpush.msra.mxu0 0.0
    %4576 = vmatpush.msra.mxu0 0.0
    %4577 = vmatpush.msra.mxu0 0.0
    %4578 = vmatpush.msra.mxu0 0.0
    %4579 = vmatpush.msra.mxu0 0.0
    %4580 = vmatpush.msra.mxu0 0.0
    %4581 = vmatpush.msra.mxu0 0.0
    %4582 = vmatpush.msra.mxu0 0.0
    %4583 = vmatpush.msra.mxu0 0.0
    %4584 = vmatpush.msra.mxu0 0.0
    %4585 = vmatpush.msra.mxu0 %v2533
    %4586 = vmatpush.msra.mxu0 %v2532
    %4587 = vmatmul.f32.gmra.mxu0 %v4569
    %v4588 = vpop.f32.mrf.mxu0
    %v4589 = vadd.f32 0.0, %v4588
    %4590 = vdwg.mxu0
    %4591 = vrot.lane.b32.xlu0 %v4257, 74
    %v4592 = vpop.permute.xlu0 %4591
    %v4593 = vsel %vm2555, %v4592, 0
    %4595 = vmatpush.msra.mxu0 0.0
    %4596 = vmatpush.msra.mxu0 0.0
    %4597 = vmatpush.msra.mxu0 0.0
    %4598 = vmatpush.msra.mxu0 0.0
    %4599 = vmatpush.msra.mxu0 0.0
    %4600 = vmatpush.msra.mxu0 0.0
    %4601 = vmatpush.msra.mxu0 0.0
    %4602 = vmatpush.msra.mxu0 0.0
    %4603 = vmatpush.msra.mxu0 0.0
    %4604 = vmatpush.msra.mxu0 0.0
    %4605 = vmatpush.msra.mxu0 0.0
    %4606 = vmatpush.msra.mxu0 0.0
    %4607 = vmatpush.msra.mxu0 0.0
    %4608 = vmatpush.msra.mxu0 0.0
    %4609 = vmatpush.msra.mxu0 %v2525
    %4610 = vmatpush.msra.mxu0 %v2524
    %4611 = vmatmul.f32.gmra.mxu0 %v4593
    %v4612 = vpop.f32.mrf.mxu0
    %v4613 = vadd.f32 %v4589, %v4612
    %4614 = vdwg.mxu0
    %4615 = vrot.lane.b32.xlu0 %v4306, 74
    %v4616 = vpop.permute.xlu0 %4615
    %v4617 = vsel %vm2555, %v4616, 0
    %4619 = vmatpush.msra.mxu0 0.0
    %4620 = vmatpush.msra.mxu0 0.0
    %4621 = vmatpush.msra.mxu0 0.0
    %4622 = vmatpush.msra.mxu0 0.0
    %4623 = vmatpush.msra.mxu0 0.0
    %4624 = vmatpush.msra.mxu0 0.0
    %4625 = vmatpush.msra.mxu0 0.0
    %4626 = vmatpush.msra.mxu0 0.0
    %4627 = vmatpush.msra.mxu0 0.0
    %4628 = vmatpush.msra.mxu0 0.0
    %4629 = vmatpush.msra.mxu0 0.0
    %4630 = vmatpush.msra.mxu0 0.0
    %4631 = vmatpush.msra.mxu0 0.0
    %4632 = vmatpush.msra.mxu0 0.0
    %4633 = vmatpush.msra.mxu0 %v2533
    %4634 = vmatpush.msra.mxu0 %v2532
    %4635 = vmatmul.f32.gmra.mxu0 %v4617
    %v4636 = vpop.f32.mrf.mxu0
    %v4637 = vadd.f32 0.0, %v4636
    %4638 = vdwg.mxu0
    %4639 = vrot.lane.b32.xlu0 %v4329, 74
    %v4640 = vpop.permute.xlu0 %4639
    %v4641 = vsel %vm2555, %v4640, 0
    %4643 = vmatpush.msra.mxu0 0.0
    %4644 = vmatpush.msra.mxu0 0.0
    %4645 = vmatpush.msra.mxu0 0.0
    %4646 = vmatpush.msra.mxu0 0.0
    %4647 = vmatpush.msra.mxu0 0.0
    %4648 = vmatpush.msra.mxu0 0.0
    %4649 = vmatpush.msra.mxu0 0.0
    %4650 = vmatpush.msra.mxu0 0.0
    %4651 = vmatpush.msra.mxu0 0.0
    %4652 = vmatpush.msra.mxu0 0.0
    %4653 = vmatpush.msra.mxu0 0.0
    %4654 = vmatpush.msra.mxu0 0.0
    %4655 = vmatpush.msra.mxu0 0.0
    %4656 = vmatpush.msra.mxu0 0.0
    %4657 = vmatpush.msra.mxu0 %v2525
    %4658 = vmatpush.msra.mxu0 %v2524
    %4659 = vmatmul.f32.gmra.mxu0 %v4641
    %v4660 = vpop.f32.mrf.mxu0
    %v4661 = vadd.f32 %v4637, %v4660
    %4662 = vdwg.mxu0
    %4664 = vrot.lane.b32.xlu0 %v4613, 64
    %v4665 = vpop.permute.xlu0 %4664
    %4667 = vst.msk [vmem:[%s4352 + $0x2] sm:$0x3] %vm2754, %v4665
    %4669 = vrot.lane.b32.xlu0 %v4661, 96
    %v4670 = vpop.permute.xlu0 %4669
    %4672 = vst.msk [vmem:[%s4352 + $0x2] sm:$0x3] %vm2760, %v4670
    %4673 = vrot.lane.b32.xlu0 %v4261, 56
    %v4674 = vpop.permute.xlu0 %4673
    %v4675 = vsel %vm2555, %v4674, 0
    %4677 = vmatpush.msra.mxu0 0.0
    %4678 = vmatpush.msra.mxu0 0.0
    %4679 = vmatpush.msra.mxu0 0.0
    %4680 = vmatpush.msra.mxu0 0.0
    %4681 = vmatpush.msra.mxu0 0.0
    %4682 = vmatpush.msra.mxu0 0.0
    %4683 = vmatpush.msra.mxu0 0.0
    %4684 = vmatpush.msra.mxu0 0.0
    %4685 = vmatpush.msra.mxu0 0.0
    %4686 = vmatpush.msra.mxu0 0.0
    %4687 = vmatpush.msra.mxu0 0.0
    %4688 = vmatpush.msra.mxu0 0.0
    %4689 = vmatpush.msra.mxu0 0.0
    %4690 = vmatpush.msra.mxu0 0.0
    %4691 = vmatpush.msra.mxu0 %v2533
    %4692 = vmatpush.msra.mxu0 %v2532
    %4693 = vmatmul.f32.gmra.mxu0 %v4675
    %v4694 = vpop.f32.mrf.mxu0
    %v4695 = vadd.f32 0.0, %v4694
    %4696 = vdwg.mxu0
    %4697 = vrot.lane.b32.xlu0 %v4257, 56
    %v4698 = vpop.permute.xlu0 %4697
    %v4699 = vsel %vm2555, %v4698, 0
    %4701 = vmatpush.msra.mxu0 0.0
    %4702 = vmatpush.msra.mxu0 0.0
    %4703 = vmatpush.msra.mxu0 0.0
    %4704 = vmatpush.msra.mxu0 0.0
    %4705 = vmatpush.msra.mxu0 0.0
    %4706 = vmatpush.msra.mxu0 0.0
    %4707 = vmatpush.msra.mxu0 0.0
    %4708 = vmatpush.msra.mxu0 0.0
    %4709 = vmatpush.msra.mxu0 0.0
    %4710 = vmatpush.msra.mxu0 0.0
    %4711 = vmatpush.msra.mxu0 0.0
    %4712 = vmatpush.msra.mxu0 0.0
    %4713 = vmatpush.msra.mxu0 0.0
    %4714 = vmatpush.msra.mxu0 0.0
    %4715 = vmatpush.msra.mxu0 %v2525
    %4716 = vmatpush.msra.mxu0 %v2524
    %4717 = vmatmul.f32.gmra.mxu0 %v4699
    %v4718 = vpop.f32.mrf.mxu0
    %v4719 = vadd.f32 %v4695, %v4718
    %4720 = vdwg.mxu0
    %4721 = vrot.lane.b32.xlu0 %v4306, 56
    %v4722 = vpop.permute.xlu0 %4721
    %v4723 = vsel %vm2555, %v4722, 0
    %4725 = vmatpush.msra.mxu0 0.0
    %4726 = vmatpush.msra.mxu0 0.0
    %4727 = vmatpush.msra.mxu0 0.0
    %4728 = vmatpush.msra.mxu0 0.0
    %4729 = vmatpush.msra.mxu0 0.0
    %4730 = vmatpush.msra.mxu0 0.0
    %4731 = vmatpush.msra.mxu0 0.0
    %4732 = vmatpush.msra.mxu0 0.0
    %4733 = vmatpush.msra.mxu0 0.0
    %4734 = vmatpush.msra.mxu0 0.0
    %4735 = vmatpush.msra.mxu0 0.0
    %4736 = vmatpush.msra.mxu0 0.0
    %4737 = vmatpush.msra.mxu0 0.0
    %4738 = vmatpush.msra.mxu0 0.0
    %4739 = vmatpush.msra.mxu0 %v2533
    %4740 = vmatpush.msra.mxu0 %v2532
    %4741 = vmatmul.f32.gmra.mxu0 %v4723
    %v4742 = vpop.f32.mrf.mxu0
    %v4743 = vadd.f32 0.0, %v4742
    %4744 = vdwg.mxu0
    %4745 = vrot.lane.b32.xlu0 %v4329, 56
    %v4746 = vpop.permute.xlu0 %4745
    %v4747 = vsel %vm2555, %v4746, 0
    %4749 = vmatpush.msra.mxu0 0.0
    %4750 = vmatpush.msra.mxu0 0.0
    %4751 = vmatpush.msra.mxu0 0.0
    %4752 = vmatpush.msra.mxu0 0.0
    %4753 = vmatpush.msra.mxu0 0.0
    %4754 = vmatpush.msra.mxu0 0.0
    %4755 = vmatpush.msra.mxu0 0.0
    %4756 = vmatpush.msra.mxu0 0.0
    %4757 = vmatpush.msra.mxu0 0.0
    %4758 = vmatpush.msra.mxu0 0.0
    %4759 = vmatpush.msra.mxu0 0.0
    %4760 = vmatpush.msra.mxu0 0.0
    %4761 = vmatpush.msra.mxu0 0.0
    %4762 = vmatpush.msra.mxu0 0.0
    %4763 = vmatpush.msra.mxu0 %v2525
    %4764 = vmatpush.msra.mxu0 %v2524
    %4765 = vmatmul.f32.gmra.mxu0 %v4747
    %v4766 = vpop.f32.mrf.mxu0
    %v4767 = vadd.f32 %v4743, %v4766
    %4768 = vdwg.mxu0
    %4769 = vst.msk [vmem:[%s4352 + $0x4] sm:$0x3] %vm2646, %v4719
    %4771 = vrot.lane.b32.xlu0 %v4767, 32
    %v4772 = vpop.permute.xlu0 %4771
    %4774 = vst.msk [vmem:[%s4352 + $0x4] sm:$0x3] %vm2652, %v4772
    %4775 = vrot.lane.b32.xlu0 %v4261, 38
    %v4776 = vpop.permute.xlu0 %4775
    %v4777 = vsel %vm2555, %v4776, 0
    %4779 = vmatpush.msra.mxu0 0.0
    %4780 = vmatpush.msra.mxu0 0.0
    %4781 = vmatpush.msra.mxu0 0.0
    %4782 = vmatpush.msra.mxu0 0.0
    %4783 = vmatpush.msra.mxu0 0.0
    %4784 = vmatpush.msra.mxu0 0.0
    %4785 = vmatpush.msra.mxu0 0.0
    %4786 = vmatpush.msra.mxu0 0.0
    %4787 = vmatpush.msra.mxu0 0.0
    %4788 = vmatpush.msra.mxu0 0.0
    %4789 = vmatpush.msra.mxu0 0.0
    %4790 = vmatpush.msra.mxu0 0.0
    %4791 = vmatpush.msra.mxu0 0.0
    %4792 = vmatpush.msra.mxu0 0.0
    %4793 = vmatpush.msra.mxu0 %v2533
    %4794 = vmatpush.msra.mxu0 %v2532
    %4795 = vmatmul.f32.gmra.mxu0 %v4777
    %v4796 = vpop.f32.mrf.mxu0
    %v4797 = vadd.f32 0.0, %v4796
    %4798 = vdwg.mxu0
    %4799 = vrot.lane.b32.xlu0 %v4257, 38
    %v4800 = vpop.permute.xlu0 %4799
    %v4801 = vsel %vm2555, %v4800, 0
    %4803 = vmatpush.msra.mxu0 0.0
    %4804 = vmatpush.msra.mxu0 0.0
    %4805 = vmatpush.msra.mxu0 0.0
    %4806 = vmatpush.msra.mxu0 0.0
    %4807 = vmatpush.msra.mxu0 0.0
    %4808 = vmatpush.msra.mxu0 0.0
    %4809 = vmatpush.msra.mxu0 0.0
    %4810 = vmatpush.msra.mxu0 0.0
    %4811 = vmatpush.msra.mxu0 0.0
    %4812 = vmatpush.msra.mxu0 0.0
    %4813 = vmatpush.msra.mxu0 0.0
    %4814 = vmatpush.msra.mxu0 0.0
    %4815 = vmatpush.msra.mxu0 0.0
    %4816 = vmatpush.msra.mxu0 0.0
    %4817 = vmatpush.msra.mxu0 %v2525
    %4818 = vmatpush.msra.mxu0 %v2524
    %4819 = vmatmul.f32.gmra.mxu0 %v4801
    %v4820 = vpop.f32.mrf.mxu0
    %v4821 = vadd.f32 %v4797, %v4820
    %4822 = vdwg.mxu0
    %4823 = vrot.lane.b32.xlu0 %v4306, 38
    %v4824 = vpop.permute.xlu0 %4823
    %v4825 = vsel %vm2555, %v4824, 0
    %4827 = vmatpush.msra.mxu0 0.0
    %4828 = vmatpush.msra.mxu0 0.0
    %4829 = vmatpush.msra.mxu0 0.0
    %4830 = vmatpush.msra.mxu0 0.0
    %4831 = vmatpush.msra.mxu0 0.0
    %4832 = vmatpush.msra.mxu0 0.0
    %4833 = vmatpush.msra.mxu0 0.0
    %4834 = vmatpush.msra.mxu0 0.0
    %4835 = vmatpush.msra.mxu0 0.0
    %4836 = vmatpush.msra.mxu0 0.0
    %4837 = vmatpush.msra.mxu0 0.0
    %4838 = vmatpush.msra.mxu0 0.0
    %4839 = vmatpush.msra.mxu0 0.0
    %4840 = vmatpush.msra.mxu0 0.0
    %4841 = vmatpush.msra.mxu0 %v2533
    %4842 = vmatpush.msra.mxu0 %v2532
    %4843 = vmatmul.f32.gmra.mxu0 %v4825
    %v4844 = vpop.f32.mrf.mxu0
    %v4845 = vadd.f32 0.0, %v4844
    %4846 = vdwg.mxu0
    %4847 = vrot.lane.b32.xlu0 %v4329, 38
    %v4848 = vpop.permute.xlu0 %4847
    %v4849 = vsel %vm2555, %v4848, 0
    %4851 = vmatpush.msra.mxu0 0.0
    %4852 = vmatpush.msra.mxu0 0.0
    %4853 = vmatpush.msra.mxu0 0.0
    %4854 = vmatpush.msra.mxu0 0.0
    %4855 = vmatpush.msra.mxu0 0.0
    %4856 = vmatpush.msra.mxu0 0.0
    %4857 = vmatpush.msra.mxu0 0.0
    %4858 = vmatpush.msra.mxu0 0.0
    %4859 = vmatpush.msra.mxu0 0.0
    %4860 = vmatpush.msra.mxu0 0.0
    %4861 = vmatpush.msra.mxu0 0.0
    %4862 = vmatpush.msra.mxu0 0.0
    %4863 = vmatpush.msra.mxu0 0.0
    %4864 = vmatpush.msra.mxu0 0.0
    %4865 = vmatpush.msra.mxu0 %v2525
    %4866 = vmatpush.msra.mxu0 %v2524
    %4867 = vmatmul.f32.gmra.mxu0 %v4849
    %v4868 = vpop.f32.mrf.mxu0
    %v4869 = vadd.f32 %v4845, %v4868
    %4870 = vdwg.mxu0
    %4872 = vrot.lane.b32.xlu0 %v4821, 64
    %v4873 = vpop.permute.xlu0 %4872
    %4875 = vst.msk [vmem:[%s4352 + $0x4] sm:$0x3] %vm2754, %v4873
    %4877 = vrot.lane.b32.xlu0 %v4869, 96
    %v4878 = vpop.permute.xlu0 %4877
    %4880 = vst.msk [vmem:[%s4352 + $0x4] sm:$0x3] %vm2760, %v4878
    %4881 = vrot.lane.b32.xlu0 %v4261, 20
    %v4882 = vpop.permute.xlu0 %4881
    %v4883 = vsel %vm2555, %v4882, 0
    %4885 = vmatpush.msra.mxu0 0.0
    %4886 = vmatpush.msra.mxu0 0.0
    %4887 = vmatpush.msra.mxu0 0.0
    %4888 = vmatpush.msra.mxu0 0.0
    %4889 = vmatpush.msra.mxu0 0.0
    %4890 = vmatpush.msra.mxu0 0.0
    %4891 = vmatpush.msra.mxu0 0.0
    %4892 = vmatpush.msra.mxu0 0.0
    %4893 = vmatpush.msra.mxu0 0.0
    %4894 = vmatpush.msra.mxu0 0.0
    %4895 = vmatpush.msra.mxu0 0.0
    %4896 = vmatpush.msra.mxu0 0.0
    %4897 = vmatpush.msra.mxu0 0.0
    %4898 = vmatpush.msra.mxu0 0.0
    %4899 = vmatpush.msra.mxu0 %v2533
    %4900 = vmatpush.msra.mxu0 %v2532
    %4901 = vmatmul.f32.gmra.mxu0 %v4883
    %v4902 = vpop.f32.mrf.mxu0
    %v4903 = vadd.f32 0.0, %v4902
    %4904 = vdwg.mxu0
    %4905 = vrot.lane.b32.xlu0 %v4257, 20
    %v4906 = vpop.permute.xlu0 %4905
    %v4907 = vsel %vm2555, %v4906, 0
    %4909 = vmatpush.msra.mxu0 0.0
    %4910 = vmatpush.msra.mxu0 0.0
    %4911 = vmatpush.msra.mxu0 0.0
    %4912 = vmatpush.msra.mxu0 0.0
    %4913 = vmatpush.msra.mxu0 0.0
    %4914 = vmatpush.msra.mxu0 0.0
    %4915 = vmatpush.msra.mxu0 0.0
    %4916 = vmatpush.msra.mxu0 0.0
    %4917 = vmatpush.msra.mxu0 0.0
    %4918 = vmatpush.msra.mxu0 0.0
    %4919 = vmatpush.msra.mxu0 0.0
    %4920 = vmatpush.msra.mxu0 0.0
    %4921 = vmatpush.msra.mxu0 0.0
    %4922 = vmatpush.msra.mxu0 0.0
    %4923 = vmatpush.msra.mxu0 %v2525
    %4924 = vmatpush.msra.mxu0 %v2524
    %4925 = vmatmul.f32.gmra.mxu0 %v4907
    %v4926 = vpop.f32.mrf.mxu0
    %v4927 = vadd.f32 %v4903, %v4926
    %4928 = vdwg.mxu0
    %4929 = vrot.lane.b32.xlu0 %v4306, 20
    %v4930 = vpop.permute.xlu0 %4929
    %v4931 = vsel %vm2555, %v4930, 0
    %4933 = vmatpush.msra.mxu0 0.0
    %4934 = vmatpush.msra.mxu0 0.0
    %4935 = vmatpush.msra.mxu0 0.0
    %4936 = vmatpush.msra.mxu0 0.0
    %4937 = vmatpush.msra.mxu0 0.0
    %4938 = vmatpush.msra.mxu0 0.0
    %4939 = vmatpush.msra.mxu0 0.0
    %4940 = vmatpush.msra.mxu0 0.0
    %4941 = vmatpush.msra.mxu0 0.0
    %4942 = vmatpush.msra.mxu0 0.0
    %4943 = vmatpush.msra.mxu0 0.0
    %4944 = vmatpush.msra.mxu0 0.0
    %4945 = vmatpush.msra.mxu0 0.0
    %4946 = vmatpush.msra.mxu0 0.0
    %4947 = vmatpush.msra.mxu0 %v2533
    %4948 = vmatpush.msra.mxu0 %v2532
    %4949 = vmatmul.f32.gmra.mxu0 %v4931
    %v4950 = vpop.f32.mrf.mxu0
    %v4951 = vadd.f32 0.0, %v4950
    %4952 = vdwg.mxu0
    %4953 = vrot.lane.b32.xlu0 %v4329, 20
    %v4954 = vpop.permute.xlu0 %4953
    %v4955 = vsel %vm2555, %v4954, 0
    %4957 = vmatpush.msra.mxu0 0.0
    %4958 = vmatpush.msra.mxu0 0.0
    %4959 = vmatpush.msra.mxu0 0.0
    %4960 = vmatpush.msra.mxu0 0.0
    %4961 = vmatpush.msra.mxu0 0.0
    %4962 = vmatpush.msra.mxu0 0.0
    %4963 = vmatpush.msra.mxu0 0.0
    %4964 = vmatpush.msra.mxu0 0.0
    %4965 = vmatpush.msra.mxu0 0.0
    %4966 = vmatpush.msra.mxu0 0.0
    %4967 = vmatpush.msra.mxu0 0.0
    %4968 = vmatpush.msra.mxu0 0.0
    %4969 = vmatpush.msra.mxu0 0.0
    %4970 = vmatpush.msra.mxu0 0.0
    %4971 = vmatpush.msra.mxu0 %v2525
    %4972 = vmatpush.msra.mxu0 %v2524
    %4973 = vmatmul.f32.gmra.mxu0 %v4955
    %v4974 = vpop.f32.mrf.mxu0
    %v4975 = vadd.f32 %v4951, %v4974
    %4976 = vdwg.mxu0
    %4977 = vst.msk [vmem:[%s4352 + $0x6] sm:$0x3] %vm2646, %v4927
    %4979 = vrot.lane.b32.xlu0 %v4975, 32
    %v4980 = vpop.permute.xlu0 %4979
    %4982 = vst.msk [vmem:[%s4352 + $0x6] sm:$0x3] %vm2652, %v4980
    %v4984 = vrot.slane %v4258, 2
    %4985 = vrot.lane.b32.xlu0 %v4261, 2
    %v4986 = vpop.permute.xlu0 %4985
    %4987 = vrot.lane.b32.xlu0 %v4984, 2
    %v4988 = vpop.permute.xlu0 %4987
    %v4989 = vsel %vm3286, %v4986, %v4988
    %v4990 = vsel %vm2555, %v4989, 0
    %4992 = vmatpush.msra.mxu0 0.0
    %4993 = vmatpush.msra.mxu0 0.0
    %4994 = vmatpush.msra.mxu0 0.0
    %4995 = vmatpush.msra.mxu0 0.0
    %4996 = vmatpush.msra.mxu0 0.0
    %4997 = vmatpush.msra.mxu0 0.0
    %4998 = vmatpush.msra.mxu0 0.0
    %4999 = vmatpush.msra.mxu0 0.0
    %5000 = vmatpush.msra.mxu0 0.0
    %5001 = vmatpush.msra.mxu0 0.0
    %5002 = vmatpush.msra.mxu0 0.0
    %5003 = vmatpush.msra.mxu0 0.0
    %5004 = vmatpush.msra.mxu0 0.0
    %5005 = vmatpush.msra.mxu0 0.0
    %5006 = vmatpush.msra.mxu0 %v2533
    %5007 = vmatpush.msra.mxu0 %v2532
    %5008 = vmatmul.f32.gmra.mxu0 %v4990
    %v5009 = vpop.f32.mrf.mxu0
    %v5010 = vadd.f32 0.0, %v5009
    %5011 = vdwg.mxu0
    %5012 = vrot.lane.b32.xlu0 %v4257, 2
    %v5013 = vpop.permute.xlu0 %5012
    %5014 = vrot.lane.b32.xlu0 %v4258, 2
    %v5015 = vpop.permute.xlu0 %5014
    %v5016 = vsel %vm3286, %v5013, %v5015
    %v5017 = vsel %vm2555, %v5016, 0
    %5019 = vmatpush.msra.mxu0 0.0
    %5020 = vmatpush.msra.mxu0 0.0
    %5021 = vmatpush.msra.mxu0 0.0
    %5022 = vmatpush.msra.mxu0 0.0
    %5023 = vmatpush.msra.mxu0 0.0
    %5024 = vmatpush.msra.mxu0 0.0
    %5025 = vmatpush.msra.mxu0 0.0
    %5026 = vmatpush.msra.mxu0 0.0
    %5027 = vmatpush.msra.mxu0 0.0
    %5028 = vmatpush.msra.mxu0 0.0
    %5029 = vmatpush.msra.mxu0 0.0
    %5030 = vmatpush.msra.mxu0 0.0
    %5031 = vmatpush.msra.mxu0 0.0
    %5032 = vmatpush.msra.mxu0 0.0
    %5033 = vmatpush.msra.mxu0 %v2525
    %5034 = vmatpush.msra.mxu0 %v2524
    %5035 = vmatmul.f32.gmra.mxu0 %v5017
    %v5036 = vpop.f32.mrf.mxu0
    %v5037 = vadd.f32 %v5010, %v5036
    %5038 = vdwg.mxu0
    %v5039 = vrot.slane %v4258, 6
    %5040 = vrot.lane.b32.xlu0 %v4306, 2
    %v5041 = vpop.permute.xlu0 %5040
    %5042 = vrot.lane.b32.xlu0 %v5039, 2
    %v5043 = vpop.permute.xlu0 %5042
    %v5044 = vsel %vm3286, %v5041, %v5043
    %v5045 = vsel %vm2555, %v5044, 0
    %5047 = vmatpush.msra.mxu0 0.0
    %5048 = vmatpush.msra.mxu0 0.0
    %5049 = vmatpush.msra.mxu0 0.0
    %5050 = vmatpush.msra.mxu0 0.0
    %5051 = vmatpush.msra.mxu0 0.0
    %5052 = vmatpush.msra.mxu0 0.0
    %5053 = vmatpush.msra.mxu0 0.0
    %5054 = vmatpush.msra.mxu0 0.0
    %5055 = vmatpush.msra.mxu0 0.0
    %5056 = vmatpush.msra.mxu0 0.0
    %5057 = vmatpush.msra.mxu0 0.0
    %5058 = vmatpush.msra.mxu0 0.0
    %5059 = vmatpush.msra.mxu0 0.0
    %5060 = vmatpush.msra.mxu0 0.0
    %5061 = vmatpush.msra.mxu0 %v2533
    %5062 = vmatpush.msra.mxu0 %v2532
    %5063 = vmatmul.f32.gmra.mxu0 %v5045
    %v5064 = vpop.f32.mrf.mxu0
    %v5065 = vadd.f32 0.0, %v5064
    %5066 = vdwg.mxu0
    %v5067 = vrot.slane %v4258, 4
    %5068 = vrot.lane.b32.xlu0 %v4329, 2
    %v5069 = vpop.permute.xlu0 %5068
    %5070 = vrot.lane.b32.xlu0 %v5067, 2
    %v5071 = vpop.permute.xlu0 %5070
    %v5072 = vsel %vm3286, %v5069, %v5071
    %v5073 = vsel %vm2555, %v5072, 0
    %5075 = vmatpush.msra.mxu0 0.0
    %5076 = vmatpush.msra.mxu0 0.0
    %5077 = vmatpush.msra.mxu0 0.0
    %5078 = vmatpush.msra.mxu0 0.0
    %5079 = vmatpush.msra.mxu0 0.0
    %5080 = vmatpush.msra.mxu0 0.0
    %5081 = vmatpush.msra.mxu0 0.0
    %5082 = vmatpush.msra.mxu0 0.0
    %5083 = vmatpush.msra.mxu0 0.0
    %5084 = vmatpush.msra.mxu0 0.0
    %5085 = vmatpush.msra.mxu0 0.0
    %5086 = vmatpush.msra.mxu0 0.0
    %5087 = vmatpush.msra.mxu0 0.0
    %5088 = vmatpush.msra.mxu0 0.0
    %5089 = vmatpush.msra.mxu0 %v2525
    %5090 = vmatpush.msra.mxu0 %v2524
    %5091 = vmatmul.f32.gmra.mxu0 %v5073
    %v5092 = vpop.f32.mrf.mxu0
    %v5093 = vadd.f32 %v5065, %v5092
    %5094 = vdwg.mxu0
    %5096 = vrot.lane.b32.xlu0 %v5037, 64
    %v5097 = vpop.permute.xlu0 %5096
    %5099 = vst.msk [vmem:[%s4352 + $0x6] sm:$0x3] %vm2754, %v5097
    %5101 = vrot.lane.b32.xlu0 %v5093, 96
    %v5102 = vpop.permute.xlu0 %5101
    %5104 = vst.msk [vmem:[%s4352 + $0x6] sm:$0x3] %vm2760, %v5102
    %5105 = vrot.lane.b32.xlu0 %v4984, 112
    %v5106 = vpop.permute.xlu0 %5105
    %v5107 = vsel %vm2555, %v5106, 0
    %5109 = vmatpush.msra.mxu0 0.0
    %5110 = vmatpush.msra.mxu0 0.0
    %5111 = vmatpush.msra.mxu0 0.0
    %5112 = vmatpush.msra.mxu0 0.0
    %5113 = vmatpush.msra.mxu0 0.0
    %5114 = vmatpush.msra.mxu0 0.0
    %5115 = vmatpush.msra.mxu0 0.0
    %5116 = vmatpush.msra.mxu0 0.0
    %5117 = vmatpush.msra.mxu0 0.0
    %5118 = vmatpush.msra.mxu0 0.0
    %5119 = vmatpush.msra.mxu0 0.0
    %5120 = vmatpush.msra.mxu0 0.0
    %5121 = vmatpush.msra.mxu0 0.0
    %5122 = vmatpush.msra.mxu0 0.0
    %5123 = vmatpush.msra.mxu0 %v2533
    %5124 = vmatpush.msra.mxu0 %v2532
    %5125 = vmatmul.f32.gmra.mxu0 %v5107
    %v5126 = vpop.f32.mrf.mxu0
    %v5127 = vadd.f32 0.0, %v5126
    %5128 = vdwg.mxu0
    %5129 = vrot.lane.b32.xlu0 %v4258, 112
    %v5130 = vpop.permute.xlu0 %5129
    %v5131 = vsel %vm2555, %v5130, 0
    %5133 = vmatpush.msra.mxu0 0.0
    %5134 = vmatpush.msra.mxu0 0.0
    %5135 = vmatpush.msra.mxu0 0.0
    %5136 = vmatpush.msra.mxu0 0.0
    %5137 = vmatpush.msra.mxu0 0.0
    %5138 = vmatpush.msra.mxu0 0.0
    %5139 = vmatpush.msra.mxu0 0.0
    %5140 = vmatpush.msra.mxu0 0.0
    %5141 = vmatpush.msra.mxu0 0.0
    %5142 = vmatpush.msra.mxu0 0.0
    %5143 = vmatpush.msra.mxu0 0.0
    %5144 = vmatpush.msra.mxu0 0.0
    %5145 = vmatpush.msra.mxu0 0.0
    %5146 = vmatpush.msra.mxu0 0.0
    %5147 = vmatpush.msra.mxu0 %v2525
    %5148 = vmatpush.msra.mxu0 %v2524
    %5149 = vmatmul.f32.gmra.mxu0 %v5131
    %v5150 = vpop.f32.mrf.mxu0
    %v5151 = vadd.f32 %v5127, %v5150
    %5152 = vdwg.mxu0
    %5153 = vrot.lane.b32.xlu0 %v5039, 112
    %v5154 = vpop.permute.xlu0 %5153
    %v5155 = vsel %vm2555, %v5154, 0
    %5157 = vmatpush.msra.mxu0 0.0
    %5158 = vmatpush.msra.mxu0 0.0
    %5159 = vmatpush.msra.mxu0 0.0
    %5160 = vmatpush.msra.mxu0 0.0
    %5161 = vmatpush.msra.mxu0 0.0
    %5162 = vmatpush.msra.mxu0 0.0
    %5163 = vmatpush.msra.mxu0 0.0
    %5164 = vmatpush.msra.mxu0 0.0
    %5165 = vmatpush.msra.mxu0 0.0
    %5166 = vmatpush.msra.mxu0 0.0
    %5167 = vmatpush.msra.mxu0 0.0
    %5168 = vmatpush.msra.mxu0 0.0
    %5169 = vmatpush.msra.mxu0 0.0
    %5170 = vmatpush.msra.mxu0 0.0
    %5171 = vmatpush.msra.mxu0 %v2533
    %5172 = vmatpush.msra.mxu0 %v2532
    %5173 = vmatmul.f32.gmra.mxu0 %v5155
    %v5174 = vpop.f32.mrf.mxu0
    %v5175 = vadd.f32 0.0, %v5174
    %5176 = vdwg.mxu0
    %5177 = vrot.lane.b32.xlu0 %v5067, 112
    %v5178 = vpop.permute.xlu0 %5177
    %v5179 = vsel %vm2555, %v5178, 0
    %5181 = vmatpush.msra.mxu0 0.0
    %5182 = vmatpush.msra.mxu0 0.0
    %5183 = vmatpush.msra.mxu0 0.0
    %5184 = vmatpush.msra.mxu0 0.0
    %5185 = vmatpush.msra.mxu0 0.0
    %5186 = vmatpush.msra.mxu0 0.0
    %5187 = vmatpush.msra.mxu0 0.0
    %5188 = vmatpush.msra.mxu0 0.0
    %5189 = vmatpush.msra.mxu0 0.0
    %5190 = vmatpush.msra.mxu0 0.0
    %5191 = vmatpush.msra.mxu0 0.0
    %5192 = vmatpush.msra.mxu0 0.0
    %5193 = vmatpush.msra.mxu0 0.0
    %5194 = vmatpush.msra.mxu0 0.0
    %5195 = vmatpush.msra.mxu0 %v2525
    %5196 = vmatpush.msra.mxu0 %v2524
    %5197 = vmatmul.f32.gmra.mxu0 %v5179
    %v5198 = vpop.f32.mrf.mxu0
    %v5199 = vadd.f32 %v5175, %v5198
    %5200 = vdwg.mxu0
    %5201 = vst.msk [vmem:[%s4352 + $0x8] sm:$0x3] %vm2646, %v5151
    %5203 = vrot.lane.b32.xlu0 %v5199, 32
    %v5204 = vpop.permute.xlu0 %5203
    %5206 = vst.msk [vmem:[%s4352 + $0x8] sm:$0x3] %vm2652, %v5204
    %5207 = vrot.lane.b32.xlu0 %v4984, 94
    %v5208 = vpop.permute.xlu0 %5207
    %v5209 = vsel %vm2555, %v5208, 0
    %5211 = vmatpush.msra.mxu0 0.0
    %5212 = vmatpush.msra.mxu0 0.0
    %5213 = vmatpush.msra.mxu0 0.0
    %5214 = vmatpush.msra.mxu0 0.0
    %5215 = vmatpush.msra.mxu0 0.0
    %5216 = vmatpush.msra.mxu0 0.0
    %5217 = vmatpush.msra.mxu0 0.0
    %5218 = vmatpush.msra.mxu0 0.0
    %5219 = vmatpush.msra.mxu0 0.0
    %5220 = vmatpush.msra.mxu0 0.0
    %5221 = vmatpush.msra.mxu0 0.0
    %5222 = vmatpush.msra.mxu0 0.0
    %5223 = vmatpush.msra.mxu0 0.0
    %5224 = vmatpush.msra.mxu0 0.0
    %5225 = vmatpush.msra.mxu0 %v2533
    %5226 = vmatpush.msra.mxu0 %v2532
    %5227 = vmatmul.f32.gmra.mxu0 %v5209
    %v5228 = vpop.f32.mrf.mxu0
    %v5229 = vadd.f32 0.0, %v5228
    %5230 = vdwg.mxu0
    %5231 = vrot.lane.b32.xlu0 %v4258, 94
    %v5232 = vpop.permute.xlu0 %5231
    %v5233 = vsel %vm2555, %v5232, 0
    %5235 = vmatpush.msra.mxu0 0.0
    %5236 = vmatpush.msra.mxu0 0.0
    %5237 = vmatpush.msra.mxu0 0.0
    %5238 = vmatpush.msra.mxu0 0.0
    %5239 = vmatpush.msra.mxu0 0.0
    %5240 = vmatpush.msra.mxu0 0.0
    %5241 = vmatpush.msra.mxu0 0.0
    %5242 = vmatpush.msra.mxu0 0.0
    %5243 = vmatpush.msra.mxu0 0.0
    %5244 = vmatpush.msra.mxu0 0.0
    %5245 = vmatpush.msra.mxu0 0.0
    %5246 = vmatpush.msra.mxu0 0.0
    %5247 = vmatpush.msra.mxu0 0.0
    %5248 = vmatpush.msra.mxu0 0.0
    %5249 = vmatpush.msra.mxu0 %v2525
    %5250 = vmatpush.msra.mxu0 %v2524
    %5251 = vmatmul.f32.gmra.mxu0 %v5233
    %v5252 = vpop.f32.mrf.mxu0
    %v5253 = vadd.f32 %v5229, %v5252
    %5254 = vdwg.mxu0
    %5255 = vrot.lane.b32.xlu0 %v5039, 94
    %v5256 = vpop.permute.xlu0 %5255
    %v5257 = vsel %vm2555, %v5256, 0
    %5259 = vmatpush.msra.mxu0 0.0
    %5260 = vmatpush.msra.mxu0 0.0
    %5261 = vmatpush.msra.mxu0 0.0
    %5262 = vmatpush.msra.mxu0 0.0
    %5263 = vmatpush.msra.mxu0 0.0
    %5264 = vmatpush.msra.mxu0 0.0
    %5265 = vmatpush.msra.mxu0 0.0
    %5266 = vmatpush.msra.mxu0 0.0
    %5267 = vmatpush.msra.mxu0 0.0
    %5268 = vmatpush.msra.mxu0 0.0
    %5269 = vmatpush.msra.mxu0 0.0
    %5270 = vmatpush.msra.mxu0 0.0
    %5271 = vmatpush.msra.mxu0 0.0
    %5272 = vmatpush.msra.mxu0 0.0
    %5273 = vmatpush.msra.mxu0 %v2533
    %5274 = vmatpush.msra.mxu0 %v2532
    %5275 = vmatmul.f32.gmra.mxu0 %v5257
    %v5276 = vpop.f32.mrf.mxu0
    %v5277 = vadd.f32 0.0, %v5276
    %5278 = vdwg.mxu0
    %5279 = vrot.lane.b32.xlu0 %v5067, 94
    %v5280 = vpop.permute.xlu0 %5279
    %v5281 = vsel %vm2555, %v5280, 0
    %5283 = vmatpush.msra.mxu0 0.0
    %5284 = vmatpush.msra.mxu0 0.0
    %5285 = vmatpush.msra.mxu0 0.0
    %5286 = vmatpush.msra.mxu0 0.0
    %5287 = vmatpush.msra.mxu0 0.0
    %5288 = vmatpush.msra.mxu0 0.0
    %5289 = vmatpush.msra.mxu0 0.0
    %5290 = vmatpush.msra.mxu0 0.0
    %5291 = vmatpush.msra.mxu0 0.0
    %5292 = vmatpush.msra.mxu0 0.0
    %5293 = vmatpush.msra.mxu0 0.0
    %5294 = vmatpush.msra.mxu0 0.0
    %5295 = vmatpush.msra.mxu0 0.0
    %5296 = vmatpush.msra.mxu0 0.0
    %5297 = vmatpush.msra.mxu0 %v2525
    %5298 = vmatpush.msra.mxu0 %v2524
    %5299 = vmatmul.f32.gmra.mxu0 %v5281
    %v5300 = vpop.f32.mrf.mxu0
    %v5301 = vadd.f32 %v5277, %v5300
    %5302 = vdwg.mxu0
    %5304 = vrot.lane.b32.xlu0 %v5253, 64
    %v5305 = vpop.permute.xlu0 %5304
    %5307 = vst.msk [vmem:[%s4352 + $0x8] sm:$0x3] %vm2754, %v5305
    %5309 = vrot.lane.b32.xlu0 %v5301, 96
    %v5310 = vpop.permute.xlu0 %5309
    %5312 = vst.msk [vmem:[%s4352 + $0x8] sm:$0x3] %vm2760, %v5310
    %5313 = vrot.lane.b32.xlu0 %v4984, 76
    %v5314 = vpop.permute.xlu0 %5313
    %v5315 = vsel %vm2555, %v5314, 0
    %5317 = vmatpush.msra.mxu0 0.0
    %5318 = vmatpush.msra.mxu0 0.0
    %5319 = vmatpush.msra.mxu0 0.0
    %5320 = vmatpush.msra.mxu0 0.0
    %5321 = vmatpush.msra.mxu0 0.0
    %5322 = vmatpush.msra.mxu0 0.0
    %5323 = vmatpush.msra.mxu0 0.0
    %5324 = vmatpush.msra.mxu0 0.0
    %5325 = vmatpush.msra.mxu0 0.0
    %5326 = vmatpush.msra.mxu0 0.0
    %5327 = vmatpush.msra.mxu0 0.0
    %5328 = vmatpush.msra.mxu0 0.0
    %5329 = vmatpush.msra.mxu0 0.0
    %5330 = vmatpush.msra.mxu0 0.0
    %5331 = vmatpush.msra.mxu0 %v2533
    %5332 = vmatpush.msra.mxu0 %v2532
    %5333 = vmatmul.f32.gmra.mxu0 %v5315
    %v5334 = vpop.f32.mrf.mxu0
    %v5335 = vadd.f32 0.0, %v5334
    %5336 = vdwg.mxu0
    %5337 = vrot.lane.b32.xlu0 %v4258, 76
    %v5338 = vpop.permute.xlu0 %5337
    %v5339 = vsel %vm2555, %v5338, 0
    %5341 = vmatpush.msra.mxu0 0.0
    %5342 = vmatpush.msra.mxu0 0.0
    %5343 = vmatpush.msra.mxu0 0.0
    %5344 = vmatpush.msra.mxu0 0.0
    %5345 = vmatpush.msra.mxu0 0.0
    %5346 = vmatpush.msra.mxu0 0.0
    %5347 = vmatpush.msra.mxu0 0.0
    %5348 = vmatpush.msra.mxu0 0.0
    %5349 = vmatpush.msra.mxu0 0.0
    %5350 = vmatpush.msra.mxu0 0.0
    %5351 = vmatpush.msra.mxu0 0.0
    %5352 = vmatpush.msra.mxu0 0.0
    %5353 = vmatpush.msra.mxu0 0.0
    %5354 = vmatpush.msra.mxu0 0.0
    %5355 = vmatpush.msra.mxu0 %v2525
    %5356 = vmatpush.msra.mxu0 %v2524
    %5357 = vmatmul.f32.gmra.mxu0 %v5339
    %v5358 = vpop.f32.mrf.mxu0
    %v5359 = vadd.f32 %v5335, %v5358
    %5360 = vdwg.mxu0
    %5361 = vrot.lane.b32.xlu0 %v5039, 76
    %v5362 = vpop.permute.xlu0 %5361
    %v5363 = vsel %vm2555, %v5362, 0
    %5365 = vmatpush.msra.mxu0 0.0
    %5366 = vmatpush.msra.mxu0 0.0
    %5367 = vmatpush.msra.mxu0 0.0
    %5368 = vmatpush.msra.mxu0 0.0
    %5369 = vmatpush.msra.mxu0 0.0
    %5370 = vmatpush.msra.mxu0 0.0
    %5371 = vmatpush.msra.mxu0 0.0
    %5372 = vmatpush.msra.mxu0 0.0
    %5373 = vmatpush.msra.mxu0 0.0
    %5374 = vmatpush.msra.mxu0 0.0
    %5375 = vmatpush.msra.mxu0 0.0
    %5376 = vmatpush.msra.mxu0 0.0
    %5377 = vmatpush.msra.mxu0 0.0
    %5378 = vmatpush.msra.mxu0 0.0
    %5379 = vmatpush.msra.mxu0 %v2533
    %5380 = vmatpush.msra.mxu0 %v2532
    %5381 = vmatmul.f32.gmra.mxu0 %v5363
    %v5382 = vpop.f32.mrf.mxu0
    %v5383 = vadd.f32 0.0, %v5382
    %5384 = vdwg.mxu0
    %5385 = vrot.lane.b32.xlu0 %v5067, 76
    %v5386 = vpop.permute.xlu0 %5385
    %v5387 = vsel %vm2555, %v5386, 0
    %5389 = vmatpush.msra.mxu0 0.0
    %5390 = vmatpush.msra.mxu0 0.0
    %5391 = vmatpush.msra.mxu0 0.0
    %5392 = vmatpush.msra.mxu0 0.0
    %5393 = vmatpush.msra.mxu0 0.0
    %5394 = vmatpush.msra.mxu0 0.0
    %5395 = vmatpush.msra.mxu0 0.0
    %5396 = vmatpush.msra.mxu0 0.0
    %5397 = vmatpush.msra.mxu0 0.0
    %5398 = vmatpush.msra.mxu0 0.0
    %5399 = vmatpush.msra.mxu0 0.0
    %5400 = vmatpush.msra.mxu0 0.0
    %5401 = vmatpush.msra.mxu0 0.0
    %5402 = vmatpush.msra.mxu0 0.0
    %5403 = vmatpush.msra.mxu0 %v2525
    %5404 = vmatpush.msra.mxu0 %v2524
    %5405 = vmatmul.f32.gmra.mxu0 %v5387
    %v5406 = vpop.f32.mrf.mxu0
    %v5407 = vadd.f32 %v5383, %v5406
    %5408 = vdwg.mxu0
    %5409 = vst.msk [vmem:[%s4352 + $0xa] sm:$0x3] %vm2646, %v5359
    %5411 = vrot.lane.b32.xlu0 %v5407, 32
    %v5412 = vpop.permute.xlu0 %5411
    %5414 = vst.msk [vmem:[%s4352 + $0xa] sm:$0x3] %vm2652, %v5412
    %5415 = vrot.lane.b32.xlu0 %v4984, 58
    %v5416 = vpop.permute.xlu0 %5415
    %v5417 = vsel %vm2555, %v5416, 0
    %5419 = vmatpush.msra.mxu0 0.0
    %5420 = vmatpush.msra.mxu0 0.0
    %5421 = vmatpush.msra.mxu0 0.0
    %5422 = vmatpush.msra.mxu0 0.0
    %5423 = vmatpush.msra.mxu0 0.0
    %5424 = vmatpush.msra.mxu0 0.0
    %5425 = vmatpush.msra.mxu0 0.0
    %5426 = vmatpush.msra.mxu0 0.0
    %5427 = vmatpush.msra.mxu0 0.0
    %5428 = vmatpush.msra.mxu0 0.0
    %5429 = vmatpush.msra.mxu0 0.0
    %5430 = vmatpush.msra.mxu0 0.0
    %5431 = vmatpush.msra.mxu0 0.0
    %5432 = vmatpush.msra.mxu0 0.0
    %5433 = vmatpush.msra.mxu0 %v2533
    %5434 = vmatpush.msra.mxu0 %v2532
    %5435 = vmatmul.f32.gmra.mxu0 %v5417
    %v5436 = vpop.f32.mrf.mxu0
    %v5437 = vadd.f32 0.0, %v5436
    %5438 = vdwg.mxu0
    %5439 = vrot.lane.b32.xlu0 %v4258, 58
    %v5440 = vpop.permute.xlu0 %5439
    %v5441 = vsel %vm2555, %v5440, 0
    %5443 = vmatpush.msra.mxu0 0.0
    %5444 = vmatpush.msra.mxu0 0.0
    %5445 = vmatpush.msra.mxu0 0.0
    %5446 = vmatpush.msra.mxu0 0.0
    %5447 = vmatpush.msra.mxu0 0.0
    %5448 = vmatpush.msra.mxu0 0.0
    %5449 = vmatpush.msra.mxu0 0.0
    %5450 = vmatpush.msra.mxu0 0.0
    %5451 = vmatpush.msra.mxu0 0.0
    %5452 = vmatpush.msra.mxu0 0.0
    %5453 = vmatpush.msra.mxu0 0.0
    %5454 = vmatpush.msra.mxu0 0.0
    %5455 = vmatpush.msra.mxu0 0.0
    %5456 = vmatpush.msra.mxu0 0.0
    %5457 = vmatpush.msra.mxu0 %v2525
    %5458 = vmatpush.msra.mxu0 %v2524
    %5459 = vmatmul.f32.gmra.mxu0 %v5441
    %v5460 = vpop.f32.mrf.mxu0
    %v5461 = vadd.f32 %v5437, %v5460
    %5462 = vdwg.mxu0
    %5463 = vrot.lane.b32.xlu0 %v5039, 58
    %v5464 = vpop.permute.xlu0 %5463
    %v5465 = vsel %vm2555, %v5464, 0
    %5467 = vmatpush.msra.mxu0 0.0
    %5468 = vmatpush.msra.mxu0 0.0
    %5469 = vmatpush.msra.mxu0 0.0
    %5470 = vmatpush.msra.mxu0 0.0
    %5471 = vmatpush.msra.mxu0 0.0
    %5472 = vmatpush.msra.mxu0 0.0
    %5473 = vmatpush.msra.mxu0 0.0
    %5474 = vmatpush.msra.mxu0 0.0
    %5475 = vmatpush.msra.mxu0 0.0
    %5476 = vmatpush.msra.mxu0 0.0
    %5477 = vmatpush.msra.mxu0 0.0
    %5478 = vmatpush.msra.mxu0 0.0
    %5479 = vmatpush.msra.mxu0 0.0
    %5480 = vmatpush.msra.mxu0 0.0
    %5481 = vmatpush.msra.mxu0 %v2533
    %5482 = vmatpush.msra.mxu0 %v2532
    %5483 = vmatmul.f32.gmra.mxu0 %v5465
    %v5484 = vpop.f32.mrf.mxu0
    %v5485 = vadd.f32 0.0, %v5484
    %5486 = vdwg.mxu0
    %5487 = vrot.lane.b32.xlu0 %v5067, 58
    %v5488 = vpop.permute.xlu0 %5487
    %v5489 = vsel %vm2555, %v5488, 0
    %5491 = vmatpush.msra.mxu0 0.0
    %5492 = vmatpush.msra.mxu0 0.0
    %5493 = vmatpush.msra.mxu0 0.0
    %5494 = vmatpush.msra.mxu0 0.0
    %5495 = vmatpush.msra.mxu0 0.0
    %5496 = vmatpush.msra.mxu0 0.0
    %5497 = vmatpush.msra.mxu0 0.0
    %5498 = vmatpush.msra.mxu0 0.0
    %5499 = vmatpush.msra.mxu0 0.0
    %5500 = vmatpush.msra.mxu0 0.0
    %5501 = vmatpush.msra.mxu0 0.0
    %5502 = vmatpush.msra.mxu0 0.0
    %5503 = vmatpush.msra.mxu0 0.0
    %5504 = vmatpush.msra.mxu0 0.0
    %5505 = vmatpush.msra.mxu0 %v2525
    %5506 = vmatpush.msra.mxu0 %v2524
    %5507 = vmatmul.f32.gmra.mxu0 %v5489
    %v5508 = vpop.f32.mrf.mxu0
    %v5509 = vadd.f32 %v5485, %v5508
    %5510 = vdwg.mxu0
    %5512 = vrot.lane.b32.xlu0 %v5461, 64
    %v5513 = vpop.permute.xlu0 %5512
    %5515 = vst.msk [vmem:[%s4352 + $0xa] sm:$0x3] %vm2754, %v5513
    %5517 = vrot.lane.b32.xlu0 %v5509, 96
    %v5518 = vpop.permute.xlu0 %5517
    %5520 = vst.msk [vmem:[%s4352 + $0xa] sm:$0x3] %vm2760, %v5518
    %5521 = vrot.lane.b32.xlu0 %v4984, 40
    %v5522 = vpop.permute.xlu0 %5521
    %v5523 = vsel %vm2555, %v5522, 0
    %5525 = vmatpush.msra.mxu0 0.0
    %5526 = vmatpush.msra.mxu0 0.0
    %5527 = vmatpush.msra.mxu0 0.0
    %5528 = vmatpush.msra.mxu0 0.0
    %5529 = vmatpush.msra.mxu0 0.0
    %5530 = vmatpush.msra.mxu0 0.0
    %5531 = vmatpush.msra.mxu0 0.0
    %5532 = vmatpush.msra.mxu0 0.0
    %5533 = vmatpush.msra.mxu0 0.0
    %5534 = vmatpush.msra.mxu0 0.0
    %5535 = vmatpush.msra.mxu0 0.0
    %5536 = vmatpush.msra.mxu0 0.0
    %5537 = vmatpush.msra.mxu0 0.0
    %5538 = vmatpush.msra.mxu0 0.0
    %5539 = vmatpush.msra.mxu0 %v2533
    %5540 = vmatpush.msra.mxu0 %v2532
    %5541 = vmatmul.f32.gmra.mxu0 %v5523
    %v5542 = vpop.f32.mrf.mxu0
    %v5543 = vadd.f32 0.0, %v5542
    %5544 = vdwg.mxu0
    %5545 = vrot.lane.b32.xlu0 %v4258, 40
    %v5546 = vpop.permute.xlu0 %5545
    %v5547 = vsel %vm2555, %v5546, 0
    %5549 = vmatpush.msra.mxu0 0.0
    %5550 = vmatpush.msra.mxu0 0.0
    %5551 = vmatpush.msra.mxu0 0.0
    %5552 = vmatpush.msra.mxu0 0.0
    %5553 = vmatpush.msra.mxu0 0.0
    %5554 = vmatpush.msra.mxu0 0.0
    %5555 = vmatpush.msra.mxu0 0.0
    %5556 = vmatpush.msra.mxu0 0.0
    %5557 = vmatpush.msra.mxu0 0.0
    %5558 = vmatpush.msra.mxu0 0.0
    %5559 = vmatpush.msra.mxu0 0.0
    %5560 = vmatpush.msra.mxu0 0.0
    %5561 = vmatpush.msra.mxu0 0.0
    %5562 = vmatpush.msra.mxu0 0.0
    %5563 = vmatpush.msra.mxu0 %v2525
    %5564 = vmatpush.msra.mxu0 %v2524
    %5565 = vmatmul.f32.gmra.mxu0 %v5547
    %v5566 = vpop.f32.mrf.mxu0
    %v5567 = vadd.f32 %v5543, %v5566
    %5568 = vdwg.mxu0
    %5569 = vrot.lane.b32.xlu0 %v5039, 40
    %v5570 = vpop.permute.xlu0 %5569
    %v5571 = vsel %vm2555, %v5570, 0
    %5573 = vmatpush.msra.mxu0 0.0
    %5574 = vmatpush.msra.mxu0 0.0
    %5575 = vmatpush.msra.mxu0 0.0
    %5576 = vmatpush.msra.mxu0 0.0
    %5577 = vmatpush.msra.mxu0 0.0
    %5578 = vmatpush.msra.mxu0 0.0
    %5579 = vmatpush.msra.mxu0 0.0
    %5580 = vmatpush.msra.mxu0 0.0
    %5581 = vmatpush.msra.mxu0 0.0
    %5582 = vmatpush.msra.mxu0 0.0
    %5583 = vmatpush.msra.mxu0 0.0
    %5584 = vmatpush.msra.mxu0 0.0
    %5585 = vmatpush.msra.mxu0 0.0
    %5586 = vmatpush.msra.mxu0 0.0
    %5587 = vmatpush.msra.mxu0 %v2533
    %5588 = vmatpush.msra.mxu0 %v2532
    %5589 = vmatmul.f32.gmra.mxu0 %v5571
    %v5590 = vpop.f32.mrf.mxu0
    %v5591 = vadd.f32 0.0, %v5590
    %5592 = vdwg.mxu0
    %5593 = vrot.lane.b32.xlu0 %v5067, 40
    %v5594 = vpop.permute.xlu0 %5593
    %v5595 = vsel %vm2555, %v5594, 0
    %5597 = vmatpush.msra.mxu0 0.0
    %5598 = vmatpush.msra.mxu0 0.0
    %5599 = vmatpush.msra.mxu0 0.0
    %5600 = vmatpush.msra.mxu0 0.0
    %5601 = vmatpush.msra.mxu0 0.0
    %5602 = vmatpush.msra.mxu0 0.0
    %5603 = vmatpush.msra.mxu0 0.0
    %5604 = vmatpush.msra.mxu0 0.0
    %5605 = vmatpush.msra.mxu0 0.0
    %5606 = vmatpush.msra.mxu0 0.0
    %5607 = vmatpush.msra.mxu0 0.0
    %5608 = vmatpush.msra.mxu0 0.0
    %5609 = vmatpush.msra.mxu0 0.0
    %5610 = vmatpush.msra.mxu0 0.0
    %5611 = vmatpush.msra.mxu0 %v2525
    %5612 = vmatpush.msra.mxu0 %v2524
    %5613 = vmatmul.f32.gmra.mxu0 %v5595
    %v5614 = vpop.f32.mrf.mxu0
    %v5615 = vadd.f32 %v5591, %v5614
    %5616 = vdwg.mxu0
    %5617 = vst.msk [vmem:[%s4352 + $0xc] sm:$0x3] %vm2646, %v5567
    %5619 = vrot.lane.b32.xlu0 %v5615, 32
    %v5620 = vpop.permute.xlu0 %5619
    %5622 = vst.msk [vmem:[%s4352 + $0xc] sm:$0x3] %vm2652, %v5620
    %5623 = vrot.lane.b32.xlu0 %v4984, 22
    %v5624 = vpop.permute.xlu0 %5623
    %v5625 = vsel %vm2555, %v5624, 0
    %5627 = vmatpush.msra.mxu0 0.0
    %5628 = vmatpush.msra.mxu0 0.0
    %5629 = vmatpush.msra.mxu0 0.0
    %5630 = vmatpush.msra.mxu0 0.0
    %5631 = vmatpush.msra.mxu0 0.0
    %5632 = vmatpush.msra.mxu0 0.0
    %5633 = vmatpush.msra.mxu0 0.0
    %5634 = vmatpush.msra.mxu0 0.0
    %5635 = vmatpush.msra.mxu0 0.0
    %5636 = vmatpush.msra.mxu0 0.0
    %5637 = vmatpush.msra.mxu0 0.0
    %5638 = vmatpush.msra.mxu0 0.0
    %5639 = vmatpush.msra.mxu0 0.0
    %5640 = vmatpush.msra.mxu0 0.0
    %5641 = vmatpush.msra.mxu0 %v2533
    %5642 = vmatpush.msra.mxu0 %v2532
    %5643 = vmatmul.f32.gmra.mxu0 %v5625
    %v5644 = vpop.f32.mrf.mxu0
    %v5645 = vadd.f32 0.0, %v5644
    %5646 = vdwg.mxu0
    %5647 = vrot.lane.b32.xlu0 %v4258, 22
    %v5648 = vpop.permute.xlu0 %5647
    %v5649 = vsel %vm2555, %v5648, 0
    %5651 = vmatpush.msra.mxu0 0.0
    %5652 = vmatpush.msra.mxu0 0.0
    %5653 = vmatpush.msra.mxu0 0.0
    %5654 = vmatpush.msra.mxu0 0.0
    %5655 = vmatpush.msra.mxu0 0.0
    %5656 = vmatpush.msra.mxu0 0.0
    %5657 = vmatpush.msra.mxu0 0.0
    %5658 = vmatpush.msra.mxu0 0.0
    %5659 = vmatpush.msra.mxu0 0.0
    %5660 = vmatpush.msra.mxu0 0.0
    %5661 = vmatpush.msra.mxu0 0.0
    %5662 = vmatpush.msra.mxu0 0.0
    %5663 = vmatpush.msra.mxu0 0.0
    %5664 = vmatpush.msra.mxu0 0.0
    %5665 = vmatpush.msra.mxu0 %v2525
    %5666 = vmatpush.msra.mxu0 %v2524
    %5667 = vmatmul.f32.gmra.mxu0 %v5649
    %v5668 = vpop.f32.mrf.mxu0
    %v5669 = vadd.f32 %v5645, %v5668
    %5670 = vdwg.mxu0
    %5671 = vrot.lane.b32.xlu0 %v5039, 22
    %v5672 = vpop.permute.xlu0 %5671
    %v5673 = vsel %vm2555, %v5672, 0
    %5675 = vmatpush.msra.mxu0 0.0
    %5676 = vmatpush.msra.mxu0 0.0
    %5677 = vmatpush.msra.mxu0 0.0
    %5678 = vmatpush.msra.mxu0 0.0
    %5679 = vmatpush.msra.mxu0 0.0
    %5680 = vmatpush.msra.mxu0 0.0
    %5681 = vmatpush.msra.mxu0 0.0
    %5682 = vmatpush.msra.mxu0 0.0
    %5683 = vmatpush.msra.mxu0 0.0
    %5684 = vmatpush.msra.mxu0 0.0
    %5685 = vmatpush.msra.mxu0 0.0
    %5686 = vmatpush.msra.mxu0 0.0
    %5687 = vmatpush.msra.mxu0 0.0
    %5688 = vmatpush.msra.mxu0 0.0
    %5689 = vmatpush.msra.mxu0 %v2533
    %5690 = vmatpush.msra.mxu0 %v2532
    %5691 = vmatmul.f32.gmra.mxu0 %v5673
    %v5692 = vpop.f32.mrf.mxu0
    %v5693 = vadd.f32 0.0, %v5692
    %5694 = vdwg.mxu0
    %5695 = vrot.lane.b32.xlu0 %v5067, 22
    %v5696 = vpop.permute.xlu0 %5695
    %v5697 = vsel %vm2555, %v5696, 0
    %5699 = vmatpush.msra.mxu0 0.0
    %5700 = vmatpush.msra.mxu0 0.0
    %5701 = vmatpush.msra.mxu0 0.0
    %5702 = vmatpush.msra.mxu0 0.0
    %5703 = vmatpush.msra.mxu0 0.0
    %5704 = vmatpush.msra.mxu0 0.0
    %5705 = vmatpush.msra.mxu0 0.0
    %5706 = vmatpush.msra.mxu0 0.0
    %5707 = vmatpush.msra.mxu0 0.0
    %5708 = vmatpush.msra.mxu0 0.0
    %5709 = vmatpush.msra.mxu0 0.0
    %5710 = vmatpush.msra.mxu0 0.0
    %5711 = vmatpush.msra.mxu0 0.0
    %5712 = vmatpush.msra.mxu0 0.0
    %5713 = vmatpush.msra.mxu0 %v2525
    %5714 = vmatpush.msra.mxu0 %v2524
    %5715 = vmatmul.f32.gmra.mxu0 %v5697
    %v5716 = vpop.f32.mrf.mxu0
    %v5717 = vadd.f32 %v5693, %v5716
    %5718 = vdwg.mxu0
    %5720 = vrot.lane.b32.xlu0 %v5669, 64
    %v5721 = vpop.permute.xlu0 %5720
    %5723 = vst.msk [vmem:[%s4352 + $0xc] sm:$0x3] %vm2754, %v5721
    %5725 = vrot.lane.b32.xlu0 %v5717, 96
    %v5726 = vpop.permute.xlu0 %5725
    %5728 = vst.msk [vmem:[%s4352 + $0xc] sm:$0x3] %vm2760, %v5726
    %v5730 = vrot.slane %v4259, 2
    %5731 = vrot.lane.b32.xlu0 %v4984, 4
    %v5732 = vpop.permute.xlu0 %5731
    %5733 = vrot.lane.b32.xlu0 %v5730, 4
    %v5734 = vpop.permute.xlu0 %5733
    %v5735 = vsel %vm525, %v5732, %v5734
    %v5736 = vsel %vm2555, %v5735, 0
    %5738 = vmatpush.msra.mxu0 0.0
    %5739 = vmatpush.msra.mxu0 0.0
    %5740 = vmatpush.msra.mxu0 0.0
    %5741 = vmatpush.msra.mxu0 0.0
    %5742 = vmatpush.msra.mxu0 0.0
    %5743 = vmatpush.msra.mxu0 0.0
    %5744 = vmatpush.msra.mxu0 0.0
    %5745 = vmatpush.msra.mxu0 0.0
    %5746 = vmatpush.msra.mxu0 0.0
    %5747 = vmatpush.msra.mxu0 0.0
    %5748 = vmatpush.msra.mxu0 0.0
    %5749 = vmatpush.msra.mxu0 0.0
    %5750 = vmatpush.msra.mxu0 0.0
    %5751 = vmatpush.msra.mxu0 0.0
    %5752 = vmatpush.msra.mxu0 %v2533
    %5753 = vmatpush.msra.mxu0 %v2532
    %5754 = vmatmul.f32.gmra.mxu0 %v5736
    %v5755 = vpop.f32.mrf.mxu0
    %v5756 = vadd.f32 0.0, %v5755
    %5757 = vdwg.mxu0
    %5758 = vrot.lane.b32.xlu0 %v4258, 4
    %v5759 = vpop.permute.xlu0 %5758
    %5760 = vrot.lane.b32.xlu0 %v4259, 4
    %v5761 = vpop.permute.xlu0 %5760
    %v5762 = vsel %vm525, %v5759, %v5761
    %v5763 = vsel %vm2555, %v5762, 0
    %5765 = vmatpush.msra.mxu0 0.0
    %5766 = vmatpush.msra.mxu0 0.0
    %5767 = vmatpush.msra.mxu0 0.0
    %5768 = vmatpush.msra.mxu0 0.0
    %5769 = vmatpush.msra.mxu0 0.0
    %5770 = vmatpush.msra.mxu0 0.0
    %5771 = vmatpush.msra.mxu0 0.0
    %5772 = vmatpush.msra.mxu0 0.0
    %5773 = vmatpush.msra.mxu0 0.0
    %5774 = vmatpush.msra.mxu0 0.0
    %5775 = vmatpush.msra.mxu0 0.0
    %5776 = vmatpush.msra.mxu0 0.0
    %5777 = vmatpush.msra.mxu0 0.0
    %5778 = vmatpush.msra.mxu0 0.0
    %5779 = vmatpush.msra.mxu0 %v2525
    %5780 = vmatpush.msra.mxu0 %v2524
    %5781 = vmatmul.f32.gmra.mxu0 %v5763
    %v5782 = vpop.f32.mrf.mxu0
    %v5783 = vadd.f32 %v5756, %v5782
    %5784 = vdwg.mxu0
    %v5785 = vrot.slane %v4259, 6
    %5786 = vrot.lane.b32.xlu0 %v5039, 4
    %v5787 = vpop.permute.xlu0 %5786
    %5788 = vrot.lane.b32.xlu0 %v5785, 4
    %v5789 = vpop.permute.xlu0 %5788
    %v5790 = vsel %vm525, %v5787, %v5789
    %v5791 = vsel %vm2555, %v5790, 0
    %5793 = vmatpush.msra.mxu0 0.0
    %5794 = vmatpush.msra.mxu0 0.0
    %5795 = vmatpush.msra.mxu0 0.0
    %5796 = vmatpush.msra.mxu0 0.0
    %5797 = vmatpush.msra.mxu0 0.0
    %5798 = vmatpush.msra.mxu0 0.0
    %5799 = vmatpush.msra.mxu0 0.0
    %5800 = vmatpush.msra.mxu0 0.0
    %5801 = vmatpush.msra.mxu0 0.0
    %5802 = vmatpush.msra.mxu0 0.0
    %5803 = vmatpush.msra.mxu0 0.0
    %5804 = vmatpush.msra.mxu0 0.0
    %5805 = vmatpush.msra.mxu0 0.0
    %5806 = vmatpush.msra.mxu0 0.0
    %5807 = vmatpush.msra.mxu0 %v2533
    %5808 = vmatpush.msra.mxu0 %v2532
    %5809 = vmatmul.f32.gmra.mxu0 %v5791
    %v5810 = vpop.f32.mrf.mxu0
    %v5811 = vadd.f32 0.0, %v5810
    %5812 = vdwg.mxu0
    %v5813 = vrot.slane %v4259, 4
    %5814 = vrot.lane.b32.xlu0 %v5067, 4
    %v5815 = vpop.permute.xlu0 %5814
    %5816 = vrot.lane.b32.xlu0 %v5813, 4
    %v5817 = vpop.permute.xlu0 %5816
    %v5818 = vsel %vm525, %v5815, %v5817
    %v5819 = vsel %vm2555, %v5818, 0
    %5821 = vmatpush.msra.mxu0 0.0
    %5822 = vmatpush.msra.mxu0 0.0
    %5823 = vmatpush.msra.mxu0 0.0
    %5824 = vmatpush.msra.mxu0 0.0
    %5825 = vmatpush.msra.mxu0 0.0
    %5826 = vmatpush.msra.mxu0 0.0
    %5827 = vmatpush.msra.mxu0 0.0
    %5828 = vmatpush.msra.mxu0 0.0
    %5829 = vmatpush.msra.mxu0 0.0
    %5830 = vmatpush.msra.mxu0 0.0
    %5831 = vmatpush.msra.mxu0 0.0
    %5832 = vmatpush.msra.mxu0 0.0
    %5833 = vmatpush.msra.mxu0 0.0
    %5834 = vmatpush.msra.mxu0 0.0
    %5835 = vmatpush.msra.mxu0 %v2525
    %5836 = vmatpush.msra.mxu0 %v2524
    %5837 = vmatmul.f32.gmra.mxu0 %v5819
    %v5838 = vpop.f32.mrf.mxu0
    %v5839 = vadd.f32 %v5811, %v5838
    %5840 = vdwg.mxu0
    %5841 = vst.msk [vmem:[%s4352 + $0xe] sm:$0x3] %vm2646, %v5783
    %5843 = vrot.lane.b32.xlu0 %v5839, 32
    %v5844 = vpop.permute.xlu0 %5843
    %5846 = vst.msk [vmem:[%s4352 + $0xe] sm:$0x3] %vm2652, %v5844
    %5847 = vrot.lane.b32.xlu0 %v5730, 114
    %v5848 = vpop.permute.xlu0 %5847
    %v5849 = vsel %vm2555, %v5848, 0
    %5851 = vmatpush.msra.mxu0 0.0
    %5852 = vmatpush.msra.mxu0 0.0
    %5853 = vmatpush.msra.mxu0 0.0
    %5854 = vmatpush.msra.mxu0 0.0
    %5855 = vmatpush.msra.mxu0 0.0
    %5856 = vmatpush.msra.mxu0 0.0
    %5857 = vmatpush.msra.mxu0 0.0
    %5858 = vmatpush.msra.mxu0 0.0
    %5859 = vmatpush.msra.mxu0 0.0
    %5860 = vmatpush.msra.mxu0 0.0
    %5861 = vmatpush.msra.mxu0 0.0
    %5862 = vmatpush.msra.mxu0 0.0
    %5863 = vmatpush.msra.mxu0 0.0
    %5864 = vmatpush.msra.mxu0 0.0
    %5865 = vmatpush.msra.mxu0 %v2533
    %5866 = vmatpush.msra.mxu0 %v2532
    %5867 = vmatmul.f32.gmra.mxu0 %v5849
    %v5868 = vpop.f32.mrf.mxu0
    %v5869 = vadd.f32 0.0, %v5868
    %5870 = vdwg.mxu0
    %5871 = vrot.lane.b32.xlu0 %v4259, 114
    %v5872 = vpop.permute.xlu0 %5871
    %v5873 = vsel %vm2555, %v5872, 0
    %5875 = vmatpush.msra.mxu0 0.0
    %5876 = vmatpush.msra.mxu0 0.0
    %5877 = vmatpush.msra.mxu0 0.0
    %5878 = vmatpush.msra.mxu0 0.0
    %5879 = vmatpush.msra.mxu0 0.0
    %5880 = vmatpush.msra.mxu0 0.0
    %5881 = vmatpush.msra.mxu0 0.0
    %5882 = vmatpush.msra.mxu0 0.0
    %5883 = vmatpush.msra.mxu0 0.0
    %5884 = vmatpush.msra.mxu0 0.0
    %5885 = vmatpush.msra.mxu0 0.0
    %5886 = vmatpush.msra.mxu0 0.0
    %5887 = vmatpush.msra.mxu0 0.0
    %5888 = vmatpush.msra.mxu0 0.0
    %5889 = vmatpush.msra.mxu0 %v2525
    %5890 = vmatpush.msra.mxu0 %v2524
    %5891 = vmatmul.f32.gmra.mxu0 %v5873
    %v5892 = vpop.f32.mrf.mxu0
    %v5893 = vadd.f32 %v5869, %v5892
    %5894 = vdwg.mxu0
    %5895 = vrot.lane.b32.xlu0 %v5785, 114
    %v5896 = vpop.permute.xlu0 %5895
    %v5897 = vsel %vm2555, %v5896, 0
    %5899 = vmatpush.msra.mxu0 0.0
    %5900 = vmatpush.msra.mxu0 0.0
    %5901 = vmatpush.msra.mxu0 0.0
    %5902 = vmatpush.msra.mxu0 0.0
    %5903 = vmatpush.msra.mxu0 0.0
    %5904 = vmatpush.msra.mxu0 0.0
    %5905 = vmatpush.msra.mxu0 0.0
    %5906 = vmatpush.msra.mxu0 0.0
    %5907 = vmatpush.msra.mxu0 0.0
    %5908 = vmatpush.msra.mxu0 0.0
    %5909 = vmatpush.msra.mxu0 0.0
    %5910 = vmatpush.msra.mxu0 0.0
    %5911 = vmatpush.msra.mxu0 0.0
    %5912 = vmatpush.msra.mxu0 0.0
    %5913 = vmatpush.msra.mxu0 %v2533
    %5914 = vmatpush.msra.mxu0 %v2532
    %5915 = vmatmul.f32.gmra.mxu0 %v5897
    %v5916 = vpop.f32.mrf.mxu0
    %v5917 = vadd.f32 0.0, %v5916
    %5918 = vdwg.mxu0
    %5919 = vrot.lane.b32.xlu0 %v5813, 114
    %v5920 = vpop.permute.xlu0 %5919
    %v5921 = vsel %vm2555, %v5920, 0
    %5923 = vmatpush.msra.mxu0 0.0
    %5924 = vmatpush.msra.mxu0 0.0
    %5925 = vmatpush.msra.mxu0 0.0
    %5926 = vmatpush.msra.mxu0 0.0
    %5927 = vmatpush.msra.mxu0 0.0
    %5928 = vmatpush.msra.mxu0 0.0
    %5929 = vmatpush.msra.mxu0 0.0
    %5930 = vmatpush.msra.mxu0 0.0
    %5931 = vmatpush.msra.mxu0 0.0
    %5932 = vmatpush.msra.mxu0 0.0
    %5933 = vmatpush.msra.mxu0 0.0
    %5934 = vmatpush.msra.mxu0 0.0
    %5935 = vmatpush.msra.mxu0 0.0
    %5936 = vmatpush.msra.mxu0 0.0
    %5937 = vmatpush.msra.mxu0 %v2525
    %5938 = vmatpush.msra.mxu0 %v2524
    %5939 = vmatmul.f32.gmra.mxu0 %v5921
    %v5940 = vpop.f32.mrf.mxu0
    %v5941 = vadd.f32 %v5917, %v5940
    %5942 = vdwg.mxu0
    %5944 = vrot.lane.b32.xlu0 %v5893, 64
    %v5945 = vpop.permute.xlu0 %5944
    %5947 = vst.msk [vmem:[%s4352 + $0xe] sm:$0x3] %vm2754, %v5945
    %5949 = vrot.lane.b32.xlu0 %v5941, 96
    %v5950 = vpop.permute.xlu0 %5949
    %5952 = vst.msk [vmem:[%s4352 + $0xe] sm:$0x3] %vm2760, %v5950
    // Predicated region
    $region22: #{tpu_custom_call.1} parent=1 // pred_check
      _
    $region23: #{tpu_custom_call.1} parent=1 // pred_check_branch
      %5954 = sbr.rel (0) target = $region25
    $region24: #{tpu_custom_call.1} parent=1 // pred_region
      %5956 = vsyncadd [#allocation6], 0
      %s5957 = sshll.u32 [#allocation7], 4
      %s5958 = int_to_ptr.vmem [resolvable:$true] %s5957
      %s5959 = sshll.u32 %s4, 4
      %s5960 = int_to_ptr.hbm [resolvable:$true] %s5959
      %5965 = dma.vmem_to_hbm [thread:$0]  %s5958, 512, %s5960, [#allocation6], 256, 256, 16
    $region25: #{tpu_custom_call.1} parent=1 // pred_fallthru
      _
    // Predicated region
    $region26: #{tpu_custom_call.1} parent=1 // pred_check
      _
    $region27: #{tpu_custom_call.1} parent=1 // pred_check_branch
      %5967 = sbr.rel (0) target = $region29
    $region28: #{tpu_custom_call.1} parent=1 // pred_region
      %5969 = dma.done [#allocation6], 512
    $region29: #{tpu_custom_call.1} parent=1 // pred_fallthru
      _
    %5970 = vsyncpa [#allocation5], 1
    %5971 = vsyncpa [#allocation6], 1

</llo_original>
